<compile_context>
chip_gen: v6e
topology: v6e:2x2x1
jax: 0.10.0
libtpu: 0.0.40
codegen_flags: <defaults>
</compile_context>

<pallas_src>
import functools

import jax
import jax.numpy as jnp
from jax.experimental import pallas as pl
from jax.experimental.pallas import tpu as pltpu

EPS = 1e-3     # BatchNorm eps used by the PyTorch module
LANE = 128     # TPU lane width; channel dims are padded to multiples of this


def _round_up(x, m):
    return (x + m - 1) // m * m


def _pick_tile_m(m):
    # Largest tile from the candidate list that divides M and leaves >= 2 grid
    # points (so the pipeline / megacore sharding actually does something).
    cands = (2048, 1024, 512, 256, 128, 64, 32, 16, 8)
    for t in cands:
        if m % t == 0 and m // t >= 2:
            return t
    for t in cands:
        if m % t == 0:
            return t
    # Fallback: single grid step (correct, just unpipelined).
    return m


# ---------------------------------------------------------------------------
# Pallas kernels
# ---------------------------------------------------------------------------
def _pw_conv_silu_dual_kernel(x_ref, w_ref, b_ref, o1_ref, o2_ref, *, hp):
    # Fused conv1||conv2: out = SiLU(x @ [W1|W2] + [b1|b2]), split into two
    # lane-dense outputs at the (128-multiple) hp boundary.
    acc = jnp.dot(x_ref[...], w_ref[...], preferred_element_type=jnp.float32)
    acc = acc + b_ref[...]
    acc = acc * jax.nn.sigmoid(acc)                       # SiLU in f32
    o1_ref[...] = acc[:, :hp].astype(o1_ref.dtype)
    o2_ref[...] = acc[:, hp:].astype(o2_ref.dtype)


def _concat_pw_conv_silu_kernel(x1_ref, x2_ref, wa_ref, wb_ref, b_ref, o_ref):
    # Implicit channel concat: out = SiLU(x1 @ Wa + x2 @ Wb + b).
    acc = jnp.dot(x1_ref[...], wa_ref[...], preferred_element_type=jnp.float32)
    acc = acc + jnp.dot(x2_ref[...], wb_ref[...], preferred_element_type=jnp.float32)
    acc = acc + b_ref[...]
    acc = acc * jax.nn.sigmoid(acc)
    o_ref[...] = acc.astype(o_ref.dtype)


def _bottleneck_kernel(x_ref, w1_ref, b1_ref, w3_ref, b3_ref, o_ref,
                       ypad_ref, slab_ref, *, H, W, C, shortcut):
    # One full Bottleneck per grid step (one batch image):
    #   y   = SiLU(x @ W1 + b1)                       (1x1 conv)
    #   out = SiLU(conv3x3(y) + b3) [+ x]             (3x3 SAME conv + residual)
    # The 3x3 conv is an in-VMEM im2col slab (H, W, 9*C) followed by ONE
    # K=9*C MXU matmul -- no HBM im2col, no per-tap small dots.

    # Zero the padded scratch only once; later steps only rewrite the interior,
    # so the halo stays zero.  Requires sequential grid -> "arbitrary" semantics.
    @pl.when(pl.program_id(0) == 0)
    def _():
        ypad_ref[...] = jnp.zeros_like(ypad_ref)

    x = x_ref[0]                                   # (H, W, C) bf16
    x2d = x.reshape(H * W, C)

    y = jnp.dot(x2d, w1_ref[...], preferred_element_type=jnp.float32)
    y = y + b1_ref[...]
    y = y * jax.nn.sigmoid(y)                      # SiLU in f32

    # Interior store into the zero-padded scratch (image lives at [1:H+1, 1:W+1)).
    ypad_ref[1:H + 1, 1:W + 1, :] = y.reshape(H, W, C).astype(jnp.bfloat16)

    # Build the im2col slab: tap t=(di,dj) -> lane block [t*C, (t+1)*C).
    for t in range(9):
        di, dj = divmod(t, 3)
        slab_ref[:, :, t * C:(t + 1) * C] = ypad_ref[di:di + H, dj:dj + W, :]

    # Single K = 9*C matmul covering the entire 3x3 conv.
    slab = slab_ref[...].reshape(H * W, 9 * C)
    acc = jnp.dot(slab, w3_ref[...], preferred_element_type=jnp.float32)
    acc = acc + b3_ref[...]
    acc = acc * jax.nn.sigmoid(acc)
    if shortcut:
        acc = acc + x2d.astype(jnp.float32)
    o_ref[0] = acc.reshape(H, W, C).astype(o_ref.dtype)


# ---------------------------------------------------------------------------
# pallas_call wrappers
# ---------------------------------------------------------------------------
def _pw_conv_silu_dual(x2d, w, b, hp, out_dtype):
    M, K = x2d.shape
    N = w.shape[1]
    assert N == 2 * hp
    tm = _pick_tile_m(M)
    grid = (M // tm,)
    bytes_accessed = (M * K * x2d.dtype.itemsize + K * N * w.dtype.itemsize
                      + M * N * jnp.dtype(out_dtype).itemsize + N * 4)
    kernel = functools.partial(_pw_conv_silu_dual_kernel, hp=hp)
    return pl.pallas_call(
        kernel,
        out_shape=(jax.ShapeDtypeStruct((M, hp), out_dtype),
                   jax.ShapeDtypeStruct((M, hp), out_dtype)),
        grid=grid,
        in_specs=[pl.BlockSpec((tm, K), lambda i: (i, 0)),
                  pl.BlockSpec((K, N), lambda i: (0, 0)),
                  pl.BlockSpec((1, N), lambda i: (0, 0))],
        out_specs=(pl.BlockSpec((tm, hp), lambda i: (i, 0)),
                   pl.BlockSpec((tm, hp), lambda i: (i, 0))),
        compiler_params=pltpu.CompilerParams(dimension_semantics=("parallel",)),
        cost_estimate=pl.CostEstimate(flops=int(2 * M * K * N),
                                      transcendentals=int(M * N),
                                      bytes_accessed=int(bytes_accessed)),
    )(x2d, w, b)


def _concat_pw_conv_silu(x1_2d, x2_2d, wa, wb, b, out_dtype):
    M, K = x1_2d.shape
    N = wa.shape[1]
    tm = _pick_tile_m(M)
    grid = (M // tm,)
    bytes_accessed = (2 * M * K * x1_2d.dtype.itemsize + 2 * K * N * wa.dtype.itemsize
                      + M * N * jnp.dtype(out_dtype).itemsize + N * 4)
    return pl.pallas_call(
        _concat_pw_conv_silu_kernel,
        out_shape=jax.ShapeDtypeStruct((M, N), out_dtype),
        grid=grid,
        in_specs=[pl.BlockSpec((tm, K), lambda i: (i, 0)),
                  pl.BlockSpec((tm, K), lambda i: (i, 0)),
                  pl.BlockSpec((K, N), lambda i: (0, 0)),
                  pl.BlockSpec((K, N), lambda i: (0, 0)),
                  pl.BlockSpec((1, N), lambda i: (0, 0))],
        out_specs=pl.BlockSpec((tm, N), lambda i: (i, 0)),
        compiler_params=pltpu.CompilerParams(dimension_semantics=("parallel",)),
        cost_estimate=pl.CostEstimate(flops=int(4 * M * K * N),
                                      transcendentals=int(M * N),
                                      bytes_accessed=int(bytes_accessed)),
    )(x1_2d, x2_2d, wa, wb, b)


def _bottleneck_fused(x_nhwc, w1, b1, w3, b3, shortcut):
    B, H, W, C = x_nhwc.shape
    assert W % 8 == 0 and C % LANE == 0, "W must be a multiple of 8, C of 128"
    wp = _round_up(W + 2, 8)                       # padded W (tile-aligned planes)
    kernel = functools.partial(_bottleneck_kernel, H=H, W=W, C=C, shortcut=shortcut)
    flops = 2 * B * H * W * C * C * 10             # 1x1 + K=9*C im2col matmul
    bytes_accessed = 2 * B * H * W * C * 2 + 10 * C * C * 2 + 2 * C * 4
    # TODO(synk): for large feature maps (H*W*C beyond a few MiB) switch to a
    # row-tiled grid (B, H//th) with a 1-row halo so the per-step VMEM footprint
    # fits v7x's 64 MiB and the DMA pipeline / both TCs are fed.
    # TODO(synk): at hidden >= 256, load w3 once into scratch (or Buffered(1))
    # to avoid double-buffering the constant-index 3x3 weight block.
    return pl.pallas_call(
        kernel,
        out_shape=jax.ShapeDtypeStruct((B, H, W, C), jnp.bfloat16),
        grid=(B,),
        in_specs=[pl.BlockSpec((1, H, W, C), lambda b: (b, 0, 0, 0)),
                  pl.BlockSpec((C, C), lambda b: (0, 0)),
                  pl.BlockSpec((1, C), lambda b: (0, 0)),
                  pl.BlockSpec((9 * C, C), lambda b: (0, 0)),
                  pl.BlockSpec((1, C), lambda b: (0, 0))],
        out_specs=pl.BlockSpec((1, H, W, C), lambda b: (b, 0, 0, 0)),
        scratch_shapes=[pltpu.VMEM((H + 2, wp, C), jnp.bfloat16),     # padded y
                        pltpu.VMEM((H, W, 9 * C), jnp.bfloat16)],     # im2col slab
        # "arbitrary": the padded scratch is zeroed only on step 0 and must
        # persist sequentially across the batch grid.
        compiler_params=pltpu.CompilerParams(dimension_semantics=("arbitrary",)),
        cost_estimate=pl.CostEstimate(flops=int(flops),
                                      transcendentals=int(2 * B * H * W * C),
                                      bytes_accessed=int(bytes_accessed)),
    )(x_nhwc, w1, b1, w3, b3)


# ---------------------------------------------------------------------------
# Parameter init (BN folded, eval-mode) and packing into padded bf16 kernels
# ---------------------------------------------------------------------------
def init_base_conv(key, cin, cout, ksize):
    kw, kg, kb = jax.random.split(key, 3)
    w = jax.random.normal(kw, (cout, cin, ksize, ksize), jnp.float32)
    w = w * (1.0 / jnp.sqrt(float(cin * ksize * ksize)))
    gamma = 1.0 + 0.1 * jax.random.normal(kg, (cout,), jnp.float32)
    beta = 0.1 * jax.random.normal(kb, (cout,), jnp.float32)
    # BN eval: running_mean=0, running_var=1  ->  scale = gamma/sqrt(1+eps), bias = beta
    scale = gamma / jnp.sqrt(1.0 + EPS)
    w_folded = w * scale[:, None, None, None]
    w_hwio = jnp.transpose(w_folded, (2, 3, 1, 0))      # (kh, kw, cin, cout)
    return {"w_hwio": w_hwio, "b": beta, "ksize": ksize}


def init_csp_layer(key, cin, cout, n=1, shortcut=True, expansion=0.5):
    hidden = int(cout * expansion)
    keys = jax.random.split(key, 3 + 2 * n)
    return {
        "conv1": init_base_conv(keys[0], cin, hidden, 1),
        "conv2": init_base_conv(keys[1], cin, hidden, 1),
        "conv3": init_base_conv(keys[2], 2 * hidden, cout, 1),
        "m": [{"conv1": init_base_conv(keys[3 + 2 * i], hidden, hidden, 1),
               "conv2": init_base_conv(keys[4 + 2 * i], hidden, hidden, 3)}
              for i in range(n)],
        "cin": cin, "cout": cout, "hidden": hidden, "shortcut": shortcut,
    }


def pack_csp_params(p):
    """Zero-pad channel dims to multiples of 128 and cast weights to bf16."""
    cin, cout, hidden, shortcut = p["cin"], p["cout"], p["hidden"], p["shortcut"]
    cin_p = _round_up(cin, LANE)
    hp = _round_up(hidden, LANE)
    cout_p = _round_up(cout, LANE)

    # conv1 || conv2 fused point-wise weight: (cin_p, 2*hp)
    w12 = jnp.zeros((cin_p, 2 * hp), jnp.float32)
    w12 = w12.at[:cin, :hidden].set(p["conv1"]["w_hwio"][0, 0])
    w12 = w12.at[:cin, hp:hp + hidden].set(p["conv2"]["w_hwio"][0, 0])
    b12 = jnp.zeros((1, 2 * hp), jnp.float32)
    b12 = b12.at[0, :hidden].set(p["conv1"]["b"])
    b12 = b12.at[0, hp:hp + hidden].set(p["conv2"]["b"])
    # Padded lanes rely on zero bias (SiLU(0)=0) so padded channels stay zero.
    assert float(jnp.max(jnp.abs(b12[0, hidden:hp]))) == 0.0
    assert float(jnp.max(jnp.abs(b12[0, hp + hidden:]))) == 0.0

    m = []
    for bp in p["m"]:
        w1 = jnp.zeros((hp, hp), jnp.float32).at[:hidden, :hidden].set(bp["conv1"]["w_hwio"][0, 0])
        b1 = jnp.zeros((1, hp), jnp.float32).at[0, :hidden].set(bp["conv1"]["b"])
        # 3x3 weight flattened for the im2col matmul: rows [t*hp, t*hp+hidden)
        # hold tap t = (di, dj) = divmod(t, 3).
        w3 = jnp.zeros((9 * hp, hp), jnp.float32)
        w_hwio = bp["conv2"]["w_hwio"]                   # (3, 3, hidden, hidden)
        for t in range(9):
            di, dj = divmod(t, 3)
            w3 = w3.at[t * hp:t * hp + hidden, :hidden].set(w_hwio[di, dj])
        b3 = jnp.zeros((1, hp), jnp.float32).at[0, :hidden].set(bp["conv2"]["b"])
        assert float(jnp.max(jnp.abs(b1[0, hidden:]))) == 0.0
        assert float(jnp.max(jnp.abs(b3[0, hidden:]))) == 0.0
        m.append({"w1": w1.astype(jnp.bfloat16), "b1": b1,
                  "w3": w3.astype(jnp.bfloat16), "b3": b3})

    w3raw = p["conv3"]["w_hwio"][0, 0]                  # (2*hidden, cout)
    wa = jnp.zeros((hp, cout_p), jnp.float32).at[:hidden, :cout].set(w3raw[:hidden])
    wb = jnp.zeros((hp, cout_p), jnp.float32).at[:hidden, :cout].set(w3raw[hidden:])
    bc = jnp.zeros((1, cout_p), jnp.float32).at[0, :cout].set(p["conv3"]["b"])
    assert float(jnp.max(jnp.abs(bc[0, cout:]))) == 0.0

    return {"w12": w12.astype(jnp.bfloat16), "b12": b12, "m": m,
            "wa": wa.astype(jnp.bfloat16), "wb": wb.astype(jnp.bfloat16), "bc": bc,
            "cin": cin, "cin_p": cin_p, "hp": hp,
            "cout": cout, "cout_p": cout_p, "shortcut": shortcut}


# ---------------------------------------------------------------------------
# Forward pass (Pallas path) and a pure-JAX f32 reference
# ---------------------------------------------------------------------------
def csp_layer_forward(packed, x_nchw):
    x = jnp.transpose(x_nchw, (0, 2, 3, 1))             # NCHW -> NHWC
    B, H, W, cin = x.shape
    cin_p, hp = packed["cin_p"], packed["hp"]
    cout = packed["cout"]
    if cin_p > cin:
        x = jnp.pad(x, ((0, 0), (0, 0), (0, 0), (0, cin_p - cin)))
    M = B * H * W
    x2d = x.reshape(M, cin_p).astype(jnp.bfloat16)

    # Fused conv1 + conv2: one lane-dense matmul, two kernel outputs (no slices).
    x1_2d, x2_2d = _pw_conv_silu_dual(x2d, packed["w12"], packed["b12"], hp,
                                      jnp.bfloat16)                    # (M, hp) x2
    x1 = x1_2d.reshape(B, H, W, hp)

    # Bottleneck chain: each one is a single fused kernel.
    # TODO(synk): for deep chains / accuracy-critical use, carry the residual
    # path in f32 instead of bf16 between bottleneck kernels.
    for bp in packed["m"]:
        x1 = _bottleneck_fused(x1, bp["w1"], bp["b1"], bp["w3"], bp["b3"],
                               packed["shortcut"])
    x1_2d = x1.reshape(M, hp)

    # conv3 over the implicit concat(x1, x2); bf16 store (memory-bound kernel).
    out = _concat_pw_conv_silu(x1_2d, x2_2d, packed["wa"], packed["wb"],
                               packed["bc"], jnp.bfloat16)             # (M, cout_p)
    out = out[:, :cout].reshape(B, H, W, cout)
    return jnp.transpose(out, (0, 3, 1, 2)).astype(jnp.float32)        # NHWC -> NCHW


def _ref_base_conv(x, p):
    ksize = p["ksize"]
    pad = (ksize - 1) // 2
    y = jax.lax.conv_general_dilated(
        x, p["w_hwio"], window_strides=(1, 1),
        padding=[(pad, pad), (pad, pad)],
        dimension_numbers=("NHWC", "HWIO", "NHWC"))
    y = y + p["b"]
    return y * jax.nn.sigmoid(y)


def csp_layer_reference(p, x_nchw):
    x = jnp.transpose(x_nchw, (0, 2, 3, 1))
    x1 = _ref_base_conv(x, p["conv1"])
    x2 = _ref_base_conv(x, p["conv2"])
    for bp in p["m"]:
        y = _ref_base_conv(x1, bp["conv1"])
        y = _ref_base_conv(y, bp["conv2"])
        if p["shortcut"]:
            y = y + x1
        x1 = y
    xcat = jnp.concatenate([x1, x2], axis=-1)
    out = _ref_base_conv(xcat, p["conv3"])
    return jnp.transpose(out, (0, 3, 1, 2))


if __name__ == "__main__":
    key = jax.random.PRNGKey(0)
    pkey, xkey = jax.random.split(key)

    # Small CSPLayer consistent with YOLOX-Tiny (e.g. dark3 CSP): in=out=96, n=1.
    B, Cin, H, W = 2, 96, 16, 16
    Cout, n = 96, 1

    params = init_csp_layer(pkey, Cin, Cout, n=n, shortcut=True)
    packed = pack_csp_params(params)

    x = jax.random.normal(xkey, (B, Cin, H, W), jnp.float32)

    fwd = jax.jit(lambda inp: csp_layer_forward(packed, inp))
    out = jax.block_until_ready(fwd(x))

    assert out.shape == (B, Cout, H, W), out.shape
    assert bool(jnp.all(jnp.isfinite(out)))

    ref = csp_layer_reference(params, x)
    err = float(jnp.max(jnp.abs(out - ref)))
    assert err < 0.2, f"max abs err {err}"

    print("KERNEL_OK")
</pallas_src>

<mosaic_0001>
module attributes {stable_mosaic.version = 11 : i64} {
  func.func @_pw_conv_silu_dual_kernel(%arg0: i32, %arg1: memref<256x128xbf16, #tpu.memory_space<vmem>>, %arg2: memref<128x256xbf16, #tpu.memory_space<vmem>>, %arg3: memref<1x256xf32, #tpu.memory_space<vmem>>, %arg4: memref<256x128xbf16, #tpu.memory_space<vmem>>, %arg5: memref<256x128xbf16, #tpu.memory_space<vmem>>) attributes {dimension_semantics = [#tpu.dimension_semantics<parallel>], iteration_bounds = array<i64: 2>, scalar_prefetch = 0 : i64, scratch_operands = 0 : i64, tpu.core_type = #tpu.core_type<tc>, window_params = [{transform_indices = @transform_0, window_bounds = array<i64: 256, 128>}, {pipeline_mode = #tpu.pipeline_mode<synchronous>, transform_indices = @transform_1, window_bounds = array<i64: 128, 256>}, {pipeline_mode = #tpu.pipeline_mode<synchronous>, transform_indices = @transform_2, window_bounds = array<i64: 1, 256>}, {transform_indices = @transform_3, window_bounds = array<i64: 256, 128>}, {transform_indices = @transform_4, window_bounds = array<i64: 256, 128>}]} {
    %c0 = arith.constant 0 : index
    %c0_0 = arith.constant 0 : index
    %0 = vector.load %arg1[%c0, %c0_0] : memref<256x128xbf16, #tpu.memory_space<vmem>>, vector<256x128xbf16>
    %c0_1 = arith.constant 0 : index
    %c0_2 = arith.constant 0 : index
    %1 = vector.load %arg2[%c0_1, %c0_2] : memref<128x256xbf16, #tpu.memory_space<vmem>>, vector<128x256xbf16>
    %cst = arith.constant dense<0.000000e+00> : vector<256x256xf32>
    %2 = tpu.matmul %0, %1, %cst {dimension_numbers = #tpu.dot_dimension_numbers<[1], [0], [0], [1], [0, 0, 1, 1], [], []>} : vector<256x128xbf16>, vector<128x256xbf16>, vector<256x256xf32> -> vector<256x256xf32>
    %c0_3 = arith.constant 0 : index
    %c0_4 = arith.constant 0 : index
    %3 = vector.load %arg3[%c0_3, %c0_4] : memref<1x256xf32, #tpu.memory_space<vmem>>, vector<1x256xf32>
    %4 = vector.broadcast %3 : vector<1x256xf32> to vector<256x256xf32>
    %5 = arith.addf %2, %4 : vector<256x256xf32>
    %6 = arith.negf %5 : vector<256x256xf32>
    %7 = math.exp %6 : vector<256x256xf32>
    %cst_5 = arith.constant 1.000000e+00 : f32
    %8 = vector.broadcast %cst_5 : f32 to vector<256x256xf32>
    %9 = arith.addf %8, %7 : vector<256x256xf32>
    %10 = arith.divf %8, %9 : vector<256x256xf32>
    %11 = arith.mulf %5, %10 : vector<256x256xf32>
    %12 = vector.extract_strided_slice %11 {offsets = [0, 0], sizes = [256, 128], strides = [1, 1]} : vector<256x256xf32> to vector<256x128xf32>
    %13 = arith.truncf %12 : vector<256x128xf32> to vector<256x128xbf16>
    %c0_6 = arith.constant 0 : index
    %c0_7 = arith.constant 0 : index
    %14 = vector.load %arg4[%c0_6, %c0_7] : memref<256x128xbf16, #tpu.memory_space<vmem>>, vector<256x128xbf16>
    tpu.vector_store %arg4[%c0_6, %c0_7], %13 {strides = array<i32>} : memref<256x128xbf16, #tpu.memory_space<vmem>>, vector<256x128xbf16>,
    %15 = vector.extract_strided_slice %11 {offsets = [0, 128], sizes = [256, 128], strides = [1, 1]} : vector<256x256xf32> to vector<256x128xf32>
    %16 = arith.truncf %15 : vector<256x128xf32> to vector<256x128xbf16>
    %c0_8 = arith.constant 0 : index
    %c0_9 = arith.constant 0 : index
    %17 = vector.load %arg5[%c0_8, %c0_9] : memref<256x128xbf16, #tpu.memory_space<vmem>>, vector<256x128xbf16>
    tpu.vector_store %arg5[%c0_8, %c0_9], %16 {strides = array<i32>} : memref<256x128xbf16, #tpu.memory_space<vmem>>, vector<256x128xbf16>,
    return
  }
  func.func @transform_0(%arg0: i32) -> (i32, i32) {
    %c0_i32 = arith.constant 0 : i32
    %c0_i32_0 = arith.constant 0 : i32
    return %arg0, %c0_i32 : i32, i32
  }
  func.func @transform_1(%arg0: i32) -> (i32, i32) {
    %c0_i32 = arith.constant 0 : i32
    %c0_i32_0 = arith.constant 0 : i32
    %c0_i32_1 = arith.constant 0 : i32
    return %c0_i32, %c0_i32_0 : i32, i32
  }
  func.func @transform_2(%arg0: i32) -> (i32, i32) {
    %c0_i32 = arith.constant 0 : i32
    %c0_i32_0 = arith.constant 0 : i32
    %c0_i32_1 = arith.constant 0 : i32
    return %c0_i32, %c0_i32_0 : i32, i32
  }
  func.func @transform_3(%arg0: i32) -> (i32, i32) {
    %c0_i32 = arith.constant 0 : i32
    %c0_i32_0 = arith.constant 0 : i32
    return %arg0, %c0_i32 : i32, i32
  }
  func.func @transform_4(%arg0: i32) -> (i32, i32) {
    %c0_i32 = arith.constant 0 : i32
    %c0_i32_0 = arith.constant 0 : i32
    return %arg0, %c0_i32 : i32, i32
  }
}

module attributes {stable_mosaic.version = 11 : i64} {
  func.func @_bottleneck_kernel(%arg0: i32, %arg1: memref<1x16x16x128xbf16, #tpu.memory_space<vmem>>, %arg2: memref<128x128xbf16, #tpu.memory_space<vmem>>, %arg3: memref<1x128xf32, #tpu.memory_space<vmem>>, %arg4: memref<1152x128xbf16, #tpu.memory_space<vmem>>, %arg5: memref<1x128xf32, #tpu.memory_space<vmem>>, %arg6: memref<1x16x16x128xbf16, #tpu.memory_space<vmem>>, %arg7: memref<18x24x128xbf16, #tpu.memory_space<vmem>>, %arg8: memref<16x16x1152xbf16, #tpu.memory_space<vmem>>) attributes {dimension_semantics = [#tpu.dimension_semantics<arbitrary>], iteration_bounds = array<i64: 2>, scalar_prefetch = 0 : i64, scratch_operands = 2 : i64, tpu.core_type = #tpu.core_type<tc>, window_params = [{transform_indices = @transform_0, window_bounds = array<i64: 1, 16, 16, 128>}, {pipeline_mode = #tpu.pipeline_mode<synchronous>, transform_indices = @transform_1, window_bounds = array<i64: 128, 128>}, {pipeline_mode = #tpu.pipeline_mode<synchronous>, transform_indices = @transform_2, window_bounds = array<i64: 1, 128>}, {pipeline_mode = #tpu.pipeline_mode<synchronous>, transform_indices = @transform_3, window_bounds = array<i64: 1152, 128>}, {pipeline_mode = #tpu.pipeline_mode<synchronous>, transform_indices = @transform_4, window_bounds = array<i64: 1, 128>}, {transform_indices = @transform_5, window_bounds = array<i64: 1, 16, 16, 128>}]} {
    %c0_i32 = arith.constant 0 : i32
    %0 = arith.cmpi eq, %arg0, %c0_i32 : i32
    %1 = arith.extui %0 : i1 to i32
    %c0_i32_0 = arith.constant 0 : i32
    %2 = arith.cmpi ne, %1, %c0_i32_0 : i32
    scf.if %2 {
      %cst_69 = arith.constant 0.000000e+00 : bf16
      %58 = vector.broadcast %cst_69 : bf16 to vector<18x24x128xbf16>
      %c0_70 = arith.constant 0 : index
      %c0_71 = arith.constant 0 : index
      %c0_72 = arith.constant 0 : index
      %59 = vector.load %arg7[%c0_70, %c0_71, %c0_72] : memref<18x24x128xbf16, #tpu.memory_space<vmem>>, vector<18x24x128xbf16>
      tpu.vector_store %arg7[%c0_70, %c0_71, %c0_72], %58 {strides = array<i32>} : memref<18x24x128xbf16, #tpu.memory_space<vmem>>, vector<18x24x128xbf16>,
    } else {
    }
    %c0 = arith.constant 0 : index
    %c0_1 = arith.constant 0 : index
    %c0_2 = arith.constant 0 : index
    %c0_3 = arith.constant 0 : index
    %3 = vector.load %arg1[%c0, %c0_1, %c0_2, %c0_3] : memref<1x16x16x128xbf16, #tpu.memory_space<vmem>>, vector<1x16x16x128xbf16>
    %4 = vector.shape_cast %3 : vector<1x16x16x128xbf16> to vector<16x16x128xbf16>
    %5 = vector.shape_cast %4 : vector<16x16x128xbf16> to vector<256x128xbf16>
    %c0_4 = arith.constant 0 : index
    %c0_5 = arith.constant 0 : index
    %6 = vector.load %arg2[%c0_4, %c0_5] : memref<128x128xbf16, #tpu.memory_space<vmem>>, vector<128x128xbf16>
    %cst = arith.constant dense<0.000000e+00> : vector<256x128xf32>
    %7 = tpu.matmul %5, %6, %cst {dimension_numbers = #tpu.dot_dimension_numbers<[1], [0], [0], [1], [0, 0, 1, 1], [], []>} : vector<256x128xbf16>, vector<128x128xbf16>, vector<256x128xf32> -> vector<256x128xf32>
    %c0_6 = arith.constant 0 : index
    %c0_7 = arith.constant 0 : index
    %8 = vector.load %arg3[%c0_6, %c0_7] : memref<1x128xf32, #tpu.memory_space<vmem>>, vector<1x128xf32>
    %9 = vector.broadcast %8 : vector<1x128xf32> to vector<256x128xf32>
    %10 = arith.addf %7, %9 : vector<256x128xf32>
    %11 = arith.negf %10 : vector<256x128xf32>
    %12 = math.exp %11 : vector<256x128xf32>
    %cst_8 = arith.constant 1.000000e+00 : f32
    %13 = vector.broadcast %cst_8 : f32 to vector<256x128xf32>
    %14 = arith.addf %13, %12 : vector<256x128xf32>
    %15 = arith.divf %13, %14 : vector<256x128xf32>
    %16 = arith.mulf %10, %15 : vector<256x128xf32>
    %17 = vector.shape_cast %16 : vector<256x128xf32> to vector<16x16x128xf32>
    %18 = arith.truncf %17 : vector<16x16x128xf32> to vector<16x16x128xbf16>
    %c1 = arith.constant 1 : index
    %c1_9 = arith.constant 1 : index
    %c0_10 = arith.constant 0 : index
    %19 = vector.load %arg7[%c1, %c1_9, %c0_10] : memref<18x24x128xbf16, #tpu.memory_space<vmem>>, vector<16x16x128xbf16>
    tpu.vector_store %arg7[%c1, %c1_9, %c0_10], %18 {strides = array<i32>} : memref<18x24x128xbf16, #tpu.memory_space<vmem>>, vector<16x16x128xbf16>,
    %c0_11 = arith.constant 0 : index
    %c0_12 = arith.constant 0 : index
    %c0_13 = arith.constant 0 : index
    %20 = vector.load %arg7[%c0_11, %c0_12, %c0_13] : memref<18x24x128xbf16, #tpu.memory_space<vmem>>, vector<16x16x128xbf16>
    %c0_14 = arith.constant 0 : index
    %c0_15 = arith.constant 0 : index
    %c0_16 = arith.constant 0 : index
    %21 = vector.load %arg8[%c0_14, %c0_15, %c0_16] : memref<16x16x1152xbf16, #tpu.memory_space<vmem>>, vector<16x16x128xbf16>
    tpu.vector_store %arg8[%c0_14, %c0_15, %c0_16], %20 {strides = array<i32>} : memref<16x16x1152xbf16, #tpu.memory_space<vmem>>, vector<16x16x128xbf16>,
    %c0_17 = arith.constant 0 : index
    %c1_18 = arith.constant 1 : index
    %c0_19 = arith.constant 0 : index
    %22 = vector.load %arg7[%c0_17, %c1_18, %c0_19] : memref<18x24x128xbf16, #tpu.memory_space<vmem>>, vector<16x16x128xbf16>
    %c0_20 = arith.constant 0 : index
    %c0_21 = arith.constant 0 : index
    %c128 = arith.constant 128 : index
    %23 = vector.load %arg8[%c0_20, %c0_21, %c128] : memref<16x16x1152xbf16, #tpu.memory_space<vmem>>, vector<16x16x128xbf16>
    tpu.vector_store %arg8[%c0_20, %c0_21, %c128], %22 {strides = array<i32>} : memref<16x16x1152xbf16, #tpu.memory_space<vmem>>, vector<16x16x128xbf16>,
    %c0_22 = arith.constant 0 : index
    %c2 = arith.constant 2 : index
    %c0_23 = arith.constant 0 : index
    %24 = vector.load %arg7[%c0_22, %c2, %c0_23] : memref<18x24x128xbf16, #tpu.memory_space<vmem>>, vector<16x16x128xbf16>
    %c0_24 = arith.constant 0 : index
    %c0_25 = arith.constant 0 : index
    %c256 = arith.constant 256 : index
    %25 = vector.load %arg8[%c0_24, %c0_25, %c256] : memref<16x16x1152xbf16, #tpu.memory_space<vmem>>, vector<16x16x128xbf16>
    tpu.vector_store %arg8[%c0_24, %c0_25, %c256], %24 {strides = array<i32>} : memref<16x16x1152xbf16, #tpu.memory_space<vmem>>, vector<16x16x128xbf16>,
    %c1_26 = arith.constant 1 : index
    %c0_27 = arith.constant 0 : index
    %c0_28 = arith.constant 0 : index
    %26 = vector.load %arg7[%c1_26, %c0_27, %c0_28] : memref<18x24x128xbf16, #tpu.memory_space<vmem>>, vector<16x16x128xbf16>
    %c0_29 = arith.constant 0 : index
    %c0_30 = arith.constant 0 : index
    %c384 = arith.constant 384 : index
    %27 = vector.load %arg8[%c0_29, %c0_30, %c384] : memref<16x16x1152xbf16, #tpu.memory_space<vmem>>, vector<16x16x128xbf16>
    tpu.vector_store %arg8[%c0_29, %c0_30, %c384], %26 {strides = array<i32>} : memref<16x16x1152xbf16, #tpu.memory_space<vmem>>, vector<16x16x128xbf16>,
    %c1_31 = arith.constant 1 : index
    %c1_32 = arith.constant 1 : index
    %c0_33 = arith.constant 0 : index
    %28 = vector.load %arg7[%c1_31, %c1_32, %c0_33] : memref<18x24x128xbf16, #tpu.memory_space<vmem>>, vector<16x16x128xbf16>
    %c0_34 = arith.constant 0 : index
    %c0_35 = arith.constant 0 : index
    %c512 = arith.constant 512 : index
    %29 = vector.load %arg8[%c0_34, %c0_35, %c512] : memref<16x16x1152xbf16, #tpu.memory_space<vmem>>, vector<16x16x128xbf16>
    tpu.vector_store %arg8[%c0_34, %c0_35, %c512], %28 {strides = array<i32>} : memref<16x16x1152xbf16, #tpu.memory_space<vmem>>, vector<16x16x128xbf16>,
    %c1_36 = arith.constant 1 : index
    %c2_37 = arith.constant 2 : index
    %c0_38 = arith.constant 0 : index
    %30 = vector.load %arg7[%c1_36, %c2_37, %c0_38] : memref<18x24x128xbf16, #tpu.memory_space<vmem>>, vector<16x16x128xbf16>
    %c0_39 = arith.constant 0 : index
    %c0_40 = arith.constant 0 : index
    %c640 = arith.constant 640 : index
    %31 = vector.load %arg8[%c0_39, %c0_40, %c640] : memref<16x16x1152xbf16, #tpu.memory_space<vmem>>, vector<16x16x128xbf16>
    tpu.vector_store %arg8[%c0_39, %c0_40, %c640], %30 {strides = array<i32>} : memref<16x16x1152xbf16, #tpu.memory_space<vmem>>, vector<16x16x128xbf16>,
    %c2_41 = arith.constant 2 : index
    %c0_42 = arith.constant 0 : index
    %c0_43 = arith.constant 0 : index
    %32 = vector.load %arg7[%c2_41, %c0_42, %c0_43] : memref<18x24x128xbf16, #tpu.memory_space<vmem>>, vector<16x16x128xbf16>
    %c0_44 = arith.constant 0 : index
    %c0_45 = arith.constant 0 : index
    %c768 = arith.constant 768 : index
    %33 = vector.load %arg8[%c0_44, %c0_45, %c768] : memref<16x16x1152xbf16, #tpu.memory_space<vmem>>, vector<16x16x128xbf16>
    tpu.vector_store %arg8[%c0_44, %c0_45, %c768], %32 {strides = array<i32>} : memref<16x16x1152xbf16, #tpu.memory_space<vmem>>, vector<16x16x128xbf16>,
    %c2_46 = arith.constant 2 : index
    %c1_47 = arith.constant 1 : index
    %c0_48 = arith.constant 0 : index
    %34 = vector.load %arg7[%c2_46, %c1_47, %c0_48] : memref<18x24x128xbf16, #tpu.memory_space<vmem>>, vector<16x16x128xbf16>
    %c0_49 = arith.constant 0 : index
    %c0_50 = arith.constant 0 : index
    %c896 = arith.constant 896 : index
    %35 = vector.load %arg8[%c0_49, %c0_50, %c896] : memref<16x16x1152xbf16, #tpu.memory_space<vmem>>, vector<16x16x128xbf16>
    tpu.vector_store %arg8[%c0_49, %c0_50, %c896], %34 {strides = array<i32>} : memref<16x16x1152xbf16, #tpu.memory_space<vmem>>, vector<16x16x128xbf16>,
    %c2_51 = arith.constant 2 : index
    %c2_52 = arith.constant 2 : index
    %c0_53 = arith.constant 0 : index
    %36 = vector.load %arg7[%c2_51, %c2_52, %c0_53] : memref<18x24x128xbf16, #tpu.memory_space<vmem>>, vector<16x16x128xbf16>
    %c0_54 = arith.constant 0 : index
    %c0_55 = arith.constant 0 : index
    %c1024 = arith.constant 1024 : index
    %37 = vector.load %arg8[%c0_54, %c0_55, %c1024] : memref<16x16x1152xbf16, #tpu.memory_space<vmem>>, vector<16x16x128xbf16>
    tpu.vector_store %arg8[%c0_54, %c0_55, %c1024], %36 {strides = array<i32>} : memref<16x16x1152xbf16, #tpu.memory_space<vmem>>, vector<16x16x128xbf16>,
    %c0_56 = arith.constant 0 : index
    %c0_57 = arith.constant 0 : index
    %c0_58 = arith.constant 0 : index
    %38 = vector.load %arg8[%c0_56, %c0_57, %c0_58] : memref<16x16x1152xbf16, #tpu.memory_space<vmem>>, vector<16x16x1152xbf16>
    %39 = vector.shape_cast %38 : vector<16x16x1152xbf16> to vector<256x1152xbf16>
    %c0_59 = arith.constant 0 : index
    %c0_60 = arith.constant 0 : index
    %40 = vector.load %arg4[%c0_59, %c0_60] : memref<1152x128xbf16, #tpu.memory_space<vmem>>, vector<1152x128xbf16>
    %cst_61 = arith.constant dense<0.000000e+00> : vector<256x128xf32>
    %41 = tpu.matmul %39, %40, %cst_61 {dimension_numbers = #tpu.dot_dimension_numbers<[1], [0], [0], [1], [0, 0, 1, 1], [], []>} : vector<256x1152xbf16>, vector<1152x128xbf16>, vector<256x128xf32> -> vector<256x128xf32>
    %c0_62 = arith.constant 0 : index
    %c0_63 = arith.constant 0 : index
    %42 = vector.load %arg5[%c0_62, %c0_63] : memref<1x128xf32, #tpu.memory_space<vmem>>, vector<1x128xf32>
    %43 = vector.broadcast %42 : vector<1x128xf32> to vector<256x128xf32>
    %44 = arith.addf %41, %43 : vector<256x128xf32>
    %45 = arith.negf %44 : vector<256x128xf32>
    %46 = math.exp %45 : vector<256x128xf32>
    %cst_64 = arith.constant 1.000000e+00 : f32
    %47 = vector.broadcast %cst_64 : f32 to vector<256x128xf32>
    %48 = arith.addf %47, %46 : vector<256x128xf32>
    %49 = arith.divf %47, %48 : vector<256x128xf32>
    %50 = arith.mulf %44, %49 : vector<256x128xf32>
    %51 = arith.extf %5 : vector<256x128xbf16> to vector<256x128xf32>
    %52 = arith.addf %50, %51 : vector<256x128xf32>
    %53 = vector.shape_cast %52 : vector<256x128xf32> to vector<16x16x128xf32>
    %54 = arith.truncf %53 : vector<16x16x128xf32> to vector<16x16x128xbf16>
    %c0_65 = arith.constant 0 : index
    %c0_66 = arith.constant 0 : index
    %c0_67 = arith.constant 0 : index
    %c0_68 = arith.constant 0 : index
    %55 = vector.load %arg6[%c0_65, %c0_66, %c0_67, %c0_68] : memref<1x16x16x128xbf16, #tpu.memory_space<vmem>>, vector<1x16x16x128xbf16>
    %56 = vector.shape_cast %55 : vector<1x16x16x128xbf16> to vector<16x16x128xbf16>
    %57 = vector.shape_cast %54 : vector<16x16x128xbf16> to vector<1x16x16x128xbf16>
    tpu.vector_store %arg6[%c0_65, %c0_66, %c0_67, %c0_68], %57 {strides = array<i32>} : memref<1x16x16x128xbf16, #tpu.memory_space<vmem>>, vector<1x16x16x128xbf16>,
    return
  }
  func.func @transform_0(%arg0: i32) -> (i32, i32, i32, i32) {
    %c0_i32 = arith.constant 0 : i32
    %c0_i32_0 = arith.constant 0 : i32
    %c0_i32_1 = arith.constant 0 : i32
    %c0_i32_2 = arith.constant 0 : i32
    return %arg0, %c0_i32, %c0_i32_0, %c0_i32_1 : i32, i32, i32, i32
  }
  func.func @transform_1(%arg0: i32) -> (i32, i32) {
    %c0_i32 = arith.constant 0 : i32
    %c0_i32_0 = arith.constant 0 : i32
    %c0_i32_1 = arith.constant 0 : i32
    return %c0_i32, %c0_i32_0 : i32, i32
  }
  func.func @transform_2(%arg0: i32) -> (i32, i32) {
    %c0_i32 = arith.constant 0 : i32
    %c0_i32_0 = arith.constant 0 : i32
    %c0_i32_1 = arith.constant 0 : i32
    return %c0_i32, %c0_i32_0 : i32, i32
  }
  func.func @transform_3(%arg0: i32) -> (i32, i32) {
    %c0_i32 = arith.constant 0 : i32
    %c0_i32_0 = arith.constant 0 : i32
    %c0_i32_1 = arith.constant 0 : i32
    return %c0_i32, %c0_i32_0 : i32, i32
  }
  func.func @transform_4(%arg0: i32) -> (i32, i32) {
    %c0_i32 = arith.constant 0 : i32
    %c0_i32_0 = arith.constant 0 : i32
    %c0_i32_1 = arith.constant 0 : i32
    return %c0_i32, %c0_i32_0 : i32, i32
  }
  func.func @transform_5(%arg0: i32) -> (i32, i32, i32, i32) {
    %c0_i32 = arith.constant 0 : i32
    %c0_i32_0 = arith.constant 0 : i32
    %c0_i32_1 = arith.constant 0 : i32
    %c0_i32_2 = arith.constant 0 : i32
    return %arg0, %c0_i32, %c0_i32_0, %c0_i32_1 : i32, i32, i32, i32
  }
}

module attributes {stable_mosaic.version = 11 : i64} {
  func.func @_concat_pw_conv_silu_kernel(%arg0: i32, %arg1: memref<256x128xbf16, #tpu.memory_space<vmem>>, %arg2: memref<256x128xbf16, #tpu.memory_space<vmem>>, %arg3: memref<128x128xbf16, #tpu.memory_space<vmem>>, %arg4: memref<128x128xbf16, #tpu.memory_space<vmem>>, %arg5: memref<1x128xf32, #tpu.memory_space<vmem>>, %arg6: memref<256x128xbf16, #tpu.memory_space<vmem>>) attributes {dimension_semantics = [#tpu.dimension_semantics<parallel>], iteration_bounds = array<i64: 2>, scalar_prefetch = 0 : i64, scratch_operands = 0 : i64, tpu.core_type = #tpu.core_type<tc>, window_params = [{transform_indices = @transform_0, window_bounds = array<i64: 256, 128>}, {transform_indices = @transform_1, window_bounds = array<i64: 256, 128>}, {pipeline_mode = #tpu.pipeline_mode<synchronous>, transform_indices = @transform_2, window_bounds = array<i64: 128, 128>}, {pipeline_mode = #tpu.pipeline_mode<synchronous>, transform_indices = @transform_3, window_bounds = array<i64: 128, 128>}, {pipeline_mode = #tpu.pipeline_mode<synchronous>, transform_indices = @transform_4, window_bounds = array<i64: 1, 128>}, {transform_indices = @transform_5, window_bounds = array<i64: 256, 128>}]} {
    %c0 = arith.constant 0 : index
    %c0_0 = arith.constant 0 : index
    %0 = vector.load %arg1[%c0, %c0_0] : memref<256x128xbf16, #tpu.memory_space<vmem>>, vector<256x128xbf16>
    %c0_1 = arith.constant 0 : index
    %c0_2 = arith.constant 0 : index
    %1 = vector.load %arg3[%c0_1, %c0_2] : memref<128x128xbf16, #tpu.memory_space<vmem>>, vector<128x128xbf16>
    %cst = arith.constant dense<0.000000e+00> : vector<256x128xf32>
    %2 = tpu.matmul %0, %1, %cst {dimension_numbers = #tpu.dot_dimension_numbers<[1], [0], [0], [1], [0, 0, 1, 1], [], []>} : vector<256x128xbf16>, vector<128x128xbf16>, vector<256x128xf32> -> vector<256x128xf32>
    %c0_3 = arith.constant 0 : index
    %c0_4 = arith.constant 0 : index
    %3 = vector.load %arg2[%c0_3, %c0_4] : memref<256x128xbf16, #tpu.memory_space<vmem>>, vector<256x128xbf16>
    %c0_5 = arith.constant 0 : index
    %c0_6 = arith.constant 0 : index
    %4 = vector.load %arg4[%c0_5, %c0_6] : memref<128x128xbf16, #tpu.memory_space<vmem>>, vector<128x128xbf16>
    %cst_7 = arith.constant dense<0.000000e+00> : vector<256x128xf32>
    %5 = tpu.matmul %3, %4, %cst_7 {dimension_numbers = #tpu.dot_dimension_numbers<[1], [0], [0], [1], [0, 0, 1, 1], [], []>} : vector<256x128xbf16>, vector<128x128xbf16>, vector<256x128xf32> -> vector<256x128xf32>
    %6 = arith.addf %2, %5 : vector<256x128xf32>
    %c0_8 = arith.constant 0 : index
    %c0_9 = arith.constant 0 : index
    %7 = vector.load %arg5[%c0_8, %c0_9] : memref<1x128xf32, #tpu.memory_space<vmem>>, vector<1x128xf32>
    %8 = vector.broadcast %7 : vector<1x128xf32> to vector<256x128xf32>
    %9 = arith.addf %6, %8 : vector<256x128xf32>
    %10 = arith.negf %9 : vector<256x128xf32>
    %11 = math.exp %10 : vector<256x128xf32>
    %cst_10 = arith.constant 1.000000e+00 : f32
    %12 = vector.broadcast %cst_10 : f32 to vector<256x128xf32>
    %13 = arith.addf %12, %11 : vector<256x128xf32>
    %14 = arith.divf %12, %13 : vector<256x128xf32>
    %15 = arith.mulf %9, %14 : vector<256x128xf32>
    %16 = arith.truncf %15 : vector<256x128xf32> to vector<256x128xbf16>
    %c0_11 = arith.constant 0 : index
    %c0_12 = arith.constant 0 : index
    %17 = vector.load %arg6[%c0_11, %c0_12] : memref<256x128xbf16, #tpu.memory_space<vmem>>, vector<256x128xbf16>
    tpu.vector_store %arg6[%c0_11, %c0_12], %16 {strides = array<i32>} : memref<256x128xbf16, #tpu.memory_space<vmem>>, vector<256x128xbf16>,
    return
  }
  func.func @transform_0(%arg0: i32) -> (i32, i32) {
    %c0_i32 = arith.constant 0 : i32
    %c0_i32_0 = arith.constant 0 : i32
    return %arg0, %c0_i32 : i32, i32
  }
  func.func @transform_1(%arg0: i32) -> (i32, i32) {
    %c0_i32 = arith.constant 0 : i32
    %c0_i32_0 = arith.constant 0 : i32
    return %arg0, %c0_i32 : i32, i32
  }
  func.func @transform_2(%arg0: i32) -> (i32, i32) {
    %c0_i32 = arith.constant 0 : i32
    %c0_i32_0 = arith.constant 0 : i32
    %c0_i32_1 = arith.constant 0 : i32
    return %c0_i32, %c0_i32_0 : i32, i32
  }
  func.func @transform_3(%arg0: i32) -> (i32, i32) {
    %c0_i32 = arith.constant 0 : i32
    %c0_i32_0 = arith.constant 0 : i32
    %c0_i32_1 = arith.constant 0 : i32
    return %c0_i32, %c0_i32_0 : i32, i32
  }
  func.func @transform_4(%arg0: i32) -> (i32, i32) {
    %c0_i32 = arith.constant 0 : i32
    %c0_i32_0 = arith.constant 0 : i32
    %c0_i32_1 = arith.constant 0 : i32
    return %c0_i32, %c0_i32_0 : i32, i32
  }
  func.func @transform_5(%arg0: i32) -> (i32, i32) {
    %c0_i32 = arith.constant 0 : i32
    %c0_i32_0 = arith.constant 0 : i32
    return %arg0, %c0_i32 : i32, i32
  }
}

</mosaic_0001>

<llo_original>
// kernel: _lambda_.3
$region0: #{_lambda_.3}
  #allocation0 [shape = 'u32[]', space=smem, size = 0x4, offset = 0x4, fixed_abs, tag = 'smem constant byte address 0x4 - core index']
  #allocation1 [shape = 'u32[144,128]{1,0:T(1,128)}', space=vmem, size = 0x12000, scoped, tag = 'internal scratch']
  %s0 = inlined_call_operand.vmem [shape: bf16[512,128], index: 0, kind: input, shape index: {}]
  %s1 = inlined_call_operand.vmem [shape: bf16[128,256], index: 1, kind: input, shape index: {}]
  %s2 = inlined_call_operand.vmem [shape: f32[1,256], index: 2, kind: input, shape index: {}]
  %s3 = inlined_call_operand.vmem [shape: bf16[512,128], index: 3, kind: output, shape index: {0}]
  %s4 = inlined_call_operand.vmem [shape: bf16[512,128], index: 4, kind: output, shape index: {1}]
  %5 = xla_tuple %s3, %s4
  %s6 = sld [smem:[#allocation0]]
  $region53: #{_lambda_.3} parent=0
    _
  %s8 = ssub.s32 1, %s6
  %s9 = scalar_select 0, %s8, %s6
  loop: start=0, step=1, limit=4
  $region2: #{_lambda_.3} parent=0 // loop_pre_header
    _
  $region3: #{_lambda_.3} parent=0 // loop_header
    %s11 = sphi 0, %s15
    %p12 = scmp.ge.s32.totalorder %s11, 4
    %s21 = sphi 0, %s23
    %s24 = sphi 0, %s21
    %s25 = sphi 0, %s24
    %s41 = sphi 0, %s25
    %s45 = sphi 0, %s45
    %s47 = sphi 0, %s45
    %s48 = sphi 0, %s47
    %s62 = sphi 0, %s48
    %s66 = sphi 0, %s66
    %s68 = sphi 0, %s66
    %s69 = sphi 0, %s68
    %s83 = sphi 0, %s69
    %s89 = sphi 0, %s91
    %s92 = sphi 0, %s89
    %s93 = sphi 0, %s92
    %s109 = sphi 0, %s93
    %s115 = sphi 0, %s117
    %s118 = sphi 0, %s115
    %s119 = sphi 0, %s118
    %s135 = sphi 0, %s119
  $region4: #{_lambda_.3} parent=0 // loop_header_branch
    %14 = sbr.rel (%p12) target = $region8
  $region5: #{_lambda_.3} parent=0 // loop_body
    %s16 = ssub.s32 %s11, 1
    %s17 = ssub.s32 %s11, 2
    %s18 = sadd.s32 %s11, 1
    %s19 = ssub.s32 %s11, %s18
    %p20 = scmp.eq.s32.totalorder %s19, 0
    %s22 = sadd.s32 %s21, 1
    %s23 = scalar_select %p20, %s21, %s22
    %p26 = pneg %p20
    %p27 = scmp.eq.s32.totalorder %s11, 1
    %p28 = por %p26, %p27
    %p29 = scmp.ne.s32.totalorder %s21, %s24
    %p30 = scmp.eq.s32.totalorder %s11, 0
    %p31 = por %p29, %p30
    %p32 = scmp.ne.s32.totalorder %s21, %s24
    %p33 = scmp.eq.s32.totalorder %s16, 1
    %p34 = por %p32, %p33
    %p35 = scmp.ne.s32.totalorder %s24, %s25
    %p36 = scmp.eq.s32.totalorder %s16, 0
    %p37 = por %p35, %p36
    %p38 = scmp.ne.s32.totalorder %s24, %s25
    %p39 = scmp.eq.s32.totalorder %s17, 1
    %p40 = por %p38, %p39
    %p42 = scmp.ne.s32.totalorder %s25, %s41
    %p43 = scmp.eq.s32.totalorder %s17, 0
    %p44 = por %p42, %p43
    %s46 = sadd.s32 %s45, 1
    %p49 = scmp.eq.s32.totalorder %s11, 1
    %p50 = scmp.ne.s32.totalorder %s45, %s47
    %p51 = scmp.eq.s32.totalorder %s11, 0
    %p52 = por %p50, %p51
    %p53 = scmp.ne.s32.totalorder %s45, %s47
    %p54 = scmp.eq.s32.totalorder %s16, 1
    %p55 = por %p53, %p54
    %p56 = scmp.ne.s32.totalorder %s47, %s48
    %p57 = scmp.eq.s32.totalorder %s16, 0
    %p58 = por %p56, %p57
    %p59 = scmp.ne.s32.totalorder %s47, %s48
    %p60 = scmp.eq.s32.totalorder %s17, 1
    %p61 = por %p59, %p60
    %p63 = scmp.ne.s32.totalorder %s48, %s62
    %p64 = scmp.eq.s32.totalorder %s17, 0
    %p65 = por %p63, %p64
    %s67 = sadd.s32 %s66, 1
    %p70 = scmp.eq.s32.totalorder %s11, 1
    %p71 = scmp.ne.s32.totalorder %s66, %s68
    %p72 = scmp.eq.s32.totalorder %s11, 0
    %p73 = por %p71, %p72
    %p74 = scmp.ne.s32.totalorder %s66, %s68
    %p75 = scmp.eq.s32.totalorder %s16, 1
    %p76 = por %p74, %p75
    %p77 = scmp.ne.s32.totalorder %s68, %s69
    %p78 = scmp.eq.s32.totalorder %s16, 0
    %p79 = por %p77, %p78
    %p80 = scmp.ne.s32.totalorder %s68, %s69
    %p81 = scmp.eq.s32.totalorder %s17, 1
    %p82 = por %p80, %p81
    %p84 = scmp.ne.s32.totalorder %s69, %s83
    %p85 = scmp.eq.s32.totalorder %s17, 0
    %p86 = por %p84, %p85
    %s87 = ssub.s32 %s11, %s18
    %p88 = scmp.eq.s32.totalorder %s87, 0
    %s90 = sadd.s32 %s89, 1
    %s91 = scalar_select %p88, %s89, %s90
    %p94 = pneg %p88
    %p95 = scmp.eq.s32.totalorder %s11, 1
    %p96 = por %p94, %p95
    %p97 = scmp.ne.s32.totalorder %s89, %s92
    %p98 = scmp.eq.s32.totalorder %s11, 0
    %p99 = por %p97, %p98
    %p100 = scmp.ne.s32.totalorder %s89, %s92
    %p101 = scmp.eq.s32.totalorder %s16, 1
    %p102 = por %p100, %p101
    %p103 = scmp.ne.s32.totalorder %s92, %s93
    %p104 = scmp.eq.s32.totalorder %s16, 0
    %p105 = por %p103, %p104
    %p106 = scmp.ne.s32.totalorder %s92, %s93
    %p107 = scmp.eq.s32.totalorder %s17, 1
    %p108 = por %p106, %p107
    %p110 = scmp.ne.s32.totalorder %s93, %s109
    %p111 = scmp.eq.s32.totalorder %s17, 0
    %p112 = por %p110, %p111
    %s113 = ssub.s32 %s11, %s18
    %p114 = scmp.eq.s32.totalorder %s113, 0
    %s116 = sadd.s32 %s115, 1
    %s117 = scalar_select %p114, %s115, %s116
    %p120 = pneg %p114
    %p121 = scmp.eq.s32.totalorder %s11, 1
    %p122 = por %p120, %p121
    %p123 = scmp.ne.s32.totalorder %s115, %s118
    %p124 = scmp.eq.s32.totalorder %s11, 0
    %p125 = por %p123, %p124
    %p126 = scmp.ne.s32.totalorder %s115, %s118
    %p127 = scmp.eq.s32.totalorder %s16, 1
    %p128 = por %p126, %p127
    %p129 = scmp.ne.s32.totalorder %s118, %s119
    %p130 = scmp.eq.s32.totalorder %s16, 0
    %p131 = por %p129, %p130
    %p132 = scmp.ne.s32.totalorder %s118, %s119
    %p133 = scmp.eq.s32.totalorder %s17, 1
    %p134 = por %p132, %p133
    %p136 = scmp.ne.s32.totalorder %s119, %s135
    %p137 = scmp.eq.s32.totalorder %s17, 0
    %p138 = por %p136, %p137
    %p139 = scmp.le.s32.totalorder 1, %s11
    %p140 = scmp.lt.s32.totalorder %s11, 3
    %p141 = pnand %p139, %p140
    %p142 = pneg %p141
    // Predicated region
    $region9: #{_lambda_.3} parent=5 // pred_check
      _
    $region10: #{_lambda_.3} parent=5 // pred_check_branch
      %144 = sbr.rel (%p141) target = $region12
    $region11: #{_lambda_.3} parent=5 // pred_region
      %s145 = ssub.s32 %s11, 1
      // Predicated region
      $region13: #{_lambda_.3} parent=11 // pred_check
        %p146 = pneg %p58
      $region14: #{_lambda_.3} parent=11 // pred_check_branch
        %148 = sbr.rel (%p146) target = $region16
      $region15: #{_lambda_.3} parent=11 // pred_region
        _
      $region16: #{_lambda_.3} parent=11 // pred_fallthru
        _
      // Predicated region
      $region17: #{_lambda_.3} parent=11 // pred_check
        %p149 = pneg %p79
      $region18: #{_lambda_.3} parent=11 // pred_check_branch
        %151 = sbr.rel (%p149) target = $region20
      $region19: #{_lambda_.3} parent=11 // pred_region
        _
      $region20: #{_lambda_.3} parent=11 // pred_fallthru
        _
    $region12: #{_lambda_.3} parent=5 // pred_fallthru
      _
    %p152 = scmp.lt.s32.totalorder %s11, 2
    // Predicated region
    $region21: #{_lambda_.3} parent=5 // pred_check
      %p153 = pneg %p152
    $region22: #{_lambda_.3} parent=5 // pred_check_branch
      %155 = sbr.rel (%p153) target = $region24
    $region23: #{_lambda_.3} parent=5 // pred_region
      // Predicated region
      $region25: #{_lambda_.3} parent=23 // pred_check
        %p156 = pneg %p31
      $region26: #{_lambda_.3} parent=23 // pred_check_branch
        %158 = sbr.rel (%p156) target = $region28
      $region27: #{_lambda_.3} parent=23 // pred_region
        %s159 = smul.u32 32, %s11
        %p160 = scmp.lt.s32.totalorder %s159, 63
        %s161 = scalar_select %p160, %s159, 63
        %s162 = smul.addr %s161, 4
        %s163 = scalar_lea.vmem %s0, %s162
        %s164 = smul.u32 32, %s11
      $region28: #{_lambda_.3} parent=23 // pred_fallthru
        _
    $region24: #{_lambda_.3} parent=5 // pred_fallthru
      _
    %p165 = scmp.le.s32.totalorder 1, %s11
    %p166 = scmp.lt.s32.totalorder %s11, 3
    %p167 = pnand %p165, %p166
    %p168 = pneg %p167
    // Predicated region
    $region29: #{_lambda_.3} parent=5 // pred_check
      _
    $region30: #{_lambda_.3} parent=5 // pred_check_branch
      %170 = sbr.rel (%p167) target = $region32
    $region31: #{_lambda_.3} parent=5 // pred_region
      %s171 = ssub.s32 %s11, 1
      %s172 = smul.u32 32, %s16
      %p173 = scmp.lt.s32.totalorder %s172, 63
      %s174 = scalar_select %p173, %s172, 63
      %s175 = smul.addr %s174, 4
      %s176 = scalar_lea.vmem %s0, %s175
      %p177 = pneg %p37
      %p178 = pneg %p34
      %p179 = pneg %p58
      %p180 = pneg %p55
      %p181 = pneg %p79
      %p182 = pneg %p76
      %p183 = pneg %p105
      %p184 = pneg %p102
      %s185 = smul.u32 32, %s16
      %p186 = scmp.lt.s32.totalorder %s185, 63
      %s187 = scalar_select %p186, %s185, 63
      %s188 = smul.addr %s187, 4
      %s189 = scalar_lea.vmem %s3, %s188
      %p190 = pneg %p131
      %p191 = pneg %p128
      %s192 = smul.u32 32, %s16
      %p193 = scmp.lt.s32.totalorder %s192, 63
      %s194 = scalar_select %p193, %s192, 63
      %s195 = smul.addr %s194, 4
      %s196 = scalar_lea.vmem %s4, %s195
      %s197 = smul.u32 32, %s16
      %p198 = scmp.lt.s32.totalorder %s197, 63
      %s199 = scalar_select %p198, %s197, 63
      %s200 = smul.addr %s199, 4
      %s201 = scalar_lea.vmem %s0, %s200
      %s202 = smul.u32 32, %s16
      %s203 = smul.u32 32, %s16
      %p204 = scmp.lt.s32.totalorder %s203, 63
      %s205 = scalar_select %p204, %s203, 63
      %s206 = smul.addr %s205, 4
      %s207 = scalar_lea.vmem %s3, %s206
      %s208 = smul.u32 32, %s16
      %s209 = smul.u32 32, %s16
      %p210 = scmp.lt.s32.totalorder %s209, 63
      %s211 = scalar_select %p210, %s209, 63
      %s212 = smul.addr %s211, 4
      %s213 = scalar_lea.vmem %s4, %s212
      %s214 = smul.u32 32, %s16
      %v216 = vld [vmem:[%s201] sm:$0xf]
      %v217 = vld [vmem:[%s201 + $0x4] sm:$0xf]
      %v218 = vld [vmem:[%s201 + $0x8] sm:$0xf]
      %v219 = vld [vmem:[%s201 + $0xc] sm:$0xf]
      %v220 = vld [vmem:[%s201 + $0x10] sm:$0xf]
      %v221 = vld [vmem:[%s201 + $0x14] sm:$0xf]
      %v222 = vld [vmem:[%s201 + $0x18] sm:$0xf]
      %v223 = vld [vmem:[%s201 + $0x1c] sm:$0xf]
      %v224 = vld [vmem:[%s201 + $0x20] sm:$0xf]
      %v225 = vld [vmem:[%s201 + $0x24] sm:$0xf]
      %v226 = vld [vmem:[%s201 + $0x28] sm:$0xf]
      %v227 = vld [vmem:[%s201 + $0x2c] sm:$0xf]
      %v228 = vld [vmem:[%s201 + $0x30] sm:$0xf]
      %v229 = vld [vmem:[%s201 + $0x34] sm:$0xf]
      %v230 = vld [vmem:[%s201 + $0x38] sm:$0xf]
      %v231 = vld [vmem:[%s201 + $0x3c] sm:$0xf]
      %v232 = vld [vmem:[%s201 + $0x40] sm:$0xf]
      %v233 = vld [vmem:[%s201 + $0x44] sm:$0xf]
      %v234 = vld [vmem:[%s201 + $0x48] sm:$0xf]
      %v235 = vld [vmem:[%s201 + $0x4c] sm:$0xf]
      %v236 = vld [vmem:[%s201 + $0x50] sm:$0xf]
      %v237 = vld [vmem:[%s201 + $0x54] sm:$0xf]
      %v238 = vld [vmem:[%s201 + $0x58] sm:$0xf]
      %v239 = vld [vmem:[%s201 + $0x5c] sm:$0xf]
      %v240 = vld [vmem:[%s201 + $0x60] sm:$0xf]
      %v241 = vld [vmem:[%s201 + $0x64] sm:$0xf]
      %v242 = vld [vmem:[%s201 + $0x68] sm:$0xf]
      %v243 = vld [vmem:[%s201 + $0x6c] sm:$0xf]
      %v244 = vld [vmem:[%s201 + $0x70] sm:$0xf]
      %v245 = vld [vmem:[%s201 + $0x74] sm:$0xf]
      %v246 = vld [vmem:[%s201 + $0x78] sm:$0xf]
      %v247 = vld [vmem:[%s201 + $0x7c] sm:$0xf]
      %v248 = vld [vmem:[%s1] sm:$0xff]
      %v249 = vld [vmem:[%s1 + $0x8] sm:$0xff]
      %v250 = vld [vmem:[%s1 + $0x10] sm:$0xff]
      %v251 = vld [vmem:[%s1 + $0x18] sm:$0xff]
      %v252 = vld [vmem:[%s1 + $0x20] sm:$0xff]
      %v253 = vld [vmem:[%s1 + $0x28] sm:$0xff]
      %v254 = vld [vmem:[%s1 + $0x30] sm:$0xff]
      %v255 = vld [vmem:[%s1 + $0x38] sm:$0xff]
      %v256 = vld [vmem:[%s1 + $0x40] sm:$0xff]
      %v257 = vld [vmem:[%s1 + $0x48] sm:$0xff]
      %v258 = vld [vmem:[%s1 + $0x50] sm:$0xff]
      %v259 = vld [vmem:[%s1 + $0x58] sm:$0xff]
      %v260 = vld [vmem:[%s1 + $0x60] sm:$0xff]
      %v261 = vld [vmem:[%s1 + $0x68] sm:$0xff]
      %v262 = vld [vmem:[%s1 + $0x70] sm:$0xff]
      %v263 = vld [vmem:[%s1 + $0x78] sm:$0xff]
      %v264 = vld [vmem:[%s2] sm:$0x3]
      %v266 = vlaneseq
      %v267 = vshrl.u32 %v266, 7
      %v268 = vsub.s32 0, %v267
      %v269 = vrot.slane %v264, %v268
      %v270 = vlaneseq
      %v271 = vshrl.u32 %v270, 7
      %v272 = vsub.s32 1, %v271
      %v273 = vrot.slane %v264, %v272
      %v308 = vunpack.c.l.b16 %v216
      %v309 = vunpack.c.l.b16 %v217
      %v310 = vunpack.c.l.b16 %v218
      %v311 = vunpack.c.l.b16 %v219
      %v312 = vunpack.c.l.b16 %v220
      %v313 = vunpack.c.l.b16 %v221
      %v314 = vunpack.c.l.b16 %v222
      %v315 = vunpack.c.l.b16 %v223
      %v316 = vunpack.c.l.b16 %v224
      %v317 = vunpack.c.l.b16 %v225
      %v318 = vunpack.c.l.b16 %v226
      %v319 = vunpack.c.l.b16 %v227
      %v320 = vunpack.c.l.b16 %v228
      %v321 = vunpack.c.l.b16 %v229
      %v322 = vunpack.c.l.b16 %v230
      %v323 = vunpack.c.l.b16 %v231
      %v324 = vunpack.c.l.b16 %v232
      %v325 = vunpack.c.l.b16 %v233
      %v326 = vunpack.c.l.b16 %v234
      %v327 = vunpack.c.l.b16 %v235
      %v328 = vunpack.c.l.b16 %v236
      %v329 = vunpack.c.l.b16 %v237
      %v330 = vunpack.c.l.b16 %v238
      %v331 = vunpack.c.l.b16 %v239
      %v332 = vunpack.c.l.b16 %v240
      %v333 = vunpack.c.l.b16 %v241
      %v334 = vunpack.c.l.b16 %v242
      %v335 = vunpack.c.l.b16 %v243
      %v336 = vunpack.c.l.b16 %v244
      %v337 = vunpack.c.l.b16 %v245
      %v338 = vunpack.c.l.b16 %v246
      %v339 = vunpack.c.l.b16 %v247
      %v340 = vpack.c.b16 %v309, %v308
      %v341 = vpack.c.b16 %v311, %v310
      %v342 = vpack.c.b16 %v313, %v312
      %v343 = vpack.c.b16 %v315, %v314
      %v344 = vpack.c.b16 %v317, %v316
      %v345 = vpack.c.b16 %v319, %v318
      %v346 = vpack.c.b16 %v321, %v320
      %v347 = vpack.c.b16 %v323, %v322
      %v348 = vpack.c.b16 %v325, %v324
      %v349 = vpack.c.b16 %v327, %v326
      %v350 = vpack.c.b16 %v329, %v328
      %v351 = vpack.c.b16 %v331, %v330
      %v352 = vpack.c.b16 %v333, %v332
      %v353 = vpack.c.b16 %v335, %v334
      %v354 = vpack.c.b16 %v337, %v336
      %v355 = vpack.c.b16 %v339, %v338
      %v388 = vunpack.c.l.b16 %v248
      %v389 = vunpack.c.h.b16 %v248
      %v390 = vunpack.c.l.b16 %v249
      %v391 = vunpack.c.h.b16 %v249
      %v392 = vunpack.c.l.b16 %v250
      %v393 = vunpack.c.h.b16 %v250
      %v394 = vunpack.c.l.b16 %v251
      %v395 = vunpack.c.h.b16 %v251
      %v396 = vunpack.c.l.b16 %v252
      %v397 = vunpack.c.h.b16 %v252
      %v398 = vunpack.c.l.b16 %v253
      %v399 = vunpack.c.h.b16 %v253
      %v400 = vunpack.c.l.b16 %v254
      %v401 = vunpack.c.h.b16 %v254
      %v402 = vunpack.c.l.b16 %v255
      %v403 = vunpack.c.h.b16 %v255
      %v404 = vunpack.c.l.b16 %v256
      %v405 = vunpack.c.h.b16 %v256
      %v406 = vunpack.c.l.b16 %v257
      %v407 = vunpack.c.h.b16 %v257
      %v408 = vunpack.c.l.b16 %v258
      %v409 = vunpack.c.h.b16 %v258
      %v410 = vunpack.c.l.b16 %v259
      %v411 = vunpack.c.h.b16 %v259
      %v412 = vunpack.c.l.b16 %v260
      %v413 = vunpack.c.h.b16 %v260
      %v414 = vunpack.c.l.b16 %v261
      %v415 = vunpack.c.h.b16 %v261
      %v416 = vunpack.c.l.b16 %v262
      %v417 = vunpack.c.h.b16 %v262
      %v418 = vunpack.c.l.b16 %v263
      %v419 = vunpack.c.h.b16 %v263
      %v420 = vpack.c.b16 %v390, %v388
      %v421 = vpack.c.b16 %v391, %v389
      %v422 = vpack.c.b16 %v394, %v392
      %v423 = vpack.c.b16 %v395, %v393
      %v424 = vpack.c.b16 %v398, %v396
      %v425 = vpack.c.b16 %v399, %v397
      %v426 = vpack.c.b16 %v402, %v400
      %v427 = vpack.c.b16 %v403, %v401
      %v428 = vpack.c.b16 %v406, %v404
      %v429 = vpack.c.b16 %v407, %v405
      %v430 = vpack.c.b16 %v410, %v408
      %v431 = vpack.c.b16 %v411, %v409
      %v432 = vpack.c.b16 %v414, %v412
      %v433 = vpack.c.b16 %v415, %v413
      %v434 = vpack.c.b16 %v418, %v416
      %v435 = vpack.c.b16 %v419, %v417
      %452 = vmatprep.subr.bf16.mxu0 %v435
      %453 = vmatpush1.bf16.msra.mxu0 %v434
      %454 = vmatprep.subr.bf16.mxu0 %v433
      %455 = vmatpush1.bf16.msra.mxu0 %v432
      %456 = vmatprep.subr.bf16.mxu0 %v431
      %457 = vmatpush1.bf16.msra.mxu0 %v430
      %458 = vmatprep.subr.bf16.mxu0 %v429
      %459 = vmatpush1.bf16.msra.mxu0 %v428
      %460 = vmatprep.subr.bf16.mxu0 %v427
      %461 = vmatpush1.bf16.msra.mxu0 %v426
      %462 = vmatprep.subr.bf16.mxu0 %v425
      %463 = vmatpush1.bf16.msra.mxu0 %v424
      %464 = vmatprep.subr.bf16.mxu0 %v423
      %465 = vmatpush1.bf16.msra.mxu0 %v422
      %466 = vmatprep.subr.bf16.mxu0 %v421
      %467 = vmatpush1.bf16.msra.mxu0 %v420
      %468 = vmatprep.subr.bf16.mxu0 0
      %469 = vmatpush2.bf16.msra.mxu0 0
      %470 = vmatprep.subr.bf16.mxu0 0
      %471 = vmatpush2.bf16.msra.mxu0 0
      %472 = vmatprep.subr.bf16.mxu0 0
      %473 = vmatpush2.bf16.msra.mxu0 0
      %474 = vmatprep.subr.bf16.mxu0 0
      %475 = vmatpush2.bf16.msra.mxu0 0
      %476 = vmatprep.subr.bf16.mxu0 0
      %477 = vmatpush2.bf16.msra.mxu0 0
      %478 = vmatprep.subr.bf16.mxu0 0
      %479 = vmatpush2.bf16.msra.mxu0 0
      %480 = vmatprep.subr.bf16.mxu0 0
      %481 = vmatpush2.bf16.msra.mxu0 0
      %482 = vmatprep.subr.bf16.mxu0 0
      %483 = vmatpush2.bf16.msra.mxu0 0
      %484 = vmatprep.mubr.bf16.mxu0 0
      %485 = vmatmul.mubr.bf16.gmra.mxu0 %v340
      %v486 = vpop.f32.mrf.mxu0
      %v487 = vadd.f32 %v269, %v486
      %v488 = vpop.f32.mrf.mxu0
      %v489 = vadd.f32 %v273, %v488
      %v490 = vpop.f32.mrf.mxu0
      %v491 = vadd.f32 %v269, %v490
      %v492 = vpop.f32.mrf.mxu0
      %v493 = vadd.f32 %v273, %v492
      %494 = vmatprep.mubr.bf16.mxu0 0
      %495 = vmatmul.mubr.bf16.gmra.mxu0 %v341
      %v496 = vpop.f32.mrf.mxu0
      %v497 = vadd.f32 %v269, %v496
      %v498 = vpop.f32.mrf.mxu0
      %v499 = vadd.f32 %v273, %v498
      %v500 = vpop.f32.mrf.mxu0
      %v501 = vadd.f32 %v269, %v500
      %v502 = vpop.f32.mrf.mxu0
      %v503 = vadd.f32 %v273, %v502
      %504 = vmatprep.mubr.bf16.mxu0 0
      %505 = vmatmul.mubr.bf16.gmra.mxu0 %v342
      %v506 = vpop.f32.mrf.mxu0
      %v507 = vadd.f32 %v269, %v506
      %v508 = vpop.f32.mrf.mxu0
      %v509 = vadd.f32 %v273, %v508
      %v510 = vpop.f32.mrf.mxu0
      %v511 = vadd.f32 %v269, %v510
      %v512 = vpop.f32.mrf.mxu0
      %v513 = vadd.f32 %v273, %v512
      %514 = vmatprep.mubr.bf16.mxu0 0
      %515 = vmatmul.mubr.bf16.gmra.mxu0 %v343
      %v516 = vpop.f32.mrf.mxu0
      %v517 = vadd.f32 %v269, %v516
      %v518 = vpop.f32.mrf.mxu0
      %v519 = vadd.f32 %v273, %v518
      %v520 = vpop.f32.mrf.mxu0
      %v521 = vadd.f32 %v269, %v520
      %v522 = vpop.f32.mrf.mxu0
      %v523 = vadd.f32 %v273, %v522
      %524 = vmatprep.mubr.bf16.mxu0 0
      %525 = vmatmul.mubr.bf16.gmra.mxu0 %v344
      %v526 = vpop.f32.mrf.mxu0
      %v527 = vadd.f32 %v269, %v526
      %v528 = vpop.f32.mrf.mxu0
      %v529 = vadd.f32 %v273, %v528
      %v530 = vpop.f32.mrf.mxu0
      %v531 = vadd.f32 %v269, %v530
      %v532 = vpop.f32.mrf.mxu0
      %v533 = vadd.f32 %v273, %v532
      %534 = vmatprep.mubr.bf16.mxu0 0
      %535 = vmatmul.mubr.bf16.gmra.mxu0 %v345
      %v536 = vpop.f32.mrf.mxu0
      %v537 = vadd.f32 %v269, %v536
      %v538 = vpop.f32.mrf.mxu0
      %v539 = vadd.f32 %v273, %v538
      %v540 = vpop.f32.mrf.mxu0
      %v541 = vadd.f32 %v269, %v540
      %v542 = vpop.f32.mrf.mxu0
      %v543 = vadd.f32 %v273, %v542
      %544 = vmatprep.mubr.bf16.mxu0 0
      %545 = vmatmul.mubr.bf16.gmra.mxu0 %v346
      %v546 = vpop.f32.mrf.mxu0
      %v547 = vadd.f32 %v269, %v546
      %v548 = vpop.f32.mrf.mxu0
      %v549 = vadd.f32 %v273, %v548
      %v550 = vpop.f32.mrf.mxu0
      %v551 = vadd.f32 %v269, %v550
      %v552 = vpop.f32.mrf.mxu0
      %v553 = vadd.f32 %v273, %v552
      %554 = vmatprep.mubr.bf16.mxu0 0
      %555 = vmatmul.mubr.bf16.gmra.mxu0 %v347
      %v556 = vpop.f32.mrf.mxu0
      %v557 = vadd.f32 %v269, %v556
      %v558 = vpop.f32.mrf.mxu0
      %v559 = vadd.f32 %v273, %v558
      %v560 = vpop.f32.mrf.mxu0
      %v561 = vadd.f32 %v269, %v560
      %v562 = vpop.f32.mrf.mxu0
      %v563 = vadd.f32 %v273, %v562
      %564 = vmatprep.mubr.bf16.mxu0 0
      %565 = vmatmul.mubr.bf16.gmra.mxu0 %v348
      %v566 = vpop.f32.mrf.mxu0
      %v567 = vadd.f32 %v269, %v566
      %v568 = vpop.f32.mrf.mxu0
      %v569 = vadd.f32 %v273, %v568
      %v570 = vpop.f32.mrf.mxu0
      %v571 = vadd.f32 %v269, %v570
      %v572 = vpop.f32.mrf.mxu0
      %v573 = vadd.f32 %v273, %v572
      %574 = vmatprep.mubr.bf16.mxu0 0
      %575 = vmatmul.mubr.bf16.gmra.mxu0 %v349
      %v576 = vpop.f32.mrf.mxu0
      %v577 = vadd.f32 %v269, %v576
      %v578 = vpop.f32.mrf.mxu0
      %v579 = vadd.f32 %v273, %v578
      %v580 = vpop.f32.mrf.mxu0
      %v581 = vadd.f32 %v269, %v580
      %v582 = vpop.f32.mrf.mxu0
      %v583 = vadd.f32 %v273, %v582
      %584 = vmatprep.mubr.bf16.mxu0 0
      %585 = vmatmul.mubr.bf16.gmra.mxu0 %v350
      %v586 = vpop.f32.mrf.mxu0
      %v587 = vadd.f32 %v269, %v586
      %v588 = vpop.f32.mrf.mxu0
      %v589 = vadd.f32 %v273, %v588
      %v590 = vpop.f32.mrf.mxu0
      %v591 = vadd.f32 %v269, %v590
      %v592 = vpop.f32.mrf.mxu0
      %v593 = vadd.f32 %v273, %v592
      %594 = vmatprep.mubr.bf16.mxu0 0
      %595 = vmatmul.mubr.bf16.gmra.mxu0 %v351
      %v596 = vpop.f32.mrf.mxu0
      %v597 = vadd.f32 %v269, %v596
      %v598 = vpop.f32.mrf.mxu0
      %v599 = vadd.f32 %v273, %v598
      %v600 = vpop.f32.mrf.mxu0
      %v601 = vadd.f32 %v269, %v600
      %v602 = vpop.f32.mrf.mxu0
      %v603 = vadd.f32 %v273, %v602
      %604 = vmatprep.mubr.bf16.mxu0 0
      %605 = vmatmul.mubr.bf16.gmra.mxu0 %v352
      %v606 = vpop.f32.mrf.mxu0
      %v607 = vadd.f32 %v269, %v606
      %v608 = vpop.f32.mrf.mxu0
      %v609 = vadd.f32 %v273, %v608
      %v610 = vpop.f32.mrf.mxu0
      %v611 = vadd.f32 %v269, %v610
      %v612 = vpop.f32.mrf.mxu0
      %v613 = vadd.f32 %v273, %v612
      %614 = vmatprep.mubr.bf16.mxu0 0
      %615 = vmatmul.mubr.bf16.gmra.mxu0 %v353
      %v616 = vpop.f32.mrf.mxu0
      %v617 = vadd.f32 %v269, %v616
      %v618 = vpop.f32.mrf.mxu0
      %v619 = vadd.f32 %v273, %v618
      %v620 = vpop.f32.mrf.mxu0
      %v621 = vadd.f32 %v269, %v620
      %v622 = vpop.f32.mrf.mxu0
      %v623 = vadd.f32 %v273, %v622
      %624 = vmatprep.mubr.bf16.mxu0 0
      %625 = vmatmul.mubr.bf16.gmra.mxu0 %v354
      %v626 = vpop.f32.mrf.mxu0
      %v627 = vadd.f32 %v269, %v626
      %v628 = vpop.f32.mrf.mxu0
      %v629 = vadd.f32 %v273, %v628
      %v630 = vpop.f32.mrf.mxu0
      %v631 = vadd.f32 %v269, %v630
      %v632 = vpop.f32.mrf.mxu0
      %v633 = vadd.f32 %v273, %v632
      %634 = vmatprep.mubr.bf16.mxu0 0
      %635 = vmatmul.mubr.bf16.gmra.mxu0 %v355
      %v636 = vpop.f32.mrf.mxu0
      %v637 = vadd.f32 %v269, %v636
      %v638 = vpop.f32.mrf.mxu0
      %v639 = vadd.f32 %v273, %v638
      %v640 = vpop.f32.mrf.mxu0
      %v641 = vadd.f32 %v269, %v640
      %v642 = vpop.f32.mrf.mxu0
      %v643 = vadd.f32 %v273, %v642
      %644 = vdwg.mxu0
      %v645 = vxor.u32 %v487, 2147483648
      %v646 = vxor.u32 %v489, 2147483648
      %v647 = vxor.u32 %v491, 2147483648
      %v648 = vxor.u32 %v493, 2147483648
      %v649 = vxor.u32 %v497, 2147483648
      %v650 = vxor.u32 %v499, 2147483648
      %v651 = vxor.u32 %v501, 2147483648
      %v652 = vxor.u32 %v503, 2147483648
      %v653 = vxor.u32 %v507, 2147483648
      %v654 = vxor.u32 %v509, 2147483648
      %v655 = vxor.u32 %v511, 2147483648
      %v656 = vxor.u32 %v513, 2147483648
      %v657 = vxor.u32 %v517, 2147483648
      %v658 = vxor.u32 %v519, 2147483648
      %v659 = vxor.u32 %v521, 2147483648
      %v660 = vxor.u32 %v523, 2147483648
      %v661 = vxor.u32 %v527, 2147483648
      %v662 = vxor.u32 %v529, 2147483648
      %v663 = vxor.u32 %v531, 2147483648
      %v664 = vxor.u32 %v533, 2147483648
      %v665 = vxor.u32 %v537, 2147483648
      %v666 = vxor.u32 %v539, 2147483648
      %v667 = vxor.u32 %v541, 2147483648
      %v668 = vxor.u32 %v543, 2147483648
      %v669 = vxor.u32 %v547, 2147483648
      %v670 = vxor.u32 %v549, 2147483648
      %v671 = vxor.u32 %v551, 2147483648
      %v672 = vxor.u32 %v553, 2147483648
      %v673 = vxor.u32 %v557, 2147483648
      %v674 = vxor.u32 %v559, 2147483648
      %v675 = vxor.u32 %v561, 2147483648
      %v676 = vxor.u32 %v563, 2147483648
      %v677 = vxor.u32 %v567, 2147483648
      %v678 = vxor.u32 %v569, 2147483648
      %v679 = vxor.u32 %v571, 2147483648
      %v680 = vxor.u32 %v573, 2147483648
      %v681 = vxor.u32 %v577, 2147483648
      %v682 = vxor.u32 %v579, 2147483648
      %v683 = vxor.u32 %v581, 2147483648
      %v684 = vxor.u32 %v583, 2147483648
      %v685 = vxor.u32 %v587, 2147483648
      %v686 = vxor.u32 %v589, 2147483648
      %v687 = vxor.u32 %v591, 2147483648
      %v688 = vxor.u32 %v593, 2147483648
      %v689 = vxor.u32 %v597, 2147483648
      %v690 = vxor.u32 %v599, 2147483648
      %v691 = vxor.u32 %v601, 2147483648
      %v692 = vxor.u32 %v603, 2147483648
      %v693 = vxor.u32 %v607, 2147483648
      %v694 = vxor.u32 %v609, 2147483648
      %v695 = vxor.u32 %v611, 2147483648
      %v696 = vxor.u32 %v613, 2147483648
      %v697 = vxor.u32 %v617, 2147483648
      %v698 = vxor.u32 %v619, 2147483648
      %v699 = vxor.u32 %v621, 2147483648
      %v700 = vxor.u32 %v623, 2147483648
      %v701 = vxor.u32 %v627, 2147483648
      %v702 = vxor.u32 %v629, 2147483648
      %v703 = vxor.u32 %v631, 2147483648
      %v704 = vxor.u32 %v633, 2147483648
      %v705 = vxor.u32 %v637, 2147483648
      %v706 = vxor.u32 %v639, 2147483648
      %v707 = vxor.u32 %v641, 2147483648
      %v708 = vxor.u32 %v643, 2147483648
      %v709 = vmul.f32 %v645, 1.442695
      %v710 = vpow.pop %v709
      %v711 = vmul.f32 %v646, 1.442695
      %v712 = vpow.pop %v711
      %v713 = vmul.f32 %v647, 1.442695
      %v714 = vpow.pop %v713
      %v715 = vmul.f32 %v648, 1.442695
      %v716 = vpow.pop %v715
      %v717 = vmul.f32 %v649, 1.442695
      %v718 = vpow.pop %v717
      %v719 = vmul.f32 %v650, 1.442695
      %v720 = vpow.pop %v719
      %v721 = vmul.f32 %v651, 1.442695
      %v722 = vpow.pop %v721
      %v723 = vmul.f32 %v652, 1.442695
      %v724 = vpow.pop %v723
      %v725 = vmul.f32 %v653, 1.442695
      %v726 = vpow.pop %v725
      %v727 = vmul.f32 %v654, 1.442695
      %v728 = vpow.pop %v727
      %v729 = vmul.f32 %v655, 1.442695
      %v730 = vpow.pop %v729
      %v731 = vmul.f32 %v656, 1.442695
      %v732 = vpow.pop %v731
      %v733 = vmul.f32 %v657, 1.442695
      %v734 = vpow.pop %v733
      %v735 = vmul.f32 %v658, 1.442695
      %v736 = vpow.pop %v735
      %v737 = vmul.f32 %v659, 1.442695
      %v738 = vpow.pop %v737
      %v739 = vmul.f32 %v660, 1.442695
      %v740 = vpow.pop %v739
      %v741 = vmul.f32 %v661, 1.442695
      %v742 = vpow.pop %v741
      %v743 = vmul.f32 %v662, 1.442695
      %v744 = vpow.pop %v743
      %v745 = vmul.f32 %v663, 1.442695
      %v746 = vpow.pop %v745
      %v747 = vmul.f32 %v664, 1.442695
      %v748 = vpow.pop %v747
      %v749 = vmul.f32 %v665, 1.442695
      %v750 = vpow.pop %v749
      %v751 = vmul.f32 %v666, 1.442695
      %v752 = vpow.pop %v751
      %v753 = vmul.f32 %v667, 1.442695
      %v754 = vpow.pop %v753
      %v755 = vmul.f32 %v668, 1.442695
      %v756 = vpow.pop %v755
      %v757 = vmul.f32 %v669, 1.442695
      %v758 = vpow.pop %v757
      %v759 = vmul.f32 %v670, 1.442695
      %v760 = vpow.pop %v759
      %v761 = vmul.f32 %v671, 1.442695
      %v762 = vpow.pop %v761
      %v763 = vmul.f32 %v672, 1.442695
      %v764 = vpow.pop %v763
      %v765 = vmul.f32 %v673, 1.442695
      %v766 = vpow.pop %v765
      %v767 = vmul.f32 %v674, 1.442695
      %v768 = vpow.pop %v767
      %v769 = vmul.f32 %v675, 1.442695
      %v770 = vpow.pop %v769
      %v771 = vmul.f32 %v676, 1.442695
      %v772 = vpow.pop %v771
      %v773 = vmul.f32 %v677, 1.442695
      %v774 = vpow.pop %v773
      %v775 = vmul.f32 %v678, 1.442695
      %v776 = vpow.pop %v775
      %v777 = vmul.f32 %v679, 1.442695
      %v778 = vpow.pop %v777
      %v779 = vmul.f32 %v680, 1.442695
      %v780 = vpow.pop %v779
      %v781 = vmul.f32 %v681, 1.442695
      %v782 = vpow.pop %v781
      %v783 = vmul.f32 %v682, 1.442695
      %v784 = vpow.pop %v783
      %v785 = vmul.f32 %v683, 1.442695
      %v786 = vpow.pop %v785
      %v787 = vmul.f32 %v684, 1.442695
      %v788 = vpow.pop %v787
      %v789 = vmul.f32 %v685, 1.442695
      %v790 = vpow.pop %v789
      %v791 = vmul.f32 %v686, 1.442695
      %v792 = vpow.pop %v791
      %v793 = vmul.f32 %v687, 1.442695
      %v794 = vpow.pop %v793
      %v795 = vmul.f32 %v688, 1.442695
      %v796 = vpow.pop %v795
      %v797 = vmul.f32 %v689, 1.442695
      %v798 = vpow.pop %v797
      %v799 = vmul.f32 %v690, 1.442695
      %v800 = vpow.pop %v799
      %v801 = vmul.f32 %v691, 1.442695
      %v802 = vpow.pop %v801
      %v803 = vmul.f32 %v692, 1.442695
      %v804 = vpow.pop %v803
      %v805 = vmul.f32 %v693, 1.442695
      %v806 = vpow.pop %v805
      %v807 = vmul.f32 %v694, 1.442695
      %v808 = vpow.pop %v807
      %v809 = vmul.f32 %v695, 1.442695
      %v810 = vpow.pop %v809
      %v811 = vmul.f32 %v696, 1.442695
      %v812 = vpow.pop %v811
      %v813 = vmul.f32 %v697, 1.442695
      %v814 = vpow.pop %v813
      %v815 = vmul.f32 %v698, 1.442695
      %v816 = vpow.pop %v815
      %v817 = vmul.f32 %v699, 1.442695
      %v818 = vpow.pop %v817
      %v819 = vmul.f32 %v700, 1.442695
      %v820 = vpow.pop %v819
      %v821 = vmul.f32 %v701, 1.442695
      %v822 = vpow.pop %v821
      %v823 = vmul.f32 %v702, 1.442695
      %v824 = vpow.pop %v823
      %v825 = vmul.f32 %v703, 1.442695
      %v826 = vpow.pop %v825
      %v827 = vmul.f32 %v704, 1.442695
      %v828 = vpow.pop %v827
      %v829 = vmul.f32 %v705, 1.442695
      %v830 = vpow.pop %v829
      %v831 = vmul.f32 %v706, 1.442695
      %v832 = vpow.pop %v831
      %v833 = vmul.f32 %v707, 1.442695
      %v834 = vpow.pop %v833
      %v835 = vmul.f32 %v708, 1.442695
      %v836 = vpow.pop %v835
      %v837 = vadd.f32 %v710, 1.0
      %v838 = vadd.f32 %v712, 1.0
      %v839 = vadd.f32 %v714, 1.0
      %v840 = vadd.f32 %v716, 1.0
      %v841 = vadd.f32 %v718, 1.0
      %v842 = vadd.f32 %v720, 1.0
      %v843 = vadd.f32 %v722, 1.0
      %v844 = vadd.f32 %v724, 1.0
      %v845 = vadd.f32 %v726, 1.0
      %v846 = vadd.f32 %v728, 1.0
      %v847 = vadd.f32 %v730, 1.0
      %v848 = vadd.f32 %v732, 1.0
      %v849 = vadd.f32 %v734, 1.0
      %v850 = vadd.f32 %v736, 1.0
      %v851 = vadd.f32 %v738, 1.0
      %v852 = vadd.f32 %v740, 1.0
      %v853 = vadd.f32 %v742, 1.0
      %v854 = vadd.f32 %v744, 1.0
      %v855 = vadd.f32 %v746, 1.0
      %v856 = vadd.f32 %v748, 1.0
      %v857 = vadd.f32 %v750, 1.0
      %v858 = vadd.f32 %v752, 1.0
      %v859 = vadd.f32 %v754, 1.0
      %v860 = vadd.f32 %v756, 1.0
      %v861 = vadd.f32 %v758, 1.0
      %v862 = vadd.f32 %v760, 1.0
      %v863 = vadd.f32 %v762, 1.0
      %v864 = vadd.f32 %v764, 1.0
      %v865 = vadd.f32 %v766, 1.0
      %v866 = vadd.f32 %v768, 1.0
      %v867 = vadd.f32 %v770, 1.0
      %v868 = vadd.f32 %v772, 1.0
      %v869 = vadd.f32 %v774, 1.0
      %v870 = vadd.f32 %v776, 1.0
      %v871 = vadd.f32 %v778, 1.0
      %v872 = vadd.f32 %v780, 1.0
      %v873 = vadd.f32 %v782, 1.0
      %v874 = vadd.f32 %v784, 1.0
      %v875 = vadd.f32 %v786, 1.0
      %v876 = vadd.f32 %v788, 1.0
      %v877 = vadd.f32 %v790, 1.0
      %v878 = vadd.f32 %v792, 1.0
      %v879 = vadd.f32 %v794, 1.0
      %v880 = vadd.f32 %v796, 1.0
      %v881 = vadd.f32 %v798, 1.0
      %v882 = vadd.f32 %v800, 1.0
      %v883 = vadd.f32 %v802, 1.0
      %v884 = vadd.f32 %v804, 1.0
      %v885 = vadd.f32 %v806, 1.0
      %v886 = vadd.f32 %v808, 1.0
      %v887 = vadd.f32 %v810, 1.0
      %v888 = vadd.f32 %v812, 1.0
      %v889 = vadd.f32 %v814, 1.0
      %v890 = vadd.f32 %v816, 1.0
      %v891 = vadd.f32 %v818, 1.0
      %v892 = vadd.f32 %v820, 1.0
      %v893 = vadd.f32 %v822, 1.0
      %v894 = vadd.f32 %v824, 1.0
      %v895 = vadd.f32 %v826, 1.0
      %v896 = vadd.f32 %v828, 1.0
      %v897 = vadd.f32 %v830, 1.0
      %v898 = vadd.f32 %v832, 1.0
      %v899 = vadd.f32 %v834, 1.0
      %v900 = vadd.f32 %v836, 1.0
      %v901 = vrcp.pop %v837
      %v902 = vmul.f32 1.0, %v901
      %v903 = vrcp.pop %v838
      %v904 = vmul.f32 1.0, %v903
      %v905 = vrcp.pop %v839
      %v906 = vmul.f32 1.0, %v905
      %v907 = vrcp.pop %v840
      %v908 = vmul.f32 1.0, %v907
      %v909 = vrcp.pop %v841
      %v910 = vmul.f32 1.0, %v909
      %v911 = vrcp.pop %v842
      %v912 = vmul.f32 1.0, %v911
      %v913 = vrcp.pop %v843
      %v914 = vmul.f32 1.0, %v913
      %v915 = vrcp.pop %v844
      %v916 = vmul.f32 1.0, %v915
      %v917 = vrcp.pop %v845
      %v918 = vmul.f32 1.0, %v917
      %v919 = vrcp.pop %v846
      %v920 = vmul.f32 1.0, %v919
      %v921 = vrcp.pop %v847
      %v922 = vmul.f32 1.0, %v921
      %v923 = vrcp.pop %v848
      %v924 = vmul.f32 1.0, %v923
      %v925 = vrcp.pop %v849
      %v926 = vmul.f32 1.0, %v925
      %v927 = vrcp.pop %v850
      %v928 = vmul.f32 1.0, %v927
      %v929 = vrcp.pop %v851
      %v930 = vmul.f32 1.0, %v929
      %v931 = vrcp.pop %v852
      %v932 = vmul.f32 1.0, %v931
      %v933 = vrcp.pop %v853
      %v934 = vmul.f32 1.0, %v933
      %v935 = vrcp.pop %v854
      %v936 = vmul.f32 1.0, %v935
      %v937 = vrcp.pop %v855
      %v938 = vmul.f32 1.0, %v937
      %v939 = vrcp.pop %v856
      %v940 = vmul.f32 1.0, %v939
      %v941 = vrcp.pop %v857
      %v942 = vmul.f32 1.0, %v941
      %v943 = vrcp.pop %v858
      %v944 = vmul.f32 1.0, %v943
      %v945 = vrcp.pop %v859
      %v946 = vmul.f32 1.0, %v945
      %v947 = vrcp.pop %v860
      %v948 = vmul.f32 1.0, %v947
      %v949 = vrcp.pop %v861
      %v950 = vmul.f32 1.0, %v949
      %v951 = vrcp.pop %v862
      %v952 = vmul.f32 1.0, %v951
      %v953 = vrcp.pop %v863
      %v954 = vmul.f32 1.0, %v953
      %v955 = vrcp.pop %v864
      %v956 = vmul.f32 1.0, %v955
      %v957 = vrcp.pop %v865
      %v958 = vmul.f32 1.0, %v957
      %v959 = vrcp.pop %v866
      %v960 = vmul.f32 1.0, %v959
      %v961 = vrcp.pop %v867
      %v962 = vmul.f32 1.0, %v961
      %v963 = vrcp.pop %v868
      %v964 = vmul.f32 1.0, %v963
      %v965 = vrcp.pop %v869
      %v966 = vmul.f32 1.0, %v965
      %v967 = vrcp.pop %v870
      %v968 = vmul.f32 1.0, %v967
      %v969 = vrcp.pop %v871
      %v970 = vmul.f32 1.0, %v969
      %v971 = vrcp.pop %v872
      %v972 = vmul.f32 1.0, %v971
      %v973 = vrcp.pop %v873
      %v974 = vmul.f32 1.0, %v973
      %v975 = vrcp.pop %v874
      %v976 = vmul.f32 1.0, %v975
      %v977 = vrcp.pop %v875
      %v978 = vmul.f32 1.0, %v977
      %v979 = vrcp.pop %v876
      %v980 = vmul.f32 1.0, %v979
      %v981 = vrcp.pop %v877
      %v982 = vmul.f32 1.0, %v981
      %v983 = vrcp.pop %v878
      %v984 = vmul.f32 1.0, %v983
      %v985 = vrcp.pop %v879
      %v986 = vmul.f32 1.0, %v985
      %v987 = vrcp.pop %v880
      %v988 = vmul.f32 1.0, %v987
      %v989 = vrcp.pop %v881
      %v990 = vmul.f32 1.0, %v989
      %v991 = vrcp.pop %v882
      %v992 = vmul.f32 1.0, %v991
      %v993 = vrcp.pop %v883
      %v994 = vmul.f32 1.0, %v993
      %v995 = vrcp.pop %v884
      %v996 = vmul.f32 1.0, %v995
      %v997 = vrcp.pop %v885
      %v998 = vmul.f32 1.0, %v997
      %v999 = vrcp.pop %v886
      %v1000 = vmul.f32 1.0, %v999
      %v1001 = vrcp.pop %v887
      %v1002 = vmul.f32 1.0, %v1001
      %v1003 = vrcp.pop %v888
      %v1004 = vmul.f32 1.0, %v1003
      %v1005 = vrcp.pop %v889
      %v1006 = vmul.f32 1.0, %v1005
      %v1007 = vrcp.pop %v890
      %v1008 = vmul.f32 1.0, %v1007
      %v1009 = vrcp.pop %v891
      %v1010 = vmul.f32 1.0, %v1009
      %v1011 = vrcp.pop %v892
      %v1012 = vmul.f32 1.0, %v1011
      %v1013 = vrcp.pop %v893
      %v1014 = vmul.f32 1.0, %v1013
      %v1015 = vrcp.pop %v894
      %v1016 = vmul.f32 1.0, %v1015
      %v1017 = vrcp.pop %v895
      %v1018 = vmul.f32 1.0, %v1017
      %v1019 = vrcp.pop %v896
      %v1020 = vmul.f32 1.0, %v1019
      %v1021 = vrcp.pop %v897
      %v1022 = vmul.f32 1.0, %v1021
      %v1023 = vrcp.pop %v898
      %v1024 = vmul.f32 1.0, %v1023
      %v1025 = vrcp.pop %v899
      %v1026 = vmul.f32 1.0, %v1025
      %v1027 = vrcp.pop %v900
      %v1028 = vmul.f32 1.0, %v1027
      %v1029 = vmul.f32 %v487, %v902
      %v1030 = vmul.f32 %v489, %v904
      %v1031 = vmul.f32 %v491, %v906
      %v1032 = vmul.f32 %v493, %v908
      %v1033 = vmul.f32 %v497, %v910
      %v1034 = vmul.f32 %v499, %v912
      %v1035 = vmul.f32 %v501, %v914
      %v1036 = vmul.f32 %v503, %v916
      %v1037 = vmul.f32 %v507, %v918
      %v1038 = vmul.f32 %v509, %v920
      %v1039 = vmul.f32 %v511, %v922
      %v1040 = vmul.f32 %v513, %v924
      %v1041 = vmul.f32 %v517, %v926
      %v1042 = vmul.f32 %v519, %v928
      %v1043 = vmul.f32 %v521, %v930
      %v1044 = vmul.f32 %v523, %v932
      %v1045 = vmul.f32 %v527, %v934
      %v1046 = vmul.f32 %v529, %v936
      %v1047 = vmul.f32 %v531, %v938
      %v1048 = vmul.f32 %v533, %v940
      %v1049 = vmul.f32 %v537, %v942
      %v1050 = vmul.f32 %v539, %v944
      %v1051 = vmul.f32 %v541, %v946
      %v1052 = vmul.f32 %v543, %v948
      %v1053 = vmul.f32 %v547, %v950
      %v1054 = vmul.f32 %v549, %v952
      %v1055 = vmul.f32 %v551, %v954
      %v1056 = vmul.f32 %v553, %v956
      %v1057 = vmul.f32 %v557, %v958
      %v1058 = vmul.f32 %v559, %v960
      %v1059 = vmul.f32 %v561, %v962
      %v1060 = vmul.f32 %v563, %v964
      %v1061 = vmul.f32 %v567, %v966
      %v1062 = vmul.f32 %v569, %v968
      %v1063 = vmul.f32 %v571, %v970
      %v1064 = vmul.f32 %v573, %v972
      %v1065 = vmul.f32 %v577, %v974
      %v1066 = vmul.f32 %v579, %v976
      %v1067 = vmul.f32 %v581, %v978
      %v1068 = vmul.f32 %v583, %v980
      %v1069 = vmul.f32 %v587, %v982
      %v1070 = vmul.f32 %v589, %v984
      %v1071 = vmul.f32 %v591, %v986
      %v1072 = vmul.f32 %v593, %v988
      %v1073 = vmul.f32 %v597, %v990
      %v1074 = vmul.f32 %v599, %v992
      %v1075 = vmul.f32 %v601, %v994
      %v1076 = vmul.f32 %v603, %v996
      %v1077 = vmul.f32 %v607, %v998
      %v1078 = vmul.f32 %v609, %v1000
      %v1079 = vmul.f32 %v611, %v1002
      %v1080 = vmul.f32 %v613, %v1004
      %v1081 = vmul.f32 %v617, %v1006
      %v1082 = vmul.f32 %v619, %v1008
      %v1083 = vmul.f32 %v621, %v1010
      %v1084 = vmul.f32 %v623, %v1012
      %v1085 = vmul.f32 %v627, %v1014
      %v1086 = vmul.f32 %v629, %v1016
      %v1087 = vmul.f32 %v631, %v1018
      %v1088 = vmul.f32 %v633, %v1020
      %v1089 = vmul.f32 %v637, %v1022
      %v1090 = vmul.f32 %v639, %v1024
      %v1091 = vmul.f32 %v641, %v1026
      %v1092 = vmul.f32 %v643, %v1028
      %v1093 = vpack.c.bf16 %v1031, %v1029
      %v1094 = vpack.c.bf16 %v1035, %v1033
      %v1095 = vpack.c.bf16 %v1039, %v1037
      %v1096 = vpack.c.bf16 %v1043, %v1041
      %v1097 = vpack.c.bf16 %v1047, %v1045
      %v1098 = vpack.c.bf16 %v1051, %v1049
      %v1099 = vpack.c.bf16 %v1055, %v1053
      %v1100 = vpack.c.bf16 %v1059, %v1057
      %v1101 = vpack.c.bf16 %v1063, %v1061
      %v1102 = vpack.c.bf16 %v1067, %v1065
      %v1103 = vpack.c.bf16 %v1071, %v1069
      %v1104 = vpack.c.bf16 %v1075, %v1073
      %v1105 = vpack.c.bf16 %v1079, %v1077
      %v1106 = vpack.c.bf16 %v1083, %v1081
      %v1107 = vpack.c.bf16 %v1087, %v1085
      %v1108 = vpack.c.bf16 %v1091, %v1089
      %v1125 = vunpack.c.l.b16 %v1093
      %v1126 = vunpack.c.h.b16 %v1093
      %v1127 = vunpack.c.l.b16 %v1094
      %v1128 = vunpack.c.h.b16 %v1094
      %v1129 = vunpack.c.l.b16 %v1095
      %v1130 = vunpack.c.h.b16 %v1095
      %v1131 = vunpack.c.l.b16 %v1096
      %v1132 = vunpack.c.h.b16 %v1096
      %v1133 = vunpack.c.l.b16 %v1097
      %v1134 = vunpack.c.h.b16 %v1097
      %v1135 = vunpack.c.l.b16 %v1098
      %v1136 = vunpack.c.h.b16 %v1098
      %v1137 = vunpack.c.l.b16 %v1099
      %v1138 = vunpack.c.h.b16 %v1099
      %v1139 = vunpack.c.l.b16 %v1100
      %v1140 = vunpack.c.h.b16 %v1100
      %v1141 = vunpack.c.l.b16 %v1101
      %v1142 = vunpack.c.h.b16 %v1101
      %v1143 = vunpack.c.l.b16 %v1102
      %v1144 = vunpack.c.h.b16 %v1102
      %v1145 = vunpack.c.l.b16 %v1103
      %v1146 = vunpack.c.h.b16 %v1103
      %v1147 = vunpack.c.l.b16 %v1104
      %v1148 = vunpack.c.h.b16 %v1104
      %v1149 = vunpack.c.l.b16 %v1105
      %v1150 = vunpack.c.h.b16 %v1105
      %v1151 = vunpack.c.l.b16 %v1106
      %v1152 = vunpack.c.h.b16 %v1106
      %v1153 = vunpack.c.l.b16 %v1107
      %v1154 = vunpack.c.h.b16 %v1107
      %v1155 = vunpack.c.l.b16 %v1108
      %v1156 = vunpack.c.h.b16 %v1108
      %v1157 = vpack.c.b16 %v1125, %v1125
      %v1158 = vpack.c.b16 %v1126, %v1126
      %v1159 = vpack.c.b16 %v1127, %v1127
      %v1160 = vpack.c.b16 %v1128, %v1128
      %v1161 = vpack.c.b16 %v1129, %v1129
      %v1162 = vpack.c.b16 %v1130, %v1130
      %v1163 = vpack.c.b16 %v1131, %v1131
      %v1164 = vpack.c.b16 %v1132, %v1132
      %v1165 = vpack.c.b16 %v1133, %v1133
      %v1166 = vpack.c.b16 %v1134, %v1134
      %v1167 = vpack.c.b16 %v1135, %v1135
      %v1168 = vpack.c.b16 %v1136, %v1136
      %v1169 = vpack.c.b16 %v1137, %v1137
      %v1170 = vpack.c.b16 %v1138, %v1138
      %v1171 = vpack.c.b16 %v1139, %v1139
      %v1172 = vpack.c.b16 %v1140, %v1140
      %v1173 = vpack.c.b16 %v1141, %v1141
      %v1174 = vpack.c.b16 %v1142, %v1142
      %v1175 = vpack.c.b16 %v1143, %v1143
      %v1176 = vpack.c.b16 %v1144, %v1144
      %v1177 = vpack.c.b16 %v1145, %v1145
      %v1178 = vpack.c.b16 %v1146, %v1146
      %v1179 = vpack.c.b16 %v1147, %v1147
      %v1180 = vpack.c.b16 %v1148, %v1148
      %v1181 = vpack.c.b16 %v1149, %v1149
      %v1182 = vpack.c.b16 %v1150, %v1150
      %v1183 = vpack.c.b16 %v1151, %v1151
      %v1184 = vpack.c.b16 %v1152, %v1152
      %v1185 = vpack.c.b16 %v1153, %v1153
      %v1186 = vpack.c.b16 %v1154, %v1154
      %v1187 = vpack.c.b16 %v1155, %v1155
      %v1188 = vpack.c.b16 %v1156, %v1156
      %1221 = vst [vmem:[%s207] sm:$0xf] %v1157
      %1222 = vst [vmem:[%s207 + $0x4] sm:$0xf] %v1158
      %1223 = vst [vmem:[%s207 + $0x8] sm:$0xf] %v1159
      %1224 = vst [vmem:[%s207 + $0xc] sm:$0xf] %v1160
      %1225 = vst [vmem:[%s207 + $0x10] sm:$0xf] %v1161
      %1226 = vst [vmem:[%s207 + $0x14] sm:$0xf] %v1162
      %1227 = vst [vmem:[%s207 + $0x18] sm:$0xf] %v1163
      %1228 = vst [vmem:[%s207 + $0x1c] sm:$0xf] %v1164
      %1229 = vst [vmem:[%s207 + $0x20] sm:$0xf] %v1165
      %1230 = vst [vmem:[%s207 + $0x24] sm:$0xf] %v1166
      %1231 = vst [vmem:[%s207 + $0x28] sm:$0xf] %v1167
      %1232 = vst [vmem:[%s207 + $0x2c] sm:$0xf] %v1168
      %1233 = vst [vmem:[%s207 + $0x30] sm:$0xf] %v1169
      %1234 = vst [vmem:[%s207 + $0x34] sm:$0xf] %v1170
      %1235 = vst [vmem:[%s207 + $0x38] sm:$0xf] %v1171
      %1236 = vst [vmem:[%s207 + $0x3c] sm:$0xf] %v1172
      %1237 = vst [vmem:[%s207 + $0x40] sm:$0xf] %v1173
      %1238 = vst [vmem:[%s207 + $0x44] sm:$0xf] %v1174
      %1239 = vst [vmem:[%s207 + $0x48] sm:$0xf] %v1175
      %1240 = vst [vmem:[%s207 + $0x4c] sm:$0xf] %v1176
      %1241 = vst [vmem:[%s207 + $0x50] sm:$0xf] %v1177
      %1242 = vst [vmem:[%s207 + $0x54] sm:$0xf] %v1178
      %1243 = vst [vmem:[%s207 + $0x58] sm:$0xf] %v1179
      %1244 = vst [vmem:[%s207 + $0x5c] sm:$0xf] %v1180
      %1245 = vst [vmem:[%s207 + $0x60] sm:$0xf] %v1181
      %1246 = vst [vmem:[%s207 + $0x64] sm:$0xf] %v1182
      %1247 = vst [vmem:[%s207 + $0x68] sm:$0xf] %v1183
      %1248 = vst [vmem:[%s207 + $0x6c] sm:$0xf] %v1184
      %1249 = vst [vmem:[%s207 + $0x70] sm:$0xf] %v1185
      %1250 = vst [vmem:[%s207 + $0x74] sm:$0xf] %v1186
      %1251 = vst [vmem:[%s207 + $0x78] sm:$0xf] %v1187
      %1252 = vst [vmem:[%s207 + $0x7c] sm:$0xf] %v1188
      %v1253 = vpack.c.bf16 %v1032, %v1030
      %v1254 = vpack.c.bf16 %v1036, %v1034
      %v1255 = vpack.c.bf16 %v1040, %v1038
      %v1256 = vpack.c.bf16 %v1044, %v1042
      %v1257 = vpack.c.bf16 %v1048, %v1046
      %v1258 = vpack.c.bf16 %v1052, %v1050
      %v1259 = vpack.c.bf16 %v1056, %v1054
      %v1260 = vpack.c.bf16 %v1060, %v1058
      %v1261 = vpack.c.bf16 %v1064, %v1062
      %v1262 = vpack.c.bf16 %v1068, %v1066
      %v1263 = vpack.c.bf16 %v1072, %v1070
      %v1264 = vpack.c.bf16 %v1076, %v1074
      %v1265 = vpack.c.bf16 %v1080, %v1078
      %v1266 = vpack.c.bf16 %v1084, %v1082
      %v1267 = vpack.c.bf16 %v1088, %v1086
      %v1268 = vpack.c.bf16 %v1092, %v1090
      %v1285 = vunpack.c.l.b16 %v1253
      %v1286 = vunpack.c.h.b16 %v1253
      %v1287 = vunpack.c.l.b16 %v1254
      %v1288 = vunpack.c.h.b16 %v1254
      %v1289 = vunpack.c.l.b16 %v1255
      %v1290 = vunpack.c.h.b16 %v1255
      %v1291 = vunpack.c.l.b16 %v1256
      %v1292 = vunpack.c.h.b16 %v1256
      %v1293 = vunpack.c.l.b16 %v1257
      %v1294 = vunpack.c.h.b16 %v1257
      %v1295 = vunpack.c.l.b16 %v1258
      %v1296 = vunpack.c.h.b16 %v1258
      %v1297 = vunpack.c.l.b16 %v1259
      %v1298 = vunpack.c.h.b16 %v1259
      %v1299 = vunpack.c.l.b16 %v1260
      %v1300 = vunpack.c.h.b16 %v1260
      %v1301 = vunpack.c.l.b16 %v1261
      %v1302 = vunpack.c.h.b16 %v1261
      %v1303 = vunpack.c.l.b16 %v1262
      %v1304 = vunpack.c.h.b16 %v1262
      %v1305 = vunpack.c.l.b16 %v1263
      %v1306 = vunpack.c.h.b16 %v1263
      %v1307 = vunpack.c.l.b16 %v1264
      %v1308 = vunpack.c.h.b16 %v1264
      %v1309 = vunpack.c.l.b16 %v1265
      %v1310 = vunpack.c.h.b16 %v1265
      %v1311 = vunpack.c.l.b16 %v1266
      %v1312 = vunpack.c.h.b16 %v1266
      %v1313 = vunpack.c.l.b16 %v1267
      %v1314 = vunpack.c.h.b16 %v1267
      %v1315 = vunpack.c.l.b16 %v1268
      %v1316 = vunpack.c.h.b16 %v1268
      %v1317 = vpack.c.b16 %v1285, %v1285
      %v1318 = vpack.c.b16 %v1286, %v1286
      %v1319 = vpack.c.b16 %v1287, %v1287
      %v1320 = vpack.c.b16 %v1288, %v1288
      %v1321 = vpack.c.b16 %v1289, %v1289
      %v1322 = vpack.c.b16 %v1290, %v1290
      %v1323 = vpack.c.b16 %v1291, %v1291
      %v1324 = vpack.c.b16 %v1292, %v1292
      %v1325 = vpack.c.b16 %v1293, %v1293
      %v1326 = vpack.c.b16 %v1294, %v1294
      %v1327 = vpack.c.b16 %v1295, %v1295
      %v1328 = vpack.c.b16 %v1296, %v1296
      %v1329 = vpack.c.b16 %v1297, %v1297
      %v1330 = vpack.c.b16 %v1298, %v1298
      %v1331 = vpack.c.b16 %v1299, %v1299
      %v1332 = vpack.c.b16 %v1300, %v1300
      %v1333 = vpack.c.b16 %v1301, %v1301
      %v1334 = vpack.c.b16 %v1302, %v1302
      %v1335 = vpack.c.b16 %v1303, %v1303
      %v1336 = vpack.c.b16 %v1304, %v1304
      %v1337 = vpack.c.b16 %v1305, %v1305
      %v1338 = vpack.c.b16 %v1306, %v1306
      %v1339 = vpack.c.b16 %v1307, %v1307
      %v1340 = vpack.c.b16 %v1308, %v1308
      %v1341 = vpack.c.b16 %v1309, %v1309
      %v1342 = vpack.c.b16 %v1310, %v1310
      %v1343 = vpack.c.b16 %v1311, %v1311
      %v1344 = vpack.c.b16 %v1312, %v1312
      %v1345 = vpack.c.b16 %v1313, %v1313
      %v1346 = vpack.c.b16 %v1314, %v1314
      %v1347 = vpack.c.b16 %v1315, %v1315
      %v1348 = vpack.c.b16 %v1316, %v1316
      %1381 = vst [vmem:[%s213] sm:$0xf] %v1317
      %1382 = vst [vmem:[%s213 + $0x4] sm:$0xf] %v1318
      %1383 = vst [vmem:[%s213 + $0x8] sm:$0xf] %v1319
      %1384 = vst [vmem:[%s213 + $0xc] sm:$0xf] %v1320
      %1385 = vst [vmem:[%s213 + $0x10] sm:$0xf] %v1321
      %1386 = vst [vmem:[%s213 + $0x14] sm:$0xf] %v1322
      %1387 = vst [vmem:[%s213 + $0x18] sm:$0xf] %v1323
      %1388 = vst [vmem:[%s213 + $0x1c] sm:$0xf] %v1324
      %1389 = vst [vmem:[%s213 + $0x20] sm:$0xf] %v1325
      %1390 = vst [vmem:[%s213 + $0x24] sm:$0xf] %v1326
      %1391 = vst [vmem:[%s213 + $0x28] sm:$0xf] %v1327
      %1392 = vst [vmem:[%s213 + $0x2c] sm:$0xf] %v1328
      %1393 = vst [vmem:[%s213 + $0x30] sm:$0xf] %v1329
      %1394 = vst [vmem:[%s213 + $0x34] sm:$0xf] %v1330
      %1395 = vst [vmem:[%s213 + $0x38] sm:$0xf] %v1331
      %1396 = vst [vmem:[%s213 + $0x3c] sm:$0xf] %v1332
      %1397 = vst [vmem:[%s213 + $0x40] sm:$0xf] %v1333
      %1398 = vst [vmem:[%s213 + $0x44] sm:$0xf] %v1334
      %1399 = vst [vmem:[%s213 + $0x48] sm:$0xf] %v1335
      %1400 = vst [vmem:[%s213 + $0x4c] sm:$0xf] %v1336
      %1401 = vst [vmem:[%s213 + $0x50] sm:$0xf] %v1337
      %1402 = vst [vmem:[%s213 + $0x54] sm:$0xf] %v1338
      %1403 = vst [vmem:[%s213 + $0x58] sm:$0xf] %v1339
      %1404 = vst [vmem:[%s213 + $0x5c] sm:$0xf] %v1340
      %1405 = vst [vmem:[%s213 + $0x60] sm:$0xf] %v1341
      %1406 = vst [vmem:[%s213 + $0x64] sm:$0xf] %v1342
      %1407 = vst [vmem:[%s213 + $0x68] sm:$0xf] %v1343
      %1408 = vst [vmem:[%s213 + $0x6c] sm:$0xf] %v1344
      %1409 = vst [vmem:[%s213 + $0x70] sm:$0xf] %v1345
      %1410 = vst [vmem:[%s213 + $0x74] sm:$0xf] %v1346
      %1411 = vst [vmem:[%s213 + $0x78] sm:$0xf] %v1347
      %1412 = vst [vmem:[%s213 + $0x7c] sm:$0xf] %v1348
      %s1413 = smul.u32 32, %s16
      %p1414 = scmp.lt.s32.totalorder %s1413, 63
      %s1415 = scalar_select %p1414, %s1413, 63
      %s1416 = smul.addr %s1415, 4
      %s1417 = scalar_lea.vmem %s3, %s1416
      %s1418 = smul.u32 32, %s16
      %p1419 = scmp.lt.s32.totalorder %s1418, 63
      %s1420 = scalar_select %p1419, %s1418, 63
      %s1421 = smul.addr %s1420, 4
      %s1422 = scalar_lea.vmem %s4, %s1421
      // Predicated region
      $region33: #{_lambda_.3} parent=31 // pred_check
        %p1423 = pneg %p102
      $region34: #{_lambda_.3} parent=31 // pred_check_branch
        %1425 = sbr.rel (%p1423) target = $region36
      $region35: #{_lambda_.3} parent=31 // pred_region
        %s1426 = smul.u32 32, %s16
      $region36: #{_lambda_.3} parent=31 // pred_fallthru
        _
      // Predicated region
      $region37: #{_lambda_.3} parent=31 // pred_check
        %p1427 = pneg %p128
      $region38: #{_lambda_.3} parent=31 // pred_check_branch
        %1429 = sbr.rel (%p1427) target = $region40
      $region39: #{_lambda_.3} parent=31 // pred_region
        %s1430 = smul.u32 32, %s16
      $region40: #{_lambda_.3} parent=31 // pred_fallthru
        _
    $region32: #{_lambda_.3} parent=5 // pred_fallthru
      _
    %p1431 = scmp.le.s32.totalorder 2, %s11
    // Predicated region
    $region41: #{_lambda_.3} parent=5 // pred_check
      %p1432 = pneg %p1431
    $region42: #{_lambda_.3} parent=5 // pred_check_branch
      %1434 = sbr.rel (%p1432) target = $region44
    $region43: #{_lambda_.3} parent=5 // pred_region
      %s1435 = ssub.s32 %s11, 2
      // Predicated region
      $region45: #{_lambda_.3} parent=43 // pred_check
        %p1436 = pneg %p108
      $region46: #{_lambda_.3} parent=43 // pred_check_branch
        %1438 = sbr.rel (%p1436) target = $region48
      $region47: #{_lambda_.3} parent=43 // pred_region
        %s1439 = smul.u32 32, %s17
        %p1440 = scmp.lt.s32.totalorder %s1439, 63
        %s1441 = scalar_select %p1440, %s1439, 63
        %s1442 = smul.addr %s1441, 4
        %s1443 = scalar_lea.vmem %s3, %s1442
      $region48: #{_lambda_.3} parent=43 // pred_fallthru
        _
      // Predicated region
      $region49: #{_lambda_.3} parent=43 // pred_check
        %p1444 = pneg %p134
      $region50: #{_lambda_.3} parent=43 // pred_check_branch
        %1446 = sbr.rel (%p1444) target = $region52
      $region51: #{_lambda_.3} parent=43 // pred_region
        %s1447 = smul.u32 32, %s17
        %p1448 = scmp.lt.s32.totalorder %s1447, 63
        %s1449 = scalar_select %p1448, %s1447, 63
        %s1450 = smul.addr %s1449, 4
        %s1451 = scalar_lea.vmem %s4, %s1450
      $region52: #{_lambda_.3} parent=43 // pred_fallthru
        _
    $region44: #{_lambda_.3} parent=5 // pred_fallthru
      _
  $region6: #{_lambda_.3} parent=0 // loop_footer
    %s15 = sadd.s32 1, %s11
  $region7: #{_lambda_.3} parent=0 // loop_footer_branch
    %10 = sbr.rel target = $region3
  $region8: #{_lambda_.3} parent=0 // loop_exit
    _

// kernel: _lambda_.5
$region0: #{_lambda_.5}
  #allocation0 [shape = 'u32[]', space=smem, size = 0x4, offset = 0x4, fixed_abs, tag = 'smem constant byte address 0x4 - core index']
  #allocation1 [shape = 'u32[144,128]{1,0:T(1,128)}', space=vmem, size = 0x12000, scoped, tag = 'internal scratch']
  %s0 = inlined_call_operand.vmem [shape: bf16[512,128], index: 0, kind: input, shape index: {}]
  %s1 = inlined_call_operand.vmem [shape: bf16[512,128], index: 1, kind: input, shape index: {}]
  %s2 = inlined_call_operand.vmem [shape: bf16[128,128], index: 2, kind: input, shape index: {}]
  %s3 = inlined_call_operand.vmem [shape: bf16[128,128], index: 3, kind: input, shape index: {}]
  %s4 = inlined_call_operand.vmem [shape: f32[1,128], index: 4, kind: input, shape index: {}]
  %s5 = inlined_call_operand.vmem [shape: bf16[512,128], index: 5, kind: output, shape index: {}]
  %s6 = sld [smem:[#allocation0]]
  $region53: #{_lambda_.5} parent=0
    _
  %s8 = ssub.s32 1, %s6
  %s9 = scalar_select 0, %s8, %s6
  loop: start=0, step=1, limit=4
  $region2: #{_lambda_.5} parent=0 // loop_pre_header
    _
  $region3: #{_lambda_.5} parent=0 // loop_header
    %s11 = sphi 0, %s15
    %p12 = scmp.ge.s32.totalorder %s11, 4
    %s21 = sphi 0, %s23
    %s24 = sphi 0, %s21
    %s25 = sphi 0, %s24
    %s41 = sphi 0, %s25
    %s47 = sphi 0, %s49
    %s50 = sphi 0, %s47
    %s51 = sphi 0, %s50
    %s67 = sphi 0, %s51
    %s71 = sphi 0, %s71
    %s73 = sphi 0, %s71
    %s74 = sphi 0, %s73
    %s88 = sphi 0, %s74
    %s92 = sphi 0, %s92
    %s94 = sphi 0, %s92
    %s95 = sphi 0, %s94
    %s109 = sphi 0, %s95
    %s113 = sphi 0, %s113
    %s115 = sphi 0, %s113
    %s116 = sphi 0, %s115
    %s130 = sphi 0, %s116
    %s136 = sphi 0, %s138
    %s139 = sphi 0, %s136
    %s140 = sphi 0, %s139
    %s156 = sphi 0, %s140
  $region4: #{_lambda_.5} parent=0 // loop_header_branch
    %14 = sbr.rel (%p12) target = $region8
  $region5: #{_lambda_.5} parent=0 // loop_body
    %s16 = ssub.s32 %s11, 1
    %s17 = ssub.s32 %s11, 2
    %s18 = sadd.s32 %s11, 1
    %s19 = ssub.s32 %s11, %s18
    %p20 = scmp.eq.s32.totalorder %s19, 0
    %s22 = sadd.s32 %s21, 1
    %s23 = scalar_select %p20, %s21, %s22
    %p26 = pneg %p20
    %p27 = scmp.eq.s32.totalorder %s11, 1
    %p28 = por %p26, %p27
    %p29 = scmp.ne.s32.totalorder %s21, %s24
    %p30 = scmp.eq.s32.totalorder %s11, 0
    %p31 = por %p29, %p30
    %p32 = scmp.ne.s32.totalorder %s21, %s24
    %p33 = scmp.eq.s32.totalorder %s16, 1
    %p34 = por %p32, %p33
    %p35 = scmp.ne.s32.totalorder %s24, %s25
    %p36 = scmp.eq.s32.totalorder %s16, 0
    %p37 = por %p35, %p36
    %p38 = scmp.ne.s32.totalorder %s24, %s25
    %p39 = scmp.eq.s32.totalorder %s17, 1
    %p40 = por %p38, %p39
    %p42 = scmp.ne.s32.totalorder %s25, %s41
    %p43 = scmp.eq.s32.totalorder %s17, 0
    %p44 = por %p42, %p43
    %s45 = ssub.s32 %s11, %s18
    %p46 = scmp.eq.s32.totalorder %s45, 0
    %s48 = sadd.s32 %s47, 1
    %s49 = scalar_select %p46, %s47, %s48
    %p52 = pneg %p46
    %p53 = scmp.eq.s32.totalorder %s11, 1
    %p54 = por %p52, %p53
    %p55 = scmp.ne.s32.totalorder %s47, %s50
    %p56 = scmp.eq.s32.totalorder %s11, 0
    %p57 = por %p55, %p56
    %p58 = scmp.ne.s32.totalorder %s47, %s50
    %p59 = scmp.eq.s32.totalorder %s16, 1
    %p60 = por %p58, %p59
    %p61 = scmp.ne.s32.totalorder %s50, %s51
    %p62 = scmp.eq.s32.totalorder %s16, 0
    %p63 = por %p61, %p62
    %p64 = scmp.ne.s32.totalorder %s50, %s51
    %p65 = scmp.eq.s32.totalorder %s17, 1
    %p66 = por %p64, %p65
    %p68 = scmp.ne.s32.totalorder %s51, %s67
    %p69 = scmp.eq.s32.totalorder %s17, 0
    %p70 = por %p68, %p69
    %s72 = sadd.s32 %s71, 1
    %p75 = scmp.eq.s32.totalorder %s11, 1
    %p76 = scmp.ne.s32.totalorder %s71, %s73
    %p77 = scmp.eq.s32.totalorder %s11, 0
    %p78 = por %p76, %p77
    %p79 = scmp.ne.s32.totalorder %s71, %s73
    %p80 = scmp.eq.s32.totalorder %s16, 1
    %p81 = por %p79, %p80
    %p82 = scmp.ne.s32.totalorder %s73, %s74
    %p83 = scmp.eq.s32.totalorder %s16, 0
    %p84 = por %p82, %p83
    %p85 = scmp.ne.s32.totalorder %s73, %s74
    %p86 = scmp.eq.s32.totalorder %s17, 1
    %p87 = por %p85, %p86
    %p89 = scmp.ne.s32.totalorder %s74, %s88
    %p90 = scmp.eq.s32.totalorder %s17, 0
    %p91 = por %p89, %p90
    %s93 = sadd.s32 %s92, 1
    %p96 = scmp.eq.s32.totalorder %s11, 1
    %p97 = scmp.ne.s32.totalorder %s92, %s94
    %p98 = scmp.eq.s32.totalorder %s11, 0
    %p99 = por %p97, %p98
    %p100 = scmp.ne.s32.totalorder %s92, %s94
    %p101 = scmp.eq.s32.totalorder %s16, 1
    %p102 = por %p100, %p101
    %p103 = scmp.ne.s32.totalorder %s94, %s95
    %p104 = scmp.eq.s32.totalorder %s16, 0
    %p105 = por %p103, %p104
    %p106 = scmp.ne.s32.totalorder %s94, %s95
    %p107 = scmp.eq.s32.totalorder %s17, 1
    %p108 = por %p106, %p107
    %p110 = scmp.ne.s32.totalorder %s95, %s109
    %p111 = scmp.eq.s32.totalorder %s17, 0
    %p112 = por %p110, %p111
    %s114 = sadd.s32 %s113, 1
    %p117 = scmp.eq.s32.totalorder %s11, 1
    %p118 = scmp.ne.s32.totalorder %s113, %s115
    %p119 = scmp.eq.s32.totalorder %s11, 0
    %p120 = por %p118, %p119
    %p121 = scmp.ne.s32.totalorder %s113, %s115
    %p122 = scmp.eq.s32.totalorder %s16, 1
    %p123 = por %p121, %p122
    %p124 = scmp.ne.s32.totalorder %s115, %s116
    %p125 = scmp.eq.s32.totalorder %s16, 0
    %p126 = por %p124, %p125
    %p127 = scmp.ne.s32.totalorder %s115, %s116
    %p128 = scmp.eq.s32.totalorder %s17, 1
    %p129 = por %p127, %p128
    %p131 = scmp.ne.s32.totalorder %s116, %s130
    %p132 = scmp.eq.s32.totalorder %s17, 0
    %p133 = por %p131, %p132
    %s134 = ssub.s32 %s11, %s18
    %p135 = scmp.eq.s32.totalorder %s134, 0
    %s137 = sadd.s32 %s136, 1
    %s138 = scalar_select %p135, %s136, %s137
    %p141 = pneg %p135
    %p142 = scmp.eq.s32.totalorder %s11, 1
    %p143 = por %p141, %p142
    %p144 = scmp.ne.s32.totalorder %s136, %s139
    %p145 = scmp.eq.s32.totalorder %s11, 0
    %p146 = por %p144, %p145
    %p147 = scmp.ne.s32.totalorder %s136, %s139
    %p148 = scmp.eq.s32.totalorder %s16, 1
    %p149 = por %p147, %p148
    %p150 = scmp.ne.s32.totalorder %s139, %s140
    %p151 = scmp.eq.s32.totalorder %s16, 0
    %p152 = por %p150, %p151
    %p153 = scmp.ne.s32.totalorder %s139, %s140
    %p154 = scmp.eq.s32.totalorder %s17, 1
    %p155 = por %p153, %p154
    %p157 = scmp.ne.s32.totalorder %s140, %s156
    %p158 = scmp.eq.s32.totalorder %s17, 0
    %p159 = por %p157, %p158
    %p160 = scmp.le.s32.totalorder 1, %s11
    %p161 = scmp.lt.s32.totalorder %s11, 3
    %p162 = pnand %p160, %p161
    %p163 = pneg %p162
    // Predicated region
    $region9: #{_lambda_.5} parent=5 // pred_check
      _
    $region10: #{_lambda_.5} parent=5 // pred_check_branch
      %165 = sbr.rel (%p162) target = $region12
    $region11: #{_lambda_.5} parent=5 // pred_region
      %s166 = ssub.s32 %s11, 1
      // Predicated region
      $region13: #{_lambda_.5} parent=11 // pred_check
        %p167 = pneg %p84
      $region14: #{_lambda_.5} parent=11 // pred_check_branch
        %169 = sbr.rel (%p167) target = $region16
      $region15: #{_lambda_.5} parent=11 // pred_region
        _
      $region16: #{_lambda_.5} parent=11 // pred_fallthru
        _
      // Predicated region
      $region17: #{_lambda_.5} parent=11 // pred_check
        %p170 = pneg %p105
      $region18: #{_lambda_.5} parent=11 // pred_check_branch
        %172 = sbr.rel (%p170) target = $region20
      $region19: #{_lambda_.5} parent=11 // pred_region
        _
      $region20: #{_lambda_.5} parent=11 // pred_fallthru
        _
      // Predicated region
      $region21: #{_lambda_.5} parent=11 // pred_check
        %p173 = pneg %p126
      $region22: #{_lambda_.5} parent=11 // pred_check_branch
        %175 = sbr.rel (%p173) target = $region24
      $region23: #{_lambda_.5} parent=11 // pred_region
        _
      $region24: #{_lambda_.5} parent=11 // pred_fallthru
        _
    $region12: #{_lambda_.5} parent=5 // pred_fallthru
      _
    %p176 = scmp.lt.s32.totalorder %s11, 2
    // Predicated region
    $region25: #{_lambda_.5} parent=5 // pred_check
      %p177 = pneg %p176
    $region26: #{_lambda_.5} parent=5 // pred_check_branch
      %179 = sbr.rel (%p177) target = $region28
    $region27: #{_lambda_.5} parent=5 // pred_region
      // Predicated region
      $region29: #{_lambda_.5} parent=27 // pred_check
        %p180 = pneg %p31
      $region30: #{_lambda_.5} parent=27 // pred_check_branch
        %182 = sbr.rel (%p180) target = $region32
      $region31: #{_lambda_.5} parent=27 // pred_region
        %s183 = smul.u32 32, %s11
        %p184 = scmp.lt.s32.totalorder %s183, 63
        %s185 = scalar_select %p184, %s183, 63
        %s186 = smul.addr %s185, 4
        %s187 = scalar_lea.vmem %s0, %s186
        %s188 = smul.u32 32, %s11
      $region32: #{_lambda_.5} parent=27 // pred_fallthru
        _
      // Predicated region
      $region33: #{_lambda_.5} parent=27 // pred_check
        %p189 = pneg %p57
      $region34: #{_lambda_.5} parent=27 // pred_check_branch
        %191 = sbr.rel (%p189) target = $region36
      $region35: #{_lambda_.5} parent=27 // pred_region
        %s192 = smul.u32 32, %s11
        %p193 = scmp.lt.s32.totalorder %s192, 63
        %s194 = scalar_select %p193, %s192, 63
        %s195 = smul.addr %s194, 4
        %s196 = scalar_lea.vmem %s1, %s195
        %s197 = smul.u32 32, %s11
      $region36: #{_lambda_.5} parent=27 // pred_fallthru
        _
    $region28: #{_lambda_.5} parent=5 // pred_fallthru
      _
    %p198 = scmp.le.s32.totalorder 1, %s11
    %p199 = scmp.lt.s32.totalorder %s11, 3
    %p200 = pnand %p198, %p199
    %p201 = pneg %p200
    // Predicated region
    $region37: #{_lambda_.5} parent=5 // pred_check
      _
    $region38: #{_lambda_.5} parent=5 // pred_check_branch
      %203 = sbr.rel (%p200) target = $region40
    $region39: #{_lambda_.5} parent=5 // pred_region
      %s204 = ssub.s32 %s11, 1
      %s205 = smul.u32 32, %s16
      %p206 = scmp.lt.s32.totalorder %s205, 63
      %s207 = scalar_select %p206, %s205, 63
      %s208 = smul.addr %s207, 4
      %s209 = scalar_lea.vmem %s0, %s208
      %p210 = pneg %p37
      %p211 = pneg %p34
      %s212 = smul.u32 32, %s16
      %p213 = scmp.lt.s32.totalorder %s212, 63
      %s214 = scalar_select %p213, %s212, 63
      %s215 = smul.addr %s214, 4
      %s216 = scalar_lea.vmem %s1, %s215
      %p217 = pneg %p63
      %p218 = pneg %p60
      %p219 = pneg %p84
      %p220 = pneg %p81
      %p221 = pneg %p105
      %p222 = pneg %p102
      %p223 = pneg %p126
      %p224 = pneg %p123
      %p225 = pneg %p152
      %p226 = pneg %p149
      %s227 = smul.u32 32, %s16
      %p228 = scmp.lt.s32.totalorder %s227, 63
      %s229 = scalar_select %p228, %s227, 63
      %s230 = smul.addr %s229, 4
      %s231 = scalar_lea.vmem %s5, %s230
      %s232 = smul.u32 32, %s16
      %p233 = scmp.lt.s32.totalorder %s232, 63
      %s234 = scalar_select %p233, %s232, 63
      %s235 = smul.addr %s234, 4
      %s236 = scalar_lea.vmem %s0, %s235
      %s237 = smul.u32 32, %s16
      %s238 = smul.u32 32, %s16
      %p239 = scmp.lt.s32.totalorder %s238, 63
      %s240 = scalar_select %p239, %s238, 63
      %s241 = smul.addr %s240, 4
      %s242 = scalar_lea.vmem %s1, %s241
      %s243 = smul.u32 32, %s16
      %s244 = smul.u32 32, %s16
      %p245 = scmp.lt.s32.totalorder %s244, 63
      %s246 = scalar_select %p245, %s244, 63
      %s247 = smul.addr %s246, 4
      %s248 = scalar_lea.vmem %s5, %s247
      %s249 = smul.u32 32, %s16
      %v251 = vld [vmem:[%s236] sm:$0xf]
      %v252 = vld [vmem:[%s236 + $0x4] sm:$0xf]
      %v253 = vld [vmem:[%s236 + $0x8] sm:$0xf]
      %v254 = vld [vmem:[%s236 + $0xc] sm:$0xf]
      %v255 = vld [vmem:[%s236 + $0x10] sm:$0xf]
      %v256 = vld [vmem:[%s236 + $0x14] sm:$0xf]
      %v257 = vld [vmem:[%s236 + $0x18] sm:$0xf]
      %v258 = vld [vmem:[%s236 + $0x1c] sm:$0xf]
      %v259 = vld [vmem:[%s236 + $0x20] sm:$0xf]
      %v260 = vld [vmem:[%s236 + $0x24] sm:$0xf]
      %v261 = vld [vmem:[%s236 + $0x28] sm:$0xf]
      %v262 = vld [vmem:[%s236 + $0x2c] sm:$0xf]
      %v263 = vld [vmem:[%s236 + $0x30] sm:$0xf]
      %v264 = vld [vmem:[%s236 + $0x34] sm:$0xf]
      %v265 = vld [vmem:[%s236 + $0x38] sm:$0xf]
      %v266 = vld [vmem:[%s236 + $0x3c] sm:$0xf]
      %v267 = vld [vmem:[%s236 + $0x40] sm:$0xf]
      %v268 = vld [vmem:[%s236 + $0x44] sm:$0xf]
      %v269 = vld [vmem:[%s236 + $0x48] sm:$0xf]
      %v270 = vld [vmem:[%s236 + $0x4c] sm:$0xf]
      %v271 = vld [vmem:[%s236 + $0x50] sm:$0xf]
      %v272 = vld [vmem:[%s236 + $0x54] sm:$0xf]
      %v273 = vld [vmem:[%s236 + $0x58] sm:$0xf]
      %v274 = vld [vmem:[%s236 + $0x5c] sm:$0xf]
      %v275 = vld [vmem:[%s236 + $0x60] sm:$0xf]
      %v276 = vld [vmem:[%s236 + $0x64] sm:$0xf]
      %v277 = vld [vmem:[%s236 + $0x68] sm:$0xf]
      %v278 = vld [vmem:[%s236 + $0x6c] sm:$0xf]
      %v279 = vld [vmem:[%s236 + $0x70] sm:$0xf]
      %v280 = vld [vmem:[%s236 + $0x74] sm:$0xf]
      %v281 = vld [vmem:[%s236 + $0x78] sm:$0xf]
      %v282 = vld [vmem:[%s236 + $0x7c] sm:$0xf]
      %v283 = vld [vmem:[%s2] sm:$0xf]
      %v284 = vld [vmem:[%s2 + $0x4] sm:$0xf]
      %v285 = vld [vmem:[%s2 + $0x8] sm:$0xf]
      %v286 = vld [vmem:[%s2 + $0xc] sm:$0xf]
      %v287 = vld [vmem:[%s2 + $0x10] sm:$0xf]
      %v288 = vld [vmem:[%s2 + $0x14] sm:$0xf]
      %v289 = vld [vmem:[%s2 + $0x18] sm:$0xf]
      %v290 = vld [vmem:[%s2 + $0x1c] sm:$0xf]
      %v291 = vld [vmem:[%s2 + $0x20] sm:$0xf]
      %v292 = vld [vmem:[%s2 + $0x24] sm:$0xf]
      %v293 = vld [vmem:[%s2 + $0x28] sm:$0xf]
      %v294 = vld [vmem:[%s2 + $0x2c] sm:$0xf]
      %v295 = vld [vmem:[%s2 + $0x30] sm:$0xf]
      %v296 = vld [vmem:[%s2 + $0x34] sm:$0xf]
      %v297 = vld [vmem:[%s2 + $0x38] sm:$0xf]
      %v298 = vld [vmem:[%s2 + $0x3c] sm:$0xf]
      %v299 = vld [vmem:[%s242] sm:$0xf]
      %v300 = vld [vmem:[%s242 + $0x4] sm:$0xf]
      %v301 = vld [vmem:[%s242 + $0x8] sm:$0xf]
      %v302 = vld [vmem:[%s242 + $0xc] sm:$0xf]
      %v303 = vld [vmem:[%s242 + $0x10] sm:$0xf]
      %v304 = vld [vmem:[%s242 + $0x14] sm:$0xf]
      %v305 = vld [vmem:[%s242 + $0x18] sm:$0xf]
      %v306 = vld [vmem:[%s242 + $0x1c] sm:$0xf]
      %v307 = vld [vmem:[%s242 + $0x20] sm:$0xf]
      %v308 = vld [vmem:[%s242 + $0x24] sm:$0xf]
      %v309 = vld [vmem:[%s242 + $0x28] sm:$0xf]
      %v310 = vld [vmem:[%s242 + $0x2c] sm:$0xf]
      %v311 = vld [vmem:[%s242 + $0x30] sm:$0xf]
      %v312 = vld [vmem:[%s242 + $0x34] sm:$0xf]
      %v313 = vld [vmem:[%s242 + $0x38] sm:$0xf]
      %v314 = vld [vmem:[%s242 + $0x3c] sm:$0xf]
      %v315 = vld [vmem:[%s242 + $0x40] sm:$0xf]
      %v316 = vld [vmem:[%s242 + $0x44] sm:$0xf]
      %v317 = vld [vmem:[%s242 + $0x48] sm:$0xf]
      %v318 = vld [vmem:[%s242 + $0x4c] sm:$0xf]
      %v319 = vld [vmem:[%s242 + $0x50] sm:$0xf]
      %v320 = vld [vmem:[%s242 + $0x54] sm:$0xf]
      %v321 = vld [vmem:[%s242 + $0x58] sm:$0xf]
      %v322 = vld [vmem:[%s242 + $0x5c] sm:$0xf]
      %v323 = vld [vmem:[%s242 + $0x60] sm:$0xf]
      %v324 = vld [vmem:[%s242 + $0x64] sm:$0xf]
      %v325 = vld [vmem:[%s242 + $0x68] sm:$0xf]
      %v326 = vld [vmem:[%s242 + $0x6c] sm:$0xf]
      %v327 = vld [vmem:[%s242 + $0x70] sm:$0xf]
      %v328 = vld [vmem:[%s242 + $0x74] sm:$0xf]
      %v329 = vld [vmem:[%s242 + $0x78] sm:$0xf]
      %v330 = vld [vmem:[%s242 + $0x7c] sm:$0xf]
      %v331 = vld [vmem:[%s3] sm:$0xf]
      %v332 = vld [vmem:[%s3 + $0x4] sm:$0xf]
      %v333 = vld [vmem:[%s3 + $0x8] sm:$0xf]
      %v334 = vld [vmem:[%s3 + $0xc] sm:$0xf]
      %v335 = vld [vmem:[%s3 + $0x10] sm:$0xf]
      %v336 = vld [vmem:[%s3 + $0x14] sm:$0xf]
      %v337 = vld [vmem:[%s3 + $0x18] sm:$0xf]
      %v338 = vld [vmem:[%s3 + $0x1c] sm:$0xf]
      %v339 = vld [vmem:[%s3 + $0x20] sm:$0xf]
      %v340 = vld [vmem:[%s3 + $0x24] sm:$0xf]
      %v341 = vld [vmem:[%s3 + $0x28] sm:$0xf]
      %v342 = vld [vmem:[%s3 + $0x2c] sm:$0xf]
      %v343 = vld [vmem:[%s3 + $0x30] sm:$0xf]
      %v344 = vld [vmem:[%s3 + $0x34] sm:$0xf]
      %v345 = vld [vmem:[%s3 + $0x38] sm:$0xf]
      %v346 = vld [vmem:[%s3 + $0x3c] sm:$0xf]
      %v379 = vunpack.c.l.b16 %v299
      %v380 = vunpack.c.l.b16 %v300
      %v381 = vunpack.c.l.b16 %v301
      %v382 = vunpack.c.l.b16 %v302
      %v383 = vunpack.c.l.b16 %v303
      %v384 = vunpack.c.l.b16 %v304
      %v385 = vunpack.c.l.b16 %v305
      %v386 = vunpack.c.l.b16 %v306
      %v387 = vunpack.c.l.b16 %v307
      %v388 = vunpack.c.l.b16 %v308
      %v389 = vunpack.c.l.b16 %v309
      %v390 = vunpack.c.l.b16 %v310
      %v391 = vunpack.c.l.b16 %v311
      %v392 = vunpack.c.l.b16 %v312
      %v393 = vunpack.c.l.b16 %v313
      %v394 = vunpack.c.l.b16 %v314
      %v395 = vunpack.c.l.b16 %v315
      %v396 = vunpack.c.l.b16 %v316
      %v397 = vunpack.c.l.b16 %v317
      %v398 = vunpack.c.l.b16 %v318
      %v399 = vunpack.c.l.b16 %v319
      %v400 = vunpack.c.l.b16 %v320
      %v401 = vunpack.c.l.b16 %v321
      %v402 = vunpack.c.l.b16 %v322
      %v403 = vunpack.c.l.b16 %v323
      %v404 = vunpack.c.l.b16 %v324
      %v405 = vunpack.c.l.b16 %v325
      %v406 = vunpack.c.l.b16 %v326
      %v407 = vunpack.c.l.b16 %v327
      %v408 = vunpack.c.l.b16 %v328
      %v409 = vunpack.c.l.b16 %v329
      %v410 = vunpack.c.l.b16 %v330
      %v411 = vpack.c.b16 %v380, %v379
      %v412 = vpack.c.b16 %v382, %v381
      %v413 = vpack.c.b16 %v384, %v383
      %v414 = vpack.c.b16 %v386, %v385
      %v415 = vpack.c.b16 %v388, %v387
      %v416 = vpack.c.b16 %v390, %v389
      %v417 = vpack.c.b16 %v392, %v391
      %v418 = vpack.c.b16 %v394, %v393
      %v419 = vpack.c.b16 %v396, %v395
      %v420 = vpack.c.b16 %v398, %v397
      %v421 = vpack.c.b16 %v400, %v399
      %v422 = vpack.c.b16 %v402, %v401
      %v423 = vpack.c.b16 %v404, %v403
      %v424 = vpack.c.b16 %v406, %v405
      %v425 = vpack.c.b16 %v408, %v407
      %v426 = vpack.c.b16 %v410, %v409
      %v459 = vunpack.c.l.b16 %v331
      %v460 = vunpack.c.l.b16 %v332
      %v461 = vunpack.c.l.b16 %v333
      %v462 = vunpack.c.l.b16 %v334
      %v463 = vunpack.c.l.b16 %v335
      %v464 = vunpack.c.l.b16 %v336
      %v465 = vunpack.c.l.b16 %v337
      %v466 = vunpack.c.l.b16 %v338
      %v467 = vunpack.c.l.b16 %v339
      %v468 = vunpack.c.l.b16 %v340
      %v469 = vunpack.c.l.b16 %v341
      %v470 = vunpack.c.l.b16 %v342
      %v471 = vunpack.c.l.b16 %v343
      %v472 = vunpack.c.l.b16 %v344
      %v473 = vunpack.c.l.b16 %v345
      %v474 = vunpack.c.l.b16 %v346
      %v475 = vpack.c.b16 %v460, %v459
      %v476 = vpack.c.b16 %v462, %v461
      %v477 = vpack.c.b16 %v464, %v463
      %v478 = vpack.c.b16 %v466, %v465
      %v479 = vpack.c.b16 %v468, %v467
      %v480 = vpack.c.b16 %v470, %v469
      %v481 = vpack.c.b16 %v472, %v471
      %v482 = vpack.c.b16 %v474, %v473
      %491 = vmatprep.subr.bf16.mxu0 0
      %492 = vmatpush1.bf16.msra.mxu0 %v482
      %493 = vmatprep.subr.bf16.mxu0 0
      %494 = vmatpush1.bf16.msra.mxu0 %v481
      %495 = vmatprep.subr.bf16.mxu0 0
      %496 = vmatpush1.bf16.msra.mxu0 %v480
      %497 = vmatprep.subr.bf16.mxu0 0
      %498 = vmatpush1.bf16.msra.mxu0 %v479
      %499 = vmatprep.subr.bf16.mxu0 0
      %500 = vmatpush1.bf16.msra.mxu0 %v478
      %501 = vmatprep.subr.bf16.mxu0 0
      %502 = vmatpush1.bf16.msra.mxu0 %v477
      %503 = vmatprep.subr.bf16.mxu0 0
      %504 = vmatpush1.bf16.msra.mxu0 %v476
      %505 = vmatprep.subr.bf16.mxu0 0
      %506 = vmatpush1.bf16.msra.mxu0 %v475
      %507 = vmatprep.subr.bf16.mxu0 0
      %508 = vmatpush2.bf16.msra.mxu0 0
      %509 = vmatprep.subr.bf16.mxu0 0
      %510 = vmatpush2.bf16.msra.mxu0 0
      %511 = vmatprep.subr.bf16.mxu0 0
      %512 = vmatpush2.bf16.msra.mxu0 0
      %513 = vmatprep.subr.bf16.mxu0 0
      %514 = vmatpush2.bf16.msra.mxu0 0
      %515 = vmatprep.subr.bf16.mxu0 0
      %516 = vmatpush2.bf16.msra.mxu0 0
      %517 = vmatprep.subr.bf16.mxu0 0
      %518 = vmatpush2.bf16.msra.mxu0 0
      %519 = vmatprep.subr.bf16.mxu0 0
      %520 = vmatpush2.bf16.msra.mxu0 0
      %521 = vmatprep.subr.bf16.mxu0 0
      %522 = vmatpush2.bf16.msra.mxu0 0
      %523 = vmatprep.mubr.bf16.mxu0 0
      %524 = vmatmul.mubr.bf16.gmra.mxu0 %v411
      %v525 = vpop.f32.mrf.mxu0
      %v526 = vadd.f32 0.0, %v525
      %v527 = vpop.f32.mrf.mxu0
      %v528 = vpop.f32.mrf.mxu0
      %v529 = vadd.f32 0.0, %v528
      %v530 = vpop.f32.mrf.mxu0
      %531 = vmatprep.mubr.bf16.mxu0 0
      %532 = vmatmul.mubr.bf16.gmra.mxu0 %v412
      %v533 = vpop.f32.mrf.mxu0
      %v534 = vadd.f32 0.0, %v533
      %v535 = vpop.f32.mrf.mxu0
      %v536 = vpop.f32.mrf.mxu0
      %v537 = vadd.f32 0.0, %v536
      %v538 = vpop.f32.mrf.mxu0
      %539 = vmatprep.mubr.bf16.mxu0 0
      %540 = vmatmul.mubr.bf16.gmra.mxu0 %v413
      %v541 = vpop.f32.mrf.mxu0
      %v542 = vadd.f32 0.0, %v541
      %v543 = vpop.f32.mrf.mxu0
      %v544 = vpop.f32.mrf.mxu0
      %v545 = vadd.f32 0.0, %v544
      %v546 = vpop.f32.mrf.mxu0
      %547 = vmatprep.mubr.bf16.mxu0 0
      %548 = vmatmul.mubr.bf16.gmra.mxu0 %v414
      %v549 = vpop.f32.mrf.mxu0
      %v550 = vadd.f32 0.0, %v549
      %v551 = vpop.f32.mrf.mxu0
      %v552 = vpop.f32.mrf.mxu0
      %v553 = vadd.f32 0.0, %v552
      %v554 = vpop.f32.mrf.mxu0
      %555 = vmatprep.mubr.bf16.mxu0 0
      %556 = vmatmul.mubr.bf16.gmra.mxu0 %v415
      %v557 = vpop.f32.mrf.mxu0
      %v558 = vadd.f32 0.0, %v557
      %v559 = vpop.f32.mrf.mxu0
      %v560 = vpop.f32.mrf.mxu0
      %v561 = vadd.f32 0.0, %v560
      %v562 = vpop.f32.mrf.mxu0
      %563 = vmatprep.mubr.bf16.mxu0 0
      %564 = vmatmul.mubr.bf16.gmra.mxu0 %v416
      %v565 = vpop.f32.mrf.mxu0
      %v566 = vadd.f32 0.0, %v565
      %v567 = vpop.f32.mrf.mxu0
      %v568 = vpop.f32.mrf.mxu0
      %v569 = vadd.f32 0.0, %v568
      %v570 = vpop.f32.mrf.mxu0
      %571 = vmatprep.mubr.bf16.mxu0 0
      %572 = vmatmul.mubr.bf16.gmra.mxu0 %v417
      %v573 = vpop.f32.mrf.mxu0
      %v574 = vadd.f32 0.0, %v573
      %v575 = vpop.f32.mrf.mxu0
      %v576 = vpop.f32.mrf.mxu0
      %v577 = vadd.f32 0.0, %v576
      %v578 = vpop.f32.mrf.mxu0
      %579 = vmatprep.mubr.bf16.mxu0 0
      %580 = vmatmul.mubr.bf16.gmra.mxu0 %v418
      %v581 = vpop.f32.mrf.mxu0
      %v582 = vadd.f32 0.0, %v581
      %v583 = vpop.f32.mrf.mxu0
      %v584 = vpop.f32.mrf.mxu0
      %v585 = vadd.f32 0.0, %v584
      %v586 = vpop.f32.mrf.mxu0
      %587 = vmatprep.mubr.bf16.mxu0 0
      %588 = vmatmul.mubr.bf16.gmra.mxu0 %v419
      %v589 = vpop.f32.mrf.mxu0
      %v590 = vadd.f32 0.0, %v589
      %v591 = vpop.f32.mrf.mxu0
      %v592 = vpop.f32.mrf.mxu0
      %v593 = vadd.f32 0.0, %v592
      %v594 = vpop.f32.mrf.mxu0
      %595 = vmatprep.mubr.bf16.mxu0 0
      %596 = vmatmul.mubr.bf16.gmra.mxu0 %v420
      %v597 = vpop.f32.mrf.mxu0
      %v598 = vadd.f32 0.0, %v597
      %v599 = vpop.f32.mrf.mxu0
      %v600 = vpop.f32.mrf.mxu0
      %v601 = vadd.f32 0.0, %v600
      %v602 = vpop.f32.mrf.mxu0
      %603 = vmatprep.mubr.bf16.mxu0 0
      %604 = vmatmul.mubr.bf16.gmra.mxu0 %v421
      %v605 = vpop.f32.mrf.mxu0
      %v606 = vadd.f32 0.0, %v605
      %v607 = vpop.f32.mrf.mxu0
      %v608 = vpop.f32.mrf.mxu0
      %v609 = vadd.f32 0.0, %v608
      %v610 = vpop.f32.mrf.mxu0
      %611 = vmatprep.mubr.bf16.mxu0 0
      %612 = vmatmul.mubr.bf16.gmra.mxu0 %v422
      %v613 = vpop.f32.mrf.mxu0
      %v614 = vadd.f32 0.0, %v613
      %v615 = vpop.f32.mrf.mxu0
      %v616 = vpop.f32.mrf.mxu0
      %v617 = vadd.f32 0.0, %v616
      %v618 = vpop.f32.mrf.mxu0
      %619 = vmatprep.mubr.bf16.mxu0 0
      %620 = vmatmul.mubr.bf16.gmra.mxu0 %v423
      %v621 = vpop.f32.mrf.mxu0
      %v622 = vadd.f32 0.0, %v621
      %v623 = vpop.f32.mrf.mxu0
      %v624 = vpop.f32.mrf.mxu0
      %v625 = vadd.f32 0.0, %v624
      %v626 = vpop.f32.mrf.mxu0
      %627 = vmatprep.mubr.bf16.mxu0 0
      %628 = vmatmul.mubr.bf16.gmra.mxu0 %v424
      %v629 = vpop.f32.mrf.mxu0
      %v630 = vadd.f32 0.0, %v629
      %v631 = vpop.f32.mrf.mxu0
      %v632 = vpop.f32.mrf.mxu0
      %v633 = vadd.f32 0.0, %v632
      %v634 = vpop.f32.mrf.mxu0
      %635 = vmatprep.mubr.bf16.mxu0 0
      %636 = vmatmul.mubr.bf16.gmra.mxu0 %v425
      %v637 = vpop.f32.mrf.mxu0
      %v638 = vadd.f32 0.0, %v637
      %v639 = vpop.f32.mrf.mxu0
      %v640 = vpop.f32.mrf.mxu0
      %v641 = vadd.f32 0.0, %v640
      %v642 = vpop.f32.mrf.mxu0
      %643 = vmatprep.mubr.bf16.mxu0 0
      %644 = vmatmul.mubr.bf16.gmra.mxu0 %v426
      %v645 = vpop.f32.mrf.mxu0
      %v646 = vadd.f32 0.0, %v645
      %v647 = vpop.f32.mrf.mxu0
      %v648 = vpop.f32.mrf.mxu0
      %v649 = vadd.f32 0.0, %v648
      %v650 = vpop.f32.mrf.mxu0
      %651 = vdwg.mxu0
      %v684 = vunpack.c.l.b16 %v251
      %v685 = vunpack.c.l.b16 %v252
      %v686 = vunpack.c.l.b16 %v253
      %v687 = vunpack.c.l.b16 %v254
      %v688 = vunpack.c.l.b16 %v255
      %v689 = vunpack.c.l.b16 %v256
      %v690 = vunpack.c.l.b16 %v257
      %v691 = vunpack.c.l.b16 %v258
      %v692 = vunpack.c.l.b16 %v259
      %v693 = vunpack.c.l.b16 %v260
      %v694 = vunpack.c.l.b16 %v261
      %v695 = vunpack.c.l.b16 %v262
      %v696 = vunpack.c.l.b16 %v263
      %v697 = vunpack.c.l.b16 %v264
      %v698 = vunpack.c.l.b16 %v265
      %v699 = vunpack.c.l.b16 %v266
      %v700 = vunpack.c.l.b16 %v267
      %v701 = vunpack.c.l.b16 %v268
      %v702 = vunpack.c.l.b16 %v269
      %v703 = vunpack.c.l.b16 %v270
      %v704 = vunpack.c.l.b16 %v271
      %v705 = vunpack.c.l.b16 %v272
      %v706 = vunpack.c.l.b16 %v273
      %v707 = vunpack.c.l.b16 %v274
      %v708 = vunpack.c.l.b16 %v275
      %v709 = vunpack.c.l.b16 %v276
      %v710 = vunpack.c.l.b16 %v277
      %v711 = vunpack.c.l.b16 %v278
      %v712 = vunpack.c.l.b16 %v279
      %v713 = vunpack.c.l.b16 %v280
      %v714 = vunpack.c.l.b16 %v281
      %v715 = vunpack.c.l.b16 %v282
      %v716 = vpack.c.b16 %v685, %v684
      %v717 = vpack.c.b16 %v687, %v686
      %v718 = vpack.c.b16 %v689, %v688
      %v719 = vpack.c.b16 %v691, %v690
      %v720 = vpack.c.b16 %v693, %v692
      %v721 = vpack.c.b16 %v695, %v694
      %v722 = vpack.c.b16 %v697, %v696
      %v723 = vpack.c.b16 %v699, %v698
      %v724 = vpack.c.b16 %v701, %v700
      %v725 = vpack.c.b16 %v703, %v702
      %v726 = vpack.c.b16 %v705, %v704
      %v727 = vpack.c.b16 %v707, %v706
      %v728 = vpack.c.b16 %v709, %v708
      %v729 = vpack.c.b16 %v711, %v710
      %v730 = vpack.c.b16 %v713, %v712
      %v731 = vpack.c.b16 %v715, %v714
      %v764 = vunpack.c.l.b16 %v283
      %v765 = vunpack.c.l.b16 %v284
      %v766 = vunpack.c.l.b16 %v285
      %v767 = vunpack.c.l.b16 %v286
      %v768 = vunpack.c.l.b16 %v287
      %v769 = vunpack.c.l.b16 %v288
      %v770 = vunpack.c.l.b16 %v289
      %v771 = vunpack.c.l.b16 %v290
      %v772 = vunpack.c.l.b16 %v291
      %v773 = vunpack.c.l.b16 %v292
      %v774 = vunpack.c.l.b16 %v293
      %v775 = vunpack.c.l.b16 %v294
      %v776 = vunpack.c.l.b16 %v295
      %v777 = vunpack.c.l.b16 %v296
      %v778 = vunpack.c.l.b16 %v297
      %v779 = vunpack.c.l.b16 %v298
      %v780 = vpack.c.b16 %v765, %v764
      %v781 = vpack.c.b16 %v767, %v766
      %v782 = vpack.c.b16 %v769, %v768
      %v783 = vpack.c.b16 %v771, %v770
      %v784 = vpack.c.b16 %v773, %v772
      %v785 = vpack.c.b16 %v775, %v774
      %v786 = vpack.c.b16 %v777, %v776
      %v787 = vpack.c.b16 %v779, %v778
      %796 = vmatprep.subr.bf16.mxu0 0
      %797 = vmatpush1.bf16.msra.mxu0 %v787
      %798 = vmatprep.subr.bf16.mxu0 0
      %799 = vmatpush1.bf16.msra.mxu0 %v786
      %800 = vmatprep.subr.bf16.mxu0 0
      %801 = vmatpush1.bf16.msra.mxu0 %v785
      %802 = vmatprep.subr.bf16.mxu0 0
      %803 = vmatpush1.bf16.msra.mxu0 %v784
      %804 = vmatprep.subr.bf16.mxu0 0
      %805 = vmatpush1.bf16.msra.mxu0 %v783
      %806 = vmatprep.subr.bf16.mxu0 0
      %807 = vmatpush1.bf16.msra.mxu0 %v782
      %808 = vmatprep.subr.bf16.mxu0 0
      %809 = vmatpush1.bf16.msra.mxu0 %v781
      %810 = vmatprep.subr.bf16.mxu0 0
      %811 = vmatpush1.bf16.msra.mxu0 %v780
      %812 = vmatprep.subr.bf16.mxu0 0
      %813 = vmatpush2.bf16.msra.mxu0 0
      %814 = vmatprep.subr.bf16.mxu0 0
      %815 = vmatpush2.bf16.msra.mxu0 0
      %816 = vmatprep.subr.bf16.mxu0 0
      %817 = vmatpush2.bf16.msra.mxu0 0
      %818 = vmatprep.subr.bf16.mxu0 0
      %819 = vmatpush2.bf16.msra.mxu0 0
      %820 = vmatprep.subr.bf16.mxu0 0
      %821 = vmatpush2.bf16.msra.mxu0 0
      %822 = vmatprep.subr.bf16.mxu0 0
      %823 = vmatpush2.bf16.msra.mxu0 0
      %824 = vmatprep.subr.bf16.mxu0 0
      %825 = vmatpush2.bf16.msra.mxu0 0
      %826 = vmatprep.subr.bf16.mxu0 0
      %827 = vmatpush2.bf16.msra.mxu0 0
      %828 = vmatprep.mubr.bf16.mxu0 0
      %829 = vmatmul.mubr.bf16.gmra.mxu0 %v716
      %v830 = vpop.f32.mrf.mxu0
      %v831 = vadd.f32 %v526, %v830
      %v832 = vpop.f32.mrf.mxu0
      %v833 = vpop.f32.mrf.mxu0
      %v834 = vadd.f32 %v529, %v833
      %v835 = vpop.f32.mrf.mxu0
      %836 = vmatprep.mubr.bf16.mxu0 0
      %837 = vmatmul.mubr.bf16.gmra.mxu0 %v717
      %v838 = vpop.f32.mrf.mxu0
      %v839 = vadd.f32 %v534, %v838
      %v840 = vpop.f32.mrf.mxu0
      %v841 = vpop.f32.mrf.mxu0
      %v842 = vadd.f32 %v537, %v841
      %v843 = vpop.f32.mrf.mxu0
      %844 = vmatprep.mubr.bf16.mxu0 0
      %845 = vmatmul.mubr.bf16.gmra.mxu0 %v718
      %v846 = vpop.f32.mrf.mxu0
      %v847 = vadd.f32 %v542, %v846
      %v848 = vpop.f32.mrf.mxu0
      %v849 = vpop.f32.mrf.mxu0
      %v850 = vadd.f32 %v545, %v849
      %v851 = vpop.f32.mrf.mxu0
      %852 = vmatprep.mubr.bf16.mxu0 0
      %853 = vmatmul.mubr.bf16.gmra.mxu0 %v719
      %v854 = vpop.f32.mrf.mxu0
      %v855 = vadd.f32 %v550, %v854
      %v856 = vpop.f32.mrf.mxu0
      %v857 = vpop.f32.mrf.mxu0
      %v858 = vadd.f32 %v553, %v857
      %v859 = vpop.f32.mrf.mxu0
      %860 = vmatprep.mubr.bf16.mxu0 0
      %861 = vmatmul.mubr.bf16.gmra.mxu0 %v720
      %v862 = vpop.f32.mrf.mxu0
      %v863 = vadd.f32 %v558, %v862
      %v864 = vpop.f32.mrf.mxu0
      %v865 = vpop.f32.mrf.mxu0
      %v866 = vadd.f32 %v561, %v865
      %v867 = vpop.f32.mrf.mxu0
      %868 = vmatprep.mubr.bf16.mxu0 0
      %869 = vmatmul.mubr.bf16.gmra.mxu0 %v721
      %v870 = vpop.f32.mrf.mxu0
      %v871 = vadd.f32 %v566, %v870
      %v872 = vpop.f32.mrf.mxu0
      %v873 = vpop.f32.mrf.mxu0
      %v874 = vadd.f32 %v569, %v873
      %v875 = vpop.f32.mrf.mxu0
      %876 = vmatprep.mubr.bf16.mxu0 0
      %877 = vmatmul.mubr.bf16.gmra.mxu0 %v722
      %v878 = vpop.f32.mrf.mxu0
      %v879 = vadd.f32 %v574, %v878
      %v880 = vpop.f32.mrf.mxu0
      %v881 = vpop.f32.mrf.mxu0
      %v882 = vadd.f32 %v577, %v881
      %v883 = vpop.f32.mrf.mxu0
      %884 = vmatprep.mubr.bf16.mxu0 0
      %885 = vmatmul.mubr.bf16.gmra.mxu0 %v723
      %v886 = vpop.f32.mrf.mxu0
      %v887 = vadd.f32 %v582, %v886
      %v888 = vpop.f32.mrf.mxu0
      %v889 = vpop.f32.mrf.mxu0
      %v890 = vadd.f32 %v585, %v889
      %v891 = vpop.f32.mrf.mxu0
      %892 = vmatprep.mubr.bf16.mxu0 0
      %893 = vmatmul.mubr.bf16.gmra.mxu0 %v724
      %v894 = vpop.f32.mrf.mxu0
      %v895 = vadd.f32 %v590, %v894
      %v896 = vpop.f32.mrf.mxu0
      %v897 = vpop.f32.mrf.mxu0
      %v898 = vadd.f32 %v593, %v897
      %v899 = vpop.f32.mrf.mxu0
      %900 = vmatprep.mubr.bf16.mxu0 0
      %901 = vmatmul.mubr.bf16.gmra.mxu0 %v725
      %v902 = vpop.f32.mrf.mxu0
      %v903 = vadd.f32 %v598, %v902
      %v904 = vpop.f32.mrf.mxu0
      %v905 = vpop.f32.mrf.mxu0
      %v906 = vadd.f32 %v601, %v905
      %v907 = vpop.f32.mrf.mxu0
      %908 = vmatprep.mubr.bf16.mxu0 0
      %909 = vmatmul.mubr.bf16.gmra.mxu0 %v726
      %v910 = vpop.f32.mrf.mxu0
      %v911 = vadd.f32 %v606, %v910
      %v912 = vpop.f32.mrf.mxu0
      %v913 = vpop.f32.mrf.mxu0
      %v914 = vadd.f32 %v609, %v913
      %v915 = vpop.f32.mrf.mxu0
      %916 = vmatprep.mubr.bf16.mxu0 0
      %917 = vmatmul.mubr.bf16.gmra.mxu0 %v727
      %v918 = vpop.f32.mrf.mxu0
      %v919 = vadd.f32 %v614, %v918
      %v920 = vpop.f32.mrf.mxu0
      %v921 = vpop.f32.mrf.mxu0
      %v922 = vadd.f32 %v617, %v921
      %v923 = vpop.f32.mrf.mxu0
      %924 = vmatprep.mubr.bf16.mxu0 0
      %925 = vmatmul.mubr.bf16.gmra.mxu0 %v728
      %v926 = vpop.f32.mrf.mxu0
      %v927 = vadd.f32 %v622, %v926
      %v928 = vpop.f32.mrf.mxu0
      %v929 = vpop.f32.mrf.mxu0
      %v930 = vadd.f32 %v625, %v929
      %v931 = vpop.f32.mrf.mxu0
      %932 = vmatprep.mubr.bf16.mxu0 0
      %933 = vmatmul.mubr.bf16.gmra.mxu0 %v729
      %v934 = vpop.f32.mrf.mxu0
      %v935 = vadd.f32 %v630, %v934
      %v936 = vpop.f32.mrf.mxu0
      %v937 = vpop.f32.mrf.mxu0
      %v938 = vadd.f32 %v633, %v937
      %v939 = vpop.f32.mrf.mxu0
      %940 = vmatprep.mubr.bf16.mxu0 0
      %941 = vmatmul.mubr.bf16.gmra.mxu0 %v730
      %v942 = vpop.f32.mrf.mxu0
      %v943 = vadd.f32 %v638, %v942
      %v944 = vpop.f32.mrf.mxu0
      %v945 = vpop.f32.mrf.mxu0
      %v946 = vadd.f32 %v641, %v945
      %v947 = vpop.f32.mrf.mxu0
      %948 = vmatprep.mubr.bf16.mxu0 0
      %949 = vmatmul.mubr.bf16.gmra.mxu0 %v731
      %v950 = vpop.f32.mrf.mxu0
      %v951 = vadd.f32 %v646, %v950
      %v952 = vpop.f32.mrf.mxu0
      %v953 = vpop.f32.mrf.mxu0
      %v954 = vadd.f32 %v649, %v953
      %v955 = vpop.f32.mrf.mxu0
      %956 = vdwg.mxu0
      %v957 = vld [vmem:[%s4] sm:$0x1]
      %v959 = vlaneseq
      %v960 = vshrl.u32 %v959, 7
      %v961 = vsub.s32 0, %v960
      %v962 = vrot.slane %v957, %v961
      %v964 = vadd.f32 %v831, %v962
      %v965 = vadd.f32 %v834, %v962
      %v966 = vadd.f32 %v839, %v962
      %v967 = vadd.f32 %v842, %v962
      %v968 = vadd.f32 %v847, %v962
      %v969 = vadd.f32 %v850, %v962
      %v970 = vadd.f32 %v855, %v962
      %v971 = vadd.f32 %v858, %v962
      %v972 = vadd.f32 %v863, %v962
      %v973 = vadd.f32 %v866, %v962
      %v974 = vadd.f32 %v871, %v962
      %v975 = vadd.f32 %v874, %v962
      %v976 = vadd.f32 %v879, %v962
      %v977 = vadd.f32 %v882, %v962
      %v978 = vadd.f32 %v887, %v962
      %v979 = vadd.f32 %v890, %v962
      %v980 = vadd.f32 %v895, %v962
      %v981 = vadd.f32 %v898, %v962
      %v982 = vadd.f32 %v903, %v962
      %v983 = vadd.f32 %v906, %v962
      %v984 = vadd.f32 %v911, %v962
      %v985 = vadd.f32 %v914, %v962
      %v986 = vadd.f32 %v919, %v962
      %v987 = vadd.f32 %v922, %v962
      %v988 = vadd.f32 %v927, %v962
      %v989 = vadd.f32 %v930, %v962
      %v990 = vadd.f32 %v935, %v962
      %v991 = vadd.f32 %v938, %v962
      %v992 = vadd.f32 %v943, %v962
      %v993 = vadd.f32 %v946, %v962
      %v994 = vadd.f32 %v951, %v962
      %v995 = vadd.f32 %v954, %v962
      %v996 = vxor.u32 %v964, 2147483648
      %v997 = vxor.u32 %v965, 2147483648
      %v998 = vxor.u32 %v966, 2147483648
      %v999 = vxor.u32 %v967, 2147483648
      %v1000 = vxor.u32 %v968, 2147483648
      %v1001 = vxor.u32 %v969, 2147483648
      %v1002 = vxor.u32 %v970, 2147483648
      %v1003 = vxor.u32 %v971, 2147483648
      %v1004 = vxor.u32 %v972, 2147483648
      %v1005 = vxor.u32 %v973, 2147483648
      %v1006 = vxor.u32 %v974, 2147483648
      %v1007 = vxor.u32 %v975, 2147483648
      %v1008 = vxor.u32 %v976, 2147483648
      %v1009 = vxor.u32 %v977, 2147483648
      %v1010 = vxor.u32 %v978, 2147483648
      %v1011 = vxor.u32 %v979, 2147483648
      %v1012 = vxor.u32 %v980, 2147483648
      %v1013 = vxor.u32 %v981, 2147483648
      %v1014 = vxor.u32 %v982, 2147483648
      %v1015 = vxor.u32 %v983, 2147483648
      %v1016 = vxor.u32 %v984, 2147483648
      %v1017 = vxor.u32 %v985, 2147483648
      %v1018 = vxor.u32 %v986, 2147483648
      %v1019 = vxor.u32 %v987, 2147483648
      %v1020 = vxor.u32 %v988, 2147483648
      %v1021 = vxor.u32 %v989, 2147483648
      %v1022 = vxor.u32 %v990, 2147483648
      %v1023 = vxor.u32 %v991, 2147483648
      %v1024 = vxor.u32 %v992, 2147483648
      %v1025 = vxor.u32 %v993, 2147483648
      %v1026 = vxor.u32 %v994, 2147483648
      %v1027 = vxor.u32 %v995, 2147483648
      %v1028 = vmul.f32 %v996, 1.442695
      %v1029 = vpow.pop %v1028
      %v1030 = vmul.f32 %v997, 1.442695
      %v1031 = vpow.pop %v1030
      %v1032 = vmul.f32 %v998, 1.442695
      %v1033 = vpow.pop %v1032
      %v1034 = vmul.f32 %v999, 1.442695
      %v1035 = vpow.pop %v1034
      %v1036 = vmul.f32 %v1000, 1.442695
      %v1037 = vpow.pop %v1036
      %v1038 = vmul.f32 %v1001, 1.442695
      %v1039 = vpow.pop %v1038
      %v1040 = vmul.f32 %v1002, 1.442695
      %v1041 = vpow.pop %v1040
      %v1042 = vmul.f32 %v1003, 1.442695
      %v1043 = vpow.pop %v1042
      %v1044 = vmul.f32 %v1004, 1.442695
      %v1045 = vpow.pop %v1044
      %v1046 = vmul.f32 %v1005, 1.442695
      %v1047 = vpow.pop %v1046
      %v1048 = vmul.f32 %v1006, 1.442695
      %v1049 = vpow.pop %v1048
      %v1050 = vmul.f32 %v1007, 1.442695
      %v1051 = vpow.pop %v1050
      %v1052 = vmul.f32 %v1008, 1.442695
      %v1053 = vpow.pop %v1052
      %v1054 = vmul.f32 %v1009, 1.442695
      %v1055 = vpow.pop %v1054
      %v1056 = vmul.f32 %v1010, 1.442695
      %v1057 = vpow.pop %v1056
      %v1058 = vmul.f32 %v1011, 1.442695
      %v1059 = vpow.pop %v1058
      %v1060 = vmul.f32 %v1012, 1.442695
      %v1061 = vpow.pop %v1060
      %v1062 = vmul.f32 %v1013, 1.442695
      %v1063 = vpow.pop %v1062
      %v1064 = vmul.f32 %v1014, 1.442695
      %v1065 = vpow.pop %v1064
      %v1066 = vmul.f32 %v1015, 1.442695
      %v1067 = vpow.pop %v1066
      %v1068 = vmul.f32 %v1016, 1.442695
      %v1069 = vpow.pop %v1068
      %v1070 = vmul.f32 %v1017, 1.442695
      %v1071 = vpow.pop %v1070
      %v1072 = vmul.f32 %v1018, 1.442695
      %v1073 = vpow.pop %v1072
      %v1074 = vmul.f32 %v1019, 1.442695
      %v1075 = vpow.pop %v1074
      %v1076 = vmul.f32 %v1020, 1.442695
      %v1077 = vpow.pop %v1076
      %v1078 = vmul.f32 %v1021, 1.442695
      %v1079 = vpow.pop %v1078
      %v1080 = vmul.f32 %v1022, 1.442695
      %v1081 = vpow.pop %v1080
      %v1082 = vmul.f32 %v1023, 1.442695
      %v1083 = vpow.pop %v1082
      %v1084 = vmul.f32 %v1024, 1.442695
      %v1085 = vpow.pop %v1084
      %v1086 = vmul.f32 %v1025, 1.442695
      %v1087 = vpow.pop %v1086
      %v1088 = vmul.f32 %v1026, 1.442695
      %v1089 = vpow.pop %v1088
      %v1090 = vmul.f32 %v1027, 1.442695
      %v1091 = vpow.pop %v1090
      %v1092 = vadd.f32 %v1029, 1.0
      %v1093 = vadd.f32 %v1031, 1.0
      %v1094 = vadd.f32 %v1033, 1.0
      %v1095 = vadd.f32 %v1035, 1.0
      %v1096 = vadd.f32 %v1037, 1.0
      %v1097 = vadd.f32 %v1039, 1.0
      %v1098 = vadd.f32 %v1041, 1.0
      %v1099 = vadd.f32 %v1043, 1.0
      %v1100 = vadd.f32 %v1045, 1.0
      %v1101 = vadd.f32 %v1047, 1.0
      %v1102 = vadd.f32 %v1049, 1.0
      %v1103 = vadd.f32 %v1051, 1.0
      %v1104 = vadd.f32 %v1053, 1.0
      %v1105 = vadd.f32 %v1055, 1.0
      %v1106 = vadd.f32 %v1057, 1.0
      %v1107 = vadd.f32 %v1059, 1.0
      %v1108 = vadd.f32 %v1061, 1.0
      %v1109 = vadd.f32 %v1063, 1.0
      %v1110 = vadd.f32 %v1065, 1.0
      %v1111 = vadd.f32 %v1067, 1.0
      %v1112 = vadd.f32 %v1069, 1.0
      %v1113 = vadd.f32 %v1071, 1.0
      %v1114 = vadd.f32 %v1073, 1.0
      %v1115 = vadd.f32 %v1075, 1.0
      %v1116 = vadd.f32 %v1077, 1.0
      %v1117 = vadd.f32 %v1079, 1.0
      %v1118 = vadd.f32 %v1081, 1.0
      %v1119 = vadd.f32 %v1083, 1.0
      %v1120 = vadd.f32 %v1085, 1.0
      %v1121 = vadd.f32 %v1087, 1.0
      %v1122 = vadd.f32 %v1089, 1.0
      %v1123 = vadd.f32 %v1091, 1.0
      %v1124 = vrcp.pop %v1092
      %v1125 = vmul.f32 1.0, %v1124
      %v1126 = vrcp.pop %v1093
      %v1127 = vmul.f32 1.0, %v1126
      %v1128 = vrcp.pop %v1094
      %v1129 = vmul.f32 1.0, %v1128
      %v1130 = vrcp.pop %v1095
      %v1131 = vmul.f32 1.0, %v1130
      %v1132 = vrcp.pop %v1096
      %v1133 = vmul.f32 1.0, %v1132
      %v1134 = vrcp.pop %v1097
      %v1135 = vmul.f32 1.0, %v1134
      %v1136 = vrcp.pop %v1098
      %v1137 = vmul.f32 1.0, %v1136
      %v1138 = vrcp.pop %v1099
      %v1139 = vmul.f32 1.0, %v1138
      %v1140 = vrcp.pop %v1100
      %v1141 = vmul.f32 1.0, %v1140
      %v1142 = vrcp.pop %v1101
      %v1143 = vmul.f32 1.0, %v1142
      %v1144 = vrcp.pop %v1102
      %v1145 = vmul.f32 1.0, %v1144
      %v1146 = vrcp.pop %v1103
      %v1147 = vmul.f32 1.0, %v1146
      %v1148 = vrcp.pop %v1104
      %v1149 = vmul.f32 1.0, %v1148
      %v1150 = vrcp.pop %v1105
      %v1151 = vmul.f32 1.0, %v1150
      %v1152 = vrcp.pop %v1106
      %v1153 = vmul.f32 1.0, %v1152
      %v1154 = vrcp.pop %v1107
      %v1155 = vmul.f32 1.0, %v1154
      %v1156 = vrcp.pop %v1108
      %v1157 = vmul.f32 1.0, %v1156
      %v1158 = vrcp.pop %v1109
      %v1159 = vmul.f32 1.0, %v1158
      %v1160 = vrcp.pop %v1110
      %v1161 = vmul.f32 1.0, %v1160
      %v1162 = vrcp.pop %v1111
      %v1163 = vmul.f32 1.0, %v1162
      %v1164 = vrcp.pop %v1112
      %v1165 = vmul.f32 1.0, %v1164
      %v1166 = vrcp.pop %v1113
      %v1167 = vmul.f32 1.0, %v1166
      %v1168 = vrcp.pop %v1114
      %v1169 = vmul.f32 1.0, %v1168
      %v1170 = vrcp.pop %v1115
      %v1171 = vmul.f32 1.0, %v1170
      %v1172 = vrcp.pop %v1116
      %v1173 = vmul.f32 1.0, %v1172
      %v1174 = vrcp.pop %v1117
      %v1175 = vmul.f32 1.0, %v1174
      %v1176 = vrcp.pop %v1118
      %v1177 = vmul.f32 1.0, %v1176
      %v1178 = vrcp.pop %v1119
      %v1179 = vmul.f32 1.0, %v1178
      %v1180 = vrcp.pop %v1120
      %v1181 = vmul.f32 1.0, %v1180
      %v1182 = vrcp.pop %v1121
      %v1183 = vmul.f32 1.0, %v1182
      %v1184 = vrcp.pop %v1122
      %v1185 = vmul.f32 1.0, %v1184
      %v1186 = vrcp.pop %v1123
      %v1187 = vmul.f32 1.0, %v1186
      %v1188 = vmul.f32 %v964, %v1125
      %v1189 = vmul.f32 %v965, %v1127
      %v1190 = vmul.f32 %v966, %v1129
      %v1191 = vmul.f32 %v967, %v1131
      %v1192 = vmul.f32 %v968, %v1133
      %v1193 = vmul.f32 %v969, %v1135
      %v1194 = vmul.f32 %v970, %v1137
      %v1195 = vmul.f32 %v971, %v1139
      %v1196 = vmul.f32 %v972, %v1141
      %v1197 = vmul.f32 %v973, %v1143
      %v1198 = vmul.f32 %v974, %v1145
      %v1199 = vmul.f32 %v975, %v1147
      %v1200 = vmul.f32 %v976, %v1149
      %v1201 = vmul.f32 %v977, %v1151
      %v1202 = vmul.f32 %v978, %v1153
      %v1203 = vmul.f32 %v979, %v1155
      %v1204 = vmul.f32 %v980, %v1157
      %v1205 = vmul.f32 %v981, %v1159
      %v1206 = vmul.f32 %v982, %v1161
      %v1207 = vmul.f32 %v983, %v1163
      %v1208 = vmul.f32 %v984, %v1165
      %v1209 = vmul.f32 %v985, %v1167
      %v1210 = vmul.f32 %v986, %v1169
      %v1211 = vmul.f32 %v987, %v1171
      %v1212 = vmul.f32 %v988, %v1173
      %v1213 = vmul.f32 %v989, %v1175
      %v1214 = vmul.f32 %v990, %v1177
      %v1215 = vmul.f32 %v991, %v1179
      %v1216 = vmul.f32 %v992, %v1181
      %v1217 = vmul.f32 %v993, %v1183
      %v1218 = vmul.f32 %v994, %v1185
      %v1219 = vmul.f32 %v995, %v1187
      %v1220 = vpack.c.bf16 %v1189, %v1188
      %v1221 = vpack.c.bf16 %v1191, %v1190
      %v1222 = vpack.c.bf16 %v1193, %v1192
      %v1223 = vpack.c.bf16 %v1195, %v1194
      %v1224 = vpack.c.bf16 %v1197, %v1196
      %v1225 = vpack.c.bf16 %v1199, %v1198
      %v1226 = vpack.c.bf16 %v1201, %v1200
      %v1227 = vpack.c.bf16 %v1203, %v1202
      %v1228 = vpack.c.bf16 %v1205, %v1204
      %v1229 = vpack.c.bf16 %v1207, %v1206
      %v1230 = vpack.c.bf16 %v1209, %v1208
      %v1231 = vpack.c.bf16 %v1211, %v1210
      %v1232 = vpack.c.bf16 %v1213, %v1212
      %v1233 = vpack.c.bf16 %v1215, %v1214
      %v1234 = vpack.c.bf16 %v1217, %v1216
      %v1235 = vpack.c.bf16 %v1219, %v1218
      %v1252 = vunpack.c.l.b16 %v1220
      %v1253 = vunpack.c.h.b16 %v1220
      %v1254 = vunpack.c.l.b16 %v1221
      %v1255 = vunpack.c.h.b16 %v1221
      %v1256 = vunpack.c.l.b16 %v1222
      %v1257 = vunpack.c.h.b16 %v1222
      %v1258 = vunpack.c.l.b16 %v1223
      %v1259 = vunpack.c.h.b16 %v1223
      %v1260 = vunpack.c.l.b16 %v1224
      %v1261 = vunpack.c.h.b16 %v1224
      %v1262 = vunpack.c.l.b16 %v1225
      %v1263 = vunpack.c.h.b16 %v1225
      %v1264 = vunpack.c.l.b16 %v1226
      %v1265 = vunpack.c.h.b16 %v1226
      %v1266 = vunpack.c.l.b16 %v1227
      %v1267 = vunpack.c.h.b16 %v1227
      %v1268 = vunpack.c.l.b16 %v1228
      %v1269 = vunpack.c.h.b16 %v1228
      %v1270 = vunpack.c.l.b16 %v1229
      %v1271 = vunpack.c.h.b16 %v1229
      %v1272 = vunpack.c.l.b16 %v1230
      %v1273 = vunpack.c.h.b16 %v1230
      %v1274 = vunpack.c.l.b16 %v1231
      %v1275 = vunpack.c.h.b16 %v1231
      %v1276 = vunpack.c.l.b16 %v1232
      %v1277 = vunpack.c.h.b16 %v1232
      %v1278 = vunpack.c.l.b16 %v1233
      %v1279 = vunpack.c.h.b16 %v1233
      %v1280 = vunpack.c.l.b16 %v1234
      %v1281 = vunpack.c.h.b16 %v1234
      %v1282 = vunpack.c.l.b16 %v1235
      %v1283 = vunpack.c.h.b16 %v1235
      %v1284 = vpack.c.b16 %v1252, %v1252
      %v1285 = vpack.c.b16 %v1253, %v1253
      %v1286 = vpack.c.b16 %v1254, %v1254
      %v1287 = vpack.c.b16 %v1255, %v1255
      %v1288 = vpack.c.b16 %v1256, %v1256
      %v1289 = vpack.c.b16 %v1257, %v1257
      %v1290 = vpack.c.b16 %v1258, %v1258
      %v1291 = vpack.c.b16 %v1259, %v1259
      %v1292 = vpack.c.b16 %v1260, %v1260
      %v1293 = vpack.c.b16 %v1261, %v1261
      %v1294 = vpack.c.b16 %v1262, %v1262
      %v1295 = vpack.c.b16 %v1263, %v1263
      %v1296 = vpack.c.b16 %v1264, %v1264
      %v1297 = vpack.c.b16 %v1265, %v1265
      %v1298 = vpack.c.b16 %v1266, %v1266
      %v1299 = vpack.c.b16 %v1267, %v1267
      %v1300 = vpack.c.b16 %v1268, %v1268
      %v1301 = vpack.c.b16 %v1269, %v1269
      %v1302 = vpack.c.b16 %v1270, %v1270
      %v1303 = vpack.c.b16 %v1271, %v1271
      %v1304 = vpack.c.b16 %v1272, %v1272
      %v1305 = vpack.c.b16 %v1273, %v1273
      %v1306 = vpack.c.b16 %v1274, %v1274
      %v1307 = vpack.c.b16 %v1275, %v1275
      %v1308 = vpack.c.b16 %v1276, %v1276
      %v1309 = vpack.c.b16 %v1277, %v1277
      %v1310 = vpack.c.b16 %v1278, %v1278
      %v1311 = vpack.c.b16 %v1279, %v1279
      %v1312 = vpack.c.b16 %v1280, %v1280
      %v1313 = vpack.c.b16 %v1281, %v1281
      %v1314 = vpack.c.b16 %v1282, %v1282
      %v1315 = vpack.c.b16 %v1283, %v1283
      %1348 = vst [vmem:[%s248] sm:$0xf] %v1284
      %1349 = vst [vmem:[%s248 + $0x4] sm:$0xf] %v1285
      %1350 = vst [vmem:[%s248 + $0x8] sm:$0xf] %v1286
      %1351 = vst [vmem:[%s248 + $0xc] sm:$0xf] %v1287
      %1352 = vst [vmem:[%s248 + $0x10] sm:$0xf] %v1288
      %1353 = vst [vmem:[%s248 + $0x14] sm:$0xf] %v1289
      %1354 = vst [vmem:[%s248 + $0x18] sm:$0xf] %v1290
      %1355 = vst [vmem:[%s248 + $0x1c] sm:$0xf] %v1291
      %1356 = vst [vmem:[%s248 + $0x20] sm:$0xf] %v1292
      %1357 = vst [vmem:[%s248 + $0x24] sm:$0xf] %v1293
      %1358 = vst [vmem:[%s248 + $0x28] sm:$0xf] %v1294
      %1359 = vst [vmem:[%s248 + $0x2c] sm:$0xf] %v1295
      %1360 = vst [vmem:[%s248 + $0x30] sm:$0xf] %v1296
      %1361 = vst [vmem:[%s248 + $0x34] sm:$0xf] %v1297
      %1362 = vst [vmem:[%s248 + $0x38] sm:$0xf] %v1298
      %1363 = vst [vmem:[%s248 + $0x3c] sm:$0xf] %v1299
      %1364 = vst [vmem:[%s248 + $0x40] sm:$0xf] %v1300
      %1365 = vst [vmem:[%s248 + $0x44] sm:$0xf] %v1301
      %1366 = vst [vmem:[%s248 + $0x48] sm:$0xf] %v1302
      %1367 = vst [vmem:[%s248 + $0x4c] sm:$0xf] %v1303
      %1368 = vst [vmem:[%s248 + $0x50] sm:$0xf] %v1304
      %1369 = vst [vmem:[%s248 + $0x54] sm:$0xf] %v1305
      %1370 = vst [vmem:[%s248 + $0x58] sm:$0xf] %v1306
      %1371 = vst [vmem:[%s248 + $0x5c] sm:$0xf] %v1307
      %1372 = vst [vmem:[%s248 + $0x60] sm:$0xf] %v1308
      %1373 = vst [vmem:[%s248 + $0x64] sm:$0xf] %v1309
      %1374 = vst [vmem:[%s248 + $0x68] sm:$0xf] %v1310
      %1375 = vst [vmem:[%s248 + $0x6c] sm:$0xf] %v1311
      %1376 = vst [vmem:[%s248 + $0x70] sm:$0xf] %v1312
      %1377 = vst [vmem:[%s248 + $0x74] sm:$0xf] %v1313
      %1378 = vst [vmem:[%s248 + $0x78] sm:$0xf] %v1314
      %1379 = vst [vmem:[%s248 + $0x7c] sm:$0xf] %v1315
      %s1380 = smul.u32 32, %s16
      %p1381 = scmp.lt.s32.totalorder %s1380, 63
      %s1382 = scalar_select %p1381, %s1380, 63
      %s1383 = smul.addr %s1382, 4
      %s1384 = scalar_lea.vmem %s5, %s1383
      // Predicated region
      $region41: #{_lambda_.5} parent=39 // pred_check
        %p1385 = pneg %p149
      $region42: #{_lambda_.5} parent=39 // pred_check_branch
        %1387 = sbr.rel (%p1385) target = $region44
      $region43: #{_lambda_.5} parent=39 // pred_region
        %s1388 = smul.u32 32, %s16
      $region44: #{_lambda_.5} parent=39 // pred_fallthru
        _
    $region40: #{_lambda_.5} parent=5 // pred_fallthru
      _
    %p1389 = scmp.le.s32.totalorder 2, %s11
    // Predicated region
    $region45: #{_lambda_.5} parent=5 // pred_check
      %p1390 = pneg %p1389
    $region46: #{_lambda_.5} parent=5 // pred_check_branch
      %1392 = sbr.rel (%p1390) target = $region48
    $region47: #{_lambda_.5} parent=5 // pred_region
      %s1393 = ssub.s32 %s11, 2
      // Predicated region
      $region49: #{_lambda_.5} parent=47 // pred_check
        %p1394 = pneg %p155
      $region50: #{_lambda_.5} parent=47 // pred_check_branch
        %1396 = sbr.rel (%p1394) target = $region52
      $region51: #{_lambda_.5} parent=47 // pred_region
        %s1397 = smul.u32 32, %s17
        %p1398 = scmp.lt.s32.totalorder %s1397, 63
        %s1399 = scalar_select %p1398, %s1397, 63
        %s1400 = smul.addr %s1399, 4
        %s1401 = scalar_lea.vmem %s5, %s1400
      $region52: #{_lambda_.5} parent=47 // pred_fallthru
        _
    $region48: #{_lambda_.5} parent=5 // pred_fallthru
      _
  $region6: #{_lambda_.5} parent=0 // loop_footer
    %s15 = sadd.s32 1, %s11
  $region7: #{_lambda_.5} parent=0 // loop_footer_branch
    %10 = sbr.rel target = $region3
  $region8: #{_lambda_.5} parent=0 // loop_exit
    _

// kernel: _lambda_.4
$region0: #{_lambda_.4}
  #allocation0 [shape = 'u32[]', space=smem, size = 0x4, offset = 0x4, fixed_abs, tag = 'smem constant byte address 0x4 - core index']
  #allocation1 [shape = 'u32[144,128]{1,0:T(1,128)}', space=vmem, size = 0x12000, scoped, tag = 'internal scratch']
  #allocation2 [shape = 'bf16[18,24,128]{2,1,0:T(8,128)(2,1)}', space=vmem, size = 0x1b000, scoped, tag = 'scratch operand']
  #allocation3 [shape = 'bf16[16,16,1152]{2,1,0:T(8,128)(2,1)}', space=vmem, size = 0x90000, scoped, tag = 'scratch operand']
  %s0 = inlined_call_operand.vmem [shape: bf16[2,16,16,128], index: 0, kind: input, shape index: {}]
  %s1 = inlined_call_operand.vmem [shape: bf16[128,128], index: 1, kind: input, shape index: {}]
  %s2 = inlined_call_operand.vmem [shape: f32[1,128], index: 2, kind: input, shape index: {}]
  %s3 = inlined_call_operand.vmem [shape: bf16[1152,128], index: 3, kind: input, shape index: {}]
  %s4 = inlined_call_operand.vmem [shape: f32[1,128], index: 4, kind: input, shape index: {}]
  %s5 = inlined_call_operand.vmem [shape: bf16[2,16,16,128], index: 5, kind: output, shape index: {}]
  %s6 = sld [smem:[#allocation0]]
  $region57: #{_lambda_.4} parent=0
    _
  %s8 = ssub.s32 1, %s6
  %s9 = scalar_select 0, %s8, %s6
  loop: start=0, step=1, limit=4
  $region2: #{_lambda_.4} parent=0 // loop_pre_header
    _
  $region3: #{_lambda_.4} parent=0 // loop_header
    %s11 = sphi 0, %s15
    %p12 = scmp.ge.s32.totalorder %s11, 4
    %s21 = sphi 0, %s23
    %s24 = sphi 0, %s21
    %s25 = sphi 0, %s24
    %s41 = sphi 0, %s25
    %s45 = sphi 0, %s45
    %s47 = sphi 0, %s45
    %s48 = sphi 0, %s47
    %s62 = sphi 0, %s48
    %s66 = sphi 0, %s66
    %s68 = sphi 0, %s66
    %s69 = sphi 0, %s68
    %s83 = sphi 0, %s69
    %s87 = sphi 0, %s87
    %s89 = sphi 0, %s87
    %s90 = sphi 0, %s89
    %s104 = sphi 0, %s90
    %s108 = sphi 0, %s108
    %s110 = sphi 0, %s108
    %s111 = sphi 0, %s110
    %s125 = sphi 0, %s111
    %s131 = sphi 0, %s133
    %s134 = sphi 0, %s131
    %s135 = sphi 0, %s134
    %s151 = sphi 0, %s135
  $region4: #{_lambda_.4} parent=0 // loop_header_branch
    %14 = sbr.rel (%p12) target = $region8
  $region5: #{_lambda_.4} parent=0 // loop_body
    %s16 = ssub.s32 %s11, 1
    %s17 = ssub.s32 %s11, 2
    %s18 = sadd.s32 %s11, 1
    %s19 = ssub.s32 %s11, %s18
    %p20 = scmp.eq.s32.totalorder %s19, 0
    %s22 = sadd.s32 %s21, 1
    %s23 = scalar_select %p20, %s21, %s22
    %p26 = pneg %p20
    %p27 = scmp.eq.s32.totalorder %s11, 1
    %p28 = por %p26, %p27
    %p29 = scmp.ne.s32.totalorder %s21, %s24
    %p30 = scmp.eq.s32.totalorder %s11, 0
    %p31 = por %p29, %p30
    %p32 = scmp.ne.s32.totalorder %s21, %s24
    %p33 = scmp.eq.s32.totalorder %s16, 1
    %p34 = por %p32, %p33
    %p35 = scmp.ne.s32.totalorder %s24, %s25
    %p36 = scmp.eq.s32.totalorder %s16, 0
    %p37 = por %p35, %p36
    %p38 = scmp.ne.s32.totalorder %s24, %s25
    %p39 = scmp.eq.s32.totalorder %s17, 1
    %p40 = por %p38, %p39
    %p42 = scmp.ne.s32.totalorder %s25, %s41
    %p43 = scmp.eq.s32.totalorder %s17, 0
    %p44 = por %p42, %p43
    %s46 = sadd.s32 %s45, 1
    %p49 = scmp.eq.s32.totalorder %s11, 1
    %p50 = scmp.ne.s32.totalorder %s45, %s47
    %p51 = scmp.eq.s32.totalorder %s11, 0
    %p52 = por %p50, %p51
    %p53 = scmp.ne.s32.totalorder %s45, %s47
    %p54 = scmp.eq.s32.totalorder %s16, 1
    %p55 = por %p53, %p54
    %p56 = scmp.ne.s32.totalorder %s47, %s48
    %p57 = scmp.eq.s32.totalorder %s16, 0
    %p58 = por %p56, %p57
    %p59 = scmp.ne.s32.totalorder %s47, %s48
    %p60 = scmp.eq.s32.totalorder %s17, 1
    %p61 = por %p59, %p60
    %p63 = scmp.ne.s32.totalorder %s48, %s62
    %p64 = scmp.eq.s32.totalorder %s17, 0
    %p65 = por %p63, %p64
    %s67 = sadd.s32 %s66, 1
    %p70 = scmp.eq.s32.totalorder %s11, 1
    %p71 = scmp.ne.s32.totalorder %s66, %s68
    %p72 = scmp.eq.s32.totalorder %s11, 0
    %p73 = por %p71, %p72
    %p74 = scmp.ne.s32.totalorder %s66, %s68
    %p75 = scmp.eq.s32.totalorder %s16, 1
    %p76 = por %p74, %p75
    %p77 = scmp.ne.s32.totalorder %s68, %s69
    %p78 = scmp.eq.s32.totalorder %s16, 0
    %p79 = por %p77, %p78
    %p80 = scmp.ne.s32.totalorder %s68, %s69
    %p81 = scmp.eq.s32.totalorder %s17, 1
    %p82 = por %p80, %p81
    %p84 = scmp.ne.s32.totalorder %s69, %s83
    %p85 = scmp.eq.s32.totalorder %s17, 0
    %p86 = por %p84, %p85
    %s88 = sadd.s32 %s87, 1
    %p91 = scmp.eq.s32.totalorder %s11, 1
    %p92 = scmp.ne.s32.totalorder %s87, %s89
    %p93 = scmp.eq.s32.totalorder %s11, 0
    %p94 = por %p92, %p93
    %p95 = scmp.ne.s32.totalorder %s87, %s89
    %p96 = scmp.eq.s32.totalorder %s16, 1
    %p97 = por %p95, %p96
    %p98 = scmp.ne.s32.totalorder %s89, %s90
    %p99 = scmp.eq.s32.totalorder %s16, 0
    %p100 = por %p98, %p99
    %p101 = scmp.ne.s32.totalorder %s89, %s90
    %p102 = scmp.eq.s32.totalorder %s17, 1
    %p103 = por %p101, %p102
    %p105 = scmp.ne.s32.totalorder %s90, %s104
    %p106 = scmp.eq.s32.totalorder %s17, 0
    %p107 = por %p105, %p106
    %s109 = sadd.s32 %s108, 1
    %p112 = scmp.eq.s32.totalorder %s11, 1
    %p113 = scmp.ne.s32.totalorder %s108, %s110
    %p114 = scmp.eq.s32.totalorder %s11, 0
    %p115 = por %p113, %p114
    %p116 = scmp.ne.s32.totalorder %s108, %s110
    %p117 = scmp.eq.s32.totalorder %s16, 1
    %p118 = por %p116, %p117
    %p119 = scmp.ne.s32.totalorder %s110, %s111
    %p120 = scmp.eq.s32.totalorder %s16, 0
    %p121 = por %p119, %p120
    %p122 = scmp.ne.s32.totalorder %s110, %s111
    %p123 = scmp.eq.s32.totalorder %s17, 1
    %p124 = por %p122, %p123
    %p126 = scmp.ne.s32.totalorder %s111, %s125
    %p127 = scmp.eq.s32.totalorder %s17, 0
    %p128 = por %p126, %p127
    %s129 = ssub.s32 %s11, %s18
    %p130 = scmp.eq.s32.totalorder %s129, 0
    %s132 = sadd.s32 %s131, 1
    %s133 = scalar_select %p130, %s131, %s132
    %p136 = pneg %p130
    %p137 = scmp.eq.s32.totalorder %s11, 1
    %p138 = por %p136, %p137
    %p139 = scmp.ne.s32.totalorder %s131, %s134
    %p140 = scmp.eq.s32.totalorder %s11, 0
    %p141 = por %p139, %p140
    %p142 = scmp.ne.s32.totalorder %s131, %s134
    %p143 = scmp.eq.s32.totalorder %s16, 1
    %p144 = por %p142, %p143
    %p145 = scmp.ne.s32.totalorder %s134, %s135
    %p146 = scmp.eq.s32.totalorder %s16, 0
    %p147 = por %p145, %p146
    %p148 = scmp.ne.s32.totalorder %s134, %s135
    %p149 = scmp.eq.s32.totalorder %s17, 1
    %p150 = por %p148, %p149
    %p152 = scmp.ne.s32.totalorder %s135, %s151
    %p153 = scmp.eq.s32.totalorder %s17, 0
    %p154 = por %p152, %p153
    %p155 = scmp.le.s32.totalorder 1, %s11
    %p156 = scmp.lt.s32.totalorder %s11, 3
    %p157 = pnand %p155, %p156
    %p158 = pneg %p157
    // Predicated region
    $region9: #{_lambda_.4} parent=5 // pred_check
      _
    $region10: #{_lambda_.4} parent=5 // pred_check_branch
      %160 = sbr.rel (%p157) target = $region12
    $region11: #{_lambda_.4} parent=5 // pred_region
      %s161 = ssub.s32 %s11, 1
      // Predicated region
      $region13: #{_lambda_.4} parent=11 // pred_check
        %p162 = pneg %p58
      $region14: #{_lambda_.4} parent=11 // pred_check_branch
        %164 = sbr.rel (%p162) target = $region16
      $region15: #{_lambda_.4} parent=11 // pred_region
        _
      $region16: #{_lambda_.4} parent=11 // pred_fallthru
        _
      // Predicated region
      $region17: #{_lambda_.4} parent=11 // pred_check
        %p165 = pneg %p79
      $region18: #{_lambda_.4} parent=11 // pred_check_branch
        %167 = sbr.rel (%p165) target = $region20
      $region19: #{_lambda_.4} parent=11 // pred_region
        _
      $region20: #{_lambda_.4} parent=11 // pred_fallthru
        _
      // Predicated region
      $region21: #{_lambda_.4} parent=11 // pred_check
        %p168 = pneg %p100
      $region22: #{_lambda_.4} parent=11 // pred_check_branch
        %170 = sbr.rel (%p168) target = $region24
      $region23: #{_lambda_.4} parent=11 // pred_region
        _
      $region24: #{_lambda_.4} parent=11 // pred_fallthru
        _
      // Predicated region
      $region25: #{_lambda_.4} parent=11 // pred_check
        %p171 = pneg %p121
      $region26: #{_lambda_.4} parent=11 // pred_check_branch
        %173 = sbr.rel (%p171) target = $region28
      $region27: #{_lambda_.4} parent=11 // pred_region
        _
      $region28: #{_lambda_.4} parent=11 // pred_fallthru
        _
    $region12: #{_lambda_.4} parent=5 // pred_fallthru
      _
    %p174 = scmp.lt.s32.totalorder %s11, 2
    // Predicated region
    $region29: #{_lambda_.4} parent=5 // pred_check
      %p175 = pneg %p174
    $region30: #{_lambda_.4} parent=5 // pred_check_branch
      %177 = sbr.rel (%p175) target = $region32
    $region31: #{_lambda_.4} parent=5 // pred_region
      // Predicated region
      $region33: #{_lambda_.4} parent=31 // pred_check
        %p178 = pneg %p31
      $region34: #{_lambda_.4} parent=31 // pred_check_branch
        %180 = sbr.rel (%p178) target = $region36
      $region35: #{_lambda_.4} parent=31 // pred_region
        %p181 = scmp.lt.s32.totalorder %s11, 1
        %s182 = scalar_select %p181, %s11, 1
        %s183 = smul.addr %s182, 32
        %s184 = smul.addr %s183, 4
        %s185 = scalar_lea.vmem %s0, %s184
      $region36: #{_lambda_.4} parent=31 // pred_fallthru
        _
    $region32: #{_lambda_.4} parent=5 // pred_fallthru
      _
    %p186 = scmp.le.s32.totalorder 1, %s11
    %p187 = scmp.lt.s32.totalorder %s11, 3
    %p188 = pnand %p186, %p187
    %p189 = pneg %p188
    // Predicated region
    $region37: #{_lambda_.4} parent=5 // pred_check
      _
    $region38: #{_lambda_.4} parent=5 // pred_check_branch
      %191 = sbr.rel (%p188) target = $region40
    $region39: #{_lambda_.4} parent=5 // pred_region
      %s192 = ssub.s32 %s11, 1
      %p193 = scmp.lt.s32.totalorder %s16, 1
      %s194 = scalar_select %p193, %s16, 1
      %s195 = smul.addr %s194, 32
      %s196 = smul.addr %s195, 4
      %s197 = scalar_lea.vmem %s0, %s196
      %p198 = pneg %p37
      %p199 = pneg %p34
      %p200 = pneg %p58
      %p201 = pneg %p55
      %p202 = pneg %p79
      %p203 = pneg %p76
      %p204 = pneg %p100
      %p205 = pneg %p97
      %p206 = pneg %p121
      %p207 = pneg %p118
      %p208 = pneg %p147
      %p209 = pneg %p144
      %p210 = scmp.lt.s32.totalorder %s16, 1
      %s211 = scalar_select %p210, %s16, 1
      %s212 = smul.addr %s211, 32
      %s213 = smul.addr %s212, 4
      %s214 = scalar_lea.vmem %s5, %s213
      %p215 = scmp.lt.s32.totalorder %s16, 1
      %s216 = scalar_select %p215, %s16, 1
      %s217 = smul.addr %s216, 32
      %s218 = smul.addr %s217, 4
      %s219 = scalar_lea.vmem %s0, %s218
      %p220 = scmp.lt.s32.totalorder %s16, 1
      %s221 = scalar_select %p220, %s16, 1
      %s222 = smul.addr %s221, 32
      %s223 = smul.addr %s222, 4
      %s224 = scalar_lea.vmem %s5, %s223
      %p226 = scmp.eq.s32.totalorder %s16, 0
      // Predicated region
      $region41: #{_lambda_.4} parent=39 // pred_check
        %p227 = pneg %p226
      $region42: #{_lambda_.4} parent=39 // pred_check_branch
        %229 = sbr.rel (%p227) target = $region44
      $region43: #{_lambda_.4} parent=39 // pred_region
        %230 = vst [vmem:[#allocation2] sm:$0xf] 0
        %231 = vst [vmem:[#allocation2 + $0x4] sm:$0xf] 0
        %232 = vst [vmem:[#allocation2 + $0x8] sm:$0xf] 0
        %233 = vst [vmem:[#allocation2 + $0xc] sm:$0xf] 0
        %234 = vst [vmem:[#allocation2 + $0x10] sm:$0xf] 0
        %235 = vst [vmem:[#allocation2 + $0x14] sm:$0xf] 0
        %236 = vst [vmem:[#allocation2 + $0x18] sm:$0xf] 0
        %237 = vst [vmem:[#allocation2 + $0x1c] sm:$0xf] 0
        %238 = vst [vmem:[#allocation2 + $0x20] sm:$0xf] 0
        %239 = vst [vmem:[#allocation2 + $0x24] sm:$0xf] 0
        %240 = vst [vmem:[#allocation2 + $0x28] sm:$0xf] 0
        %241 = vst [vmem:[#allocation2 + $0x2c] sm:$0xf] 0
        %242 = vst [vmem:[#allocation2 + $0x30] sm:$0xf] 0
        %243 = vst [vmem:[#allocation2 + $0x34] sm:$0xf] 0
        %244 = vst [vmem:[#allocation2 + $0x38] sm:$0xf] 0
        %245 = vst [vmem:[#allocation2 + $0x3c] sm:$0xf] 0
        %246 = vst [vmem:[#allocation2 + $0x40] sm:$0xf] 0
        %247 = vst [vmem:[#allocation2 + $0x44] sm:$0xf] 0
        %248 = vst [vmem:[#allocation2 + $0x48] sm:$0xf] 0
        %249 = vst [vmem:[#allocation2 + $0x4c] sm:$0xf] 0
        %250 = vst [vmem:[#allocation2 + $0x50] sm:$0xf] 0
        %251 = vst [vmem:[#allocation2 + $0x54] sm:$0xf] 0
        %252 = vst [vmem:[#allocation2 + $0x58] sm:$0xf] 0
        %253 = vst [vmem:[#allocation2 + $0x5c] sm:$0xf] 0
        %254 = vst [vmem:[#allocation2 + $0x60] sm:$0xf] 0
        %255 = vst [vmem:[#allocation2 + $0x64] sm:$0xf] 0
        %256 = vst [vmem:[#allocation2 + $0x68] sm:$0xf] 0
        %257 = vst [vmem:[#allocation2 + $0x6c] sm:$0xf] 0
        %258 = vst [vmem:[#allocation2 + $0x70] sm:$0xf] 0
        %259 = vst [vmem:[#allocation2 + $0x74] sm:$0xf] 0
        %260 = vst [vmem:[#allocation2 + $0x78] sm:$0xf] 0
        %261 = vst [vmem:[#allocation2 + $0x7c] sm:$0xf] 0
        %262 = vst [vmem:[#allocation2 + $0x80] sm:$0xf] 0
        %263 = vst [vmem:[#allocation2 + $0x84] sm:$0xf] 0
        %264 = vst [vmem:[#allocation2 + $0x88] sm:$0xf] 0
        %265 = vst [vmem:[#allocation2 + $0x8c] sm:$0xf] 0
        %266 = vst [vmem:[#allocation2 + $0x90] sm:$0xf] 0
        %267 = vst [vmem:[#allocation2 + $0x94] sm:$0xf] 0
        %268 = vst [vmem:[#allocation2 + $0x98] sm:$0xf] 0
        %269 = vst [vmem:[#allocation2 + $0x9c] sm:$0xf] 0
        %270 = vst [vmem:[#allocation2 + $0xa0] sm:$0xf] 0
        %271 = vst [vmem:[#allocation2 + $0xa4] sm:$0xf] 0
        %272 = vst [vmem:[#allocation2 + $0xa8] sm:$0xf] 0
        %273 = vst [vmem:[#allocation2 + $0xac] sm:$0xf] 0
        %274 = vst [vmem:[#allocation2 + $0xb0] sm:$0xf] 0
        %275 = vst [vmem:[#allocation2 + $0xb4] sm:$0xf] 0
        %276 = vst [vmem:[#allocation2 + $0xb8] sm:$0xf] 0
        %277 = vst [vmem:[#allocation2 + $0xbc] sm:$0xf] 0
        %278 = vst [vmem:[#allocation2 + $0xc0] sm:$0xf] 0
        %279 = vst [vmem:[#allocation2 + $0xc4] sm:$0xf] 0
        %280 = vst [vmem:[#allocation2 + $0xc8] sm:$0xf] 0
        %281 = vst [vmem:[#allocation2 + $0xcc] sm:$0xf] 0
        %282 = vst [vmem:[#allocation2 + $0xd0] sm:$0xf] 0
        %283 = vst [vmem:[#allocation2 + $0xd4] sm:$0xf] 0
      $region44: #{_lambda_.4} parent=39 // pred_fallthru
        _
      %v284 = vld [vmem:[%s219] sm:$0xf]
      %v285 = vld [vmem:[%s219 + $0x4] sm:$0xf]
      %v286 = vld [vmem:[%s219 + $0x8] sm:$0xf]
      %v287 = vld [vmem:[%s219 + $0xc] sm:$0xf]
      %v288 = vld [vmem:[%s219 + $0x10] sm:$0xf]
      %v289 = vld [vmem:[%s219 + $0x14] sm:$0xf]
      %v290 = vld [vmem:[%s219 + $0x18] sm:$0xf]
      %v291 = vld [vmem:[%s219 + $0x1c] sm:$0xf]
      %v292 = vld [vmem:[%s219 + $0x20] sm:$0xf]
      %v293 = vld [vmem:[%s219 + $0x24] sm:$0xf]
      %v294 = vld [vmem:[%s219 + $0x28] sm:$0xf]
      %v295 = vld [vmem:[%s219 + $0x2c] sm:$0xf]
      %v296 = vld [vmem:[%s219 + $0x30] sm:$0xf]
      %v297 = vld [vmem:[%s219 + $0x34] sm:$0xf]
      %v298 = vld [vmem:[%s219 + $0x38] sm:$0xf]
      %v299 = vld [vmem:[%s219 + $0x3c] sm:$0xf]
      %v300 = vld [vmem:[%s219 + $0x40] sm:$0xf]
      %v301 = vld [vmem:[%s219 + $0x44] sm:$0xf]
      %v302 = vld [vmem:[%s219 + $0x48] sm:$0xf]
      %v303 = vld [vmem:[%s219 + $0x4c] sm:$0xf]
      %v304 = vld [vmem:[%s219 + $0x50] sm:$0xf]
      %v305 = vld [vmem:[%s219 + $0x54] sm:$0xf]
      %v306 = vld [vmem:[%s219 + $0x58] sm:$0xf]
      %v307 = vld [vmem:[%s219 + $0x5c] sm:$0xf]
      %v308 = vld [vmem:[%s219 + $0x60] sm:$0xf]
      %v309 = vld [vmem:[%s219 + $0x64] sm:$0xf]
      %v310 = vld [vmem:[%s219 + $0x68] sm:$0xf]
      %v311 = vld [vmem:[%s219 + $0x6c] sm:$0xf]
      %v312 = vld [vmem:[%s219 + $0x70] sm:$0xf]
      %v313 = vld [vmem:[%s219 + $0x74] sm:$0xf]
      %v314 = vld [vmem:[%s219 + $0x78] sm:$0xf]
      %v315 = vld [vmem:[%s219 + $0x7c] sm:$0xf]
      %v316 = vld [vmem:[%s1] sm:$0xf]
      %v317 = vld [vmem:[%s1 + $0x4] sm:$0xf]
      %v318 = vld [vmem:[%s1 + $0x8] sm:$0xf]
      %v319 = vld [vmem:[%s1 + $0xc] sm:$0xf]
      %v320 = vld [vmem:[%s1 + $0x10] sm:$0xf]
      %v321 = vld [vmem:[%s1 + $0x14] sm:$0xf]
      %v322 = vld [vmem:[%s1 + $0x18] sm:$0xf]
      %v323 = vld [vmem:[%s1 + $0x1c] sm:$0xf]
      %v324 = vld [vmem:[%s1 + $0x20] sm:$0xf]
      %v325 = vld [vmem:[%s1 + $0x24] sm:$0xf]
      %v326 = vld [vmem:[%s1 + $0x28] sm:$0xf]
      %v327 = vld [vmem:[%s1 + $0x2c] sm:$0xf]
      %v328 = vld [vmem:[%s1 + $0x30] sm:$0xf]
      %v329 = vld [vmem:[%s1 + $0x34] sm:$0xf]
      %v330 = vld [vmem:[%s1 + $0x38] sm:$0xf]
      %v331 = vld [vmem:[%s1 + $0x3c] sm:$0xf]
      %v332 = vld [vmem:[%s2] sm:$0x1]
      %v334 = vlaneseq
      %v335 = vshrl.u32 %v334, 7
      %v336 = vsub.s32 0, %v335
      %v337 = vrot.slane %v332, %v336
      %v371 = vunpack.c.l.b16 %v284
      %v372 = vunpack.c.l.b16 %v285
      %v373 = vunpack.c.l.b16 %v286
      %v374 = vunpack.c.l.b16 %v287
      %v375 = vunpack.c.l.b16 %v288
      %v376 = vunpack.c.l.b16 %v289
      %v377 = vunpack.c.l.b16 %v290
      %v378 = vunpack.c.l.b16 %v291
      %v379 = vunpack.c.l.b16 %v292
      %v380 = vunpack.c.l.b16 %v293
      %v381 = vunpack.c.l.b16 %v294
      %v382 = vunpack.c.l.b16 %v295
      %v383 = vunpack.c.l.b16 %v296
      %v384 = vunpack.c.l.b16 %v297
      %v385 = vunpack.c.l.b16 %v298
      %v386 = vunpack.c.l.b16 %v299
      %v387 = vunpack.c.l.b16 %v300
      %v388 = vunpack.c.l.b16 %v301
      %v389 = vunpack.c.l.b16 %v302
      %v390 = vunpack.c.l.b16 %v303
      %v391 = vunpack.c.l.b16 %v304
      %v392 = vunpack.c.l.b16 %v305
      %v393 = vunpack.c.l.b16 %v306
      %v394 = vunpack.c.l.b16 %v307
      %v395 = vunpack.c.l.b16 %v308
      %v396 = vunpack.c.l.b16 %v309
      %v397 = vunpack.c.l.b16 %v310
      %v398 = vunpack.c.l.b16 %v311
      %v399 = vunpack.c.l.b16 %v312
      %v400 = vunpack.c.l.b16 %v313
      %v401 = vunpack.c.l.b16 %v314
      %v402 = vunpack.c.l.b16 %v315
      %v403 = vpack.c.b16 %v372, %v371
      %v404 = vpack.c.b16 %v374, %v373
      %v405 = vpack.c.b16 %v376, %v375
      %v406 = vpack.c.b16 %v378, %v377
      %v407 = vpack.c.b16 %v380, %v379
      %v408 = vpack.c.b16 %v382, %v381
      %v409 = vpack.c.b16 %v384, %v383
      %v410 = vpack.c.b16 %v386, %v385
      %v411 = vpack.c.b16 %v388, %v387
      %v412 = vpack.c.b16 %v390, %v389
      %v413 = vpack.c.b16 %v392, %v391
      %v414 = vpack.c.b16 %v394, %v393
      %v415 = vpack.c.b16 %v396, %v395
      %v416 = vpack.c.b16 %v398, %v397
      %v417 = vpack.c.b16 %v400, %v399
      %v418 = vpack.c.b16 %v402, %v401
      %v451 = vunpack.c.l.b16 %v316
      %v452 = vunpack.c.l.b16 %v317
      %v453 = vunpack.c.l.b16 %v318
      %v454 = vunpack.c.l.b16 %v319
      %v455 = vunpack.c.l.b16 %v320
      %v456 = vunpack.c.l.b16 %v321
      %v457 = vunpack.c.l.b16 %v322
      %v458 = vunpack.c.l.b16 %v323
      %v459 = vunpack.c.l.b16 %v324
      %v460 = vunpack.c.l.b16 %v325
      %v461 = vunpack.c.l.b16 %v326
      %v462 = vunpack.c.l.b16 %v327
      %v463 = vunpack.c.l.b16 %v328
      %v464 = vunpack.c.l.b16 %v329
      %v465 = vunpack.c.l.b16 %v330
      %v466 = vunpack.c.l.b16 %v331
      %v467 = vpack.c.b16 %v452, %v451
      %v468 = vpack.c.b16 %v454, %v453
      %v469 = vpack.c.b16 %v456, %v455
      %v470 = vpack.c.b16 %v458, %v457
      %v471 = vpack.c.b16 %v460, %v459
      %v472 = vpack.c.b16 %v462, %v461
      %v473 = vpack.c.b16 %v464, %v463
      %v474 = vpack.c.b16 %v466, %v465
      %483 = vmatprep.subr.bf16.mxu0 0
      %484 = vmatpush1.bf16.msra.mxu0 %v474
      %485 = vmatprep.subr.bf16.mxu0 0
      %486 = vmatpush1.bf16.msra.mxu0 %v473
      %487 = vmatprep.subr.bf16.mxu0 0
      %488 = vmatpush1.bf16.msra.mxu0 %v472
      %489 = vmatprep.subr.bf16.mxu0 0
      %490 = vmatpush1.bf16.msra.mxu0 %v471
      %491 = vmatprep.subr.bf16.mxu0 0
      %492 = vmatpush1.bf16.msra.mxu0 %v470
      %493 = vmatprep.subr.bf16.mxu0 0
      %494 = vmatpush1.bf16.msra.mxu0 %v469
      %495 = vmatprep.subr.bf16.mxu0 0
      %496 = vmatpush1.bf16.msra.mxu0 %v468
      %497 = vmatprep.subr.bf16.mxu0 0
      %498 = vmatpush1.bf16.msra.mxu0 %v467
      %499 = vmatprep.subr.bf16.mxu0 0
      %500 = vmatpush2.bf16.msra.mxu0 0
      %501 = vmatprep.subr.bf16.mxu0 0
      %502 = vmatpush2.bf16.msra.mxu0 0
      %503 = vmatprep.subr.bf16.mxu0 0
      %504 = vmatpush2.bf16.msra.mxu0 0
      %505 = vmatprep.subr.bf16.mxu0 0
      %506 = vmatpush2.bf16.msra.mxu0 0
      %507 = vmatprep.subr.bf16.mxu0 0
      %508 = vmatpush2.bf16.msra.mxu0 0
      %509 = vmatprep.subr.bf16.mxu0 0
      %510 = vmatpush2.bf16.msra.mxu0 0
      %511 = vmatprep.subr.bf16.mxu0 0
      %512 = vmatpush2.bf16.msra.mxu0 0
      %513 = vmatprep.subr.bf16.mxu0 0
      %514 = vmatpush2.bf16.msra.mxu0 0
      %515 = vmatprep.mubr.bf16.mxu0 0
      %516 = vmatmul.mubr.bf16.gmra.mxu0 %v403
      %v517 = vpop.f32.mrf.mxu0
      %v518 = vadd.f32 %v337, %v517
      %v519 = vpop.f32.mrf.mxu0
      %v520 = vpop.f32.mrf.mxu0
      %v521 = vadd.f32 %v337, %v520
      %v522 = vpop.f32.mrf.mxu0
      %523 = vmatprep.mubr.bf16.mxu0 0
      %524 = vmatmul.mubr.bf16.gmra.mxu0 %v404
      %v525 = vpop.f32.mrf.mxu0
      %v526 = vadd.f32 %v337, %v525
      %v527 = vpop.f32.mrf.mxu0
      %v528 = vpop.f32.mrf.mxu0
      %v529 = vadd.f32 %v337, %v528
      %v530 = vpop.f32.mrf.mxu0
      %531 = vmatprep.mubr.bf16.mxu0 0
      %532 = vmatmul.mubr.bf16.gmra.mxu0 %v405
      %v533 = vpop.f32.mrf.mxu0
      %v534 = vadd.f32 %v337, %v533
      %v535 = vpop.f32.mrf.mxu0
      %v536 = vpop.f32.mrf.mxu0
      %v537 = vadd.f32 %v337, %v536
      %v538 = vpop.f32.mrf.mxu0
      %539 = vmatprep.mubr.bf16.mxu0 0
      %540 = vmatmul.mubr.bf16.gmra.mxu0 %v406
      %v541 = vpop.f32.mrf.mxu0
      %v542 = vadd.f32 %v337, %v541
      %v543 = vpop.f32.mrf.mxu0
      %v544 = vpop.f32.mrf.mxu0
      %v545 = vadd.f32 %v337, %v544
      %v546 = vpop.f32.mrf.mxu0
      %547 = vmatprep.mubr.bf16.mxu0 0
      %548 = vmatmul.mubr.bf16.gmra.mxu0 %v407
      %v549 = vpop.f32.mrf.mxu0
      %v550 = vadd.f32 %v337, %v549
      %v551 = vpop.f32.mrf.mxu0
      %v552 = vpop.f32.mrf.mxu0
      %v553 = vadd.f32 %v337, %v552
      %v554 = vpop.f32.mrf.mxu0
      %555 = vmatprep.mubr.bf16.mxu0 0
      %556 = vmatmul.mubr.bf16.gmra.mxu0 %v408
      %v557 = vpop.f32.mrf.mxu0
      %v558 = vadd.f32 %v337, %v557
      %v559 = vpop.f32.mrf.mxu0
      %v560 = vpop.f32.mrf.mxu0
      %v561 = vadd.f32 %v337, %v560
      %v562 = vpop.f32.mrf.mxu0
      %563 = vmatprep.mubr.bf16.mxu0 0
      %564 = vmatmul.mubr.bf16.gmra.mxu0 %v409
      %v565 = vpop.f32.mrf.mxu0
      %v566 = vadd.f32 %v337, %v565
      %v567 = vpop.f32.mrf.mxu0
      %v568 = vpop.f32.mrf.mxu0
      %v569 = vadd.f32 %v337, %v568
      %v570 = vpop.f32.mrf.mxu0
      %571 = vmatprep.mubr.bf16.mxu0 0
      %572 = vmatmul.mubr.bf16.gmra.mxu0 %v410
      %v573 = vpop.f32.mrf.mxu0
      %v574 = vadd.f32 %v337, %v573
      %v575 = vpop.f32.mrf.mxu0
      %v576 = vpop.f32.mrf.mxu0
      %v577 = vadd.f32 %v337, %v576
      %v578 = vpop.f32.mrf.mxu0
      %579 = vmatprep.mubr.bf16.mxu0 0
      %580 = vmatmul.mubr.bf16.gmra.mxu0 %v411
      %v581 = vpop.f32.mrf.mxu0
      %v582 = vadd.f32 %v337, %v581
      %v583 = vpop.f32.mrf.mxu0
      %v584 = vpop.f32.mrf.mxu0
      %v585 = vadd.f32 %v337, %v584
      %v586 = vpop.f32.mrf.mxu0
      %587 = vmatprep.mubr.bf16.mxu0 0
      %588 = vmatmul.mubr.bf16.gmra.mxu0 %v412
      %v589 = vpop.f32.mrf.mxu0
      %v590 = vadd.f32 %v337, %v589
      %v591 = vpop.f32.mrf.mxu0
      %v592 = vpop.f32.mrf.mxu0
      %v593 = vadd.f32 %v337, %v592
      %v594 = vpop.f32.mrf.mxu0
      %595 = vmatprep.mubr.bf16.mxu0 0
      %596 = vmatmul.mubr.bf16.gmra.mxu0 %v413
      %v597 = vpop.f32.mrf.mxu0
      %v598 = vadd.f32 %v337, %v597
      %v599 = vpop.f32.mrf.mxu0
      %v600 = vpop.f32.mrf.mxu0
      %v601 = vadd.f32 %v337, %v600
      %v602 = vpop.f32.mrf.mxu0
      %603 = vmatprep.mubr.bf16.mxu0 0
      %604 = vmatmul.mubr.bf16.gmra.mxu0 %v414
      %v605 = vpop.f32.mrf.mxu0
      %v606 = vadd.f32 %v337, %v605
      %v607 = vpop.f32.mrf.mxu0
      %v608 = vpop.f32.mrf.mxu0
      %v609 = vadd.f32 %v337, %v608
      %v610 = vpop.f32.mrf.mxu0
      %611 = vmatprep.mubr.bf16.mxu0 0
      %612 = vmatmul.mubr.bf16.gmra.mxu0 %v415
      %v613 = vpop.f32.mrf.mxu0
      %v614 = vadd.f32 %v337, %v613
      %v615 = vpop.f32.mrf.mxu0
      %v616 = vpop.f32.mrf.mxu0
      %v617 = vadd.f32 %v337, %v616
      %v618 = vpop.f32.mrf.mxu0
      %619 = vmatprep.mubr.bf16.mxu0 0
      %620 = vmatmul.mubr.bf16.gmra.mxu0 %v416
      %v621 = vpop.f32.mrf.mxu0
      %v622 = vadd.f32 %v337, %v621
      %v623 = vpop.f32.mrf.mxu0
      %v624 = vpop.f32.mrf.mxu0
      %v625 = vadd.f32 %v337, %v624
      %v626 = vpop.f32.mrf.mxu0
      %627 = vmatprep.mubr.bf16.mxu0 0
      %628 = vmatmul.mubr.bf16.gmra.mxu0 %v417
      %v629 = vpop.f32.mrf.mxu0
      %v630 = vadd.f32 %v337, %v629
      %v631 = vpop.f32.mrf.mxu0
      %v632 = vpop.f32.mrf.mxu0
      %v633 = vadd.f32 %v337, %v632
      %v634 = vpop.f32.mrf.mxu0
      %635 = vmatprep.mubr.bf16.mxu0 0
      %636 = vmatmul.mubr.bf16.gmra.mxu0 %v418
      %v637 = vpop.f32.mrf.mxu0
      %v638 = vadd.f32 %v337, %v637
      %v639 = vpop.f32.mrf.mxu0
      %v640 = vpop.f32.mrf.mxu0
      %v641 = vadd.f32 %v337, %v640
      %v642 = vpop.f32.mrf.mxu0
      %643 = vdwg.mxu0
      %v644 = vxor.u32 %v518, 2147483648
      %v645 = vxor.u32 %v521, 2147483648
      %v646 = vxor.u32 %v526, 2147483648
      %v647 = vxor.u32 %v529, 2147483648
      %v648 = vxor.u32 %v534, 2147483648
      %v649 = vxor.u32 %v537, 2147483648
      %v650 = vxor.u32 %v542, 2147483648
      %v651 = vxor.u32 %v545, 2147483648
      %v652 = vxor.u32 %v550, 2147483648
      %v653 = vxor.u32 %v553, 2147483648
      %v654 = vxor.u32 %v558, 2147483648
      %v655 = vxor.u32 %v561, 2147483648
      %v656 = vxor.u32 %v566, 2147483648
      %v657 = vxor.u32 %v569, 2147483648
      %v658 = vxor.u32 %v574, 2147483648
      %v659 = vxor.u32 %v577, 2147483648
      %v660 = vxor.u32 %v582, 2147483648
      %v661 = vxor.u32 %v585, 2147483648
      %v662 = vxor.u32 %v590, 2147483648
      %v663 = vxor.u32 %v593, 2147483648
      %v664 = vxor.u32 %v598, 2147483648
      %v665 = vxor.u32 %v601, 2147483648
      %v666 = vxor.u32 %v606, 2147483648
      %v667 = vxor.u32 %v609, 2147483648
      %v668 = vxor.u32 %v614, 2147483648
      %v669 = vxor.u32 %v617, 2147483648
      %v670 = vxor.u32 %v622, 2147483648
      %v671 = vxor.u32 %v625, 2147483648
      %v672 = vxor.u32 %v630, 2147483648
      %v673 = vxor.u32 %v633, 2147483648
      %v674 = vxor.u32 %v638, 2147483648
      %v675 = vxor.u32 %v641, 2147483648
      %v676 = vmul.f32 %v644, 1.442695
      %v677 = vpow.pop %v676
      %v678 = vmul.f32 %v645, 1.442695
      %v679 = vpow.pop %v678
      %v680 = vmul.f32 %v646, 1.442695
      %v681 = vpow.pop %v680
      %v682 = vmul.f32 %v647, 1.442695
      %v683 = vpow.pop %v682
      %v684 = vmul.f32 %v648, 1.442695
      %v685 = vpow.pop %v684
      %v686 = vmul.f32 %v649, 1.442695
      %v687 = vpow.pop %v686
      %v688 = vmul.f32 %v650, 1.442695
      %v689 = vpow.pop %v688
      %v690 = vmul.f32 %v651, 1.442695
      %v691 = vpow.pop %v690
      %v692 = vmul.f32 %v652, 1.442695
      %v693 = vpow.pop %v692
      %v694 = vmul.f32 %v653, 1.442695
      %v695 = vpow.pop %v694
      %v696 = vmul.f32 %v654, 1.442695
      %v697 = vpow.pop %v696
      %v698 = vmul.f32 %v655, 1.442695
      %v699 = vpow.pop %v698
      %v700 = vmul.f32 %v656, 1.442695
      %v701 = vpow.pop %v700
      %v702 = vmul.f32 %v657, 1.442695
      %v703 = vpow.pop %v702
      %v704 = vmul.f32 %v658, 1.442695
      %v705 = vpow.pop %v704
      %v706 = vmul.f32 %v659, 1.442695
      %v707 = vpow.pop %v706
      %v708 = vmul.f32 %v660, 1.442695
      %v709 = vpow.pop %v708
      %v710 = vmul.f32 %v661, 1.442695
      %v711 = vpow.pop %v710
      %v712 = vmul.f32 %v662, 1.442695
      %v713 = vpow.pop %v712
      %v714 = vmul.f32 %v663, 1.442695
      %v715 = vpow.pop %v714
      %v716 = vmul.f32 %v664, 1.442695
      %v717 = vpow.pop %v716
      %v718 = vmul.f32 %v665, 1.442695
      %v719 = vpow.pop %v718
      %v720 = vmul.f32 %v666, 1.442695
      %v721 = vpow.pop %v720
      %v722 = vmul.f32 %v667, 1.442695
      %v723 = vpow.pop %v722
      %v724 = vmul.f32 %v668, 1.442695
      %v725 = vpow.pop %v724
      %v726 = vmul.f32 %v669, 1.442695
      %v727 = vpow.pop %v726
      %v728 = vmul.f32 %v670, 1.442695
      %v729 = vpow.pop %v728
      %v730 = vmul.f32 %v671, 1.442695
      %v731 = vpow.pop %v730
      %v732 = vmul.f32 %v672, 1.442695
      %v733 = vpow.pop %v732
      %v734 = vmul.f32 %v673, 1.442695
      %v735 = vpow.pop %v734
      %v736 = vmul.f32 %v674, 1.442695
      %v737 = vpow.pop %v736
      %v738 = vmul.f32 %v675, 1.442695
      %v739 = vpow.pop %v738
      %v740 = vadd.f32 %v677, 1.0
      %v741 = vadd.f32 %v679, 1.0
      %v742 = vadd.f32 %v681, 1.0
      %v743 = vadd.f32 %v683, 1.0
      %v744 = vadd.f32 %v685, 1.0
      %v745 = vadd.f32 %v687, 1.0
      %v746 = vadd.f32 %v689, 1.0
      %v747 = vadd.f32 %v691, 1.0
      %v748 = vadd.f32 %v693, 1.0
      %v749 = vadd.f32 %v695, 1.0
      %v750 = vadd.f32 %v697, 1.0
      %v751 = vadd.f32 %v699, 1.0
      %v752 = vadd.f32 %v701, 1.0
      %v753 = vadd.f32 %v703, 1.0
      %v754 = vadd.f32 %v705, 1.0
      %v755 = vadd.f32 %v707, 1.0
      %v756 = vadd.f32 %v709, 1.0
      %v757 = vadd.f32 %v711, 1.0
      %v758 = vadd.f32 %v713, 1.0
      %v759 = vadd.f32 %v715, 1.0
      %v760 = vadd.f32 %v717, 1.0
      %v761 = vadd.f32 %v719, 1.0
      %v762 = vadd.f32 %v721, 1.0
      %v763 = vadd.f32 %v723, 1.0
      %v764 = vadd.f32 %v725, 1.0
      %v765 = vadd.f32 %v727, 1.0
      %v766 = vadd.f32 %v729, 1.0
      %v767 = vadd.f32 %v731, 1.0
      %v768 = vadd.f32 %v733, 1.0
      %v769 = vadd.f32 %v735, 1.0
      %v770 = vadd.f32 %v737, 1.0
      %v771 = vadd.f32 %v739, 1.0
      %v772 = vrcp.pop %v740
      %v773 = vmul.f32 1.0, %v772
      %v774 = vrcp.pop %v741
      %v775 = vmul.f32 1.0, %v774
      %v776 = vrcp.pop %v742
      %v777 = vmul.f32 1.0, %v776
      %v778 = vrcp.pop %v743
      %v779 = vmul.f32 1.0, %v778
      %v780 = vrcp.pop %v744
      %v781 = vmul.f32 1.0, %v780
      %v782 = vrcp.pop %v745
      %v783 = vmul.f32 1.0, %v782
      %v784 = vrcp.pop %v746
      %v785 = vmul.f32 1.0, %v784
      %v786 = vrcp.pop %v747
      %v787 = vmul.f32 1.0, %v786
      %v788 = vrcp.pop %v748
      %v789 = vmul.f32 1.0, %v788
      %v790 = vrcp.pop %v749
      %v791 = vmul.f32 1.0, %v790
      %v792 = vrcp.pop %v750
      %v793 = vmul.f32 1.0, %v792
      %v794 = vrcp.pop %v751
      %v795 = vmul.f32 1.0, %v794
      %v796 = vrcp.pop %v752
      %v797 = vmul.f32 1.0, %v796
      %v798 = vrcp.pop %v753
      %v799 = vmul.f32 1.0, %v798
      %v800 = vrcp.pop %v754
      %v801 = vmul.f32 1.0, %v800
      %v802 = vrcp.pop %v755
      %v803 = vmul.f32 1.0, %v802
      %v804 = vrcp.pop %v756
      %v805 = vmul.f32 1.0, %v804
      %v806 = vrcp.pop %v757
      %v807 = vmul.f32 1.0, %v806
      %v808 = vrcp.pop %v758
      %v809 = vmul.f32 1.0, %v808
      %v810 = vrcp.pop %v759
      %v811 = vmul.f32 1.0, %v810
      %v812 = vrcp.pop %v760
      %v813 = vmul.f32 1.0, %v812
      %v814 = vrcp.pop %v761
      %v815 = vmul.f32 1.0, %v814
      %v816 = vrcp.pop %v762
      %v817 = vmul.f32 1.0, %v816
      %v818 = vrcp.pop %v763
      %v819 = vmul.f32 1.0, %v818
      %v820 = vrcp.pop %v764
      %v821 = vmul.f32 1.0, %v820
      %v822 = vrcp.pop %v765
      %v823 = vmul.f32 1.0, %v822
      %v824 = vrcp.pop %v766
      %v825 = vmul.f32 1.0, %v824
      %v826 = vrcp.pop %v767
      %v827 = vmul.f32 1.0, %v826
      %v828 = vrcp.pop %v768
      %v829 = vmul.f32 1.0, %v828
      %v830 = vrcp.pop %v769
      %v831 = vmul.f32 1.0, %v830
      %v832 = vrcp.pop %v770
      %v833 = vmul.f32 1.0, %v832
      %v834 = vrcp.pop %v771
      %v835 = vmul.f32 1.0, %v834
      %v836 = vmul.f32 %v518, %v773
      %v837 = vmul.f32 %v521, %v775
      %v838 = vmul.f32 %v526, %v777
      %v839 = vmul.f32 %v529, %v779
      %v840 = vmul.f32 %v534, %v781
      %v841 = vmul.f32 %v537, %v783
      %v842 = vmul.f32 %v542, %v785
      %v843 = vmul.f32 %v545, %v787
      %v844 = vmul.f32 %v550, %v789
      %v845 = vmul.f32 %v553, %v791
      %v846 = vmul.f32 %v558, %v793
      %v847 = vmul.f32 %v561, %v795
      %v848 = vmul.f32 %v566, %v797
      %v849 = vmul.f32 %v569, %v799
      %v850 = vmul.f32 %v574, %v801
      %v851 = vmul.f32 %v577, %v803
      %v852 = vmul.f32 %v582, %v805
      %v853 = vmul.f32 %v585, %v807
      %v854 = vmul.f32 %v590, %v809
      %v855 = vmul.f32 %v593, %v811
      %v856 = vmul.f32 %v598, %v813
      %v857 = vmul.f32 %v601, %v815
      %v858 = vmul.f32 %v606, %v817
      %v859 = vmul.f32 %v609, %v819
      %v860 = vmul.f32 %v614, %v821
      %v861 = vmul.f32 %v617, %v823
      %v862 = vmul.f32 %v622, %v825
      %v863 = vmul.f32 %v625, %v827
      %v864 = vmul.f32 %v630, %v829
      %v865 = vmul.f32 %v633, %v831
      %v866 = vmul.f32 %v638, %v833
      %v867 = vmul.f32 %v641, %v835
      %v868 = vpack.c.bf16 %v837, %v836
      %v869 = vpack.c.bf16 %v839, %v838
      %v870 = vpack.c.bf16 %v841, %v840
      %v871 = vpack.c.bf16 %v843, %v842
      %v872 = vpack.c.bf16 %v845, %v844
      %v873 = vpack.c.bf16 %v847, %v846
      %v874 = vpack.c.bf16 %v849, %v848
      %v875 = vpack.c.bf16 %v851, %v850
      %v876 = vpack.c.bf16 %v853, %v852
      %v877 = vpack.c.bf16 %v855, %v854
      %v878 = vpack.c.bf16 %v857, %v856
      %v879 = vpack.c.bf16 %v859, %v858
      %v880 = vpack.c.bf16 %v861, %v860
      %v881 = vpack.c.bf16 %v863, %v862
      %v882 = vpack.c.bf16 %v865, %v864
      %v883 = vpack.c.bf16 %v867, %v866
      %v900 = vunpack.c.l.b16 %v868
      %v901 = vunpack.c.h.b16 %v868
      %v902 = vunpack.c.l.b16 %v869
      %v903 = vunpack.c.h.b16 %v869
      %v904 = vunpack.c.l.b16 %v870
      %v905 = vunpack.c.h.b16 %v870
      %v906 = vunpack.c.l.b16 %v871
      %v907 = vunpack.c.h.b16 %v871
      %v908 = vunpack.c.l.b16 %v872
      %v909 = vunpack.c.h.b16 %v872
      %v910 = vunpack.c.l.b16 %v873
      %v911 = vunpack.c.h.b16 %v873
      %v912 = vunpack.c.l.b16 %v874
      %v913 = vunpack.c.h.b16 %v874
      %v914 = vunpack.c.l.b16 %v875
      %v915 = vunpack.c.h.b16 %v875
      %v916 = vunpack.c.l.b16 %v876
      %v917 = vunpack.c.h.b16 %v876
      %v918 = vunpack.c.l.b16 %v877
      %v919 = vunpack.c.h.b16 %v877
      %v920 = vunpack.c.l.b16 %v878
      %v921 = vunpack.c.h.b16 %v878
      %v922 = vunpack.c.l.b16 %v879
      %v923 = vunpack.c.h.b16 %v879
      %v924 = vunpack.c.l.b16 %v880
      %v925 = vunpack.c.h.b16 %v880
      %v926 = vunpack.c.l.b16 %v881
      %v927 = vunpack.c.h.b16 %v881
      %v928 = vunpack.c.l.b16 %v882
      %v929 = vunpack.c.h.b16 %v882
      %v930 = vunpack.c.l.b16 %v883
      %v931 = vunpack.c.h.b16 %v883
      %v932 = vpack.c.b16 %v900, %v900
      %v933 = vpack.c.b16 %v901, %v901
      %v934 = vpack.c.b16 %v902, %v902
      %v935 = vpack.c.b16 %v903, %v903
      %v936 = vpack.c.b16 %v904, %v904
      %v937 = vpack.c.b16 %v905, %v905
      %v938 = vpack.c.b16 %v906, %v906
      %v939 = vpack.c.b16 %v907, %v907
      %v940 = vpack.c.b16 %v908, %v908
      %v941 = vpack.c.b16 %v909, %v909
      %v942 = vpack.c.b16 %v910, %v910
      %v943 = vpack.c.b16 %v911, %v911
      %v944 = vpack.c.b16 %v912, %v912
      %v945 = vpack.c.b16 %v913, %v913
      %v946 = vpack.c.b16 %v914, %v914
      %v947 = vpack.c.b16 %v915, %v915
      %v948 = vpack.c.b16 %v916, %v916
      %v949 = vpack.c.b16 %v917, %v917
      %v950 = vpack.c.b16 %v918, %v918
      %v951 = vpack.c.b16 %v919, %v919
      %v952 = vpack.c.b16 %v920, %v920
      %v953 = vpack.c.b16 %v921, %v921
      %v954 = vpack.c.b16 %v922, %v922
      %v955 = vpack.c.b16 %v923, %v923
      %v956 = vpack.c.b16 %v924, %v924
      %v957 = vpack.c.b16 %v925, %v925
      %v958 = vpack.c.b16 %v926, %v926
      %v959 = vpack.c.b16 %v927, %v927
      %v960 = vpack.c.b16 %v928, %v928
      %v961 = vpack.c.b16 %v929, %v929
      %v962 = vpack.c.b16 %v930, %v930
      %v963 = vpack.c.b16 %v931, %v931
      %vm964 = vsmask.f32 256
      %vm965 = vsmask.f32 4368
      %vm966 = vmor %vm964, %vm965
      %v968 = vshrl.u32 %v932, 16
      %v970 = vrot.slane %v968, 7
      %v971 = vshll.u32 %v932, 16
      %v973 = vor.u32 %v970, %v971
      %v974 = vrot.slane %v970, 4
      %v976 = vshrl.u32 %v933, 16
      %v978 = vrot.slane %v976, 7
      %v979 = vshll.u32 %v933, 16
      %v981 = vor.u32 %v978, %v979
      %v982 = vsel %vm966, %v974, %v981
      %v983 = vrot.slane %v978, 4
      %v985 = vshrl.u32 %v934, 16
      %v987 = vrot.slane %v985, 7
      %v988 = vshll.u32 %v934, 16
      %v990 = vor.u32 %v987, %v988
      %v991 = vrot.slane %v987, 4
      %v993 = vshrl.u32 %v935, 16
      %v995 = vrot.slane %v993, 7
      %v996 = vshll.u32 %v935, 16
      %v998 = vor.u32 %v995, %v996
      %v999 = vsel %vm966, %v991, %v998
      %v1000 = vrot.slane %v995, 4
      %v1002 = vshrl.u32 %v936, 16
      %v1004 = vrot.slane %v1002, 7
      %v1005 = vshll.u32 %v936, 16
      %v1007 = vor.u32 %v1004, %v1005
      %v1008 = vrot.slane %v1004, 4
      %v1010 = vshrl.u32 %v937, 16
      %v1012 = vrot.slane %v1010, 7
      %v1013 = vshll.u32 %v937, 16
      %v1015 = vor.u32 %v1012, %v1013
      %v1016 = vsel %vm966, %v1008, %v1015
      %v1017 = vrot.slane %v1012, 4
      %v1019 = vshrl.u32 %v938, 16
      %v1021 = vrot.slane %v1019, 7
      %v1022 = vshll.u32 %v938, 16
      %v1024 = vor.u32 %v1021, %v1022
      %v1025 = vrot.slane %v1021, 4
      %v1027 = vshrl.u32 %v939, 16
      %v1029 = vrot.slane %v1027, 7
      %v1030 = vshll.u32 %v939, 16
      %v1032 = vor.u32 %v1029, %v1030
      %v1033 = vsel %vm966, %v1025, %v1032
      %v1034 = vrot.slane %v1029, 4
      %v1036 = vshrl.u32 %v940, 16
      %v1038 = vrot.slane %v1036, 7
      %v1039 = vshll.u32 %v940, 16
      %v1041 = vor.u32 %v1038, %v1039
      %v1042 = vrot.slane %v1038, 4
      %v1044 = vshrl.u32 %v941, 16
      %v1046 = vrot.slane %v1044, 7
      %v1047 = vshll.u32 %v941, 16
      %v1049 = vor.u32 %v1046, %v1047
      %v1050 = vsel %vm966, %v1042, %v1049
      %v1051 = vrot.slane %v1046, 4
      %v1053 = vshrl.u32 %v942, 16
      %v1055 = vrot.slane %v1053, 7
      %v1056 = vshll.u32 %v942, 16
      %v1058 = vor.u32 %v1055, %v1056
      %v1059 = vrot.slane %v1055, 4
      %v1061 = vshrl.u32 %v943, 16
      %v1063 = vrot.slane %v1061, 7
      %v1064 = vshll.u32 %v943, 16
      %v1066 = vor.u32 %v1063, %v1064
      %v1067 = vsel %vm966, %v1059, %v1066
      %v1068 = vrot.slane %v1063, 4
      %v1070 = vshrl.u32 %v944, 16
      %v1072 = vrot.slane %v1070, 7
      %v1073 = vshll.u32 %v944, 16
      %v1075 = vor.u32 %v1072, %v1073
      %v1076 = vrot.slane %v1072, 4
      %v1078 = vshrl.u32 %v945, 16
      %v1080 = vrot.slane %v1078, 7
      %v1081 = vshll.u32 %v945, 16
      %v1083 = vor.u32 %v1080, %v1081
      %v1084 = vsel %vm966, %v1076, %v1083
      %v1085 = vrot.slane %v1080, 4
      %v1087 = vshrl.u32 %v946, 16
      %v1089 = vrot.slane %v1087, 7
      %v1090 = vshll.u32 %v946, 16
      %v1092 = vor.u32 %v1089, %v1090
      %v1093 = vrot.slane %v1089, 4
      %v1095 = vshrl.u32 %v947, 16
      %v1097 = vrot.slane %v1095, 7
      %v1098 = vshll.u32 %v947, 16
      %v1100 = vor.u32 %v1097, %v1098
      %v1101 = vsel %vm966, %v1093, %v1100
      %v1102 = vrot.slane %v1097, 4
      %v1104 = vshrl.u32 %v948, 16
      %v1106 = vrot.slane %v1104, 7
      %v1107 = vshll.u32 %v948, 16
      %v1109 = vor.u32 %v1106, %v1107
      %v1110 = vrot.slane %v1106, 4
      %v1112 = vshrl.u32 %v949, 16
      %v1114 = vrot.slane %v1112, 7
      %v1115 = vshll.u32 %v949, 16
      %v1117 = vor.u32 %v1114, %v1115
      %v1118 = vsel %vm966, %v1110, %v1117
      %v1119 = vrot.slane %v1114, 4
      %v1121 = vshrl.u32 %v950, 16
      %v1123 = vrot.slane %v1121, 7
      %v1124 = vshll.u32 %v950, 16
      %v1126 = vor.u32 %v1123, %v1124
      %v1127 = vrot.slane %v1123, 4
      %v1129 = vshrl.u32 %v951, 16
      %v1131 = vrot.slane %v1129, 7
      %v1132 = vshll.u32 %v951, 16
      %v1134 = vor.u32 %v1131, %v1132
      %v1135 = vsel %vm966, %v1127, %v1134
      %v1136 = vrot.slane %v1131, 4
      %v1138 = vshrl.u32 %v952, 16
      %v1140 = vrot.slane %v1138, 7
      %v1141 = vshll.u32 %v952, 16
      %v1143 = vor.u32 %v1140, %v1141
      %v1144 = vrot.slane %v1140, 4
      %v1146 = vshrl.u32 %v953, 16
      %v1148 = vrot.slane %v1146, 7
      %v1149 = vshll.u32 %v953, 16
      %v1151 = vor.u32 %v1148, %v1149
      %v1152 = vsel %vm966, %v1144, %v1151
      %v1153 = vrot.slane %v1148, 4
      %v1155 = vshrl.u32 %v954, 16
      %v1157 = vrot.slane %v1155, 7
      %v1158 = vshll.u32 %v954, 16
      %v1160 = vor.u32 %v1157, %v1158
      %v1161 = vrot.slane %v1157, 4
      %v1163 = vshrl.u32 %v955, 16
      %v1165 = vrot.slane %v1163, 7
      %v1166 = vshll.u32 %v955, 16
      %v1168 = vor.u32 %v1165, %v1166
      %v1169 = vsel %vm966, %v1161, %v1168
      %v1170 = vrot.slane %v1165, 4
      %v1172 = vshrl.u32 %v956, 16
      %v1174 = vrot.slane %v1172, 7
      %v1175 = vshll.u32 %v956, 16
      %v1177 = vor.u32 %v1174, %v1175
      %v1178 = vrot.slane %v1174, 4
      %v1180 = vshrl.u32 %v957, 16
      %v1182 = vrot.slane %v1180, 7
      %v1183 = vshll.u32 %v957, 16
      %v1185 = vor.u32 %v1182, %v1183
      %v1186 = vsel %vm966, %v1178, %v1185
      %v1187 = vrot.slane %v1182, 4
      %v1189 = vshrl.u32 %v958, 16
      %v1191 = vrot.slane %v1189, 7
      %v1192 = vshll.u32 %v958, 16
      %v1194 = vor.u32 %v1191, %v1192
      %v1195 = vrot.slane %v1191, 4
      %v1197 = vshrl.u32 %v959, 16
      %v1199 = vrot.slane %v1197, 7
      %v1200 = vshll.u32 %v959, 16
      %v1202 = vor.u32 %v1199, %v1200
      %v1203 = vsel %vm966, %v1195, %v1202
      %v1204 = vrot.slane %v1199, 4
      %v1206 = vshrl.u32 %v960, 16
      %v1208 = vrot.slane %v1206, 7
      %v1209 = vshll.u32 %v960, 16
      %v1211 = vor.u32 %v1208, %v1209
      %v1212 = vrot.slane %v1208, 4
      %v1214 = vshrl.u32 %v961, 16
      %v1216 = vrot.slane %v1214, 7
      %v1217 = vshll.u32 %v961, 16
      %v1219 = vor.u32 %v1216, %v1217
      %v1220 = vsel %vm966, %v1212, %v1219
      %v1221 = vrot.slane %v1216, 4
      %v1223 = vshrl.u32 %v962, 16
      %v1225 = vrot.slane %v1223, 7
      %v1226 = vshll.u32 %v962, 16
      %v1228 = vor.u32 %v1225, %v1226
      %v1229 = vrot.slane %v1225, 4
      %v1231 = vshrl.u32 %v963, 16
      %v1233 = vrot.slane %v1231, 7
      %v1234 = vshll.u32 %v963, 16
      %v1236 = vor.u32 %v1233, %v1234
      %v1237 = vsel %vm966, %v1229, %v1236
      %v1238 = vrot.slane %v1233, 4
      %s1287 = scalar_lea.vmem [#allocation2], 12
      %vm1288 = vcmask 1043456
      %vm1289 = vsmask.f32 7938
      %vm1290 = vmand %vm1288, %vm1289
      %v1291 = vld [vmem:[%s1287] sm:$0xf]
      %v1292 = vsel %vm1290, %v973, %v1291
      %1293 = vst [vmem:[%s1287] sm:$0xf] %v1292
      %1294 = vst [vmem:[%s1287 + $0x4] sm:$0xf] %v982
      %vm1295 = vcmask 1040384
      %vm1296 = vmand %vm1295, %vm964
      %v1297 = vld [vmem:[%s1287 + $0x8] sm:$0x1]
      %v1298 = vsel %vm1296, %v983, %v1297
      %1299 = vst [vmem:[%s1287 + $0x8] sm:$0x1] %v1298
      %v1300 = vld [vmem:[%s1287 + $0xc] sm:$0xf]
      %v1301 = vsel %vm1290, %v990, %v1300
      %1302 = vst [vmem:[%s1287 + $0xc] sm:$0xf] %v1301
      %1303 = vst [vmem:[%s1287 + $0x10] sm:$0xf] %v999
      %v1304 = vld [vmem:[%s1287 + $0x14] sm:$0x1]
      %v1305 = vsel %vm1296, %v1000, %v1304
      %1306 = vst [vmem:[%s1287 + $0x14] sm:$0x1] %v1305
      %v1307 = vld [vmem:[%s1287 + $0x18] sm:$0xf]
      %v1308 = vsel %vm1290, %v1007, %v1307
      %1309 = vst [vmem:[%s1287 + $0x18] sm:$0xf] %v1308
      %1310 = vst [vmem:[%s1287 + $0x1c] sm:$0xf] %v1016
      %v1311 = vld [vmem:[%s1287 + $0x20] sm:$0x1]
      %v1312 = vsel %vm1296, %v1017, %v1311
      %1313 = vst [vmem:[%s1287 + $0x20] sm:$0x1] %v1312
      %v1314 = vld [vmem:[%s1287 + $0x24] sm:$0xf]
      %v1315 = vsel %vm1290, %v1024, %v1314
      %1316 = vst [vmem:[%s1287 + $0x24] sm:$0xf] %v1315
      %1317 = vst [vmem:[%s1287 + $0x28] sm:$0xf] %v1033
      %v1318 = vld [vmem:[%s1287 + $0x2c] sm:$0x1]
      %v1319 = vsel %vm1296, %v1034, %v1318
      %1320 = vst [vmem:[%s1287 + $0x2c] sm:$0x1] %v1319
      %v1321 = vld [vmem:[%s1287 + $0x30] sm:$0xf]
      %v1322 = vsel %vm1290, %v1041, %v1321
      %1323 = vst [vmem:[%s1287 + $0x30] sm:$0xf] %v1322
      %1324 = vst [vmem:[%s1287 + $0x34] sm:$0xf] %v1050
      %v1325 = vld [vmem:[%s1287 + $0x38] sm:$0x1]
      %v1326 = vsel %vm1296, %v1051, %v1325
      %1327 = vst [vmem:[%s1287 + $0x38] sm:$0x1] %v1326
      %v1328 = vld [vmem:[%s1287 + $0x3c] sm:$0xf]
      %v1329 = vsel %vm1290, %v1058, %v1328
      %1330 = vst [vmem:[%s1287 + $0x3c] sm:$0xf] %v1329
      %1331 = vst [vmem:[%s1287 + $0x40] sm:$0xf] %v1067
      %v1332 = vld [vmem:[%s1287 + $0x44] sm:$0x1]
      %v1333 = vsel %vm1296, %v1068, %v1332
      %1334 = vst [vmem:[%s1287 + $0x44] sm:$0x1] %v1333
      %v1335 = vld [vmem:[%s1287 + $0x48] sm:$0xf]
      %v1336 = vsel %vm1290, %v1075, %v1335
      %1337 = vst [vmem:[%s1287 + $0x48] sm:$0xf] %v1336
      %1338 = vst [vmem:[%s1287 + $0x4c] sm:$0xf] %v1084
      %v1339 = vld [vmem:[%s1287 + $0x50] sm:$0x1]
      %v1340 = vsel %vm1296, %v1085, %v1339
      %1341 = vst [vmem:[%s1287 + $0x50] sm:$0x1] %v1340
      %v1342 = vld [vmem:[%s1287 + $0x54] sm:$0xf]
      %v1343 = vsel %vm1290, %v1092, %v1342
      %1344 = vst [vmem:[%s1287 + $0x54] sm:$0xf] %v1343
      %1345 = vst [vmem:[%s1287 + $0x58] sm:$0xf] %v1101
      %v1346 = vld [vmem:[%s1287 + $0x5c] sm:$0x1]
      %v1347 = vsel %vm1296, %v1102, %v1346
      %1348 = vst [vmem:[%s1287 + $0x5c] sm:$0x1] %v1347
      %v1349 = vld [vmem:[%s1287 + $0x60] sm:$0xf]
      %v1350 = vsel %vm1290, %v1109, %v1349
      %1351 = vst [vmem:[%s1287 + $0x60] sm:$0xf] %v1350
      %1352 = vst [vmem:[%s1287 + $0x64] sm:$0xf] %v1118
      %v1353 = vld [vmem:[%s1287 + $0x68] sm:$0x1]
      %v1354 = vsel %vm1296, %v1119, %v1353
      %1355 = vst [vmem:[%s1287 + $0x68] sm:$0x1] %v1354
      %v1356 = vld [vmem:[%s1287 + $0x6c] sm:$0xf]
      %v1357 = vsel %vm1290, %v1126, %v1356
      %1358 = vst [vmem:[%s1287 + $0x6c] sm:$0xf] %v1357
      %1359 = vst [vmem:[%s1287 + $0x70] sm:$0xf] %v1135
      %v1360 = vld [vmem:[%s1287 + $0x74] sm:$0x1]
      %v1361 = vsel %vm1296, %v1136, %v1360
      %1362 = vst [vmem:[%s1287 + $0x74] sm:$0x1] %v1361
      %v1363 = vld [vmem:[%s1287 + $0x78] sm:$0xf]
      %v1364 = vsel %vm1290, %v1143, %v1363
      %1365 = vst [vmem:[%s1287 + $0x78] sm:$0xf] %v1364
      %1366 = vst [vmem:[%s1287 + $0x7c] sm:$0xf] %v1152
      %v1367 = vld [vmem:[%s1287 + $0x80] sm:$0x1]
      %v1368 = vsel %vm1296, %v1153, %v1367
      %1369 = vst [vmem:[%s1287 + $0x80] sm:$0x1] %v1368
      %v1370 = vld [vmem:[%s1287 + $0x84] sm:$0xf]
      %v1371 = vsel %vm1290, %v1160, %v1370
      %1372 = vst [vmem:[%s1287 + $0x84] sm:$0xf] %v1371
      %1373 = vst [vmem:[%s1287 + $0x88] sm:$0xf] %v1169
      %v1374 = vld [vmem:[%s1287 + $0x8c] sm:$0x1]
      %v1375 = vsel %vm1296, %v1170, %v1374
      %1376 = vst [vmem:[%s1287 + $0x8c] sm:$0x1] %v1375
      %v1377 = vld [vmem:[%s1287 + $0x90] sm:$0xf]
      %v1378 = vsel %vm1290, %v1177, %v1377
      %1379 = vst [vmem:[%s1287 + $0x90] sm:$0xf] %v1378
      %1380 = vst [vmem:[%s1287 + $0x94] sm:$0xf] %v1186
      %v1381 = vld [vmem:[%s1287 + $0x98] sm:$0x1]
      %v1382 = vsel %vm1296, %v1187, %v1381
      %1383 = vst [vmem:[%s1287 + $0x98] sm:$0x1] %v1382
      %v1384 = vld [vmem:[%s1287 + $0x9c] sm:$0xf]
      %v1385 = vsel %vm1290, %v1194, %v1384
      %1386 = vst [vmem:[%s1287 + $0x9c] sm:$0xf] %v1385
      %1387 = vst [vmem:[%s1287 + $0xa0] sm:$0xf] %v1203
      %v1388 = vld [vmem:[%s1287 + $0xa4] sm:$0x1]
      %v1389 = vsel %vm1296, %v1204, %v1388
      %1390 = vst [vmem:[%s1287 + $0xa4] sm:$0x1] %v1389
      %v1391 = vld [vmem:[%s1287 + $0xa8] sm:$0xf]
      %v1392 = vsel %vm1290, %v1211, %v1391
      %1393 = vst [vmem:[%s1287 + $0xa8] sm:$0xf] %v1392
      %1394 = vst [vmem:[%s1287 + $0xac] sm:$0xf] %v1220
      %v1395 = vld [vmem:[%s1287 + $0xb0] sm:$0x1]
      %v1396 = vsel %vm1296, %v1221, %v1395
      %1397 = vst [vmem:[%s1287 + $0xb0] sm:$0x1] %v1396
      %v1398 = vld [vmem:[%s1287 + $0xb4] sm:$0xf]
      %v1399 = vsel %vm1290, %v1228, %v1398
      %1400 = vst [vmem:[%s1287 + $0xb4] sm:$0xf] %v1399
      %1401 = vst [vmem:[%s1287 + $0xb8] sm:$0xf] %v1237
      %v1402 = vld [vmem:[%s1287 + $0xbc] sm:$0x1]
      %v1403 = vsel %vm1296, %v1238, %v1402
      %1404 = vst [vmem:[%s1287 + $0xbc] sm:$0x1] %v1403
      %v1405 = vld [vmem:[#allocation2] sm:$0xf]
      %v1406 = vld [vmem:[#allocation2 + $0x4] sm:$0xf]
      %v1407 = vld [vmem:[#allocation2 + $0xc] sm:$0xf]
      %v1408 = vld [vmem:[#allocation2 + $0x10] sm:$0xf]
      %v1409 = vld [vmem:[#allocation2 + $0x18] sm:$0xf]
      %v1410 = vld [vmem:[#allocation2 + $0x1c] sm:$0xf]
      %v1411 = vld [vmem:[#allocation2 + $0x24] sm:$0xf]
      %v1412 = vld [vmem:[#allocation2 + $0x28] sm:$0xf]
      %v1413 = vld [vmem:[#allocation2 + $0x30] sm:$0xf]
      %v1414 = vld [vmem:[#allocation2 + $0x34] sm:$0xf]
      %v1415 = vld [vmem:[#allocation2 + $0x3c] sm:$0xf]
      %v1416 = vld [vmem:[#allocation2 + $0x40] sm:$0xf]
      %v1417 = vld [vmem:[#allocation2 + $0x48] sm:$0xf]
      %v1418 = vld [vmem:[#allocation2 + $0x4c] sm:$0xf]
      %v1419 = vld [vmem:[#allocation2 + $0x54] sm:$0xf]
      %v1420 = vld [vmem:[#allocation2 + $0x58] sm:$0xf]
      %v1421 = vld [vmem:[#allocation2 + $0x60] sm:$0xf]
      %v1422 = vld [vmem:[#allocation2 + $0x64] sm:$0xf]
      %v1423 = vld [vmem:[#allocation2 + $0x6c] sm:$0xf]
      %v1424 = vld [vmem:[#allocation2 + $0x70] sm:$0xf]
      %v1425 = vld [vmem:[#allocation2 + $0x78] sm:$0xf]
      %v1426 = vld [vmem:[#allocation2 + $0x7c] sm:$0xf]
      %v1427 = vld [vmem:[#allocation2 + $0x84] sm:$0xf]
      %v1428 = vld [vmem:[#allocation2 + $0x88] sm:$0xf]
      %v1429 = vld [vmem:[#allocation2 + $0x90] sm:$0xf]
      %v1430 = vld [vmem:[#allocation2 + $0x94] sm:$0xf]
      %v1431 = vld [vmem:[#allocation2 + $0x9c] sm:$0xf]
      %v1432 = vld [vmem:[#allocation2 + $0xa0] sm:$0xf]
      %v1433 = vld [vmem:[#allocation2 + $0xa8] sm:$0xf]
      %v1434 = vld [vmem:[#allocation2 + $0xac] sm:$0xf]
      %v1435 = vld [vmem:[#allocation2 + $0xb4] sm:$0xf]
      %v1436 = vld [vmem:[#allocation2 + $0xb8] sm:$0xf]
      %1437 = vst [vmem:[#allocation3] sm:$0xf] %v1405
      %1438 = vst [vmem:[#allocation3 + $0x24] sm:$0xf] %v1406
      %1439 = vst [vmem:[#allocation3 + $0x48] sm:$0xf] %v1407
      %1440 = vst [vmem:[#allocation3 + $0x6c] sm:$0xf] %v1408
      %1441 = vst [vmem:[#allocation3 + $0x90] sm:$0xf] %v1409
      %1442 = vst [vmem:[#allocation3 + $0xb4] sm:$0xf] %v1410
      %1443 = vst [vmem:[#allocation3 + $0xd8] sm:$0xf] %v1411
      %1444 = vst [vmem:[#allocation3 + $0xfc] sm:$0xf] %v1412
      %1445 = vst [vmem:[#allocation3 + $0x120] sm:$0xf] %v1413
      %1446 = vst [vmem:[#allocation3 + $0x144] sm:$0xf] %v1414
      %1447 = vst [vmem:[#allocation3 + $0x168] sm:$0xf] %v1415
      %1448 = vst [vmem:[#allocation3 + $0x18c] sm:$0xf] %v1416
      %1449 = vst [vmem:[#allocation3 + $0x1b0] sm:$0xf] %v1417
      %1450 = vst [vmem:[#allocation3 + $0x1d4] sm:$0xf] %v1418
      %1451 = vst [vmem:[#allocation3 + $0x1f8] sm:$0xf] %v1419
      %1452 = vst [vmem:[#allocation3 + $0x21c] sm:$0xf] %v1420
      %1453 = vst [vmem:[#allocation3 + $0x240] sm:$0xf] %v1421
      %1454 = vst [vmem:[#allocation3 + $0x264] sm:$0xf] %v1422
      %1455 = vst [vmem:[#allocation3 + $0x288] sm:$0xf] %v1423
      %1456 = vst [vmem:[#allocation3 + $0x2ac] sm:$0xf] %v1424
      %1457 = vst [vmem:[#allocation3 + $0x2d0] sm:$0xf] %v1425
      %1458 = vst [vmem:[#allocation3 + $0x2f4] sm:$0xf] %v1426
      %1459 = vst [vmem:[#allocation3 + $0x318] sm:$0xf] %v1427
      %1460 = vst [vmem:[#allocation3 + $0x33c] sm:$0xf] %v1428
      %1461 = vst [vmem:[#allocation3 + $0x360] sm:$0xf] %v1429
      %1462 = vst [vmem:[#allocation3 + $0x384] sm:$0xf] %v1430
      %1463 = vst [vmem:[#allocation3 + $0x3a8] sm:$0xf] %v1431
      %1464 = vst [vmem:[#allocation3 + $0x3cc] sm:$0xf] %v1432
      %1465 = vst [vmem:[#allocation3 + $0x3f0] sm:$0xf] %v1433
      %1466 = vst [vmem:[#allocation3 + $0x414] sm:$0xf] %v1434
      %1467 = vst [vmem:[#allocation3 + $0x438] sm:$0xf] %v1435
      %1468 = vst [vmem:[#allocation3 + $0x45c] sm:$0xf] %v1436
      %v1469 = vld [vmem:[#allocation2] sm:$0xf]
      %v1470 = vld [vmem:[#allocation2 + $0x4] sm:$0xf]
      %v1471 = vld [vmem:[#allocation2 + $0x8] sm:$0x1]
      %v1472 = vld [vmem:[#allocation2 + $0xc] sm:$0xf]
      %v1473 = vld [vmem:[#allocation2 + $0x10] sm:$0xf]
      %v1474 = vld [vmem:[#allocation2 + $0x14] sm:$0x1]
      %v1475 = vld [vmem:[#allocation2 + $0x18] sm:$0xf]
      %v1476 = vld [vmem:[#allocation2 + $0x1c] sm:$0xf]
      %v1477 = vld [vmem:[#allocation2 + $0x20] sm:$0x1]
      %v1478 = vld [vmem:[#allocation2 + $0x24] sm:$0xf]
      %v1479 = vld [vmem:[#allocation2 + $0x28] sm:$0xf]
      %v1480 = vld [vmem:[#allocation2 + $0x2c] sm:$0x1]
      %v1481 = vld [vmem:[#allocation2 + $0x30] sm:$0xf]
      %v1482 = vld [vmem:[#allocation2 + $0x34] sm:$0xf]
      %v1483 = vld [vmem:[#allocation2 + $0x38] sm:$0x1]
      %v1484 = vld [vmem:[#allocation2 + $0x3c] sm:$0xf]
      %v1485 = vld [vmem:[#allocation2 + $0x40] sm:$0xf]
      %v1486 = vld [vmem:[#allocation2 + $0x44] sm:$0x1]
      %v1487 = vld [vmem:[#allocation2 + $0x48] sm:$0xf]
      %v1488 = vld [vmem:[#allocation2 + $0x4c] sm:$0xf]
      %v1489 = vld [vmem:[#allocation2 + $0x50] sm:$0x1]
      %v1490 = vld [vmem:[#allocation2 + $0x54] sm:$0xf]
      %v1491 = vld [vmem:[#allocation2 + $0x58] sm:$0xf]
      %v1492 = vld [vmem:[#allocation2 + $0x5c] sm:$0x1]
      %v1493 = vld [vmem:[#allocation2 + $0x60] sm:$0xf]
      %v1494 = vld [vmem:[#allocation2 + $0x64] sm:$0xf]
      %v1495 = vld [vmem:[#allocation2 + $0x68] sm:$0x1]
      %v1496 = vld [vmem:[#allocation2 + $0x6c] sm:$0xf]
      %v1497 = vld [vmem:[#allocation2 + $0x70] sm:$0xf]
      %v1498 = vld [vmem:[#allocation2 + $0x74] sm:$0x1]
      %v1499 = vld [vmem:[#allocation2 + $0x78] sm:$0xf]
      %v1500 = vld [vmem:[#allocation2 + $0x7c] sm:$0xf]
      %v1501 = vld [vmem:[#allocation2 + $0x80] sm:$0x1]
      %v1502 = vld [vmem:[#allocation2 + $0x84] sm:$0xf]
      %v1503 = vld [vmem:[#allocation2 + $0x88] sm:$0xf]
      %v1504 = vld [vmem:[#allocation2 + $0x8c] sm:$0x1]
      %v1505 = vld [vmem:[#allocation2 + $0x90] sm:$0xf]
      %v1506 = vld [vmem:[#allocation2 + $0x94] sm:$0xf]
      %v1507 = vld [vmem:[#allocation2 + $0x98] sm:$0x1]
      %v1508 = vld [vmem:[#allocation2 + $0x9c] sm:$0xf]
      %v1509 = vld [vmem:[#allocation2 + $0xa0] sm:$0xf]
      %v1510 = vld [vmem:[#allocation2 + $0xa4] sm:$0x1]
      %v1511 = vld [vmem:[#allocation2 + $0xa8] sm:$0xf]
      %v1512 = vld [vmem:[#allocation2 + $0xac] sm:$0xf]
      %v1513 = vld [vmem:[#allocation2 + $0xb0] sm:$0x1]
      %v1514 = vld [vmem:[#allocation2 + $0xb4] sm:$0xf]
      %v1515 = vld [vmem:[#allocation2 + $0xb8] sm:$0xf]
      %v1516 = vld [vmem:[#allocation2 + $0xbc] sm:$0x1]
      %vm1517 = vsmask.f32 3328
      %vm1518 = vsmask.f32 7440
      %vm1519 = vmor %vm1517, %vm1518
      %v1521 = vshrl.u32 %v1469, 16
      %v1523 = vrot.slane %v1521, 4
      %v1524 = vshll.u32 %v1469, 16
      %v1526 = vrot.slane %v1524, 5
      %v1527 = vor.u32 %v1523, %v1526
      %v1528 = vrot.slane %v1527, 4
      %v1530 = vshll.u32 %v1470, 16
      %v1532 = vrot.slane %v1530, 5
      %v1533 = vsel %vm1519, %v1528, %v1532
      %v1534 = vshrl.u32 %v1470, 16
      %v1536 = vrot.slane %v1534, 4
      %v1537 = vor.u32 %v1536, %v1532
      %v1538 = vrot.slane %v1537, 4
      %v1540 = vshll.u32 %v1471, 16
      %v1542 = vrot.slane %v1540, 5
      %v1543 = vsel %vm1519, %v1538, %v1542
      %v1545 = vshrl.u32 %v1472, 16
      %v1547 = vrot.slane %v1545, 4
      %v1548 = vshll.u32 %v1472, 16
      %v1550 = vrot.slane %v1548, 5
      %v1551 = vor.u32 %v1547, %v1550
      %v1552 = vrot.slane %v1551, 4
      %v1554 = vshll.u32 %v1473, 16
      %v1556 = vrot.slane %v1554, 5
      %v1557 = vsel %vm1519, %v1552, %v1556
      %v1558 = vshrl.u32 %v1473, 16
      %v1560 = vrot.slane %v1558, 4
      %v1561 = vor.u32 %v1560, %v1556
      %v1562 = vrot.slane %v1561, 4
      %v1564 = vshll.u32 %v1474, 16
      %v1566 = vrot.slane %v1564, 5
      %v1567 = vsel %vm1519, %v1562, %v1566
      %v1569 = vshrl.u32 %v1475, 16
      %v1571 = vrot.slane %v1569, 4
      %v1572 = vshll.u32 %v1475, 16
      %v1574 = vrot.slane %v1572, 5
      %v1575 = vor.u32 %v1571, %v1574
      %v1576 = vrot.slane %v1575, 4
      %v1578 = vshll.u32 %v1476, 16
      %v1580 = vrot.slane %v1578, 5
      %v1581 = vsel %vm1519, %v1576, %v1580
      %v1582 = vshrl.u32 %v1476, 16
      %v1584 = vrot.slane %v1582, 4
      %v1585 = vor.u32 %v1584, %v1580
      %v1586 = vrot.slane %v1585, 4
      %v1588 = vshll.u32 %v1477, 16
      %v1590 = vrot.slane %v1588, 5
      %v1591 = vsel %vm1519, %v1586, %v1590
      %v1593 = vshrl.u32 %v1478, 16
      %v1595 = vrot.slane %v1593, 4
      %v1596 = vshll.u32 %v1478, 16
      %v1598 = vrot.slane %v1596, 5
      %v1599 = vor.u32 %v1595, %v1598
      %v1600 = vrot.slane %v1599, 4
      %v1602 = vshll.u32 %v1479, 16
      %v1604 = vrot.slane %v1602, 5
      %v1605 = vsel %vm1519, %v1600, %v1604
      %v1606 = vshrl.u32 %v1479, 16
      %v1608 = vrot.slane %v1606, 4
      %v1609 = vor.u32 %v1608, %v1604
      %v1610 = vrot.slane %v1609, 4
      %v1612 = vshll.u32 %v1480, 16
      %v1614 = vrot.slane %v1612, 5
      %v1615 = vsel %vm1519, %v1610, %v1614
      %v1617 = vshrl.u32 %v1481, 16
      %v1619 = vrot.slane %v1617, 4
      %v1620 = vshll.u32 %v1481, 16
      %v1622 = vrot.slane %v1620, 5
      %v1623 = vor.u32 %v1619, %v1622
      %v1624 = vrot.slane %v1623, 4
      %v1626 = vshll.u32 %v1482, 16
      %v1628 = vrot.slane %v1626, 5
      %v1629 = vsel %vm1519, %v1624, %v1628
      %v1630 = vshrl.u32 %v1482, 16
      %v1632 = vrot.slane %v1630, 4
      %v1633 = vor.u32 %v1632, %v1628
      %v1634 = vrot.slane %v1633, 4
      %v1636 = vshll.u32 %v1483, 16
      %v1638 = vrot.slane %v1636, 5
      %v1639 = vsel %vm1519, %v1634, %v1638
      %v1641 = vshrl.u32 %v1484, 16
      %v1643 = vrot.slane %v1641, 4
      %v1644 = vshll.u32 %v1484, 16
      %v1646 = vrot.slane %v1644, 5
      %v1647 = vor.u32 %v1643, %v1646
      %v1648 = vrot.slane %v1647, 4
      %v1650 = vshll.u32 %v1485, 16
      %v1652 = vrot.slane %v1650, 5
      %v1653 = vsel %vm1519, %v1648, %v1652
      %v1654 = vshrl.u32 %v1485, 16
      %v1656 = vrot.slane %v1654, 4
      %v1657 = vor.u32 %v1656, %v1652
      %v1658 = vrot.slane %v1657, 4
      %v1660 = vshll.u32 %v1486, 16
      %v1662 = vrot.slane %v1660, 5
      %v1663 = vsel %vm1519, %v1658, %v1662
      %v1665 = vshrl.u32 %v1487, 16
      %v1667 = vrot.slane %v1665, 4
      %v1668 = vshll.u32 %v1487, 16
      %v1670 = vrot.slane %v1668, 5
      %v1671 = vor.u32 %v1667, %v1670
      %v1672 = vrot.slane %v1671, 4
      %v1674 = vshll.u32 %v1488, 16
      %v1676 = vrot.slane %v1674, 5
      %v1677 = vsel %vm1519, %v1672, %v1676
      %v1678 = vshrl.u32 %v1488, 16
      %v1680 = vrot.slane %v1678, 4
      %v1681 = vor.u32 %v1680, %v1676
      %v1682 = vrot.slane %v1681, 4
      %v1684 = vshll.u32 %v1489, 16
      %v1686 = vrot.slane %v1684, 5
      %v1687 = vsel %vm1519, %v1682, %v1686
      %v1689 = vshrl.u32 %v1490, 16
      %v1691 = vrot.slane %v1689, 4
      %v1692 = vshll.u32 %v1490, 16
      %v1694 = vrot.slane %v1692, 5
      %v1695 = vor.u32 %v1691, %v1694
      %v1696 = vrot.slane %v1695, 4
      %v1698 = vshll.u32 %v1491, 16
      %v1700 = vrot.slane %v1698, 5
      %v1701 = vsel %vm1519, %v1696, %v1700
      %v1702 = vshrl.u32 %v1491, 16
      %v1704 = vrot.slane %v1702, 4
      %v1705 = vor.u32 %v1704, %v1700
      %v1706 = vrot.slane %v1705, 4
      %v1708 = vshll.u32 %v1492, 16
      %v1710 = vrot.slane %v1708, 5
      %v1711 = vsel %vm1519, %v1706, %v1710
      %v1713 = vshrl.u32 %v1493, 16
      %v1715 = vrot.slane %v1713, 4
      %v1716 = vshll.u32 %v1493, 16
      %v1718 = vrot.slane %v1716, 5
      %v1719 = vor.u32 %v1715, %v1718
      %v1720 = vrot.slane %v1719, 4
      %v1722 = vshll.u32 %v1494, 16
      %v1724 = vrot.slane %v1722, 5
      %v1725 = vsel %vm1519, %v1720, %v1724
      %v1726 = vshrl.u32 %v1494, 16
      %v1728 = vrot.slane %v1726, 4
      %v1729 = vor.u32 %v1728, %v1724
      %v1730 = vrot.slane %v1729, 4
      %v1732 = vshll.u32 %v1495, 16
      %v1734 = vrot.slane %v1732, 5
      %v1735 = vsel %vm1519, %v1730, %v1734
      %v1737 = vshrl.u32 %v1496, 16
      %v1739 = vrot.slane %v1737, 4
      %v1740 = vshll.u32 %v1496, 16
      %v1742 = vrot.slane %v1740, 5
      %v1743 = vor.u32 %v1739, %v1742
      %v1744 = vrot.slane %v1743, 4
      %v1746 = vshll.u32 %v1497, 16
      %v1748 = vrot.slane %v1746, 5
      %v1749 = vsel %vm1519, %v1744, %v1748
      %v1750 = vshrl.u32 %v1497, 16
      %v1752 = vrot.slane %v1750, 4
      %v1753 = vor.u32 %v1752, %v1748
      %v1754 = vrot.slane %v1753, 4
      %v1756 = vshll.u32 %v1498, 16
      %v1758 = vrot.slane %v1756, 5
      %v1759 = vsel %vm1519, %v1754, %v1758
      %v1761 = vshrl.u32 %v1499, 16
      %v1763 = vrot.slane %v1761, 4
      %v1764 = vshll.u32 %v1499, 16
      %v1766 = vrot.slane %v1764, 5
      %v1767 = vor.u32 %v1763, %v1766
      %v1768 = vrot.slane %v1767, 4
      %v1770 = vshll.u32 %v1500, 16
      %v1772 = vrot.slane %v1770, 5
      %v1773 = vsel %vm1519, %v1768, %v1772
      %v1774 = vshrl.u32 %v1500, 16
      %v1776 = vrot.slane %v1774, 4
      %v1777 = vor.u32 %v1776, %v1772
      %v1778 = vrot.slane %v1777, 4
      %v1780 = vshll.u32 %v1501, 16
      %v1782 = vrot.slane %v1780, 5
      %v1783 = vsel %vm1519, %v1778, %v1782
      %v1785 = vshrl.u32 %v1502, 16
      %v1787 = vrot.slane %v1785, 4
      %v1788 = vshll.u32 %v1502, 16
      %v1790 = vrot.slane %v1788, 5
      %v1791 = vor.u32 %v1787, %v1790
      %v1792 = vrot.slane %v1791, 4
      %v1794 = vshll.u32 %v1503, 16
      %v1796 = vrot.slane %v1794, 5
      %v1797 = vsel %vm1519, %v1792, %v1796
      %v1798 = vshrl.u32 %v1503, 16
      %v1800 = vrot.slane %v1798, 4
      %v1801 = vor.u32 %v1800, %v1796
      %v1802 = vrot.slane %v1801, 4
      %v1804 = vshll.u32 %v1504, 16
      %v1806 = vrot.slane %v1804, 5
      %v1807 = vsel %vm1519, %v1802, %v1806
      %v1809 = vshrl.u32 %v1505, 16
      %v1811 = vrot.slane %v1809, 4
      %v1812 = vshll.u32 %v1505, 16
      %v1814 = vrot.slane %v1812, 5
      %v1815 = vor.u32 %v1811, %v1814
      %v1816 = vrot.slane %v1815, 4
      %v1818 = vshll.u32 %v1506, 16
      %v1820 = vrot.slane %v1818, 5
      %v1821 = vsel %vm1519, %v1816, %v1820
      %v1822 = vshrl.u32 %v1506, 16
      %v1824 = vrot.slane %v1822, 4
      %v1825 = vor.u32 %v1824, %v1820
      %v1826 = vrot.slane %v1825, 4
      %v1828 = vshll.u32 %v1507, 16
      %v1830 = vrot.slane %v1828, 5
      %v1831 = vsel %vm1519, %v1826, %v1830
      %v1833 = vshrl.u32 %v1508, 16
      %v1835 = vrot.slane %v1833, 4
      %v1836 = vshll.u32 %v1508, 16
      %v1838 = vrot.slane %v1836, 5
      %v1839 = vor.u32 %v1835, %v1838
      %v1840 = vrot.slane %v1839, 4
      %v1842 = vshll.u32 %v1509, 16
      %v1844 = vrot.slane %v1842, 5
      %v1845 = vsel %vm1519, %v1840, %v1844
      %v1846 = vshrl.u32 %v1509, 16
      %v1848 = vrot.slane %v1846, 4
      %v1849 = vor.u32 %v1848, %v1844
      %v1850 = vrot.slane %v1849, 4
      %v1852 = vshll.u32 %v1510, 16
      %v1854 = vrot.slane %v1852, 5
      %v1855 = vsel %vm1519, %v1850, %v1854
      %v1857 = vshrl.u32 %v1511, 16
      %v1859 = vrot.slane %v1857, 4
      %v1860 = vshll.u32 %v1511, 16
      %v1862 = vrot.slane %v1860, 5
      %v1863 = vor.u32 %v1859, %v1862
      %v1864 = vrot.slane %v1863, 4
      %v1866 = vshll.u32 %v1512, 16
      %v1868 = vrot.slane %v1866, 5
      %v1869 = vsel %vm1519, %v1864, %v1868
      %v1870 = vshrl.u32 %v1512, 16
      %v1872 = vrot.slane %v1870, 4
      %v1873 = vor.u32 %v1872, %v1868
      %v1874 = vrot.slane %v1873, 4
      %v1876 = vshll.u32 %v1513, 16
      %v1878 = vrot.slane %v1876, 5
      %v1879 = vsel %vm1519, %v1874, %v1878
      %v1881 = vshrl.u32 %v1514, 16
      %v1883 = vrot.slane %v1881, 4
      %v1884 = vshll.u32 %v1514, 16
      %v1886 = vrot.slane %v1884, 5
      %v1887 = vor.u32 %v1883, %v1886
      %v1888 = vrot.slane %v1887, 4
      %v1890 = vshll.u32 %v1515, 16
      %v1892 = vrot.slane %v1890, 5
      %v1893 = vsel %vm1519, %v1888, %v1892
      %v1894 = vshrl.u32 %v1515, 16
      %v1896 = vrot.slane %v1894, 4
      %v1897 = vor.u32 %v1896, %v1892
      %v1898 = vrot.slane %v1897, 4
      %v1900 = vshll.u32 %v1516, 16
      %v1902 = vrot.slane %v1900, 5
      %v1903 = vsel %vm1519, %v1898, %v1902
      %1936 = vst [vmem:[#allocation3 + $0x4] sm:$0xf] %v1533
      %1937 = vst [vmem:[#allocation3 + $0x28] sm:$0xf] %v1543
      %1938 = vst [vmem:[#allocation3 + $0x4c] sm:$0xf] %v1557
      %1939 = vst [vmem:[#allocation3 + $0x70] sm:$0xf] %v1567
      %1940 = vst [vmem:[#allocation3 + $0x94] sm:$0xf] %v1581
      %1941 = vst [vmem:[#allocation3 + $0xb8] sm:$0xf] %v1591
      %1942 = vst [vmem:[#allocation3 + $0xdc] sm:$0xf] %v1605
      %1943 = vst [vmem:[#allocation3 + $0x100] sm:$0xf] %v1615
      %1944 = vst [vmem:[#allocation3 + $0x124] sm:$0xf] %v1629
      %1945 = vst [vmem:[#allocation3 + $0x148] sm:$0xf] %v1639
      %1946 = vst [vmem:[#allocation3 + $0x16c] sm:$0xf] %v1653
      %1947 = vst [vmem:[#allocation3 + $0x190] sm:$0xf] %v1663
      %1948 = vst [vmem:[#allocation3 + $0x1b4] sm:$0xf] %v1677
      %1949 = vst [vmem:[#allocation3 + $0x1d8] sm:$0xf] %v1687
      %1950 = vst [vmem:[#allocation3 + $0x1fc] sm:$0xf] %v1701
      %1951 = vst [vmem:[#allocation3 + $0x220] sm:$0xf] %v1711
      %1952 = vst [vmem:[#allocation3 + $0x244] sm:$0xf] %v1725
      %1953 = vst [vmem:[#allocation3 + $0x268] sm:$0xf] %v1735
      %1954 = vst [vmem:[#allocation3 + $0x28c] sm:$0xf] %v1749
      %1955 = vst [vmem:[#allocation3 + $0x2b0] sm:$0xf] %v1759
      %1956 = vst [vmem:[#allocation3 + $0x2d4] sm:$0xf] %v1773
      %1957 = vst [vmem:[#allocation3 + $0x2f8] sm:$0xf] %v1783
      %1958 = vst [vmem:[#allocation3 + $0x31c] sm:$0xf] %v1797
      %1959 = vst [vmem:[#allocation3 + $0x340] sm:$0xf] %v1807
      %1960 = vst [vmem:[#allocation3 + $0x364] sm:$0xf] %v1821
      %1961 = vst [vmem:[#allocation3 + $0x388] sm:$0xf] %v1831
      %1962 = vst [vmem:[#allocation3 + $0x3ac] sm:$0xf] %v1845
      %1963 = vst [vmem:[#allocation3 + $0x3d0] sm:$0xf] %v1855
      %1964 = vst [vmem:[#allocation3 + $0x3f4] sm:$0xf] %v1869
      %1965 = vst [vmem:[#allocation3 + $0x418] sm:$0xf] %v1879
      %1966 = vst [vmem:[#allocation3 + $0x43c] sm:$0xf] %v1893
      %1967 = vst [vmem:[#allocation3 + $0x460] sm:$0xf] %v1903
      %v1968 = vld [vmem:[#allocation2] sm:$0xe]
      %v1969 = vld [vmem:[#allocation2 + $0x4] sm:$0xf]
      %v1970 = vld [vmem:[#allocation2 + $0x8] sm:$0x1]
      %v1971 = vld [vmem:[#allocation2 + $0xc] sm:$0xe]
      %v1972 = vld [vmem:[#allocation2 + $0x10] sm:$0xf]
      %v1973 = vld [vmem:[#allocation2 + $0x14] sm:$0x1]
      %v1974 = vld [vmem:[#allocation2 + $0x18] sm:$0xe]
      %v1975 = vld [vmem:[#allocation2 + $0x1c] sm:$0xf]
      %v1976 = vld [vmem:[#allocation2 + $0x20] sm:$0x1]
      %v1977 = vld [vmem:[#allocation2 + $0x24] sm:$0xe]
      %v1978 = vld [vmem:[#allocation2 + $0x28] sm:$0xf]
      %v1979 = vld [vmem:[#allocation2 + $0x2c] sm:$0x1]
      %v1980 = vld [vmem:[#allocation2 + $0x30] sm:$0xe]
      %v1981 = vld [vmem:[#allocation2 + $0x34] sm:$0xf]
      %v1982 = vld [vmem:[#allocation2 + $0x38] sm:$0x1]
      %v1983 = vld [vmem:[#allocation2 + $0x3c] sm:$0xe]
      %v1984 = vld [vmem:[#allocation2 + $0x40] sm:$0xf]
      %v1985 = vld [vmem:[#allocation2 + $0x44] sm:$0x1]
      %v1986 = vld [vmem:[#allocation2 + $0x48] sm:$0xe]
      %v1987 = vld [vmem:[#allocation2 + $0x4c] sm:$0xf]
      %v1988 = vld [vmem:[#allocation2 + $0x50] sm:$0x1]
      %v1989 = vld [vmem:[#allocation2 + $0x54] sm:$0xe]
      %v1990 = vld [vmem:[#allocation2 + $0x58] sm:$0xf]
      %v1991 = vld [vmem:[#allocation2 + $0x5c] sm:$0x1]
      %v1992 = vld [vmem:[#allocation2 + $0x60] sm:$0xe]
      %v1993 = vld [vmem:[#allocation2 + $0x64] sm:$0xf]
      %v1994 = vld [vmem:[#allocation2 + $0x68] sm:$0x1]
      %v1995 = vld [vmem:[#allocation2 + $0x6c] sm:$0xe]
      %v1996 = vld [vmem:[#allocation2 + $0x70] sm:$0xf]
      %v1997 = vld [vmem:[#allocation2 + $0x74] sm:$0x1]
      %v1998 = vld [vmem:[#allocation2 + $0x78] sm:$0xe]
      %v1999 = vld [vmem:[#allocation2 + $0x7c] sm:$0xf]
      %v2000 = vld [vmem:[#allocation2 + $0x80] sm:$0x1]
      %v2001 = vld [vmem:[#allocation2 + $0x84] sm:$0xe]
      %v2002 = vld [vmem:[#allocation2 + $0x88] sm:$0xf]
      %v2003 = vld [vmem:[#allocation2 + $0x8c] sm:$0x1]
      %v2004 = vld [vmem:[#allocation2 + $0x90] sm:$0xe]
      %v2005 = vld [vmem:[#allocation2 + $0x94] sm:$0xf]
      %v2006 = vld [vmem:[#allocation2 + $0x98] sm:$0x1]
      %v2007 = vld [vmem:[#allocation2 + $0x9c] sm:$0xe]
      %v2008 = vld [vmem:[#allocation2 + $0xa0] sm:$0xf]
      %v2009 = vld [vmem:[#allocation2 + $0xa4] sm:$0x1]
      %v2010 = vld [vmem:[#allocation2 + $0xa8] sm:$0xe]
      %v2011 = vld [vmem:[#allocation2 + $0xac] sm:$0xf]
      %v2012 = vld [vmem:[#allocation2 + $0xb0] sm:$0x1]
      %v2013 = vld [vmem:[#allocation2 + $0xb4] sm:$0xe]
      %v2014 = vld [vmem:[#allocation2 + $0xb8] sm:$0xf]
      %v2015 = vld [vmem:[#allocation2 + $0xbc] sm:$0x1]
      %vm2064 = vcmask 1042432
      %vm2065 = vcmask 1046532
      %vm2066 = vmor %vm2064, %vm2065
      %v2067 = vrot.slane %v1968, 5
      %v2068 = vrot.slane %v2067, 4
      %v2069 = vrot.slane %v1969, 5
      %v2070 = vsel %vm2066, %v2068, %v2069
      %v2071 = vrot.slane %v2069, 4
      %v2072 = vrot.slane %v1970, 5
      %v2073 = vsel %vm2066, %v2071, %v2072
      %v2074 = vrot.slane %v1971, 5
      %v2075 = vrot.slane %v2074, 4
      %v2076 = vrot.slane %v1972, 5
      %v2077 = vsel %vm2066, %v2075, %v2076
      %v2078 = vrot.slane %v2076, 4
      %v2079 = vrot.slane %v1973, 5
      %v2080 = vsel %vm2066, %v2078, %v2079
      %v2081 = vrot.slane %v1974, 5
      %v2082 = vrot.slane %v2081, 4
      %v2083 = vrot.slane %v1975, 5
      %v2084 = vsel %vm2066, %v2082, %v2083
      %v2085 = vrot.slane %v2083, 4
      %v2086 = vrot.slane %v1976, 5
      %v2087 = vsel %vm2066, %v2085, %v2086
      %v2088 = vrot.slane %v1977, 5
      %v2089 = vrot.slane %v2088, 4
      %v2090 = vrot.slane %v1978, 5
      %v2091 = vsel %vm2066, %v2089, %v2090
      %v2092 = vrot.slane %v2090, 4
      %v2093 = vrot.slane %v1979, 5
      %v2094 = vsel %vm2066, %v2092, %v2093
      %v2095 = vrot.slane %v1980, 5
      %v2096 = vrot.slane %v2095, 4
      %v2097 = vrot.slane %v1981, 5
      %v2098 = vsel %vm2066, %v2096, %v2097
      %v2099 = vrot.slane %v2097, 4
      %v2100 = vrot.slane %v1982, 5
      %v2101 = vsel %vm2066, %v2099, %v2100
      %v2102 = vrot.slane %v1983, 5
      %v2103 = vrot.slane %v2102, 4
      %v2104 = vrot.slane %v1984, 5
      %v2105 = vsel %vm2066, %v2103, %v2104
      %v2106 = vrot.slane %v2104, 4
      %v2107 = vrot.slane %v1985, 5
      %v2108 = vsel %vm2066, %v2106, %v2107
      %v2109 = vrot.slane %v1986, 5
      %v2110 = vrot.slane %v2109, 4
      %v2111 = vrot.slane %v1987, 5
      %v2112 = vsel %vm2066, %v2110, %v2111
      %v2113 = vrot.slane %v2111, 4
      %v2114 = vrot.slane %v1988, 5
      %v2115 = vsel %vm2066, %v2113, %v2114
      %v2116 = vrot.slane %v1989, 5
      %v2117 = vrot.slane %v2116, 4
      %v2118 = vrot.slane %v1990, 5
      %v2119 = vsel %vm2066, %v2117, %v2118
      %v2120 = vrot.slane %v2118, 4
      %v2121 = vrot.slane %v1991, 5
      %v2122 = vsel %vm2066, %v2120, %v2121
      %v2123 = vrot.slane %v1992, 5
      %v2124 = vrot.slane %v2123, 4
      %v2125 = vrot.slane %v1993, 5
      %v2126 = vsel %vm2066, %v2124, %v2125
      %v2127 = vrot.slane %v2125, 4
      %v2128 = vrot.slane %v1994, 5
      %v2129 = vsel %vm2066, %v2127, %v2128
      %v2130 = vrot.slane %v1995, 5
      %v2131 = vrot.slane %v2130, 4
      %v2132 = vrot.slane %v1996, 5
      %v2133 = vsel %vm2066, %v2131, %v2132
      %v2134 = vrot.slane %v2132, 4
      %v2135 = vrot.slane %v1997, 5
      %v2136 = vsel %vm2066, %v2134, %v2135
      %v2137 = vrot.slane %v1998, 5
      %v2138 = vrot.slane %v2137, 4
      %v2139 = vrot.slane %v1999, 5
      %v2140 = vsel %vm2066, %v2138, %v2139
      %v2141 = vrot.slane %v2139, 4
      %v2142 = vrot.slane %v2000, 5
      %v2143 = vsel %vm2066, %v2141, %v2142
      %v2144 = vrot.slane %v2001, 5
      %v2145 = vrot.slane %v2144, 4
      %v2146 = vrot.slane %v2002, 5
      %v2147 = vsel %vm2066, %v2145, %v2146
      %v2148 = vrot.slane %v2146, 4
      %v2149 = vrot.slane %v2003, 5
      %v2150 = vsel %vm2066, %v2148, %v2149
      %v2151 = vrot.slane %v2004, 5
      %v2152 = vrot.slane %v2151, 4
      %v2153 = vrot.slane %v2005, 5
      %v2154 = vsel %vm2066, %v2152, %v2153
      %v2155 = vrot.slane %v2153, 4
      %v2156 = vrot.slane %v2006, 5
      %v2157 = vsel %vm2066, %v2155, %v2156
      %v2158 = vrot.slane %v2007, 5
      %v2159 = vrot.slane %v2158, 4
      %v2160 = vrot.slane %v2008, 5
      %v2161 = vsel %vm2066, %v2159, %v2160
      %v2162 = vrot.slane %v2160, 4
      %v2163 = vrot.slane %v2009, 5
      %v2164 = vsel %vm2066, %v2162, %v2163
      %v2165 = vrot.slane %v2010, 5
      %v2166 = vrot.slane %v2165, 4
      %v2167 = vrot.slane %v2011, 5
      %v2168 = vsel %vm2066, %v2166, %v2167
      %v2169 = vrot.slane %v2167, 4
      %v2170 = vrot.slane %v2012, 5
      %v2171 = vsel %vm2066, %v2169, %v2170
      %v2172 = vrot.slane %v2013, 5
      %v2173 = vrot.slane %v2172, 4
      %v2174 = vrot.slane %v2014, 5
      %v2175 = vsel %vm2066, %v2173, %v2174
      %v2176 = vrot.slane %v2174, 4
      %v2177 = vrot.slane %v2015, 5
      %v2178 = vsel %vm2066, %v2176, %v2177
      %2211 = vst [vmem:[#allocation3 + $0x8] sm:$0xf] %v2070
      %2212 = vst [vmem:[#allocation3 + $0x2c] sm:$0xf] %v2073
      %2213 = vst [vmem:[#allocation3 + $0x50] sm:$0xf] %v2077
      %2214 = vst [vmem:[#allocation3 + $0x74] sm:$0xf] %v2080
      %2215 = vst [vmem:[#allocation3 + $0x98] sm:$0xf] %v2084
      %2216 = vst [vmem:[#allocation3 + $0xbc] sm:$0xf] %v2087
      %2217 = vst [vmem:[#allocation3 + $0xe0] sm:$0xf] %v2091
      %2218 = vst [vmem:[#allocation3 + $0x104] sm:$0xf] %v2094
      %2219 = vst [vmem:[#allocation3 + $0x128] sm:$0xf] %v2098
      %2220 = vst [vmem:[#allocation3 + $0x14c] sm:$0xf] %v2101
      %2221 = vst [vmem:[#allocation3 + $0x170] sm:$0xf] %v2105
      %2222 = vst [vmem:[#allocation3 + $0x194] sm:$0xf] %v2108
      %2223 = vst [vmem:[#allocation3 + $0x1b8] sm:$0xf] %v2112
      %2224 = vst [vmem:[#allocation3 + $0x1dc] sm:$0xf] %v2115
      %2225 = vst [vmem:[#allocation3 + $0x200] sm:$0xf] %v2119
      %2226 = vst [vmem:[#allocation3 + $0x224] sm:$0xf] %v2122
      %2227 = vst [vmem:[#allocation3 + $0x248] sm:$0xf] %v2126
      %2228 = vst [vmem:[#allocation3 + $0x26c] sm:$0xf] %v2129
      %2229 = vst [vmem:[#allocation3 + $0x290] sm:$0xf] %v2133
      %2230 = vst [vmem:[#allocation3 + $0x2b4] sm:$0xf] %v2136
      %2231 = vst [vmem:[#allocation3 + $0x2d8] sm:$0xf] %v2140
      %2232 = vst [vmem:[#allocation3 + $0x2fc] sm:$0xf] %v2143
      %2233 = vst [vmem:[#allocation3 + $0x320] sm:$0xf] %v2147
      %2234 = vst [vmem:[#allocation3 + $0x344] sm:$0xf] %v2150
      %2235 = vst [vmem:[#allocation3 + $0x368] sm:$0xf] %v2154
      %2236 = vst [vmem:[#allocation3 + $0x38c] sm:$0xf] %v2157
      %2237 = vst [vmem:[#allocation3 + $0x3b0] sm:$0xf] %v2161
      %2238 = vst [vmem:[#allocation3 + $0x3d4] sm:$0xf] %v2164
      %2239 = vst [vmem:[#allocation3 + $0x3f8] sm:$0xf] %v2168
      %2240 = vst [vmem:[#allocation3 + $0x41c] sm:$0xf] %v2171
      %2241 = vst [vmem:[#allocation3 + $0x440] sm:$0xf] %v2175
      %2242 = vst [vmem:[#allocation3 + $0x464] sm:$0xf] %v2178
      %v2243 = vld [vmem:[%s1287] sm:$0xf]
      %v2244 = vld [vmem:[%s1287 + $0x4] sm:$0xf]
      %v2245 = vld [vmem:[%s1287 + $0xc] sm:$0xf]
      %v2246 = vld [vmem:[%s1287 + $0x10] sm:$0xf]
      %v2247 = vld [vmem:[%s1287 + $0x18] sm:$0xf]
      %v2248 = vld [vmem:[%s1287 + $0x1c] sm:$0xf]
      %v2249 = vld [vmem:[%s1287 + $0x24] sm:$0xf]
      %v2250 = vld [vmem:[%s1287 + $0x28] sm:$0xf]
      %v2251 = vld [vmem:[%s1287 + $0x30] sm:$0xf]
      %v2252 = vld [vmem:[%s1287 + $0x34] sm:$0xf]
      %v2253 = vld [vmem:[%s1287 + $0x3c] sm:$0xf]
      %v2254 = vld [vmem:[%s1287 + $0x40] sm:$0xf]
      %v2255 = vld [vmem:[%s1287 + $0x48] sm:$0xf]
      %v2256 = vld [vmem:[%s1287 + $0x4c] sm:$0xf]
      %v2257 = vld [vmem:[%s1287 + $0x54] sm:$0xf]
      %v2258 = vld [vmem:[%s1287 + $0x58] sm:$0xf]
      %v2259 = vld [vmem:[%s1287 + $0x60] sm:$0xf]
      %v2260 = vld [vmem:[%s1287 + $0x64] sm:$0xf]
      %v2261 = vld [vmem:[%s1287 + $0x6c] sm:$0xf]
      %v2262 = vld [vmem:[%s1287 + $0x70] sm:$0xf]
      %v2263 = vld [vmem:[%s1287 + $0x78] sm:$0xf]
      %v2264 = vld [vmem:[%s1287 + $0x7c] sm:$0xf]
      %v2265 = vld [vmem:[%s1287 + $0x84] sm:$0xf]
      %v2266 = vld [vmem:[%s1287 + $0x88] sm:$0xf]
      %v2267 = vld [vmem:[%s1287 + $0x90] sm:$0xf]
      %v2268 = vld [vmem:[%s1287 + $0x94] sm:$0xf]
      %v2269 = vld [vmem:[%s1287 + $0x9c] sm:$0xf]
      %v2270 = vld [vmem:[%s1287 + $0xa0] sm:$0xf]
      %v2271 = vld [vmem:[%s1287 + $0xa8] sm:$0xf]
      %v2272 = vld [vmem:[%s1287 + $0xac] sm:$0xf]
      %v2273 = vld [vmem:[%s1287 + $0xb4] sm:$0xf]
      %v2274 = vld [vmem:[%s1287 + $0xb8] sm:$0xf]
      %2275 = vst [vmem:[#allocation3 + $0xc] sm:$0xf] %v2243
      %2276 = vst [vmem:[#allocation3 + $0x30] sm:$0xf] %v2244
      %2277 = vst [vmem:[#allocation3 + $0x54] sm:$0xf] %v2245
      %2278 = vst [vmem:[#allocation3 + $0x78] sm:$0xf] %v2246
      %2279 = vst [vmem:[#allocation3 + $0x9c] sm:$0xf] %v2247
      %2280 = vst [vmem:[#allocation3 + $0xc0] sm:$0xf] %v2248
      %2281 = vst [vmem:[#allocation3 + $0xe4] sm:$0xf] %v2249
      %2282 = vst [vmem:[#allocation3 + $0x108] sm:$0xf] %v2250
      %2283 = vst [vmem:[#allocation3 + $0x12c] sm:$0xf] %v2251
      %2284 = vst [vmem:[#allocation3 + $0x150] sm:$0xf] %v2252
      %2285 = vst [vmem:[#allocation3 + $0x174] sm:$0xf] %v2253
      %2286 = vst [vmem:[#allocation3 + $0x198] sm:$0xf] %v2254
      %2287 = vst [vmem:[#allocation3 + $0x1bc] sm:$0xf] %v2255
      %2288 = vst [vmem:[#allocation3 + $0x1e0] sm:$0xf] %v2256
      %2289 = vst [vmem:[#allocation3 + $0x204] sm:$0xf] %v2257
      %2290 = vst [vmem:[#allocation3 + $0x228] sm:$0xf] %v2258
      %2291 = vst [vmem:[#allocation3 + $0x24c] sm:$0xf] %v2259
      %2292 = vst [vmem:[#allocation3 + $0x270] sm:$0xf] %v2260
      %2293 = vst [vmem:[#allocation3 + $0x294] sm:$0xf] %v2261
      %2294 = vst [vmem:[#allocation3 + $0x2b8] sm:$0xf] %v2262
      %2295 = vst [vmem:[#allocation3 + $0x2dc] sm:$0xf] %v2263
      %2296 = vst [vmem:[#allocation3 + $0x300] sm:$0xf] %v2264
      %2297 = vst [vmem:[#allocation3 + $0x324] sm:$0xf] %v2265
      %2298 = vst [vmem:[#allocation3 + $0x348] sm:$0xf] %v2266
      %2299 = vst [vmem:[#allocation3 + $0x36c] sm:$0xf] %v2267
      %2300 = vst [vmem:[#allocation3 + $0x390] sm:$0xf] %v2268
      %2301 = vst [vmem:[#allocation3 + $0x3b4] sm:$0xf] %v2269
      %2302 = vst [vmem:[#allocation3 + $0x3d8] sm:$0xf] %v2270
      %2303 = vst [vmem:[#allocation3 + $0x3fc] sm:$0xf] %v2271
      %2304 = vst [vmem:[#allocation3 + $0x420] sm:$0xf] %v2272
      %2305 = vst [vmem:[#allocation3 + $0x444] sm:$0xf] %v2273
      %2306 = vst [vmem:[#allocation3 + $0x468] sm:$0xf] %v2274
      %v2307 = vld [vmem:[%s1287] sm:$0xf]
      %v2308 = vld [vmem:[%s1287 + $0x4] sm:$0xf]
      %v2309 = vld [vmem:[%s1287 + $0x8] sm:$0x1]
      %v2310 = vld [vmem:[%s1287 + $0xc] sm:$0xf]
      %v2311 = vld [vmem:[%s1287 + $0x10] sm:$0xf]
      %v2312 = vld [vmem:[%s1287 + $0x14] sm:$0x1]
      %v2313 = vld [vmem:[%s1287 + $0x18] sm:$0xf]
      %v2314 = vld [vmem:[%s1287 + $0x1c] sm:$0xf]
      %v2315 = vld [vmem:[%s1287 + $0x20] sm:$0x1]
      %v2316 = vld [vmem:[%s1287 + $0x24] sm:$0xf]
      %v2317 = vld [vmem:[%s1287 + $0x28] sm:$0xf]
      %v2318 = vld [vmem:[%s1287 + $0x2c] sm:$0x1]
      %v2319 = vld [vmem:[%s1287 + $0x30] sm:$0xf]
      %v2320 = vld [vmem:[%s1287 + $0x34] sm:$0xf]
      %v2321 = vld [vmem:[%s1287 + $0x38] sm:$0x1]
      %v2322 = vld [vmem:[%s1287 + $0x3c] sm:$0xf]
      %v2323 = vld [vmem:[%s1287 + $0x40] sm:$0xf]
      %v2324 = vld [vmem:[%s1287 + $0x44] sm:$0x1]
      %v2325 = vld [vmem:[%s1287 + $0x48] sm:$0xf]
      %v2326 = vld [vmem:[%s1287 + $0x4c] sm:$0xf]
      %v2327 = vld [vmem:[%s1287 + $0x50] sm:$0x1]
      %v2328 = vld [vmem:[%s1287 + $0x54] sm:$0xf]
      %v2329 = vld [vmem:[%s1287 + $0x58] sm:$0xf]
      %v2330 = vld [vmem:[%s1287 + $0x5c] sm:$0x1]
      %v2331 = vld [vmem:[%s1287 + $0x60] sm:$0xf]
      %v2332 = vld [vmem:[%s1287 + $0x64] sm:$0xf]
      %v2333 = vld [vmem:[%s1287 + $0x68] sm:$0x1]
      %v2334 = vld [vmem:[%s1287 + $0x6c] sm:$0xf]
      %v2335 = vld [vmem:[%s1287 + $0x70] sm:$0xf]
      %v2336 = vld [vmem:[%s1287 + $0x74] sm:$0x1]
      %v2337 = vld [vmem:[%s1287 + $0x78] sm:$0xf]
      %v2338 = vld [vmem:[%s1287 + $0x7c] sm:$0xf]
      %v2339 = vld [vmem:[%s1287 + $0x80] sm:$0x1]
      %v2340 = vld [vmem:[%s1287 + $0x84] sm:$0xf]
      %v2341 = vld [vmem:[%s1287 + $0x88] sm:$0xf]
      %v2342 = vld [vmem:[%s1287 + $0x8c] sm:$0x1]
      %v2343 = vld [vmem:[%s1287 + $0x90] sm:$0xf]
      %v2344 = vld [vmem:[%s1287 + $0x94] sm:$0xf]
      %v2345 = vld [vmem:[%s1287 + $0x98] sm:$0x1]
      %v2346 = vld [vmem:[%s1287 + $0x9c] sm:$0xf]
      %v2347 = vld [vmem:[%s1287 + $0xa0] sm:$0xf]
      %v2348 = vld [vmem:[%s1287 + $0xa4] sm:$0x1]
      %v2349 = vld [vmem:[%s1287 + $0xa8] sm:$0xf]
      %v2350 = vld [vmem:[%s1287 + $0xac] sm:$0xf]
      %v2351 = vld [vmem:[%s1287 + $0xb0] sm:$0x1]
      %v2352 = vld [vmem:[%s1287 + $0xb4] sm:$0xf]
      %v2353 = vld [vmem:[%s1287 + $0xb8] sm:$0xf]
      %v2354 = vld [vmem:[%s1287 + $0xbc] sm:$0x1]
      %v2356 = vshrl.u32 %v2307, 16
      %v2358 = vrot.slane %v2356, 4
      %v2359 = vshll.u32 %v2307, 16
      %v2361 = vrot.slane %v2359, 5
      %v2362 = vor.u32 %v2358, %v2361
      %v2363 = vrot.slane %v2362, 4
      %v2365 = vshll.u32 %v2308, 16
      %v2367 = vrot.slane %v2365, 5
      %v2368 = vsel %vm1519, %v2363, %v2367
      %v2369 = vshrl.u32 %v2308, 16
      %v2371 = vrot.slane %v2369, 4
      %v2372 = vor.u32 %v2371, %v2367
      %v2373 = vrot.slane %v2372, 4
      %v2375 = vshll.u32 %v2309, 16
      %v2377 = vrot.slane %v2375, 5
      %v2378 = vsel %vm1519, %v2373, %v2377
      %v2380 = vshrl.u32 %v2310, 16
      %v2382 = vrot.slane %v2380, 4
      %v2383 = vshll.u32 %v2310, 16
      %v2385 = vrot.slane %v2383, 5
      %v2386 = vor.u32 %v2382, %v2385
      %v2387 = vrot.slane %v2386, 4
      %v2389 = vshll.u32 %v2311, 16
      %v2391 = vrot.slane %v2389, 5
      %v2392 = vsel %vm1519, %v2387, %v2391
      %v2393 = vshrl.u32 %v2311, 16
      %v2395 = vrot.slane %v2393, 4
      %v2396 = vor.u32 %v2395, %v2391
      %v2397 = vrot.slane %v2396, 4
      %v2399 = vshll.u32 %v2312, 16
      %v2401 = vrot.slane %v2399, 5
      %v2402 = vsel %vm1519, %v2397, %v2401
      %v2404 = vshrl.u32 %v2313, 16
      %v2406 = vrot.slane %v2404, 4
      %v2407 = vshll.u32 %v2313, 16
      %v2409 = vrot.slane %v2407, 5
      %v2410 = vor.u32 %v2406, %v2409
      %v2411 = vrot.slane %v2410, 4
      %v2413 = vshll.u32 %v2314, 16
      %v2415 = vrot.slane %v2413, 5
      %v2416 = vsel %vm1519, %v2411, %v2415
      %v2417 = vshrl.u32 %v2314, 16
      %v2419 = vrot.slane %v2417, 4
      %v2420 = vor.u32 %v2419, %v2415
      %v2421 = vrot.slane %v2420, 4
      %v2423 = vshll.u32 %v2315, 16
      %v2425 = vrot.slane %v2423, 5
      %v2426 = vsel %vm1519, %v2421, %v2425
      %v2428 = vshrl.u32 %v2316, 16
      %v2430 = vrot.slane %v2428, 4
      %v2431 = vshll.u32 %v2316, 16
      %v2433 = vrot.slane %v2431, 5
      %v2434 = vor.u32 %v2430, %v2433
      %v2435 = vrot.slane %v2434, 4
      %v2437 = vshll.u32 %v2317, 16
      %v2439 = vrot.slane %v2437, 5
      %v2440 = vsel %vm1519, %v2435, %v2439
      %v2441 = vshrl.u32 %v2317, 16
      %v2443 = vrot.slane %v2441, 4
      %v2444 = vor.u32 %v2443, %v2439
      %v2445 = vrot.slane %v2444, 4
      %v2447 = vshll.u32 %v2318, 16
      %v2449 = vrot.slane %v2447, 5
      %v2450 = vsel %vm1519, %v2445, %v2449
      %v2452 = vshrl.u32 %v2319, 16
      %v2454 = vrot.slane %v2452, 4
      %v2455 = vshll.u32 %v2319, 16
      %v2457 = vrot.slane %v2455, 5
      %v2458 = vor.u32 %v2454, %v2457
      %v2459 = vrot.slane %v2458, 4
      %v2461 = vshll.u32 %v2320, 16
      %v2463 = vrot.slane %v2461, 5
      %v2464 = vsel %vm1519, %v2459, %v2463
      %v2465 = vshrl.u32 %v2320, 16
      %v2467 = vrot.slane %v2465, 4
      %v2468 = vor.u32 %v2467, %v2463
      %v2469 = vrot.slane %v2468, 4
      %v2471 = vshll.u32 %v2321, 16
      %v2473 = vrot.slane %v2471, 5
      %v2474 = vsel %vm1519, %v2469, %v2473
      %v2476 = vshrl.u32 %v2322, 16
      %v2478 = vrot.slane %v2476, 4
      %v2479 = vshll.u32 %v2322, 16
      %v2481 = vrot.slane %v2479, 5
      %v2482 = vor.u32 %v2478, %v2481
      %v2483 = vrot.slane %v2482, 4
      %v2485 = vshll.u32 %v2323, 16
      %v2487 = vrot.slane %v2485, 5
      %v2488 = vsel %vm1519, %v2483, %v2487
      %v2489 = vshrl.u32 %v2323, 16
      %v2491 = vrot.slane %v2489, 4
      %v2492 = vor.u32 %v2491, %v2487
      %v2493 = vrot.slane %v2492, 4
      %v2495 = vshll.u32 %v2324, 16
      %v2497 = vrot.slane %v2495, 5
      %v2498 = vsel %vm1519, %v2493, %v2497
      %v2500 = vshrl.u32 %v2325, 16
      %v2502 = vrot.slane %v2500, 4
      %v2503 = vshll.u32 %v2325, 16
      %v2505 = vrot.slane %v2503, 5
      %v2506 = vor.u32 %v2502, %v2505
      %v2507 = vrot.slane %v2506, 4
      %v2509 = vshll.u32 %v2326, 16
      %v2511 = vrot.slane %v2509, 5
      %v2512 = vsel %vm1519, %v2507, %v2511
      %v2513 = vshrl.u32 %v2326, 16
      %v2515 = vrot.slane %v2513, 4
      %v2516 = vor.u32 %v2515, %v2511
      %v2517 = vrot.slane %v2516, 4
      %v2519 = vshll.u32 %v2327, 16
      %v2521 = vrot.slane %v2519, 5
      %v2522 = vsel %vm1519, %v2517, %v2521
      %v2524 = vshrl.u32 %v2328, 16
      %v2526 = vrot.slane %v2524, 4
      %v2527 = vshll.u32 %v2328, 16
      %v2529 = vrot.slane %v2527, 5
      %v2530 = vor.u32 %v2526, %v2529
      %v2531 = vrot.slane %v2530, 4
      %v2533 = vshll.u32 %v2329, 16
      %v2535 = vrot.slane %v2533, 5
      %v2536 = vsel %vm1519, %v2531, %v2535
      %v2537 = vshrl.u32 %v2329, 16
      %v2539 = vrot.slane %v2537, 4
      %v2540 = vor.u32 %v2539, %v2535
      %v2541 = vrot.slane %v2540, 4
      %v2543 = vshll.u32 %v2330, 16
      %v2545 = vrot.slane %v2543, 5
      %v2546 = vsel %vm1519, %v2541, %v2545
      %v2548 = vshrl.u32 %v2331, 16
      %v2550 = vrot.slane %v2548, 4
      %v2551 = vshll.u32 %v2331, 16
      %v2553 = vrot.slane %v2551, 5
      %v2554 = vor.u32 %v2550, %v2553
      %v2555 = vrot.slane %v2554, 4
      %v2557 = vshll.u32 %v2332, 16
      %v2559 = vrot.slane %v2557, 5
      %v2560 = vsel %vm1519, %v2555, %v2559
      %v2561 = vshrl.u32 %v2332, 16
      %v2563 = vrot.slane %v2561, 4
      %v2564 = vor.u32 %v2563, %v2559
      %v2565 = vrot.slane %v2564, 4
      %v2567 = vshll.u32 %v2333, 16
      %v2569 = vrot.slane %v2567, 5
      %v2570 = vsel %vm1519, %v2565, %v2569
      %v2572 = vshrl.u32 %v2334, 16
      %v2574 = vrot.slane %v2572, 4
      %v2575 = vshll.u32 %v2334, 16
      %v2577 = vrot.slane %v2575, 5
      %v2578 = vor.u32 %v2574, %v2577
      %v2579 = vrot.slane %v2578, 4
      %v2581 = vshll.u32 %v2335, 16
      %v2583 = vrot.slane %v2581, 5
      %v2584 = vsel %vm1519, %v2579, %v2583
      %v2585 = vshrl.u32 %v2335, 16
      %v2587 = vrot.slane %v2585, 4
      %v2588 = vor.u32 %v2587, %v2583
      %v2589 = vrot.slane %v2588, 4
      %v2591 = vshll.u32 %v2336, 16
      %v2593 = vrot.slane %v2591, 5
      %v2594 = vsel %vm1519, %v2589, %v2593
      %v2596 = vshrl.u32 %v2337, 16
      %v2598 = vrot.slane %v2596, 4
      %v2599 = vshll.u32 %v2337, 16
      %v2601 = vrot.slane %v2599, 5
      %v2602 = vor.u32 %v2598, %v2601
      %v2603 = vrot.slane %v2602, 4
      %v2605 = vshll.u32 %v2338, 16
      %v2607 = vrot.slane %v2605, 5
      %v2608 = vsel %vm1519, %v2603, %v2607
      %v2609 = vshrl.u32 %v2338, 16
      %v2611 = vrot.slane %v2609, 4
      %v2612 = vor.u32 %v2611, %v2607
      %v2613 = vrot.slane %v2612, 4
      %v2615 = vshll.u32 %v2339, 16
      %v2617 = vrot.slane %v2615, 5
      %v2618 = vsel %vm1519, %v2613, %v2617
      %v2620 = vshrl.u32 %v2340, 16
      %v2622 = vrot.slane %v2620, 4
      %v2623 = vshll.u32 %v2340, 16
      %v2625 = vrot.slane %v2623, 5
      %v2626 = vor.u32 %v2622, %v2625
      %v2627 = vrot.slane %v2626, 4
      %v2629 = vshll.u32 %v2341, 16
      %v2631 = vrot.slane %v2629, 5
      %v2632 = vsel %vm1519, %v2627, %v2631
      %v2633 = vshrl.u32 %v2341, 16
      %v2635 = vrot.slane %v2633, 4
      %v2636 = vor.u32 %v2635, %v2631
      %v2637 = vrot.slane %v2636, 4
      %v2639 = vshll.u32 %v2342, 16
      %v2641 = vrot.slane %v2639, 5
      %v2642 = vsel %vm1519, %v2637, %v2641
      %v2644 = vshrl.u32 %v2343, 16
      %v2646 = vrot.slane %v2644, 4
      %v2647 = vshll.u32 %v2343, 16
      %v2649 = vrot.slane %v2647, 5
      %v2650 = vor.u32 %v2646, %v2649
      %v2651 = vrot.slane %v2650, 4
      %v2653 = vshll.u32 %v2344, 16
      %v2655 = vrot.slane %v2653, 5
      %v2656 = vsel %vm1519, %v2651, %v2655
      %v2657 = vshrl.u32 %v2344, 16
      %v2659 = vrot.slane %v2657, 4
      %v2660 = vor.u32 %v2659, %v2655
      %v2661 = vrot.slane %v2660, 4
      %v2663 = vshll.u32 %v2345, 16
      %v2665 = vrot.slane %v2663, 5
      %v2666 = vsel %vm1519, %v2661, %v2665
      %v2668 = vshrl.u32 %v2346, 16
      %v2670 = vrot.slane %v2668, 4
      %v2671 = vshll.u32 %v2346, 16
      %v2673 = vrot.slane %v2671, 5
      %v2674 = vor.u32 %v2670, %v2673
      %v2675 = vrot.slane %v2674, 4
      %v2677 = vshll.u32 %v2347, 16
      %v2679 = vrot.slane %v2677, 5
      %v2680 = vsel %vm1519, %v2675, %v2679
      %v2681 = vshrl.u32 %v2347, 16
      %v2683 = vrot.slane %v2681, 4
      %v2684 = vor.u32 %v2683, %v2679
      %v2685 = vrot.slane %v2684, 4
      %v2687 = vshll.u32 %v2348, 16
      %v2689 = vrot.slane %v2687, 5
      %v2690 = vsel %vm1519, %v2685, %v2689
      %v2692 = vshrl.u32 %v2349, 16
      %v2694 = vrot.slane %v2692, 4
      %v2695 = vshll.u32 %v2349, 16
      %v2697 = vrot.slane %v2695, 5
      %v2698 = vor.u32 %v2694, %v2697
      %v2699 = vrot.slane %v2698, 4
      %v2701 = vshll.u32 %v2350, 16
      %v2703 = vrot.slane %v2701, 5
      %v2704 = vsel %vm1519, %v2699, %v2703
      %v2705 = vshrl.u32 %v2350, 16
      %v2707 = vrot.slane %v2705, 4
      %v2708 = vor.u32 %v2707, %v2703
      %v2709 = vrot.slane %v2708, 4
      %v2711 = vshll.u32 %v2351, 16
      %v2713 = vrot.slane %v2711, 5
      %v2714 = vsel %vm1519, %v2709, %v2713
      %v2716 = vshrl.u32 %v2352, 16
      %v2718 = vrot.slane %v2716, 4
      %v2719 = vshll.u32 %v2352, 16
      %v2721 = vrot.slane %v2719, 5
      %v2722 = vor.u32 %v2718, %v2721
      %v2723 = vrot.slane %v2722, 4
      %v2725 = vshll.u32 %v2353, 16
      %v2727 = vrot.slane %v2725, 5
      %v2728 = vsel %vm1519, %v2723, %v2727
      %v2729 = vshrl.u32 %v2353, 16
      %v2731 = vrot.slane %v2729, 4
      %v2732 = vor.u32 %v2731, %v2727
      %v2733 = vrot.slane %v2732, 4
      %v2735 = vshll.u32 %v2354, 16
      %v2737 = vrot.slane %v2735, 5
      %v2738 = vsel %vm1519, %v2733, %v2737
      %2771 = vst [vmem:[#allocation3 + $0x10] sm:$0xf] %v2368
      %2772 = vst [vmem:[#allocation3 + $0x34] sm:$0xf] %v2378
      %2773 = vst [vmem:[#allocation3 + $0x58] sm:$0xf] %v2392
      %2774 = vst [vmem:[#allocation3 + $0x7c] sm:$0xf] %v2402
      %2775 = vst [vmem:[#allocation3 + $0xa0] sm:$0xf] %v2416
      %2776 = vst [vmem:[#allocation3 + $0xc4] sm:$0xf] %v2426
      %2777 = vst [vmem:[#allocation3 + $0xe8] sm:$0xf] %v2440
      %2778 = vst [vmem:[#allocation3 + $0x10c] sm:$0xf] %v2450
      %2779 = vst [vmem:[#allocation3 + $0x130] sm:$0xf] %v2464
      %2780 = vst [vmem:[#allocation3 + $0x154] sm:$0xf] %v2474
      %2781 = vst [vmem:[#allocation3 + $0x178] sm:$0xf] %v2488
      %2782 = vst [vmem:[#allocation3 + $0x19c] sm:$0xf] %v2498
      %2783 = vst [vmem:[#allocation3 + $0x1c0] sm:$0xf] %v2512
      %2784 = vst [vmem:[#allocation3 + $0x1e4] sm:$0xf] %v2522
      %2785 = vst [vmem:[#allocation3 + $0x208] sm:$0xf] %v2536
      %2786 = vst [vmem:[#allocation3 + $0x22c] sm:$0xf] %v2546
      %2787 = vst [vmem:[#allocation3 + $0x250] sm:$0xf] %v2560
      %2788 = vst [vmem:[#allocation3 + $0x274] sm:$0xf] %v2570
      %2789 = vst [vmem:[#allocation3 + $0x298] sm:$0xf] %v2584
      %2790 = vst [vmem:[#allocation3 + $0x2bc] sm:$0xf] %v2594
      %2791 = vst [vmem:[#allocation3 + $0x2e0] sm:$0xf] %v2608
      %2792 = vst [vmem:[#allocation3 + $0x304] sm:$0xf] %v2618
      %2793 = vst [vmem:[#allocation3 + $0x328] sm:$0xf] %v2632
      %2794 = vst [vmem:[#allocation3 + $0x34c] sm:$0xf] %v2642
      %2795 = vst [vmem:[#allocation3 + $0x370] sm:$0xf] %v2656
      %2796 = vst [vmem:[#allocation3 + $0x394] sm:$0xf] %v2666
      %2797 = vst [vmem:[#allocation3 + $0x3b8] sm:$0xf] %v2680
      %2798 = vst [vmem:[#allocation3 + $0x3dc] sm:$0xf] %v2690
      %2799 = vst [vmem:[#allocation3 + $0x400] sm:$0xf] %v2704
      %2800 = vst [vmem:[#allocation3 + $0x424] sm:$0xf] %v2714
      %2801 = vst [vmem:[#allocation3 + $0x448] sm:$0xf] %v2728
      %2802 = vst [vmem:[#allocation3 + $0x46c] sm:$0xf] %v2738
      %v2803 = vld [vmem:[%s1287] sm:$0xe]
      %v2804 = vld [vmem:[%s1287 + $0x4] sm:$0xf]
      %v2805 = vld [vmem:[%s1287 + $0x8] sm:$0x1]
      %v2806 = vld [vmem:[%s1287 + $0xc] sm:$0xe]
      %v2807 = vld [vmem:[%s1287 + $0x10] sm:$0xf]
      %v2808 = vld [vmem:[%s1287 + $0x14] sm:$0x1]
      %v2809 = vld [vmem:[%s1287 + $0x18] sm:$0xe]
      %v2810 = vld [vmem:[%s1287 + $0x1c] sm:$0xf]
      %v2811 = vld [vmem:[%s1287 + $0x20] sm:$0x1]
      %v2812 = vld [vmem:[%s1287 + $0x24] sm:$0xe]
      %v2813 = vld [vmem:[%s1287 + $0x28] sm:$0xf]
      %v2814 = vld [vmem:[%s1287 + $0x2c] sm:$0x1]
      %v2815 = vld [vmem:[%s1287 + $0x30] sm:$0xe]
      %v2816 = vld [vmem:[%s1287 + $0x34] sm:$0xf]
      %v2817 = vld [vmem:[%s1287 + $0x38] sm:$0x1]
      %v2818 = vld [vmem:[%s1287 + $0x3c] sm:$0xe]
      %v2819 = vld [vmem:[%s1287 + $0x40] sm:$0xf]
      %v2820 = vld [vmem:[%s1287 + $0x44] sm:$0x1]
      %v2821 = vld [vmem:[%s1287 + $0x48] sm:$0xe]
      %v2822 = vld [vmem:[%s1287 + $0x4c] sm:$0xf]
      %v2823 = vld [vmem:[%s1287 + $0x50] sm:$0x1]
      %v2824 = vld [vmem:[%s1287 + $0x54] sm:$0xe]
      %v2825 = vld [vmem:[%s1287 + $0x58] sm:$0xf]
      %v2826 = vld [vmem:[%s1287 + $0x5c] sm:$0x1]
      %v2827 = vld [vmem:[%s1287 + $0x60] sm:$0xe]
      %v2828 = vld [vmem:[%s1287 + $0x64] sm:$0xf]
      %v2829 = vld [vmem:[%s1287 + $0x68] sm:$0x1]
      %v2830 = vld [vmem:[%s1287 + $0x6c] sm:$0xe]
      %v2831 = vld [vmem:[%s1287 + $0x70] sm:$0xf]
      %v2832 = vld [vmem:[%s1287 + $0x74] sm:$0x1]
      %v2833 = vld [vmem:[%s1287 + $0x78] sm:$0xe]
      %v2834 = vld [vmem:[%s1287 + $0x7c] sm:$0xf]
      %v2835 = vld [vmem:[%s1287 + $0x80] sm:$0x1]
      %v2836 = vld [vmem:[%s1287 + $0x84] sm:$0xe]
      %v2837 = vld [vmem:[%s1287 + $0x88] sm:$0xf]
      %v2838 = vld [vmem:[%s1287 + $0x8c] sm:$0x1]
      %v2839 = vld [vmem:[%s1287 + $0x90] sm:$0xe]
      %v2840 = vld [vmem:[%s1287 + $0x94] sm:$0xf]
      %v2841 = vld [vmem:[%s1287 + $0x98] sm:$0x1]
      %v2842 = vld [vmem:[%s1287 + $0x9c] sm:$0xe]
      %v2843 = vld [vmem:[%s1287 + $0xa0] sm:$0xf]
      %v2844 = vld [vmem:[%s1287 + $0xa4] sm:$0x1]
      %v2845 = vld [vmem:[%s1287 + $0xa8] sm:$0xe]
      %v2846 = vld [vmem:[%s1287 + $0xac] sm:$0xf]
      %v2847 = vld [vmem:[%s1287 + $0xb0] sm:$0x1]
      %v2848 = vld [vmem:[%s1287 + $0xb4] sm:$0xe]
      %v2849 = vld [vmem:[%s1287 + $0xb8] sm:$0xf]
      %v2850 = vld [vmem:[%s1287 + $0xbc] sm:$0x1]
      %v2899 = vrot.slane %v2803, 5
      %v2900 = vrot.slane %v2899, 4
      %v2901 = vrot.slane %v2804, 5
      %v2902 = vsel %vm2066, %v2900, %v2901
      %v2903 = vrot.slane %v2901, 4
      %v2904 = vrot.slane %v2805, 5
      %v2905 = vsel %vm2066, %v2903, %v2904
      %v2906 = vrot.slane %v2806, 5
      %v2907 = vrot.slane %v2906, 4
      %v2908 = vrot.slane %v2807, 5
      %v2909 = vsel %vm2066, %v2907, %v2908
      %v2910 = vrot.slane %v2908, 4
      %v2911 = vrot.slane %v2808, 5
      %v2912 = vsel %vm2066, %v2910, %v2911
      %v2913 = vrot.slane %v2809, 5
      %v2914 = vrot.slane %v2913, 4
      %v2915 = vrot.slane %v2810, 5
      %v2916 = vsel %vm2066, %v2914, %v2915
      %v2917 = vrot.slane %v2915, 4
      %v2918 = vrot.slane %v2811, 5
      %v2919 = vsel %vm2066, %v2917, %v2918
      %v2920 = vrot.slane %v2812, 5
      %v2921 = vrot.slane %v2920, 4
      %v2922 = vrot.slane %v2813, 5
      %v2923 = vsel %vm2066, %v2921, %v2922
      %v2924 = vrot.slane %v2922, 4
      %v2925 = vrot.slane %v2814, 5
      %v2926 = vsel %vm2066, %v2924, %v2925
      %v2927 = vrot.slane %v2815, 5
      %v2928 = vrot.slane %v2927, 4
      %v2929 = vrot.slane %v2816, 5
      %v2930 = vsel %vm2066, %v2928, %v2929
      %v2931 = vrot.slane %v2929, 4
      %v2932 = vrot.slane %v2817, 5
      %v2933 = vsel %vm2066, %v2931, %v2932
      %v2934 = vrot.slane %v2818, 5
      %v2935 = vrot.slane %v2934, 4
      %v2936 = vrot.slane %v2819, 5
      %v2937 = vsel %vm2066, %v2935, %v2936
      %v2938 = vrot.slane %v2936, 4
      %v2939 = vrot.slane %v2820, 5
      %v2940 = vsel %vm2066, %v2938, %v2939
      %v2941 = vrot.slane %v2821, 5
      %v2942 = vrot.slane %v2941, 4
      %v2943 = vrot.slane %v2822, 5
      %v2944 = vsel %vm2066, %v2942, %v2943
      %v2945 = vrot.slane %v2943, 4
      %v2946 = vrot.slane %v2823, 5
      %v2947 = vsel %vm2066, %v2945, %v2946
      %v2948 = vrot.slane %v2824, 5
      %v2949 = vrot.slane %v2948, 4
      %v2950 = vrot.slane %v2825, 5
      %v2951 = vsel %vm2066, %v2949, %v2950
      %v2952 = vrot.slane %v2950, 4
      %v2953 = vrot.slane %v2826, 5
      %v2954 = vsel %vm2066, %v2952, %v2953
      %v2955 = vrot.slane %v2827, 5
      %v2956 = vrot.slane %v2955, 4
      %v2957 = vrot.slane %v2828, 5
      %v2958 = vsel %vm2066, %v2956, %v2957
      %v2959 = vrot.slane %v2957, 4
      %v2960 = vrot.slane %v2829, 5
      %v2961 = vsel %vm2066, %v2959, %v2960
      %v2962 = vrot.slane %v2830, 5
      %v2963 = vrot.slane %v2962, 4
      %v2964 = vrot.slane %v2831, 5
      %v2965 = vsel %vm2066, %v2963, %v2964
      %v2966 = vrot.slane %v2964, 4
      %v2967 = vrot.slane %v2832, 5
      %v2968 = vsel %vm2066, %v2966, %v2967
      %v2969 = vrot.slane %v2833, 5
      %v2970 = vrot.slane %v2969, 4
      %v2971 = vrot.slane %v2834, 5
      %v2972 = vsel %vm2066, %v2970, %v2971
      %v2973 = vrot.slane %v2971, 4
      %v2974 = vrot.slane %v2835, 5
      %v2975 = vsel %vm2066, %v2973, %v2974
      %v2976 = vrot.slane %v2836, 5
      %v2977 = vrot.slane %v2976, 4
      %v2978 = vrot.slane %v2837, 5
      %v2979 = vsel %vm2066, %v2977, %v2978
      %v2980 = vrot.slane %v2978, 4
      %v2981 = vrot.slane %v2838, 5
      %v2982 = vsel %vm2066, %v2980, %v2981
      %v2983 = vrot.slane %v2839, 5
      %v2984 = vrot.slane %v2983, 4
      %v2985 = vrot.slane %v2840, 5
      %v2986 = vsel %vm2066, %v2984, %v2985
      %v2987 = vrot.slane %v2985, 4
      %v2988 = vrot.slane %v2841, 5
      %v2989 = vsel %vm2066, %v2987, %v2988
      %v2990 = vrot.slane %v2842, 5
      %v2991 = vrot.slane %v2990, 4
      %v2992 = vrot.slane %v2843, 5
      %v2993 = vsel %vm2066, %v2991, %v2992
      %v2994 = vrot.slane %v2992, 4
      %v2995 = vrot.slane %v2844, 5
      %v2996 = vsel %vm2066, %v2994, %v2995
      %v2997 = vrot.slane %v2845, 5
      %v2998 = vrot.slane %v2997, 4
      %v2999 = vrot.slane %v2846, 5
      %v3000 = vsel %vm2066, %v2998, %v2999
      %v3001 = vrot.slane %v2999, 4
      %v3002 = vrot.slane %v2847, 5
      %v3003 = vsel %vm2066, %v3001, %v3002
      %v3004 = vrot.slane %v2848, 5
      %v3005 = vrot.slane %v3004, 4
      %v3006 = vrot.slane %v2849, 5
      %v3007 = vsel %vm2066, %v3005, %v3006
      %v3008 = vrot.slane %v3006, 4
      %v3009 = vrot.slane %v2850, 5
      %v3010 = vsel %vm2066, %v3008, %v3009
      %3043 = vst [vmem:[#allocation3 + $0x14] sm:$0xf] %v2902
      %3044 = vst [vmem:[#allocation3 + $0x38] sm:$0xf] %v2905
      %3045 = vst [vmem:[#allocation3 + $0x5c] sm:$0xf] %v2909
      %3046 = vst [vmem:[#allocation3 + $0x80] sm:$0xf] %v2912
      %3047 = vst [vmem:[#allocation3 + $0xa4] sm:$0xf] %v2916
      %3048 = vst [vmem:[#allocation3 + $0xc8] sm:$0xf] %v2919
      %3049 = vst [vmem:[#allocation3 + $0xec] sm:$0xf] %v2923
      %3050 = vst [vmem:[#allocation3 + $0x110] sm:$0xf] %v2926
      %3051 = vst [vmem:[#allocation3 + $0x134] sm:$0xf] %v2930
      %3052 = vst [vmem:[#allocation3 + $0x158] sm:$0xf] %v2933
      %3053 = vst [vmem:[#allocation3 + $0x17c] sm:$0xf] %v2937
      %3054 = vst [vmem:[#allocation3 + $0x1a0] sm:$0xf] %v2940
      %3055 = vst [vmem:[#allocation3 + $0x1c4] sm:$0xf] %v2944
      %3056 = vst [vmem:[#allocation3 + $0x1e8] sm:$0xf] %v2947
      %3057 = vst [vmem:[#allocation3 + $0x20c] sm:$0xf] %v2951
      %3058 = vst [vmem:[#allocation3 + $0x230] sm:$0xf] %v2954
      %3059 = vst [vmem:[#allocation3 + $0x254] sm:$0xf] %v2958
      %3060 = vst [vmem:[#allocation3 + $0x278] sm:$0xf] %v2961
      %3061 = vst [vmem:[#allocation3 + $0x29c] sm:$0xf] %v2965
      %3062 = vst [vmem:[#allocation3 + $0x2c0] sm:$0xf] %v2968
      %3063 = vst [vmem:[#allocation3 + $0x2e4] sm:$0xf] %v2972
      %3064 = vst [vmem:[#allocation3 + $0x308] sm:$0xf] %v2975
      %3065 = vst [vmem:[#allocation3 + $0x32c] sm:$0xf] %v2979
      %3066 = vst [vmem:[#allocation3 + $0x350] sm:$0xf] %v2982
      %3067 = vst [vmem:[#allocation3 + $0x374] sm:$0xf] %v2986
      %3068 = vst [vmem:[#allocation3 + $0x398] sm:$0xf] %v2989
      %3069 = vst [vmem:[#allocation3 + $0x3bc] sm:$0xf] %v2993
      %3070 = vst [vmem:[#allocation3 + $0x3e0] sm:$0xf] %v2996
      %3071 = vst [vmem:[#allocation3 + $0x404] sm:$0xf] %v3000
      %3072 = vst [vmem:[#allocation3 + $0x428] sm:$0xf] %v3003
      %3073 = vst [vmem:[#allocation3 + $0x44c] sm:$0xf] %v3007
      %3074 = vst [vmem:[#allocation3 + $0x470] sm:$0xf] %v3010
      %s3075 = scalar_lea.vmem [#allocation2], 24
      %v3076 = vld [vmem:[%s3075] sm:$0xf]
      %v3077 = vld [vmem:[%s3075 + $0x4] sm:$0xf]
      %v3078 = vld [vmem:[%s3075 + $0xc] sm:$0xf]
      %v3079 = vld [vmem:[%s3075 + $0x10] sm:$0xf]
      %v3080 = vld [vmem:[%s3075 + $0x18] sm:$0xf]
      %v3081 = vld [vmem:[%s3075 + $0x1c] sm:$0xf]
      %v3082 = vld [vmem:[%s3075 + $0x24] sm:$0xf]
      %v3083 = vld [vmem:[%s3075 + $0x28] sm:$0xf]
      %v3084 = vld [vmem:[%s3075 + $0x30] sm:$0xf]
      %v3085 = vld [vmem:[%s3075 + $0x34] sm:$0xf]
      %v3086 = vld [vmem:[%s3075 + $0x3c] sm:$0xf]
      %v3087 = vld [vmem:[%s3075 + $0x40] sm:$0xf]
      %v3088 = vld [vmem:[%s3075 + $0x48] sm:$0xf]
      %v3089 = vld [vmem:[%s3075 + $0x4c] sm:$0xf]
      %v3090 = vld [vmem:[%s3075 + $0x54] sm:$0xf]
      %v3091 = vld [vmem:[%s3075 + $0x58] sm:$0xf]
      %v3092 = vld [vmem:[%s3075 + $0x60] sm:$0xf]
      %v3093 = vld [vmem:[%s3075 + $0x64] sm:$0xf]
      %v3094 = vld [vmem:[%s3075 + $0x6c] sm:$0xf]
      %v3095 = vld [vmem:[%s3075 + $0x70] sm:$0xf]
      %v3096 = vld [vmem:[%s3075 + $0x78] sm:$0xf]
      %v3097 = vld [vmem:[%s3075 + $0x7c] sm:$0xf]
      %v3098 = vld [vmem:[%s3075 + $0x84] sm:$0xf]
      %v3099 = vld [vmem:[%s3075 + $0x88] sm:$0xf]
      %v3100 = vld [vmem:[%s3075 + $0x90] sm:$0xf]
      %v3101 = vld [vmem:[%s3075 + $0x94] sm:$0xf]
      %v3102 = vld [vmem:[%s3075 + $0x9c] sm:$0xf]
      %v3103 = vld [vmem:[%s3075 + $0xa0] sm:$0xf]
      %v3104 = vld [vmem:[%s3075 + $0xa8] sm:$0xf]
      %v3105 = vld [vmem:[%s3075 + $0xac] sm:$0xf]
      %v3106 = vld [vmem:[%s3075 + $0xb4] sm:$0xf]
      %v3107 = vld [vmem:[%s3075 + $0xb8] sm:$0xf]
      %3108 = vst [vmem:[#allocation3 + $0x18] sm:$0xf] %v3076
      %3109 = vst [vmem:[#allocation3 + $0x3c] sm:$0xf] %v3077
      %3110 = vst [vmem:[#allocation3 + $0x60] sm:$0xf] %v3078
      %3111 = vst [vmem:[#allocation3 + $0x84] sm:$0xf] %v3079
      %3112 = vst [vmem:[#allocation3 + $0xa8] sm:$0xf] %v3080
      %3113 = vst [vmem:[#allocation3 + $0xcc] sm:$0xf] %v3081
      %3114 = vst [vmem:[#allocation3 + $0xf0] sm:$0xf] %v3082
      %3115 = vst [vmem:[#allocation3 + $0x114] sm:$0xf] %v3083
      %3116 = vst [vmem:[#allocation3 + $0x138] sm:$0xf] %v3084
      %3117 = vst [vmem:[#allocation3 + $0x15c] sm:$0xf] %v3085
      %3118 = vst [vmem:[#allocation3 + $0x180] sm:$0xf] %v3086
      %3119 = vst [vmem:[#allocation3 + $0x1a4] sm:$0xf] %v3087
      %3120 = vst [vmem:[#allocation3 + $0x1c8] sm:$0xf] %v3088
      %3121 = vst [vmem:[#allocation3 + $0x1ec] sm:$0xf] %v3089
      %3122 = vst [vmem:[#allocation3 + $0x210] sm:$0xf] %v3090
      %3123 = vst [vmem:[#allocation3 + $0x234] sm:$0xf] %v3091
      %3124 = vst [vmem:[#allocation3 + $0x258] sm:$0xf] %v3092
      %3125 = vst [vmem:[#allocation3 + $0x27c] sm:$0xf] %v3093
      %3126 = vst [vmem:[#allocation3 + $0x2a0] sm:$0xf] %v3094
      %3127 = vst [vmem:[#allocation3 + $0x2c4] sm:$0xf] %v3095
      %3128 = vst [vmem:[#allocation3 + $0x2e8] sm:$0xf] %v3096
      %3129 = vst [vmem:[#allocation3 + $0x30c] sm:$0xf] %v3097
      %3130 = vst [vmem:[#allocation3 + $0x330] sm:$0xf] %v3098
      %3131 = vst [vmem:[#allocation3 + $0x354] sm:$0xf] %v3099
      %3132 = vst [vmem:[#allocation3 + $0x378] sm:$0xf] %v3100
      %3133 = vst [vmem:[#allocation3 + $0x39c] sm:$0xf] %v3101
      %3134 = vst [vmem:[#allocation3 + $0x3c0] sm:$0xf] %v3102
      %3135 = vst [vmem:[#allocation3 + $0x3e4] sm:$0xf] %v3103
      %3136 = vst [vmem:[#allocation3 + $0x408] sm:$0xf] %v3104
      %3137 = vst [vmem:[#allocation3 + $0x42c] sm:$0xf] %v3105
      %3138 = vst [vmem:[#allocation3 + $0x450] sm:$0xf] %v3106
      %3139 = vst [vmem:[#allocation3 + $0x474] sm:$0xf] %v3107
      %v3140 = vld [vmem:[%s3075] sm:$0xf]
      %v3141 = vld [vmem:[%s3075 + $0x4] sm:$0xf]
      %v3142 = vld [vmem:[%s3075 + $0x8] sm:$0x1]
      %v3143 = vld [vmem:[%s3075 + $0xc] sm:$0xf]
      %v3144 = vld [vmem:[%s3075 + $0x10] sm:$0xf]
      %v3145 = vld [vmem:[%s3075 + $0x14] sm:$0x1]
      %v3146 = vld [vmem:[%s3075 + $0x18] sm:$0xf]
      %v3147 = vld [vmem:[%s3075 + $0x1c] sm:$0xf]
      %v3148 = vld [vmem:[%s3075 + $0x20] sm:$0x1]
      %v3149 = vld [vmem:[%s3075 + $0x24] sm:$0xf]
      %v3150 = vld [vmem:[%s3075 + $0x28] sm:$0xf]
      %v3151 = vld [vmem:[%s3075 + $0x2c] sm:$0x1]
      %v3152 = vld [vmem:[%s3075 + $0x30] sm:$0xf]
      %v3153 = vld [vmem:[%s3075 + $0x34] sm:$0xf]
      %v3154 = vld [vmem:[%s3075 + $0x38] sm:$0x1]
      %v3155 = vld [vmem:[%s3075 + $0x3c] sm:$0xf]
      %v3156 = vld [vmem:[%s3075 + $0x40] sm:$0xf]
      %v3157 = vld [vmem:[%s3075 + $0x44] sm:$0x1]
      %v3158 = vld [vmem:[%s3075 + $0x48] sm:$0xf]
      %v3159 = vld [vmem:[%s3075 + $0x4c] sm:$0xf]
      %v3160 = vld [vmem:[%s3075 + $0x50] sm:$0x1]
      %v3161 = vld [vmem:[%s3075 + $0x54] sm:$0xf]
      %v3162 = vld [vmem:[%s3075 + $0x58] sm:$0xf]
      %v3163 = vld [vmem:[%s3075 + $0x5c] sm:$0x1]
      %v3164 = vld [vmem:[%s3075 + $0x60] sm:$0xf]
      %v3165 = vld [vmem:[%s3075 + $0x64] sm:$0xf]
      %v3166 = vld [vmem:[%s3075 + $0x68] sm:$0x1]
      %v3167 = vld [vmem:[%s3075 + $0x6c] sm:$0xf]
      %v3168 = vld [vmem:[%s3075 + $0x70] sm:$0xf]
      %v3169 = vld [vmem:[%s3075 + $0x74] sm:$0x1]
      %v3170 = vld [vmem:[%s3075 + $0x78] sm:$0xf]
      %v3171 = vld [vmem:[%s3075 + $0x7c] sm:$0xf]
      %v3172 = vld [vmem:[%s3075 + $0x80] sm:$0x1]
      %v3173 = vld [vmem:[%s3075 + $0x84] sm:$0xf]
      %v3174 = vld [vmem:[%s3075 + $0x88] sm:$0xf]
      %v3175 = vld [vmem:[%s3075 + $0x8c] sm:$0x1]
      %v3176 = vld [vmem:[%s3075 + $0x90] sm:$0xf]
      %v3177 = vld [vmem:[%s3075 + $0x94] sm:$0xf]
      %v3178 = vld [vmem:[%s3075 + $0x98] sm:$0x1]
      %v3179 = vld [vmem:[%s3075 + $0x9c] sm:$0xf]
      %v3180 = vld [vmem:[%s3075 + $0xa0] sm:$0xf]
      %v3181 = vld [vmem:[%s3075 + $0xa4] sm:$0x1]
      %v3182 = vld [vmem:[%s3075 + $0xa8] sm:$0xf]
      %v3183 = vld [vmem:[%s3075 + $0xac] sm:$0xf]
      %v3184 = vld [vmem:[%s3075 + $0xb0] sm:$0x1]
      %v3185 = vld [vmem:[%s3075 + $0xb4] sm:$0xf]
      %v3186 = vld [vmem:[%s3075 + $0xb8] sm:$0xf]
      %v3187 = vld [vmem:[%s3075 + $0xbc] sm:$0x1]
      %v3189 = vshrl.u32 %v3140, 16
      %v3191 = vrot.slane %v3189, 4
      %v3192 = vshll.u32 %v3140, 16
      %v3194 = vrot.slane %v3192, 5
      %v3195 = vor.u32 %v3191, %v3194
      %v3196 = vrot.slane %v3195, 4
      %v3198 = vshll.u32 %v3141, 16
      %v3200 = vrot.slane %v3198, 5
      %v3201 = vsel %vm1519, %v3196, %v3200
      %v3202 = vshrl.u32 %v3141, 16
      %v3204 = vrot.slane %v3202, 4
      %v3205 = vor.u32 %v3204, %v3200
      %v3206 = vrot.slane %v3205, 4
      %v3208 = vshll.u32 %v3142, 16
      %v3210 = vrot.slane %v3208, 5
      %v3211 = vsel %vm1519, %v3206, %v3210
      %v3213 = vshrl.u32 %v3143, 16
      %v3215 = vrot.slane %v3213, 4
      %v3216 = vshll.u32 %v3143, 16
      %v3218 = vrot.slane %v3216, 5
      %v3219 = vor.u32 %v3215, %v3218
      %v3220 = vrot.slane %v3219, 4
      %v3222 = vshll.u32 %v3144, 16
      %v3224 = vrot.slane %v3222, 5
      %v3225 = vsel %vm1519, %v3220, %v3224
      %v3226 = vshrl.u32 %v3144, 16
      %v3228 = vrot.slane %v3226, 4
      %v3229 = vor.u32 %v3228, %v3224
      %v3230 = vrot.slane %v3229, 4
      %v3232 = vshll.u32 %v3145, 16
      %v3234 = vrot.slane %v3232, 5
      %v3235 = vsel %vm1519, %v3230, %v3234
      %v3237 = vshrl.u32 %v3146, 16
      %v3239 = vrot.slane %v3237, 4
      %v3240 = vshll.u32 %v3146, 16
      %v3242 = vrot.slane %v3240, 5
      %v3243 = vor.u32 %v3239, %v3242
      %v3244 = vrot.slane %v3243, 4
      %v3246 = vshll.u32 %v3147, 16
      %v3248 = vrot.slane %v3246, 5
      %v3249 = vsel %vm1519, %v3244, %v3248
      %v3250 = vshrl.u32 %v3147, 16
      %v3252 = vrot.slane %v3250, 4
      %v3253 = vor.u32 %v3252, %v3248
      %v3254 = vrot.slane %v3253, 4
      %v3256 = vshll.u32 %v3148, 16
      %v3258 = vrot.slane %v3256, 5
      %v3259 = vsel %vm1519, %v3254, %v3258
      %v3261 = vshrl.u32 %v3149, 16
      %v3263 = vrot.slane %v3261, 4
      %v3264 = vshll.u32 %v3149, 16
      %v3266 = vrot.slane %v3264, 5
      %v3267 = vor.u32 %v3263, %v3266
      %v3268 = vrot.slane %v3267, 4
      %v3270 = vshll.u32 %v3150, 16
      %v3272 = vrot.slane %v3270, 5
      %v3273 = vsel %vm1519, %v3268, %v3272
      %v3274 = vshrl.u32 %v3150, 16
      %v3276 = vrot.slane %v3274, 4
      %v3277 = vor.u32 %v3276, %v3272
      %v3278 = vrot.slane %v3277, 4
      %v3280 = vshll.u32 %v3151, 16
      %v3282 = vrot.slane %v3280, 5
      %v3283 = vsel %vm1519, %v3278, %v3282
      %v3285 = vshrl.u32 %v3152, 16
      %v3287 = vrot.slane %v3285, 4
      %v3288 = vshll.u32 %v3152, 16
      %v3290 = vrot.slane %v3288, 5
      %v3291 = vor.u32 %v3287, %v3290
      %v3292 = vrot.slane %v3291, 4
      %v3294 = vshll.u32 %v3153, 16
      %v3296 = vrot.slane %v3294, 5
      %v3297 = vsel %vm1519, %v3292, %v3296
      %v3298 = vshrl.u32 %v3153, 16
      %v3300 = vrot.slane %v3298, 4
      %v3301 = vor.u32 %v3300, %v3296
      %v3302 = vrot.slane %v3301, 4
      %v3304 = vshll.u32 %v3154, 16
      %v3306 = vrot.slane %v3304, 5
      %v3307 = vsel %vm1519, %v3302, %v3306
      %v3309 = vshrl.u32 %v3155, 16
      %v3311 = vrot.slane %v3309, 4
      %v3312 = vshll.u32 %v3155, 16
      %v3314 = vrot.slane %v3312, 5
      %v3315 = vor.u32 %v3311, %v3314
      %v3316 = vrot.slane %v3315, 4
      %v3318 = vshll.u32 %v3156, 16
      %v3320 = vrot.slane %v3318, 5
      %v3321 = vsel %vm1519, %v3316, %v3320
      %v3322 = vshrl.u32 %v3156, 16
      %v3324 = vrot.slane %v3322, 4
      %v3325 = vor.u32 %v3324, %v3320
      %v3326 = vrot.slane %v3325, 4
      %v3328 = vshll.u32 %v3157, 16
      %v3330 = vrot.slane %v3328, 5
      %v3331 = vsel %vm1519, %v3326, %v3330
      %v3333 = vshrl.u32 %v3158, 16
      %v3335 = vrot.slane %v3333, 4
      %v3336 = vshll.u32 %v3158, 16
      %v3338 = vrot.slane %v3336, 5
      %v3339 = vor.u32 %v3335, %v3338
      %v3340 = vrot.slane %v3339, 4
      %v3342 = vshll.u32 %v3159, 16
      %v3344 = vrot.slane %v3342, 5
      %v3345 = vsel %vm1519, %v3340, %v3344
      %v3346 = vshrl.u32 %v3159, 16
      %v3348 = vrot.slane %v3346, 4
      %v3349 = vor.u32 %v3348, %v3344
      %v3350 = vrot.slane %v3349, 4
      %v3352 = vshll.u32 %v3160, 16
      %v3354 = vrot.slane %v3352, 5
      %v3355 = vsel %vm1519, %v3350, %v3354
      %v3357 = vshrl.u32 %v3161, 16
      %v3359 = vrot.slane %v3357, 4
      %v3360 = vshll.u32 %v3161, 16
      %v3362 = vrot.slane %v3360, 5
      %v3363 = vor.u32 %v3359, %v3362
      %v3364 = vrot.slane %v3363, 4
      %v3366 = vshll.u32 %v3162, 16
      %v3368 = vrot.slane %v3366, 5
      %v3369 = vsel %vm1519, %v3364, %v3368
      %v3370 = vshrl.u32 %v3162, 16
      %v3372 = vrot.slane %v3370, 4
      %v3373 = vor.u32 %v3372, %v3368
      %v3374 = vrot.slane %v3373, 4
      %v3376 = vshll.u32 %v3163, 16
      %v3378 = vrot.slane %v3376, 5
      %v3379 = vsel %vm1519, %v3374, %v3378
      %v3381 = vshrl.u32 %v3164, 16
      %v3383 = vrot.slane %v3381, 4
      %v3384 = vshll.u32 %v3164, 16
      %v3386 = vrot.slane %v3384, 5
      %v3387 = vor.u32 %v3383, %v3386
      %v3388 = vrot.slane %v3387, 4
      %v3390 = vshll.u32 %v3165, 16
      %v3392 = vrot.slane %v3390, 5
      %v3393 = vsel %vm1519, %v3388, %v3392
      %v3394 = vshrl.u32 %v3165, 16
      %v3396 = vrot.slane %v3394, 4
      %v3397 = vor.u32 %v3396, %v3392
      %v3398 = vrot.slane %v3397, 4
      %v3400 = vshll.u32 %v3166, 16
      %v3402 = vrot.slane %v3400, 5
      %v3403 = vsel %vm1519, %v3398, %v3402
      %v3405 = vshrl.u32 %v3167, 16
      %v3407 = vrot.slane %v3405, 4
      %v3408 = vshll.u32 %v3167, 16
      %v3410 = vrot.slane %v3408, 5
      %v3411 = vor.u32 %v3407, %v3410
      %v3412 = vrot.slane %v3411, 4
      %v3414 = vshll.u32 %v3168, 16
      %v3416 = vrot.slane %v3414, 5
      %v3417 = vsel %vm1519, %v3412, %v3416
      %v3418 = vshrl.u32 %v3168, 16
      %v3420 = vrot.slane %v3418, 4
      %v3421 = vor.u32 %v3420, %v3416
      %v3422 = vrot.slane %v3421, 4
      %v3424 = vshll.u32 %v3169, 16
      %v3426 = vrot.slane %v3424, 5
      %v3427 = vsel %vm1519, %v3422, %v3426
      %v3429 = vshrl.u32 %v3170, 16
      %v3431 = vrot.slane %v3429, 4
      %v3432 = vshll.u32 %v3170, 16
      %v3434 = vrot.slane %v3432, 5
      %v3435 = vor.u32 %v3431, %v3434
      %v3436 = vrot.slane %v3435, 4
      %v3438 = vshll.u32 %v3171, 16
      %v3440 = vrot.slane %v3438, 5
      %v3441 = vsel %vm1519, %v3436, %v3440
      %v3442 = vshrl.u32 %v3171, 16
      %v3444 = vrot.slane %v3442, 4
      %v3445 = vor.u32 %v3444, %v3440
      %v3446 = vrot.slane %v3445, 4
      %v3448 = vshll.u32 %v3172, 16
      %v3450 = vrot.slane %v3448, 5
      %v3451 = vsel %vm1519, %v3446, %v3450
      %v3453 = vshrl.u32 %v3173, 16
      %v3455 = vrot.slane %v3453, 4
      %v3456 = vshll.u32 %v3173, 16
      %v3458 = vrot.slane %v3456, 5
      %v3459 = vor.u32 %v3455, %v3458
      %v3460 = vrot.slane %v3459, 4
      %v3462 = vshll.u32 %v3174, 16
      %v3464 = vrot.slane %v3462, 5
      %v3465 = vsel %vm1519, %v3460, %v3464
      %v3466 = vshrl.u32 %v3174, 16
      %v3468 = vrot.slane %v3466, 4
      %v3469 = vor.u32 %v3468, %v3464
      %v3470 = vrot.slane %v3469, 4
      %v3472 = vshll.u32 %v3175, 16
      %v3474 = vrot.slane %v3472, 5
      %v3475 = vsel %vm1519, %v3470, %v3474
      %v3477 = vshrl.u32 %v3176, 16
      %v3479 = vrot.slane %v3477, 4
      %v3480 = vshll.u32 %v3176, 16
      %v3482 = vrot.slane %v3480, 5
      %v3483 = vor.u32 %v3479, %v3482
      %v3484 = vrot.slane %v3483, 4
      %v3486 = vshll.u32 %v3177, 16
      %v3488 = vrot.slane %v3486, 5
      %v3489 = vsel %vm1519, %v3484, %v3488
      %v3490 = vshrl.u32 %v3177, 16
      %v3492 = vrot.slane %v3490, 4
      %v3493 = vor.u32 %v3492, %v3488
      %v3494 = vrot.slane %v3493, 4
      %v3496 = vshll.u32 %v3178, 16
      %v3498 = vrot.slane %v3496, 5
      %v3499 = vsel %vm1519, %v3494, %v3498
      %v3501 = vshrl.u32 %v3179, 16
      %v3503 = vrot.slane %v3501, 4
      %v3504 = vshll.u32 %v3179, 16
      %v3506 = vrot.slane %v3504, 5
      %v3507 = vor.u32 %v3503, %v3506
      %v3508 = vrot.slane %v3507, 4
      %v3510 = vshll.u32 %v3180, 16
      %v3512 = vrot.slane %v3510, 5
      %v3513 = vsel %vm1519, %v3508, %v3512
      %v3514 = vshrl.u32 %v3180, 16
      %v3516 = vrot.slane %v3514, 4
      %v3517 = vor.u32 %v3516, %v3512
      %v3518 = vrot.slane %v3517, 4
      %v3520 = vshll.u32 %v3181, 16
      %v3522 = vrot.slane %v3520, 5
      %v3523 = vsel %vm1519, %v3518, %v3522
      %v3525 = vshrl.u32 %v3182, 16
      %v3527 = vrot.slane %v3525, 4
      %v3528 = vshll.u32 %v3182, 16
      %v3530 = vrot.slane %v3528, 5
      %v3531 = vor.u32 %v3527, %v3530
      %v3532 = vrot.slane %v3531, 4
      %v3534 = vshll.u32 %v3183, 16
      %v3536 = vrot.slane %v3534, 5
      %v3537 = vsel %vm1519, %v3532, %v3536
      %v3538 = vshrl.u32 %v3183, 16
      %v3540 = vrot.slane %v3538, 4
      %v3541 = vor.u32 %v3540, %v3536
      %v3542 = vrot.slane %v3541, 4
      %v3544 = vshll.u32 %v3184, 16
      %v3546 = vrot.slane %v3544, 5
      %v3547 = vsel %vm1519, %v3542, %v3546
      %v3549 = vshrl.u32 %v3185, 16
      %v3551 = vrot.slane %v3549, 4
      %v3552 = vshll.u32 %v3185, 16
      %v3554 = vrot.slane %v3552, 5
      %v3555 = vor.u32 %v3551, %v3554
      %v3556 = vrot.slane %v3555, 4
      %v3558 = vshll.u32 %v3186, 16
      %v3560 = vrot.slane %v3558, 5
      %v3561 = vsel %vm1519, %v3556, %v3560
      %v3562 = vshrl.u32 %v3186, 16
      %v3564 = vrot.slane %v3562, 4
      %v3565 = vor.u32 %v3564, %v3560
      %v3566 = vrot.slane %v3565, 4
      %v3568 = vshll.u32 %v3187, 16
      %v3570 = vrot.slane %v3568, 5
      %v3571 = vsel %vm1519, %v3566, %v3570
      %3604 = vst [vmem:[#allocation3 + $0x1c] sm:$0xf] %v3201
      %3605 = vst [vmem:[#allocation3 + $0x40] sm:$0xf] %v3211
      %3606 = vst [vmem:[#allocation3 + $0x64] sm:$0xf] %v3225
      %3607 = vst [vmem:[#allocation3 + $0x88] sm:$0xf] %v3235
      %3608 = vst [vmem:[#allocation3 + $0xac] sm:$0xf] %v3249
      %3609 = vst [vmem:[#allocation3 + $0xd0] sm:$0xf] %v3259
      %3610 = vst [vmem:[#allocation3 + $0xf4] sm:$0xf] %v3273
      %3611 = vst [vmem:[#allocation3 + $0x118] sm:$0xf] %v3283
      %3612 = vst [vmem:[#allocation3 + $0x13c] sm:$0xf] %v3297
      %3613 = vst [vmem:[#allocation3 + $0x160] sm:$0xf] %v3307
      %3614 = vst [vmem:[#allocation3 + $0x184] sm:$0xf] %v3321
      %3615 = vst [vmem:[#allocation3 + $0x1a8] sm:$0xf] %v3331
      %3616 = vst [vmem:[#allocation3 + $0x1cc] sm:$0xf] %v3345
      %3617 = vst [vmem:[#allocation3 + $0x1f0] sm:$0xf] %v3355
      %3618 = vst [vmem:[#allocation3 + $0x214] sm:$0xf] %v3369
      %3619 = vst [vmem:[#allocation3 + $0x238] sm:$0xf] %v3379
      %3620 = vst [vmem:[#allocation3 + $0x25c] sm:$0xf] %v3393
      %3621 = vst [vmem:[#allocation3 + $0x280] sm:$0xf] %v3403
      %3622 = vst [vmem:[#allocation3 + $0x2a4] sm:$0xf] %v3417
      %3623 = vst [vmem:[#allocation3 + $0x2c8] sm:$0xf] %v3427
      %3624 = vst [vmem:[#allocation3 + $0x2ec] sm:$0xf] %v3441
      %3625 = vst [vmem:[#allocation3 + $0x310] sm:$0xf] %v3451
      %3626 = vst [vmem:[#allocation3 + $0x334] sm:$0xf] %v3465
      %3627 = vst [vmem:[#allocation3 + $0x358] sm:$0xf] %v3475
      %3628 = vst [vmem:[#allocation3 + $0x37c] sm:$0xf] %v3489
      %3629 = vst [vmem:[#allocation3 + $0x3a0] sm:$0xf] %v3499
      %3630 = vst [vmem:[#allocation3 + $0x3c4] sm:$0xf] %v3513
      %3631 = vst [vmem:[#allocation3 + $0x3e8] sm:$0xf] %v3523
      %3632 = vst [vmem:[#allocation3 + $0x40c] sm:$0xf] %v3537
      %3633 = vst [vmem:[#allocation3 + $0x430] sm:$0xf] %v3547
      %3634 = vst [vmem:[#allocation3 + $0x454] sm:$0xf] %v3561
      %3635 = vst [vmem:[#allocation3 + $0x478] sm:$0xf] %v3571
      %v3636 = vld [vmem:[%s3075] sm:$0xe]
      %v3637 = vld [vmem:[%s3075 + $0x4] sm:$0xf]
      %v3638 = vld [vmem:[%s3075 + $0x8] sm:$0x1]
      %v3639 = vld [vmem:[%s3075 + $0xc] sm:$0xe]
      %v3640 = vld [vmem:[%s3075 + $0x10] sm:$0xf]
      %v3641 = vld [vmem:[%s3075 + $0x14] sm:$0x1]
      %v3642 = vld [vmem:[%s3075 + $0x18] sm:$0xe]
      %v3643 = vld [vmem:[%s3075 + $0x1c] sm:$0xf]
      %v3644 = vld [vmem:[%s3075 + $0x20] sm:$0x1]
      %v3645 = vld [vmem:[%s3075 + $0x24] sm:$0xe]
      %v3646 = vld [vmem:[%s3075 + $0x28] sm:$0xf]
      %v3647 = vld [vmem:[%s3075 + $0x2c] sm:$0x1]
      %v3648 = vld [vmem:[%s3075 + $0x30] sm:$0xe]
      %v3649 = vld [vmem:[%s3075 + $0x34] sm:$0xf]
      %v3650 = vld [vmem:[%s3075 + $0x38] sm:$0x1]
      %v3651 = vld [vmem:[%s3075 + $0x3c] sm:$0xe]
      %v3652 = vld [vmem:[%s3075 + $0x40] sm:$0xf]
      %v3653 = vld [vmem:[%s3075 + $0x44] sm:$0x1]
      %v3654 = vld [vmem:[%s3075 + $0x48] sm:$0xe]
      %v3655 = vld [vmem:[%s3075 + $0x4c] sm:$0xf]
      %v3656 = vld [vmem:[%s3075 + $0x50] sm:$0x1]
      %v3657 = vld [vmem:[%s3075 + $0x54] sm:$0xe]
      %v3658 = vld [vmem:[%s3075 + $0x58] sm:$0xf]
      %v3659 = vld [vmem:[%s3075 + $0x5c] sm:$0x1]
      %v3660 = vld [vmem:[%s3075 + $0x60] sm:$0xe]
      %v3661 = vld [vmem:[%s3075 + $0x64] sm:$0xf]
      %v3662 = vld [vmem:[%s3075 + $0x68] sm:$0x1]
      %v3663 = vld [vmem:[%s3075 + $0x6c] sm:$0xe]
      %v3664 = vld [vmem:[%s3075 + $0x70] sm:$0xf]
      %v3665 = vld [vmem:[%s3075 + $0x74] sm:$0x1]
      %v3666 = vld [vmem:[%s3075 + $0x78] sm:$0xe]
      %v3667 = vld [vmem:[%s3075 + $0x7c] sm:$0xf]
      %v3668 = vld [vmem:[%s3075 + $0x80] sm:$0x1]
      %v3669 = vld [vmem:[%s3075 + $0x84] sm:$0xe]
      %v3670 = vld [vmem:[%s3075 + $0x88] sm:$0xf]
      %v3671 = vld [vmem:[%s3075 + $0x8c] sm:$0x1]
      %v3672 = vld [vmem:[%s3075 + $0x90] sm:$0xe]
      %v3673 = vld [vmem:[%s3075 + $0x94] sm:$0xf]
      %v3674 = vld [vmem:[%s3075 + $0x98] sm:$0x1]
      %v3675 = vld [vmem:[%s3075 + $0x9c] sm:$0xe]
      %v3676 = vld [vmem:[%s3075 + $0xa0] sm:$0xf]
      %v3677 = vld [vmem:[%s3075 + $0xa4] sm:$0x1]
      %v3678 = vld [vmem:[%s3075 + $0xa8] sm:$0xe]
      %v3679 = vld [vmem:[%s3075 + $0xac] sm:$0xf]
      %v3680 = vld [vmem:[%s3075 + $0xb0] sm:$0x1]
      %v3681 = vld [vmem:[%s3075 + $0xb4] sm:$0xe]
      %v3682 = vld [vmem:[%s3075 + $0xb8] sm:$0xf]
      %v3683 = vld [vmem:[%s3075 + $0xbc] sm:$0x1]
      %v3732 = vrot.slane %v3636, 5
      %v3733 = vrot.slane %v3732, 4
      %v3734 = vrot.slane %v3637, 5
      %v3735 = vsel %vm2066, %v3733, %v3734
      %v3736 = vrot.slane %v3734, 4
      %v3737 = vrot.slane %v3638, 5
      %v3738 = vsel %vm2066, %v3736, %v3737
      %v3739 = vrot.slane %v3639, 5
      %v3740 = vrot.slane %v3739, 4
      %v3741 = vrot.slane %v3640, 5
      %v3742 = vsel %vm2066, %v3740, %v3741
      %v3743 = vrot.slane %v3741, 4
      %v3744 = vrot.slane %v3641, 5
      %v3745 = vsel %vm2066, %v3743, %v3744
      %v3746 = vrot.slane %v3642, 5
      %v3747 = vrot.slane %v3746, 4
      %v3748 = vrot.slane %v3643, 5
      %v3749 = vsel %vm2066, %v3747, %v3748
      %v3750 = vrot.slane %v3748, 4
      %v3751 = vrot.slane %v3644, 5
      %v3752 = vsel %vm2066, %v3750, %v3751
      %v3753 = vrot.slane %v3645, 5
      %v3754 = vrot.slane %v3753, 4
      %v3755 = vrot.slane %v3646, 5
      %v3756 = vsel %vm2066, %v3754, %v3755
      %v3757 = vrot.slane %v3755, 4
      %v3758 = vrot.slane %v3647, 5
      %v3759 = vsel %vm2066, %v3757, %v3758
      %v3760 = vrot.slane %v3648, 5
      %v3761 = vrot.slane %v3760, 4
      %v3762 = vrot.slane %v3649, 5
      %v3763 = vsel %vm2066, %v3761, %v3762
      %v3764 = vrot.slane %v3762, 4
      %v3765 = vrot.slane %v3650, 5
      %v3766 = vsel %vm2066, %v3764, %v3765
      %v3767 = vrot.slane %v3651, 5
      %v3768 = vrot.slane %v3767, 4
      %v3769 = vrot.slane %v3652, 5
      %v3770 = vsel %vm2066, %v3768, %v3769
      %v3771 = vrot.slane %v3769, 4
      %v3772 = vrot.slane %v3653, 5
      %v3773 = vsel %vm2066, %v3771, %v3772
      %v3774 = vrot.slane %v3654, 5
      %v3775 = vrot.slane %v3774, 4
      %v3776 = vrot.slane %v3655, 5
      %v3777 = vsel %vm2066, %v3775, %v3776
      %v3778 = vrot.slane %v3776, 4
      %v3779 = vrot.slane %v3656, 5
      %v3780 = vsel %vm2066, %v3778, %v3779
      %v3781 = vrot.slane %v3657, 5
      %v3782 = vrot.slane %v3781, 4
      %v3783 = vrot.slane %v3658, 5
      %v3784 = vsel %vm2066, %v3782, %v3783
      %v3785 = vrot.slane %v3783, 4
      %v3786 = vrot.slane %v3659, 5
      %v3787 = vsel %vm2066, %v3785, %v3786
      %v3788 = vrot.slane %v3660, 5
      %v3789 = vrot.slane %v3788, 4
      %v3790 = vrot.slane %v3661, 5
      %v3791 = vsel %vm2066, %v3789, %v3790
      %v3792 = vrot.slane %v3790, 4
      %v3793 = vrot.slane %v3662, 5
      %v3794 = vsel %vm2066, %v3792, %v3793
      %v3795 = vrot.slane %v3663, 5
      %v3796 = vrot.slane %v3795, 4
      %v3797 = vrot.slane %v3664, 5
      %v3798 = vsel %vm2066, %v3796, %v3797
      %v3799 = vrot.slane %v3797, 4
      %v3800 = vrot.slane %v3665, 5
      %v3801 = vsel %vm2066, %v3799, %v3800
      %v3802 = vrot.slane %v3666, 5
      %v3803 = vrot.slane %v3802, 4
      %v3804 = vrot.slane %v3667, 5
      %v3805 = vsel %vm2066, %v3803, %v3804
      %v3806 = vrot.slane %v3804, 4
      %v3807 = vrot.slane %v3668, 5
      %v3808 = vsel %vm2066, %v3806, %v3807
      %v3809 = vrot.slane %v3669, 5
      %v3810 = vrot.slane %v3809, 4
      %v3811 = vrot.slane %v3670, 5
      %v3812 = vsel %vm2066, %v3810, %v3811
      %v3813 = vrot.slane %v3811, 4
      %v3814 = vrot.slane %v3671, 5
      %v3815 = vsel %vm2066, %v3813, %v3814
      %v3816 = vrot.slane %v3672, 5
      %v3817 = vrot.slane %v3816, 4
      %v3818 = vrot.slane %v3673, 5
      %v3819 = vsel %vm2066, %v3817, %v3818
      %v3820 = vrot.slane %v3818, 4
      %v3821 = vrot.slane %v3674, 5
      %v3822 = vsel %vm2066, %v3820, %v3821
      %v3823 = vrot.slane %v3675, 5
      %v3824 = vrot.slane %v3823, 4
      %v3825 = vrot.slane %v3676, 5
      %v3826 = vsel %vm2066, %v3824, %v3825
      %v3827 = vrot.slane %v3825, 4
      %v3828 = vrot.slane %v3677, 5
      %v3829 = vsel %vm2066, %v3827, %v3828
      %v3830 = vrot.slane %v3678, 5
      %v3831 = vrot.slane %v3830, 4
      %v3832 = vrot.slane %v3679, 5
      %v3833 = vsel %vm2066, %v3831, %v3832
      %v3834 = vrot.slane %v3832, 4
      %v3835 = vrot.slane %v3680, 5
      %v3836 = vsel %vm2066, %v3834, %v3835
      %v3837 = vrot.slane %v3681, 5
      %v3838 = vrot.slane %v3837, 4
      %v3839 = vrot.slane %v3682, 5
      %v3840 = vsel %vm2066, %v3838, %v3839
      %v3841 = vrot.slane %v3839, 4
      %v3842 = vrot.slane %v3683, 5
      %v3843 = vsel %vm2066, %v3841, %v3842
      %3876 = vst [vmem:[#allocation3 + $0x20] sm:$0xf] %v3735
      %3877 = vst [vmem:[#allocation3 + $0x44] sm:$0xf] %v3738
      %3878 = vst [vmem:[#allocation3 + $0x68] sm:$0xf] %v3742
      %3879 = vst [vmem:[#allocation3 + $0x8c] sm:$0xf] %v3745
      %3880 = vst [vmem:[#allocation3 + $0xb0] sm:$0xf] %v3749
      %3881 = vst [vmem:[#allocation3 + $0xd4] sm:$0xf] %v3752
      %3882 = vst [vmem:[#allocation3 + $0xf8] sm:$0xf] %v3756
      %3883 = vst [vmem:[#allocation3 + $0x11c] sm:$0xf] %v3759
      %3884 = vst [vmem:[#allocation3 + $0x140] sm:$0xf] %v3763
      %3885 = vst [vmem:[#allocation3 + $0x164] sm:$0xf] %v3766
      %3886 = vst [vmem:[#allocation3 + $0x188] sm:$0xf] %v3770
      %3887 = vst [vmem:[#allocation3 + $0x1ac] sm:$0xf] %v3773
      %3888 = vst [vmem:[#allocation3 + $0x1d0] sm:$0xf] %v3777
      %3889 = vst [vmem:[#allocation3 + $0x1f4] sm:$0xf] %v3780
      %3890 = vst [vmem:[#allocation3 + $0x218] sm:$0xf] %v3784
      %3891 = vst [vmem:[#allocation3 + $0x23c] sm:$0xf] %v3787
      %3892 = vst [vmem:[#allocation3 + $0x260] sm:$0xf] %v3791
      %3893 = vst [vmem:[#allocation3 + $0x284] sm:$0xf] %v3794
      %3894 = vst [vmem:[#allocation3 + $0x2a8] sm:$0xf] %v3798
      %3895 = vst [vmem:[#allocation3 + $0x2cc] sm:$0xf] %v3801
      %3896 = vst [vmem:[#allocation3 + $0x2f0] sm:$0xf] %v3805
      %3897 = vst [vmem:[#allocation3 + $0x314] sm:$0xf] %v3808
      %3898 = vst [vmem:[#allocation3 + $0x338] sm:$0xf] %v3812
      %3899 = vst [vmem:[#allocation3 + $0x35c] sm:$0xf] %v3815
      %3900 = vst [vmem:[#allocation3 + $0x380] sm:$0xf] %v3819
      %3901 = vst [vmem:[#allocation3 + $0x3a4] sm:$0xf] %v3822
      %3902 = vst [vmem:[#allocation3 + $0x3c8] sm:$0xf] %v3826
      %3903 = vst [vmem:[#allocation3 + $0x3ec] sm:$0xf] %v3829
      %3904 = vst [vmem:[#allocation3 + $0x410] sm:$0xf] %v3833
      %3905 = vst [vmem:[#allocation3 + $0x434] sm:$0xf] %v3836
      %3906 = vst [vmem:[#allocation3 + $0x458] sm:$0xf] %v3840
      %3907 = vst [vmem:[#allocation3 + $0x47c] sm:$0xf] %v3843
      %v3908 = vld [vmem:[#allocation3] sm:$0xff]
      %v3909 = vld [vmem:[#allocation3 + $0x8] sm:$0xff]
      %v3910 = vld [vmem:[#allocation3 + $0x10] sm:$0xff]
      %v3911 = vld [vmem:[#allocation3 + $0x18] sm:$0xff]
      %v3912 = vld [vmem:[#allocation3 + $0x20] sm:$0xf]
      %v3913 = vld [vmem:[#allocation3 + $0x24] sm:$0xff]
      %v3914 = vld [vmem:[#allocation3 + $0x2c] sm:$0xff]
      %v3915 = vld [vmem:[#allocation3 + $0x34] sm:$0xff]
      %v3916 = vld [vmem:[#allocation3 + $0x3c] sm:$0xff]
      %v3917 = vld [vmem:[#allocation3 + $0x44] sm:$0xf]
      %v3918 = vld [vmem:[#allocation3 + $0x48] sm:$0xff]
      %v3919 = vld [vmem:[#allocation3 + $0x50] sm:$0xff]
      %v3920 = vld [vmem:[#allocation3 + $0x58] sm:$0xff]
      %v3921 = vld [vmem:[#allocation3 + $0x60] sm:$0xff]
      %v3922 = vld [vmem:[#allocation3 + $0x68] sm:$0xf]
      %v3923 = vld [vmem:[#allocation3 + $0x6c] sm:$0xff]
      %v3924 = vld [vmem:[#allocation3 + $0x74] sm:$0xff]
      %v3925 = vld [vmem:[#allocation3 + $0x7c] sm:$0xff]
      %v3926 = vld [vmem:[#allocation3 + $0x84] sm:$0xff]
      %v3927 = vld [vmem:[#allocation3 + $0x8c] sm:$0xf]
      %v3928 = vld [vmem:[#allocation3 + $0x90] sm:$0xff]
      %v3929 = vld [vmem:[#allocation3 + $0x98] sm:$0xff]
      %v3930 = vld [vmem:[#allocation3 + $0xa0] sm:$0xff]
      %v3931 = vld [vmem:[#allocation3 + $0xa8] sm:$0xff]
      %v3932 = vld [vmem:[#allocation3 + $0xb0] sm:$0xf]
      %v3933 = vld [vmem:[#allocation3 + $0xb4] sm:$0xff]
      %v3934 = vld [vmem:[#allocation3 + $0xbc] sm:$0xff]
      %v3935 = vld [vmem:[#allocation3 + $0xc4] sm:$0xff]
      %v3936 = vld [vmem:[#allocation3 + $0xcc] sm:$0xff]
      %v3937 = vld [vmem:[#allocation3 + $0xd4] sm:$0xf]
      %v3938 = vld [vmem:[#allocation3 + $0xd8] sm:$0xff]
      %v3939 = vld [vmem:[#allocation3 + $0xe0] sm:$0xff]
      %v3940 = vld [vmem:[#allocation3 + $0xe8] sm:$0xff]
      %v3941 = vld [vmem:[#allocation3 + $0xf0] sm:$0xff]
      %v3942 = vld [vmem:[#allocation3 + $0xf8] sm:$0xf]
      %v3943 = vld [vmem:[#allocation3 + $0xfc] sm:$0xff]
      %v3944 = vld [vmem:[#allocation3 + $0x104] sm:$0xff]
      %v3945 = vld [vmem:[#allocation3 + $0x10c] sm:$0xff]
      %v3946 = vld [vmem:[#allocation3 + $0x114] sm:$0xff]
      %v3947 = vld [vmem:[#allocation3 + $0x11c] sm:$0xf]
      %v3948 = vld [vmem:[#allocation3 + $0x120] sm:$0xff]
      %v3949 = vld [vmem:[#allocation3 + $0x128] sm:$0xff]
      %v3950 = vld [vmem:[#allocation3 + $0x130] sm:$0xff]
      %v3951 = vld [vmem:[#allocation3 + $0x138] sm:$0xff]
      %v3952 = vld [vmem:[#allocation3 + $0x140] sm:$0xf]
      %v3953 = vld [vmem:[#allocation3 + $0x144] sm:$0xff]
      %v3954 = vld [vmem:[#allocation3 + $0x14c] sm:$0xff]
      %v3955 = vld [vmem:[#allocation3 + $0x154] sm:$0xff]
      %v3956 = vld [vmem:[#allocation3 + $0x15c] sm:$0xff]
      %v3957 = vld [vmem:[#allocation3 + $0x164] sm:$0xf]
      %v3958 = vld [vmem:[#allocation3 + $0x168] sm:$0xff]
      %v3959 = vld [vmem:[#allocation3 + $0x170] sm:$0xff]
      %v3960 = vld [vmem:[#allocation3 + $0x178] sm:$0xff]
      %v3961 = vld [vmem:[#allocation3 + $0x180] sm:$0xff]
      %v3962 = vld [vmem:[#allocation3 + $0x188] sm:$0xf]
      %v3963 = vld [vmem:[#allocation3 + $0x18c] sm:$0xff]
      %v3964 = vld [vmem:[#allocation3 + $0x194] sm:$0xff]
      %v3965 = vld [vmem:[#allocation3 + $0x19c] sm:$0xff]
      %v3966 = vld [vmem:[#allocation3 + $0x1a4] sm:$0xff]
      %v3967 = vld [vmem:[#allocation3 + $0x1ac] sm:$0xf]
      %v3968 = vld [vmem:[#allocation3 + $0x1b0] sm:$0xff]
      %v3969 = vld [vmem:[#allocation3 + $0x1b8] sm:$0xff]
      %v3970 = vld [vmem:[#allocation3 + $0x1c0] sm:$0xff]
      %v3971 = vld [vmem:[#allocation3 + $0x1c8] sm:$0xff]
      %v3972 = vld [vmem:[#allocation3 + $0x1d0] sm:$0xf]
      %v3973 = vld [vmem:[#allocation3 + $0x1d4] sm:$0xff]
      %v3974 = vld [vmem:[#allocation3 + $0x1dc] sm:$0xff]
      %v3975 = vld [vmem:[#allocation3 + $0x1e4] sm:$0xff]
      %v3976 = vld [vmem:[#allocation3 + $0x1ec] sm:$0xff]
      %v3977 = vld [vmem:[#allocation3 + $0x1f4] sm:$0xf]
      %v3978 = vld [vmem:[#allocation3 + $0x1f8] sm:$0xff]
      %v3979 = vld [vmem:[#allocation3 + $0x200] sm:$0xff]
      %v3980 = vld [vmem:[#allocation3 + $0x208] sm:$0xff]
      %v3981 = vld [vmem:[#allocation3 + $0x210] sm:$0xff]
      %v3982 = vld [vmem:[#allocation3 + $0x218] sm:$0xf]
      %v3983 = vld [vmem:[#allocation3 + $0x21c] sm:$0xff]
      %v3984 = vld [vmem:[#allocation3 + $0x224] sm:$0xff]
      %v3985 = vld [vmem:[#allocation3 + $0x22c] sm:$0xff]
      %v3986 = vld [vmem:[#allocation3 + $0x234] sm:$0xff]
      %v3987 = vld [vmem:[#allocation3 + $0x23c] sm:$0xf]
      %v3988 = vld [vmem:[#allocation3 + $0x240] sm:$0xff]
      %v3989 = vld [vmem:[#allocation3 + $0x248] sm:$0xff]
      %v3990 = vld [vmem:[#allocation3 + $0x250] sm:$0xff]
      %v3991 = vld [vmem:[#allocation3 + $0x258] sm:$0xff]
      %v3992 = vld [vmem:[#allocation3 + $0x260] sm:$0xf]
      %v3993 = vld [vmem:[#allocation3 + $0x264] sm:$0xff]
      %v3994 = vld [vmem:[#allocation3 + $0x26c] sm:$0xff]
      %v3995 = vld [vmem:[#allocation3 + $0x274] sm:$0xff]
      %v3996 = vld [vmem:[#allocation3 + $0x27c] sm:$0xff]
      %v3997 = vld [vmem:[#allocation3 + $0x284] sm:$0xf]
      %v3998 = vld [vmem:[#allocation3 + $0x288] sm:$0xff]
      %v3999 = vld [vmem:[#allocation3 + $0x290] sm:$0xff]
      %v4000 = vld [vmem:[#allocation3 + $0x298] sm:$0xff]
      %v4001 = vld [vmem:[#allocation3 + $0x2a0] sm:$0xff]
      %v4002 = vld [vmem:[#allocation3 + $0x2a8] sm:$0xf]
      %v4003 = vld [vmem:[#allocation3 + $0x2ac] sm:$0xff]
      %v4004 = vld [vmem:[#allocation3 + $0x2b4] sm:$0xff]
      %v4005 = vld [vmem:[#allocation3 + $0x2bc] sm:$0xff]
      %v4006 = vld [vmem:[#allocation3 + $0x2c4] sm:$0xff]
      %v4007 = vld [vmem:[#allocation3 + $0x2cc] sm:$0xf]
      %v4008 = vld [vmem:[#allocation3 + $0x2d0] sm:$0xff]
      %v4009 = vld [vmem:[#allocation3 + $0x2d8] sm:$0xff]
      %v4010 = vld [vmem:[#allocation3 + $0x2e0] sm:$0xff]
      %v4011 = vld [vmem:[#allocation3 + $0x2e8] sm:$0xff]
      %v4012 = vld [vmem:[#allocation3 + $0x2f0] sm:$0xf]
      %v4013 = vld [vmem:[#allocation3 + $0x2f4] sm:$0xff]
      %v4014 = vld [vmem:[#allocation3 + $0x2fc] sm:$0xff]
      %v4015 = vld [vmem:[#allocation3 + $0x304] sm:$0xff]
      %v4016 = vld [vmem:[#allocation3 + $0x30c] sm:$0xff]
      %v4017 = vld [vmem:[#allocation3 + $0x314] sm:$0xf]
      %v4018 = vld [vmem:[#allocation3 + $0x318] sm:$0xff]
      %v4019 = vld [vmem:[#allocation3 + $0x320] sm:$0xff]
      %v4020 = vld [vmem:[#allocation3 + $0x328] sm:$0xff]
      %v4021 = vld [vmem:[#allocation3 + $0x330] sm:$0xff]
      %v4022 = vld [vmem:[#allocation3 + $0x338] sm:$0xf]
      %v4023 = vld [vmem:[#allocation3 + $0x33c] sm:$0xff]
      %v4024 = vld [vmem:[#allocation3 + $0x344] sm:$0xff]
      %v4025 = vld [vmem:[#allocation3 + $0x34c] sm:$0xff]
      %v4026 = vld [vmem:[#allocation3 + $0x354] sm:$0xff]
      %v4027 = vld [vmem:[#allocation3 + $0x35c] sm:$0xf]
      %v4028 = vld [vmem:[#allocation3 + $0x360] sm:$0xff]
      %v4029 = vld [vmem:[#allocation3 + $0x368] sm:$0xff]
      %v4030 = vld [vmem:[#allocation3 + $0x370] sm:$0xff]
      %v4031 = vld [vmem:[#allocation3 + $0x378] sm:$0xff]
      %v4032 = vld [vmem:[#allocation3 + $0x380] sm:$0xf]
      %v4033 = vld [vmem:[#allocation3 + $0x384] sm:$0xff]
      %v4034 = vld [vmem:[#allocation3 + $0x38c] sm:$0xff]
      %v4035 = vld [vmem:[#allocation3 + $0x394] sm:$0xff]
      %v4036 = vld [vmem:[#allocation3 + $0x39c] sm:$0xff]
      %v4037 = vld [vmem:[#allocation3 + $0x3a4] sm:$0xf]
      %v4038 = vld [vmem:[#allocation3 + $0x3a8] sm:$0xff]
      %v4039 = vld [vmem:[#allocation3 + $0x3b0] sm:$0xff]
      %v4040 = vld [vmem:[#allocation3 + $0x3b8] sm:$0xff]
      %v4041 = vld [vmem:[#allocation3 + $0x3c0] sm:$0xff]
      %v4042 = vld [vmem:[#allocation3 + $0x3c8] sm:$0xf]
      %v4043 = vld [vmem:[#allocation3 + $0x3cc] sm:$0xff]
      %v4044 = vld [vmem:[#allocation3 + $0x3d4] sm:$0xff]
      %v4045 = vld [vmem:[#allocation3 + $0x3dc] sm:$0xff]
      %v4046 = vld [vmem:[#allocation3 + $0x3e4] sm:$0xff]
      %v4047 = vld [vmem:[#allocation3 + $0x3ec] sm:$0xf]
      %v4048 = vld [vmem:[#allocation3 + $0x3f0] sm:$0xff]
      %v4049 = vld [vmem:[#allocation3 + $0x3f8] sm:$0xff]
      %v4050 = vld [vmem:[#allocation3 + $0x400] sm:$0xff]
      %v4051 = vld [vmem:[#allocation3 + $0x408] sm:$0xff]
      %v4052 = vld [vmem:[#allocation3 + $0x410] sm:$0xf]
      %v4053 = vld [vmem:[#allocation3 + $0x414] sm:$0xff]
      %v4054 = vld [vmem:[#allocation3 + $0x41c] sm:$0xff]
      %v4055 = vld [vmem:[#allocation3 + $0x424] sm:$0xff]
      %v4056 = vld [vmem:[#allocation3 + $0x42c] sm:$0xff]
      %v4057 = vld [vmem:[#allocation3 + $0x434] sm:$0xf]
      %v4058 = vld [vmem:[#allocation3 + $0x438] sm:$0xff]
      %v4059 = vld [vmem:[#allocation3 + $0x440] sm:$0xff]
      %v4060 = vld [vmem:[#allocation3 + $0x448] sm:$0xff]
      %v4061 = vld [vmem:[#allocation3 + $0x450] sm:$0xff]
      %v4062 = vld [vmem:[#allocation3 + $0x458] sm:$0xf]
      %v4063 = vld [vmem:[#allocation3 + $0x45c] sm:$0xff]
      %v4064 = vld [vmem:[#allocation3 + $0x464] sm:$0xff]
      %v4065 = vld [vmem:[#allocation3 + $0x46c] sm:$0xff]
      %v4066 = vld [vmem:[#allocation3 + $0x474] sm:$0xff]
      %v4067 = vld [vmem:[#allocation3 + $0x47c] sm:$0xf]
      %v4068 = vld [vmem:[%s3] sm:$0xf]
      %v4069 = vld [vmem:[%s3 + $0x4] sm:$0xf]
      %v4070 = vld [vmem:[%s3 + $0x8] sm:$0xf]
      %v4071 = vld [vmem:[%s3 + $0xc] sm:$0xf]
      %v4072 = vld [vmem:[%s3 + $0x10] sm:$0xf]
      %v4073 = vld [vmem:[%s3 + $0x14] sm:$0xf]
      %v4074 = vld [vmem:[%s3 + $0x18] sm:$0xf]
      %v4075 = vld [vmem:[%s3 + $0x1c] sm:$0xf]
      %v4076 = vld [vmem:[%s3 + $0x20] sm:$0xf]
      %v4077 = vld [vmem:[%s3 + $0x24] sm:$0xf]
      %v4078 = vld [vmem:[%s3 + $0x28] sm:$0xf]
      %v4079 = vld [vmem:[%s3 + $0x2c] sm:$0xf]
      %v4080 = vld [vmem:[%s3 + $0x30] sm:$0xf]
      %v4081 = vld [vmem:[%s3 + $0x34] sm:$0xf]
      %v4082 = vld [vmem:[%s3 + $0x38] sm:$0xf]
      %v4083 = vld [vmem:[%s3 + $0x3c] sm:$0xf]
      %v4084 = vld [vmem:[%s3 + $0x40] sm:$0xf]
      %v4085 = vld [vmem:[%s3 + $0x44] sm:$0xf]
      %v4086 = vld [vmem:[%s3 + $0x48] sm:$0xf]
      %v4087 = vld [vmem:[%s3 + $0x4c] sm:$0xf]
      %v4088 = vld [vmem:[%s3 + $0x50] sm:$0xf]
      %v4089 = vld [vmem:[%s3 + $0x54] sm:$0xf]
      %v4090 = vld [vmem:[%s3 + $0x58] sm:$0xf]
      %v4091 = vld [vmem:[%s3 + $0x5c] sm:$0xf]
      %v4092 = vld [vmem:[%s3 + $0x60] sm:$0xf]
      %v4093 = vld [vmem:[%s3 + $0x64] sm:$0xf]
      %v4094 = vld [vmem:[%s3 + $0x68] sm:$0xf]
      %v4095 = vld [vmem:[%s3 + $0x6c] sm:$0xf]
      %v4096 = vld [vmem:[%s3 + $0x70] sm:$0xf]
      %v4097 = vld [vmem:[%s3 + $0x74] sm:$0xf]
      %v4098 = vld [vmem:[%s3 + $0x78] sm:$0xf]
      %v4099 = vld [vmem:[%s3 + $0x7c] sm:$0xf]
      %v4100 = vld [vmem:[%s3 + $0x80] sm:$0xf]
      %v4101 = vld [vmem:[%s3 + $0x84] sm:$0xf]
      %v4102 = vld [vmem:[%s3 + $0x88] sm:$0xf]
      %v4103 = vld [vmem:[%s3 + $0x8c] sm:$0xf]
      %v4104 = vld [vmem:[%s3 + $0x90] sm:$0xf]
      %v4105 = vld [vmem:[%s3 + $0x94] sm:$0xf]
      %v4106 = vld [vmem:[%s3 + $0x98] sm:$0xf]
      %v4107 = vld [vmem:[%s3 + $0x9c] sm:$0xf]
      %v4108 = vld [vmem:[%s3 + $0xa0] sm:$0xf]
      %v4109 = vld [vmem:[%s3 + $0xa4] sm:$0xf]
      %v4110 = vld [vmem:[%s3 + $0xa8] sm:$0xf]
      %v4111 = vld [vmem:[%s3 + $0xac] sm:$0xf]
      %v4112 = vld [vmem:[%s3 + $0xb0] sm:$0xf]
      %v4113 = vld [vmem:[%s3 + $0xb4] sm:$0xf]
      %v4114 = vld [vmem:[%s3 + $0xb8] sm:$0xf]
      %v4115 = vld [vmem:[%s3 + $0xbc] sm:$0xf]
      %v4116 = vld [vmem:[%s3 + $0xc0] sm:$0xf]
      %v4117 = vld [vmem:[%s3 + $0xc4] sm:$0xf]
      %v4118 = vld [vmem:[%s3 + $0xc8] sm:$0xf]
      %v4119 = vld [vmem:[%s3 + $0xcc] sm:$0xf]
      %v4120 = vld [vmem:[%s3 + $0xd0] sm:$0xf]
      %v4121 = vld [vmem:[%s3 + $0xd4] sm:$0xf]
      %v4122 = vld [vmem:[%s3 + $0xd8] sm:$0xf]
      %v4123 = vld [vmem:[%s3 + $0xdc] sm:$0xf]
      %v4124 = vld [vmem:[%s3 + $0xe0] sm:$0xf]
      %v4125 = vld [vmem:[%s3 + $0xe4] sm:$0xf]
      %v4126 = vld [vmem:[%s3 + $0xe8] sm:$0xf]
      %v4127 = vld [vmem:[%s3 + $0xec] sm:$0xf]
      %v4128 = vld [vmem:[%s3 + $0xf0] sm:$0xf]
      %v4129 = vld [vmem:[%s3 + $0xf4] sm:$0xf]
      %v4130 = vld [vmem:[%s3 + $0xf8] sm:$0xf]
      %v4131 = vld [vmem:[%s3 + $0xfc] sm:$0xf]
      %v4132 = vld [vmem:[%s3 + $0x100] sm:$0xf]
      %v4133 = vld [vmem:[%s3 + $0x104] sm:$0xf]
      %v4134 = vld [vmem:[%s3 + $0x108] sm:$0xf]
      %v4135 = vld [vmem:[%s3 + $0x10c] sm:$0xf]
      %v4136 = vld [vmem:[%s3 + $0x110] sm:$0xf]
      %v4137 = vld [vmem:[%s3 + $0x114] sm:$0xf]
      %v4138 = vld [vmem:[%s3 + $0x118] sm:$0xf]
      %v4139 = vld [vmem:[%s3 + $0x11c] sm:$0xf]
      %v4140 = vld [vmem:[%s3 + $0x120] sm:$0xf]
      %v4141 = vld [vmem:[%s3 + $0x124] sm:$0xf]
      %v4142 = vld [vmem:[%s3 + $0x128] sm:$0xf]
      %v4143 = vld [vmem:[%s3 + $0x12c] sm:$0xf]
      %v4144 = vld [vmem:[%s3 + $0x130] sm:$0xf]
      %v4145 = vld [vmem:[%s3 + $0x134] sm:$0xf]
      %v4146 = vld [vmem:[%s3 + $0x138] sm:$0xf]
      %v4147 = vld [vmem:[%s3 + $0x13c] sm:$0xf]
      %v4148 = vld [vmem:[%s3 + $0x140] sm:$0xf]
      %v4149 = vld [vmem:[%s3 + $0x144] sm:$0xf]
      %v4150 = vld [vmem:[%s3 + $0x148] sm:$0xf]
      %v4151 = vld [vmem:[%s3 + $0x14c] sm:$0xf]
      %v4152 = vld [vmem:[%s3 + $0x150] sm:$0xf]
      %v4153 = vld [vmem:[%s3 + $0x154] sm:$0xf]
      %v4154 = vld [vmem:[%s3 + $0x158] sm:$0xf]
      %v4155 = vld [vmem:[%s3 + $0x15c] sm:$0xf]
      %v4156 = vld [vmem:[%s3 + $0x160] sm:$0xf]
      %v4157 = vld [vmem:[%s3 + $0x164] sm:$0xf]
      %v4158 = vld [vmem:[%s3 + $0x168] sm:$0xf]
      %v4159 = vld [vmem:[%s3 + $0x16c] sm:$0xf]
      %v4160 = vld [vmem:[%s3 + $0x170] sm:$0xf]
      %v4161 = vld [vmem:[%s3 + $0x174] sm:$0xf]
      %v4162 = vld [vmem:[%s3 + $0x178] sm:$0xf]
      %v4163 = vld [vmem:[%s3 + $0x17c] sm:$0xf]
      %v4164 = vld [vmem:[%s3 + $0x180] sm:$0xf]
      %v4165 = vld [vmem:[%s3 + $0x184] sm:$0xf]
      %v4166 = vld [vmem:[%s3 + $0x188] sm:$0xf]
      %v4167 = vld [vmem:[%s3 + $0x18c] sm:$0xf]
      %v4168 = vld [vmem:[%s3 + $0x190] sm:$0xf]
      %v4169 = vld [vmem:[%s3 + $0x194] sm:$0xf]
      %v4170 = vld [vmem:[%s3 + $0x198] sm:$0xf]
      %v4171 = vld [vmem:[%s3 + $0x19c] sm:$0xf]
      %v4172 = vld [vmem:[%s3 + $0x1a0] sm:$0xf]
      %v4173 = vld [vmem:[%s3 + $0x1a4] sm:$0xf]
      %v4174 = vld [vmem:[%s3 + $0x1a8] sm:$0xf]
      %v4175 = vld [vmem:[%s3 + $0x1ac] sm:$0xf]
      %v4176 = vld [vmem:[%s3 + $0x1b0] sm:$0xf]
      %v4177 = vld [vmem:[%s3 + $0x1b4] sm:$0xf]
      %v4178 = vld [vmem:[%s3 + $0x1b8] sm:$0xf]
      %v4179 = vld [vmem:[%s3 + $0x1bc] sm:$0xf]
      %v4180 = vld [vmem:[%s3 + $0x1c0] sm:$0xf]
      %v4181 = vld [vmem:[%s3 + $0x1c4] sm:$0xf]
      %v4182 = vld [vmem:[%s3 + $0x1c8] sm:$0xf]
      %v4183 = vld [vmem:[%s3 + $0x1cc] sm:$0xf]
      %v4184 = vld [vmem:[%s3 + $0x1d0] sm:$0xf]
      %v4185 = vld [vmem:[%s3 + $0x1d4] sm:$0xf]
      %v4186 = vld [vmem:[%s3 + $0x1d8] sm:$0xf]
      %v4187 = vld [vmem:[%s3 + $0x1dc] sm:$0xf]
      %v4188 = vld [vmem:[%s3 + $0x1e0] sm:$0xf]
      %v4189 = vld [vmem:[%s3 + $0x1e4] sm:$0xf]
      %v4190 = vld [vmem:[%s3 + $0x1e8] sm:$0xf]
      %v4191 = vld [vmem:[%s3 + $0x1ec] sm:$0xf]
      %v4192 = vld [vmem:[%s3 + $0x1f0] sm:$0xf]
      %v4193 = vld [vmem:[%s3 + $0x1f4] sm:$0xf]
      %v4194 = vld [vmem:[%s3 + $0x1f8] sm:$0xf]
      %v4195 = vld [vmem:[%s3 + $0x1fc] sm:$0xf]
      %v4196 = vld [vmem:[%s3 + $0x200] sm:$0xf]
      %v4197 = vld [vmem:[%s3 + $0x204] sm:$0xf]
      %v4198 = vld [vmem:[%s3 + $0x208] sm:$0xf]
      %v4199 = vld [vmem:[%s3 + $0x20c] sm:$0xf]
      %v4200 = vld [vmem:[%s3 + $0x210] sm:$0xf]
      %v4201 = vld [vmem:[%s3 + $0x214] sm:$0xf]
      %v4202 = vld [vmem:[%s3 + $0x218] sm:$0xf]
      %v4203 = vld [vmem:[%s3 + $0x21c] sm:$0xf]
      %v4204 = vld [vmem:[%s3 + $0x220] sm:$0xf]
      %v4205 = vld [vmem:[%s3 + $0x224] sm:$0xf]
      %v4206 = vld [vmem:[%s3 + $0x228] sm:$0xf]
      %v4207 = vld [vmem:[%s3 + $0x22c] sm:$0xf]
      %v4208 = vld [vmem:[%s3 + $0x230] sm:$0xf]
      %v4209 = vld [vmem:[%s3 + $0x234] sm:$0xf]
      %v4210 = vld [vmem:[%s3 + $0x238] sm:$0xf]
      %v4211 = vld [vmem:[%s3 + $0x23c] sm:$0xf]
      %v4212 = vld [vmem:[%s4] sm:$0x1]
      %v4214 = vlaneseq
      %v4215 = vshrl.u32 %v4214, 7
      %v4216 = vsub.s32 0, %v4215
      %v4217 = vrot.slane %v4212, %v4216
      %v4379 = vunpack.c.l.b16 %v3908
      %v4380 = vunpack.c.h.b16 %v3908
      %v4381 = vunpack.c.l.b16 %v3909
      %v4382 = vunpack.c.h.b16 %v3909
      %v4383 = vunpack.c.l.b16 %v3910
      %v4384 = vunpack.c.h.b16 %v3910
      %v4385 = vunpack.c.l.b16 %v3911
      %v4386 = vunpack.c.h.b16 %v3911
      %v4387 = vunpack.c.l.b16 %v3912
      %v4388 = vunpack.c.l.b16 %v3913
      %v4389 = vunpack.c.h.b16 %v3913
      %v4390 = vunpack.c.l.b16 %v3914
      %v4391 = vunpack.c.h.b16 %v3914
      %v4392 = vunpack.c.l.b16 %v3915
      %v4393 = vunpack.c.h.b16 %v3915
      %v4394 = vunpack.c.l.b16 %v3916
      %v4395 = vunpack.c.h.b16 %v3916
      %v4396 = vunpack.c.l.b16 %v3917
      %v4397 = vunpack.c.l.b16 %v3918
      %v4398 = vunpack.c.h.b16 %v3918
      %v4399 = vunpack.c.l.b16 %v3919
      %v4400 = vunpack.c.h.b16 %v3919
      %v4401 = vunpack.c.l.b16 %v3920
      %v4402 = vunpack.c.h.b16 %v3920
      %v4403 = vunpack.c.l.b16 %v3921
      %v4404 = vunpack.c.h.b16 %v3921
      %v4405 = vunpack.c.l.b16 %v3922
      %v4406 = vunpack.c.l.b16 %v3923
      %v4407 = vunpack.c.h.b16 %v3923
      %v4408 = vunpack.c.l.b16 %v3924
      %v4409 = vunpack.c.h.b16 %v3924
      %v4410 = vunpack.c.l.b16 %v3925
      %v4411 = vunpack.c.h.b16 %v3925
      %v4412 = vunpack.c.l.b16 %v3926
      %v4413 = vunpack.c.h.b16 %v3926
      %v4414 = vunpack.c.l.b16 %v3927
      %v4415 = vunpack.c.l.b16 %v3928
      %v4416 = vunpack.c.h.b16 %v3928
      %v4417 = vunpack.c.l.b16 %v3929
      %v4418 = vunpack.c.h.b16 %v3929
      %v4419 = vunpack.c.l.b16 %v3930
      %v4420 = vunpack.c.h.b16 %v3930
      %v4421 = vunpack.c.l.b16 %v3931
      %v4422 = vunpack.c.h.b16 %v3931
      %v4423 = vunpack.c.l.b16 %v3932
      %v4424 = vunpack.c.l.b16 %v3933
      %v4425 = vunpack.c.h.b16 %v3933
      %v4426 = vunpack.c.l.b16 %v3934
      %v4427 = vunpack.c.h.b16 %v3934
      %v4428 = vunpack.c.l.b16 %v3935
      %v4429 = vunpack.c.h.b16 %v3935
      %v4430 = vunpack.c.l.b16 %v3936
      %v4431 = vunpack.c.h.b16 %v3936
      %v4432 = vunpack.c.l.b16 %v3937
      %v4433 = vunpack.c.l.b16 %v3938
      %v4434 = vunpack.c.h.b16 %v3938
      %v4435 = vunpack.c.l.b16 %v3939
      %v4436 = vunpack.c.h.b16 %v3939
      %v4437 = vunpack.c.l.b16 %v3940
      %v4438 = vunpack.c.h.b16 %v3940
      %v4439 = vunpack.c.l.b16 %v3941
      %v4440 = vunpack.c.h.b16 %v3941
      %v4441 = vunpack.c.l.b16 %v3942
      %v4442 = vunpack.c.l.b16 %v3943
      %v4443 = vunpack.c.h.b16 %v3943
      %v4444 = vunpack.c.l.b16 %v3944
      %v4445 = vunpack.c.h.b16 %v3944
      %v4446 = vunpack.c.l.b16 %v3945
      %v4447 = vunpack.c.h.b16 %v3945
      %v4448 = vunpack.c.l.b16 %v3946
      %v4449 = vunpack.c.h.b16 %v3946
      %v4450 = vunpack.c.l.b16 %v3947
      %v4451 = vunpack.c.l.b16 %v3948
      %v4452 = vunpack.c.h.b16 %v3948
      %v4453 = vunpack.c.l.b16 %v3949
      %v4454 = vunpack.c.h.b16 %v3949
      %v4455 = vunpack.c.l.b16 %v3950
      %v4456 = vunpack.c.h.b16 %v3950
      %v4457 = vunpack.c.l.b16 %v3951
      %v4458 = vunpack.c.h.b16 %v3951
      %v4459 = vunpack.c.l.b16 %v3952
      %v4460 = vunpack.c.l.b16 %v3953
      %v4461 = vunpack.c.h.b16 %v3953
      %v4462 = vunpack.c.l.b16 %v3954
      %v4463 = vunpack.c.h.b16 %v3954
      %v4464 = vunpack.c.l.b16 %v3955
      %v4465 = vunpack.c.h.b16 %v3955
      %v4466 = vunpack.c.l.b16 %v3956
      %v4467 = vunpack.c.h.b16 %v3956
      %v4468 = vunpack.c.l.b16 %v3957
      %v4469 = vunpack.c.l.b16 %v3958
      %v4470 = vunpack.c.h.b16 %v3958
      %v4471 = vunpack.c.l.b16 %v3959
      %v4472 = vunpack.c.h.b16 %v3959
      %v4473 = vunpack.c.l.b16 %v3960
      %v4474 = vunpack.c.h.b16 %v3960
      %v4475 = vunpack.c.l.b16 %v3961
      %v4476 = vunpack.c.h.b16 %v3961
      %v4477 = vunpack.c.l.b16 %v3962
      %v4478 = vunpack.c.l.b16 %v3963
      %v4479 = vunpack.c.h.b16 %v3963
      %v4480 = vunpack.c.l.b16 %v3964
      %v4481 = vunpack.c.h.b16 %v3964
      %v4482 = vunpack.c.l.b16 %v3965
      %v4483 = vunpack.c.h.b16 %v3965
      %v4484 = vunpack.c.l.b16 %v3966
      %v4485 = vunpack.c.h.b16 %v3966
      %v4486 = vunpack.c.l.b16 %v3967
      %v4487 = vunpack.c.l.b16 %v3968
      %v4488 = vunpack.c.h.b16 %v3968
      %v4489 = vunpack.c.l.b16 %v3969
      %v4490 = vunpack.c.h.b16 %v3969
      %v4491 = vunpack.c.l.b16 %v3970
      %v4492 = vunpack.c.h.b16 %v3970
      %v4493 = vunpack.c.l.b16 %v3971
      %v4494 = vunpack.c.h.b16 %v3971
      %v4495 = vunpack.c.l.b16 %v3972
      %v4496 = vunpack.c.l.b16 %v3973
      %v4497 = vunpack.c.h.b16 %v3973
      %v4498 = vunpack.c.l.b16 %v3974
      %v4499 = vunpack.c.h.b16 %v3974
      %v4500 = vunpack.c.l.b16 %v3975
      %v4501 = vunpack.c.h.b16 %v3975
      %v4502 = vunpack.c.l.b16 %v3976
      %v4503 = vunpack.c.h.b16 %v3976
      %v4504 = vunpack.c.l.b16 %v3977
      %v4505 = vunpack.c.l.b16 %v3978
      %v4506 = vunpack.c.h.b16 %v3978
      %v4507 = vunpack.c.l.b16 %v3979
      %v4508 = vunpack.c.h.b16 %v3979
      %v4509 = vunpack.c.l.b16 %v3980
      %v4510 = vunpack.c.h.b16 %v3980
      %v4511 = vunpack.c.l.b16 %v3981
      %v4512 = vunpack.c.h.b16 %v3981
      %v4513 = vunpack.c.l.b16 %v3982
      %v4514 = vunpack.c.l.b16 %v3983
      %v4515 = vunpack.c.h.b16 %v3983
      %v4516 = vunpack.c.l.b16 %v3984
      %v4517 = vunpack.c.h.b16 %v3984
      %v4518 = vunpack.c.l.b16 %v3985
      %v4519 = vunpack.c.h.b16 %v3985
      %v4520 = vunpack.c.l.b16 %v3986
      %v4521 = vunpack.c.h.b16 %v3986
      %v4522 = vunpack.c.l.b16 %v3987
      %v4523 = vunpack.c.l.b16 %v3988
      %v4524 = vunpack.c.h.b16 %v3988
      %v4525 = vunpack.c.l.b16 %v3989
      %v4526 = vunpack.c.h.b16 %v3989
      %v4527 = vunpack.c.l.b16 %v3990
      %v4528 = vunpack.c.h.b16 %v3990
      %v4529 = vunpack.c.l.b16 %v3991
      %v4530 = vunpack.c.h.b16 %v3991
      %v4531 = vunpack.c.l.b16 %v3992
      %v4532 = vunpack.c.l.b16 %v3993
      %v4533 = vunpack.c.h.b16 %v3993
      %v4534 = vunpack.c.l.b16 %v3994
      %v4535 = vunpack.c.h.b16 %v3994
      %v4536 = vunpack.c.l.b16 %v3995
      %v4537 = vunpack.c.h.b16 %v3995
      %v4538 = vunpack.c.l.b16 %v3996
      %v4539 = vunpack.c.h.b16 %v3996
      %v4540 = vunpack.c.l.b16 %v3997
      %v4541 = vunpack.c.l.b16 %v3998
      %v4542 = vunpack.c.h.b16 %v3998
      %v4543 = vunpack.c.l.b16 %v3999
      %v4544 = vunpack.c.h.b16 %v3999
      %v4545 = vunpack.c.l.b16 %v4000
      %v4546 = vunpack.c.h.b16 %v4000
      %v4547 = vunpack.c.l.b16 %v4001
      %v4548 = vunpack.c.h.b16 %v4001
      %v4549 = vunpack.c.l.b16 %v4002
      %v4550 = vunpack.c.l.b16 %v4003
      %v4551 = vunpack.c.h.b16 %v4003
      %v4552 = vunpack.c.l.b16 %v4004
      %v4553 = vunpack.c.h.b16 %v4004
      %v4554 = vunpack.c.l.b16 %v4005
      %v4555 = vunpack.c.h.b16 %v4005
      %v4556 = vunpack.c.l.b16 %v4006
      %v4557 = vunpack.c.h.b16 %v4006
      %v4558 = vunpack.c.l.b16 %v4007
      %v4559 = vunpack.c.l.b16 %v4008
      %v4560 = vunpack.c.h.b16 %v4008
      %v4561 = vunpack.c.l.b16 %v4009
      %v4562 = vunpack.c.h.b16 %v4009
      %v4563 = vunpack.c.l.b16 %v4010
      %v4564 = vunpack.c.h.b16 %v4010
      %v4565 = vunpack.c.l.b16 %v4011
      %v4566 = vunpack.c.h.b16 %v4011
      %v4567 = vunpack.c.l.b16 %v4012
      %v4568 = vunpack.c.l.b16 %v4013
      %v4569 = vunpack.c.h.b16 %v4013
      %v4570 = vunpack.c.l.b16 %v4014
      %v4571 = vunpack.c.h.b16 %v4014
      %v4572 = vunpack.c.l.b16 %v4015
      %v4573 = vunpack.c.h.b16 %v4015
      %v4574 = vunpack.c.l.b16 %v4016
      %v4575 = vunpack.c.h.b16 %v4016
      %v4576 = vunpack.c.l.b16 %v4017
      %v4577 = vunpack.c.l.b16 %v4018
      %v4578 = vunpack.c.h.b16 %v4018
      %v4579 = vunpack.c.l.b16 %v4019
      %v4580 = vunpack.c.h.b16 %v4019
      %v4581 = vunpack.c.l.b16 %v4020
      %v4582 = vunpack.c.h.b16 %v4020
      %v4583 = vunpack.c.l.b16 %v4021
      %v4584 = vunpack.c.h.b16 %v4021
      %v4585 = vunpack.c.l.b16 %v4022
      %v4586 = vunpack.c.l.b16 %v4023
      %v4587 = vunpack.c.h.b16 %v4023
      %v4588 = vunpack.c.l.b16 %v4024
      %v4589 = vunpack.c.h.b16 %v4024
      %v4590 = vunpack.c.l.b16 %v4025
      %v4591 = vunpack.c.h.b16 %v4025
      %v4592 = vunpack.c.l.b16 %v4026
      %v4593 = vunpack.c.h.b16 %v4026
      %v4594 = vunpack.c.l.b16 %v4027
      %v4595 = vunpack.c.l.b16 %v4028
      %v4596 = vunpack.c.h.b16 %v4028
      %v4597 = vunpack.c.l.b16 %v4029
      %v4598 = vunpack.c.h.b16 %v4029
      %v4599 = vunpack.c.l.b16 %v4030
      %v4600 = vunpack.c.h.b16 %v4030
      %v4601 = vunpack.c.l.b16 %v4031
      %v4602 = vunpack.c.h.b16 %v4031
      %v4603 = vunpack.c.l.b16 %v4032
      %v4604 = vunpack.c.l.b16 %v4033
      %v4605 = vunpack.c.h.b16 %v4033
      %v4606 = vunpack.c.l.b16 %v4034
      %v4607 = vunpack.c.h.b16 %v4034
      %v4608 = vunpack.c.l.b16 %v4035
      %v4609 = vunpack.c.h.b16 %v4035
      %v4610 = vunpack.c.l.b16 %v4036
      %v4611 = vunpack.c.h.b16 %v4036
      %v4612 = vunpack.c.l.b16 %v4037
      %v4613 = vunpack.c.l.b16 %v4038
      %v4614 = vunpack.c.h.b16 %v4038
      %v4615 = vunpack.c.l.b16 %v4039
      %v4616 = vunpack.c.h.b16 %v4039
      %v4617 = vunpack.c.l.b16 %v4040
      %v4618 = vunpack.c.h.b16 %v4040
      %v4619 = vunpack.c.l.b16 %v4041
      %v4620 = vunpack.c.h.b16 %v4041
      %v4621 = vunpack.c.l.b16 %v4042
      %v4622 = vunpack.c.l.b16 %v4043
      %v4623 = vunpack.c.h.b16 %v4043
      %v4624 = vunpack.c.l.b16 %v4044
      %v4625 = vunpack.c.h.b16 %v4044
      %v4626 = vunpack.c.l.b16 %v4045
      %v4627 = vunpack.c.h.b16 %v4045
      %v4628 = vunpack.c.l.b16 %v4046
      %v4629 = vunpack.c.h.b16 %v4046
      %v4630 = vunpack.c.l.b16 %v4047
      %v4631 = vunpack.c.l.b16 %v4048
      %v4632 = vunpack.c.h.b16 %v4048
      %v4633 = vunpack.c.l.b16 %v4049
      %v4634 = vunpack.c.h.b16 %v4049
      %v4635 = vunpack.c.l.b16 %v4050
      %v4636 = vunpack.c.h.b16 %v4050
      %v4637 = vunpack.c.l.b16 %v4051
      %v4638 = vunpack.c.h.b16 %v4051
      %v4639 = vunpack.c.l.b16 %v4052
      %v4640 = vunpack.c.l.b16 %v4053
      %v4641 = vunpack.c.h.b16 %v4053
      %v4642 = vunpack.c.l.b16 %v4054
      %v4643 = vunpack.c.h.b16 %v4054
      %v4644 = vunpack.c.l.b16 %v4055
      %v4645 = vunpack.c.h.b16 %v4055
      %v4646 = vunpack.c.l.b16 %v4056
      %v4647 = vunpack.c.h.b16 %v4056
      %v4648 = vunpack.c.l.b16 %v4057
      %v4649 = vunpack.c.l.b16 %v4058
      %v4650 = vunpack.c.h.b16 %v4058
      %v4651 = vunpack.c.l.b16 %v4059
      %v4652 = vunpack.c.h.b16 %v4059
      %v4653 = vunpack.c.l.b16 %v4060
      %v4654 = vunpack.c.h.b16 %v4060
      %v4655 = vunpack.c.l.b16 %v4061
      %v4656 = vunpack.c.h.b16 %v4061
      %v4657 = vunpack.c.l.b16 %v4062
      %v4658 = vunpack.c.l.b16 %v4063
      %v4659 = vunpack.c.h.b16 %v4063
      %v4660 = vunpack.c.l.b16 %v4064
      %v4661 = vunpack.c.h.b16 %v4064
      %v4662 = vunpack.c.l.b16 %v4065
      %v4663 = vunpack.c.h.b16 %v4065
      %v4664 = vunpack.c.l.b16 %v4066
      %v4665 = vunpack.c.h.b16 %v4066
      %v4666 = vunpack.c.l.b16 %v4067
      %v4667 = vpack.c.b16 %v4388, %v4379
      %v4668 = vpack.c.b16 %v4389, %v4380
      %v4669 = vpack.c.b16 %v4390, %v4381
      %v4670 = vpack.c.b16 %v4391, %v4382
      %v4671 = vpack.c.b16 %v4392, %v4383
      %v4672 = vpack.c.b16 %v4393, %v4384
      %v4673 = vpack.c.b16 %v4394, %v4385
      %v4674 = vpack.c.b16 %v4395, %v4386
      %v4675 = vpack.c.b16 %v4396, %v4387
      %v4676 = vpack.c.b16 %v4406, %v4397
      %v4677 = vpack.c.b16 %v4407, %v4398
      %v4678 = vpack.c.b16 %v4408, %v4399
      %v4679 = vpack.c.b16 %v4409, %v4400
      %v4680 = vpack.c.b16 %v4410, %v4401
      %v4681 = vpack.c.b16 %v4411, %v4402
      %v4682 = vpack.c.b16 %v4412, %v4403
      %v4683 = vpack.c.b16 %v4413, %v4404
      %v4684 = vpack.c.b16 %v4414, %v4405
      %v4685 = vpack.c.b16 %v4424, %v4415
      %v4686 = vpack.c.b16 %v4425, %v4416
      %v4687 = vpack.c.b16 %v4426, %v4417
      %v4688 = vpack.c.b16 %v4427, %v4418
      %v4689 = vpack.c.b16 %v4428, %v4419
      %v4690 = vpack.c.b16 %v4429, %v4420
      %v4691 = vpack.c.b16 %v4430, %v4421
      %v4692 = vpack.c.b16 %v4431, %v4422
      %v4693 = vpack.c.b16 %v4432, %v4423
      %v4694 = vpack.c.b16 %v4442, %v4433
      %v4695 = vpack.c.b16 %v4443, %v4434
      %v4696 = vpack.c.b16 %v4444, %v4435
      %v4697 = vpack.c.b16 %v4445, %v4436
      %v4698 = vpack.c.b16 %v4446, %v4437
      %v4699 = vpack.c.b16 %v4447, %v4438
      %v4700 = vpack.c.b16 %v4448, %v4439
      %v4701 = vpack.c.b16 %v4449, %v4440
      %v4702 = vpack.c.b16 %v4450, %v4441
      %v4703 = vpack.c.b16 %v4460, %v4451
      %v4704 = vpack.c.b16 %v4461, %v4452
      %v4705 = vpack.c.b16 %v4462, %v4453
      %v4706 = vpack.c.b16 %v4463, %v4454
      %v4707 = vpack.c.b16 %v4464, %v4455
      %v4708 = vpack.c.b16 %v4465, %v4456
      %v4709 = vpack.c.b16 %v4466, %v4457
      %v4710 = vpack.c.b16 %v4467, %v4458
      %v4711 = vpack.c.b16 %v4468, %v4459
      %v4712 = vpack.c.b16 %v4478, %v4469
      %v4713 = vpack.c.b16 %v4479, %v4470
      %v4714 = vpack.c.b16 %v4480, %v4471
      %v4715 = vpack.c.b16 %v4481, %v4472
      %v4716 = vpack.c.b16 %v4482, %v4473
      %v4717 = vpack.c.b16 %v4483, %v4474
      %v4718 = vpack.c.b16 %v4484, %v4475
      %v4719 = vpack.c.b16 %v4485, %v4476
      %v4720 = vpack.c.b16 %v4486, %v4477
      %v4721 = vpack.c.b16 %v4496, %v4487
      %v4722 = vpack.c.b16 %v4497, %v4488
      %v4723 = vpack.c.b16 %v4498, %v4489
      %v4724 = vpack.c.b16 %v4499, %v4490
      %v4725 = vpack.c.b16 %v4500, %v4491
      %v4726 = vpack.c.b16 %v4501, %v4492
      %v4727 = vpack.c.b16 %v4502, %v4493
      %v4728 = vpack.c.b16 %v4503, %v4494
      %v4729 = vpack.c.b16 %v4504, %v4495
      %v4730 = vpack.c.b16 %v4514, %v4505
      %v4731 = vpack.c.b16 %v4515, %v4506
      %v4732 = vpack.c.b16 %v4516, %v4507
      %v4733 = vpack.c.b16 %v4517, %v4508
      %v4734 = vpack.c.b16 %v4518, %v4509
      %v4735 = vpack.c.b16 %v4519, %v4510
      %v4736 = vpack.c.b16 %v4520, %v4511
      %v4737 = vpack.c.b16 %v4521, %v4512
      %v4738 = vpack.c.b16 %v4522, %v4513
      %v4739 = vpack.c.b16 %v4532, %v4523
      %v4740 = vpack.c.b16 %v4533, %v4524
      %v4741 = vpack.c.b16 %v4534, %v4525
      %v4742 = vpack.c.b16 %v4535, %v4526
      %v4743 = vpack.c.b16 %v4536, %v4527
      %v4744 = vpack.c.b16 %v4537, %v4528
      %v4745 = vpack.c.b16 %v4538, %v4529
      %v4746 = vpack.c.b16 %v4539, %v4530
      %v4747 = vpack.c.b16 %v4540, %v4531
      %v4748 = vpack.c.b16 %v4550, %v4541
      %v4749 = vpack.c.b16 %v4551, %v4542
      %v4750 = vpack.c.b16 %v4552, %v4543
      %v4751 = vpack.c.b16 %v4553, %v4544
      %v4752 = vpack.c.b16 %v4554, %v4545
      %v4753 = vpack.c.b16 %v4555, %v4546
      %v4754 = vpack.c.b16 %v4556, %v4547
      %v4755 = vpack.c.b16 %v4557, %v4548
      %v4756 = vpack.c.b16 %v4558, %v4549
      %v4757 = vpack.c.b16 %v4568, %v4559
      %v4758 = vpack.c.b16 %v4569, %v4560
      %v4759 = vpack.c.b16 %v4570, %v4561
      %v4760 = vpack.c.b16 %v4571, %v4562
      %v4761 = vpack.c.b16 %v4572, %v4563
      %v4762 = vpack.c.b16 %v4573, %v4564
      %v4763 = vpack.c.b16 %v4574, %v4565
      %v4764 = vpack.c.b16 %v4575, %v4566
      %v4765 = vpack.c.b16 %v4576, %v4567
      %v4766 = vpack.c.b16 %v4586, %v4577
      %v4767 = vpack.c.b16 %v4587, %v4578
      %v4768 = vpack.c.b16 %v4588, %v4579
      %v4769 = vpack.c.b16 %v4589, %v4580
      %v4770 = vpack.c.b16 %v4590, %v4581
      %v4771 = vpack.c.b16 %v4591, %v4582
      %v4772 = vpack.c.b16 %v4592, %v4583
      %v4773 = vpack.c.b16 %v4593, %v4584
      %v4774 = vpack.c.b16 %v4594, %v4585
      %v4775 = vpack.c.b16 %v4604, %v4595
      %v4776 = vpack.c.b16 %v4605, %v4596
      %v4777 = vpack.c.b16 %v4606, %v4597
      %v4778 = vpack.c.b16 %v4607, %v4598
      %v4779 = vpack.c.b16 %v4608, %v4599
      %v4780 = vpack.c.b16 %v4609, %v4600
      %v4781 = vpack.c.b16 %v4610, %v4601
      %v4782 = vpack.c.b16 %v4611, %v4602
      %v4783 = vpack.c.b16 %v4612, %v4603
      %v4784 = vpack.c.b16 %v4622, %v4613
      %v4785 = vpack.c.b16 %v4623, %v4614
      %v4786 = vpack.c.b16 %v4624, %v4615
      %v4787 = vpack.c.b16 %v4625, %v4616
      %v4788 = vpack.c.b16 %v4626, %v4617
      %v4789 = vpack.c.b16 %v4627, %v4618
      %v4790 = vpack.c.b16 %v4628, %v4619
      %v4791 = vpack.c.b16 %v4629, %v4620
      %v4792 = vpack.c.b16 %v4630, %v4621
      %v4793 = vpack.c.b16 %v4640, %v4631
      %v4794 = vpack.c.b16 %v4641, %v4632
      %v4795 = vpack.c.b16 %v4642, %v4633
      %v4796 = vpack.c.b16 %v4643, %v4634
      %v4797 = vpack.c.b16 %v4644, %v4635
      %v4798 = vpack.c.b16 %v4645, %v4636
      %v4799 = vpack.c.b16 %v4646, %v4637
      %v4800 = vpack.c.b16 %v4647, %v4638
      %v4801 = vpack.c.b16 %v4648, %v4639
      %v4802 = vpack.c.b16 %v4658, %v4649
      %v4803 = vpack.c.b16 %v4659, %v4650
      %v4804 = vpack.c.b16 %v4660, %v4651
      %v4805 = vpack.c.b16 %v4661, %v4652
      %v4806 = vpack.c.b16 %v4662, %v4653
      %v4807 = vpack.c.b16 %v4663, %v4654
      %v4808 = vpack.c.b16 %v4664, %v4655
      %v4809 = vpack.c.b16 %v4665, %v4656
      %v4810 = vpack.c.b16 %v4666, %v4657
      %v5099 = vunpack.c.l.b16 %v4068
      %v5100 = vunpack.c.l.b16 %v4069
      %v5101 = vunpack.c.l.b16 %v4070
      %v5102 = vunpack.c.l.b16 %v4071
      %v5103 = vunpack.c.l.b16 %v4072
      %v5104 = vunpack.c.l.b16 %v4073
      %v5105 = vunpack.c.l.b16 %v4074
      %v5106 = vunpack.c.l.b16 %v4075
      %v5107 = vunpack.c.l.b16 %v4076
      %v5108 = vunpack.c.l.b16 %v4077
      %v5109 = vunpack.c.l.b16 %v4078
      %v5110 = vunpack.c.l.b16 %v4079
      %v5111 = vunpack.c.l.b16 %v4080
      %v5112 = vunpack.c.l.b16 %v4081
      %v5113 = vunpack.c.l.b16 %v4082
      %v5114 = vunpack.c.l.b16 %v4083
      %v5115 = vunpack.c.l.b16 %v4084
      %v5116 = vunpack.c.l.b16 %v4085
      %v5117 = vunpack.c.l.b16 %v4086
      %v5118 = vunpack.c.l.b16 %v4087
      %v5119 = vunpack.c.l.b16 %v4088
      %v5120 = vunpack.c.l.b16 %v4089
      %v5121 = vunpack.c.l.b16 %v4090
      %v5122 = vunpack.c.l.b16 %v4091
      %v5123 = vunpack.c.l.b16 %v4092
      %v5124 = vunpack.c.l.b16 %v4093
      %v5125 = vunpack.c.l.b16 %v4094
      %v5126 = vunpack.c.l.b16 %v4095
      %v5127 = vunpack.c.l.b16 %v4096
      %v5128 = vunpack.c.l.b16 %v4097
      %v5129 = vunpack.c.l.b16 %v4098
      %v5130 = vunpack.c.l.b16 %v4099
      %v5131 = vunpack.c.l.b16 %v4100
      %v5132 = vunpack.c.l.b16 %v4101
      %v5133 = vunpack.c.l.b16 %v4102
      %v5134 = vunpack.c.l.b16 %v4103
      %v5135 = vunpack.c.l.b16 %v4104
      %v5136 = vunpack.c.l.b16 %v4105
      %v5137 = vunpack.c.l.b16 %v4106
      %v5138 = vunpack.c.l.b16 %v4107
      %v5139 = vunpack.c.l.b16 %v4108
      %v5140 = vunpack.c.l.b16 %v4109
      %v5141 = vunpack.c.l.b16 %v4110
      %v5142 = vunpack.c.l.b16 %v4111
      %v5143 = vunpack.c.l.b16 %v4112
      %v5144 = vunpack.c.l.b16 %v4113
      %v5145 = vunpack.c.l.b16 %v4114
      %v5146 = vunpack.c.l.b16 %v4115
      %v5147 = vunpack.c.l.b16 %v4116
      %v5148 = vunpack.c.l.b16 %v4117
      %v5149 = vunpack.c.l.b16 %v4118
      %v5150 = vunpack.c.l.b16 %v4119
      %v5151 = vunpack.c.l.b16 %v4120
      %v5152 = vunpack.c.l.b16 %v4121
      %v5153 = vunpack.c.l.b16 %v4122
      %v5154 = vunpack.c.l.b16 %v4123
      %v5155 = vunpack.c.l.b16 %v4124
      %v5156 = vunpack.c.l.b16 %v4125
      %v5157 = vunpack.c.l.b16 %v4126
      %v5158 = vunpack.c.l.b16 %v4127
      %v5159 = vunpack.c.l.b16 %v4128
      %v5160 = vunpack.c.l.b16 %v4129
      %v5161 = vunpack.c.l.b16 %v4130
      %v5162 = vunpack.c.l.b16 %v4131
      %v5163 = vunpack.c.l.b16 %v4132
      %v5164 = vunpack.c.l.b16 %v4133
      %v5165 = vunpack.c.l.b16 %v4134
      %v5166 = vunpack.c.l.b16 %v4135
      %v5167 = vunpack.c.l.b16 %v4136
      %v5168 = vunpack.c.l.b16 %v4137
      %v5169 = vunpack.c.l.b16 %v4138
      %v5170 = vunpack.c.l.b16 %v4139
      %v5171 = vunpack.c.l.b16 %v4140
      %v5172 = vunpack.c.l.b16 %v4141
      %v5173 = vunpack.c.l.b16 %v4142
      %v5174 = vunpack.c.l.b16 %v4143
      %v5175 = vunpack.c.l.b16 %v4144
      %v5176 = vunpack.c.l.b16 %v4145
      %v5177 = vunpack.c.l.b16 %v4146
      %v5178 = vunpack.c.l.b16 %v4147
      %v5179 = vunpack.c.l.b16 %v4148
      %v5180 = vunpack.c.l.b16 %v4149
      %v5181 = vunpack.c.l.b16 %v4150
      %v5182 = vunpack.c.l.b16 %v4151
      %v5183 = vunpack.c.l.b16 %v4152
      %v5184 = vunpack.c.l.b16 %v4153
      %v5185 = vunpack.c.l.b16 %v4154
      %v5186 = vunpack.c.l.b16 %v4155
      %v5187 = vunpack.c.l.b16 %v4156
      %v5188 = vunpack.c.l.b16 %v4157
      %v5189 = vunpack.c.l.b16 %v4158
      %v5190 = vunpack.c.l.b16 %v4159
      %v5191 = vunpack.c.l.b16 %v4160
      %v5192 = vunpack.c.l.b16 %v4161
      %v5193 = vunpack.c.l.b16 %v4162
      %v5194 = vunpack.c.l.b16 %v4163
      %v5195 = vunpack.c.l.b16 %v4164
      %v5196 = vunpack.c.l.b16 %v4165
      %v5197 = vunpack.c.l.b16 %v4166
      %v5198 = vunpack.c.l.b16 %v4167
      %v5199 = vunpack.c.l.b16 %v4168
      %v5200 = vunpack.c.l.b16 %v4169
      %v5201 = vunpack.c.l.b16 %v4170
      %v5202 = vunpack.c.l.b16 %v4171
      %v5203 = vunpack.c.l.b16 %v4172
      %v5204 = vunpack.c.l.b16 %v4173
      %v5205 = vunpack.c.l.b16 %v4174
      %v5206 = vunpack.c.l.b16 %v4175
      %v5207 = vunpack.c.l.b16 %v4176
      %v5208 = vunpack.c.l.b16 %v4177
      %v5209 = vunpack.c.l.b16 %v4178
      %v5210 = vunpack.c.l.b16 %v4179
      %v5211 = vunpack.c.l.b16 %v4180
      %v5212 = vunpack.c.l.b16 %v4181
      %v5213 = vunpack.c.l.b16 %v4182
      %v5214 = vunpack.c.l.b16 %v4183
      %v5215 = vunpack.c.l.b16 %v4184
      %v5216 = vunpack.c.l.b16 %v4185
      %v5217 = vunpack.c.l.b16 %v4186
      %v5218 = vunpack.c.l.b16 %v4187
      %v5219 = vunpack.c.l.b16 %v4188
      %v5220 = vunpack.c.l.b16 %v4189
      %v5221 = vunpack.c.l.b16 %v4190
      %v5222 = vunpack.c.l.b16 %v4191
      %v5223 = vunpack.c.l.b16 %v4192
      %v5224 = vunpack.c.l.b16 %v4193
      %v5225 = vunpack.c.l.b16 %v4194
      %v5226 = vunpack.c.l.b16 %v4195
      %v5227 = vunpack.c.l.b16 %v4196
      %v5228 = vunpack.c.l.b16 %v4197
      %v5229 = vunpack.c.l.b16 %v4198
      %v5230 = vunpack.c.l.b16 %v4199
      %v5231 = vunpack.c.l.b16 %v4200
      %v5232 = vunpack.c.l.b16 %v4201
      %v5233 = vunpack.c.l.b16 %v4202
      %v5234 = vunpack.c.l.b16 %v4203
      %v5235 = vunpack.c.l.b16 %v4204
      %v5236 = vunpack.c.l.b16 %v4205
      %v5237 = vunpack.c.l.b16 %v4206
      %v5238 = vunpack.c.l.b16 %v4207
      %v5239 = vunpack.c.l.b16 %v4208
      %v5240 = vunpack.c.l.b16 %v4209
      %v5241 = vunpack.c.l.b16 %v4210
      %v5242 = vunpack.c.l.b16 %v4211
      %v5243 = vpack.c.b16 %v5100, %v5099
      %v5244 = vpack.c.b16 %v5102, %v5101
      %v5245 = vpack.c.b16 %v5104, %v5103
      %v5246 = vpack.c.b16 %v5106, %v5105
      %v5247 = vpack.c.b16 %v5108, %v5107
      %v5248 = vpack.c.b16 %v5110, %v5109
      %v5249 = vpack.c.b16 %v5112, %v5111
      %v5250 = vpack.c.b16 %v5114, %v5113
      %v5251 = vpack.c.b16 %v5116, %v5115
      %v5252 = vpack.c.b16 %v5118, %v5117
      %v5253 = vpack.c.b16 %v5120, %v5119
      %v5254 = vpack.c.b16 %v5122, %v5121
      %v5255 = vpack.c.b16 %v5124, %v5123
      %v5256 = vpack.c.b16 %v5126, %v5125
      %v5257 = vpack.c.b16 %v5128, %v5127
      %v5258 = vpack.c.b16 %v5130, %v5129
      %v5259 = vpack.c.b16 %v5132, %v5131
      %v5260 = vpack.c.b16 %v5134, %v5133
      %v5261 = vpack.c.b16 %v5136, %v5135
      %v5262 = vpack.c.b16 %v5138, %v5137
      %v5263 = vpack.c.b16 %v5140, %v5139
      %v5264 = vpack.c.b16 %v5142, %v5141
      %v5265 = vpack.c.b16 %v5144, %v5143
      %v5266 = vpack.c.b16 %v5146, %v5145
      %v5267 = vpack.c.b16 %v5148, %v5147
      %v5268 = vpack.c.b16 %v5150, %v5149
      %v5269 = vpack.c.b16 %v5152, %v5151
      %v5270 = vpack.c.b16 %v5154, %v5153
      %v5271 = vpack.c.b16 %v5156, %v5155
      %v5272 = vpack.c.b16 %v5158, %v5157
      %v5273 = vpack.c.b16 %v5160, %v5159
      %v5274 = vpack.c.b16 %v5162, %v5161
      %v5275 = vpack.c.b16 %v5164, %v5163
      %v5276 = vpack.c.b16 %v5166, %v5165
      %v5277 = vpack.c.b16 %v5168, %v5167
      %v5278 = vpack.c.b16 %v5170, %v5169
      %v5279 = vpack.c.b16 %v5172, %v5171
      %v5280 = vpack.c.b16 %v5174, %v5173
      %v5281 = vpack.c.b16 %v5176, %v5175
      %v5282 = vpack.c.b16 %v5178, %v5177
      %v5283 = vpack.c.b16 %v5180, %v5179
      %v5284 = vpack.c.b16 %v5182, %v5181
      %v5285 = vpack.c.b16 %v5184, %v5183
      %v5286 = vpack.c.b16 %v5186, %v5185
      %v5287 = vpack.c.b16 %v5188, %v5187
      %v5288 = vpack.c.b16 %v5190, %v5189
      %v5289 = vpack.c.b16 %v5192, %v5191
      %v5290 = vpack.c.b16 %v5194, %v5193
      %v5291 = vpack.c.b16 %v5196, %v5195
      %v5292 = vpack.c.b16 %v5198, %v5197
      %v5293 = vpack.c.b16 %v5200, %v5199
      %v5294 = vpack.c.b16 %v5202, %v5201
      %v5295 = vpack.c.b16 %v5204, %v5203
      %v5296 = vpack.c.b16 %v5206, %v5205
      %v5297 = vpack.c.b16 %v5208, %v5207
      %v5298 = vpack.c.b16 %v5210, %v5209
      %v5299 = vpack.c.b16 %v5212, %v5211
      %v5300 = vpack.c.b16 %v5214, %v5213
      %v5301 = vpack.c.b16 %v5216, %v5215
      %v5302 = vpack.c.b16 %v5218, %v5217
      %v5303 = vpack.c.b16 %v5220, %v5219
      %v5304 = vpack.c.b16 %v5222, %v5221
      %v5305 = vpack.c.b16 %v5224, %v5223
      %v5306 = vpack.c.b16 %v5226, %v5225
      %v5307 = vpack.c.b16 %v5228, %v5227
      %v5308 = vpack.c.b16 %v5230, %v5229
      %v5309 = vpack.c.b16 %v5232, %v5231
      %v5310 = vpack.c.b16 %v5234, %v5233
      %v5311 = vpack.c.b16 %v5236, %v5235
      %v5312 = vpack.c.b16 %v5238, %v5237
      %v5313 = vpack.c.b16 %v5240, %v5239
      %v5314 = vpack.c.b16 %v5242, %v5241
      %5387 = vmatprep.subr.bf16.mxu0 0
      %5388 = vmatpush1.bf16.msra.mxu0 %v5250
      %5389 = vmatprep.subr.bf16.mxu0 0
      %5390 = vmatpush1.bf16.msra.mxu0 %v5249
      %5391 = vmatprep.subr.bf16.mxu0 0
      %5392 = vmatpush1.bf16.msra.mxu0 %v5248
      %5393 = vmatprep.subr.bf16.mxu0 0
      %5394 = vmatpush1.bf16.msra.mxu0 %v5247
      %5395 = vmatprep.subr.bf16.mxu0 0
      %5396 = vmatpush1.bf16.msra.mxu0 %v5246
      %5397 = vmatprep.subr.bf16.mxu0 0
      %5398 = vmatpush1.bf16.msra.mxu0 %v5245
      %5399 = vmatprep.subr.bf16.mxu0 0
      %5400 = vmatpush1.bf16.msra.mxu0 %v5244
      %5401 = vmatprep.subr.bf16.mxu0 0
      %5402 = vmatpush1.bf16.msra.mxu0 %v5243
      %5403 = vmatprep.subr.bf16.mxu0 0
      %5404 = vmatpush2.bf16.msra.mxu0 %v5258
      %5405 = vmatprep.subr.bf16.mxu0 0
      %5406 = vmatpush2.bf16.msra.mxu0 %v5257
      %5407 = vmatprep.subr.bf16.mxu0 0
      %5408 = vmatpush2.bf16.msra.mxu0 %v5256
      %5409 = vmatprep.subr.bf16.mxu0 0
      %5410 = vmatpush2.bf16.msra.mxu0 %v5255
      %5411 = vmatprep.subr.bf16.mxu0 0
      %5412 = vmatpush2.bf16.msra.mxu0 %v5254
      %5413 = vmatprep.subr.bf16.mxu0 0
      %5414 = vmatpush2.bf16.msra.mxu0 %v5253
      %5415 = vmatprep.subr.bf16.mxu0 0
      %5416 = vmatpush2.bf16.msra.mxu0 %v5252
      %5417 = vmatprep.subr.bf16.mxu0 0
      %5418 = vmatpush2.bf16.msra.mxu0 %v5251
      %5419 = vmatprep.mubr.bf16.mxu0 %v4668
      %5420 = vmatmul.mubr.bf16.gmra.mxu0 %v4667
      %v5421 = vpop.f32.mrf.mxu0
      %v5422 = vadd.f32 %v4217, %v5421
      %v5423 = vpop.f32.mrf.mxu0
      %v5424 = vpop.f32.mrf.mxu0
      %v5425 = vadd.f32 %v4217, %v5424
      %v5426 = vpop.f32.mrf.mxu0
      %5427 = vmatprep.mubr.bf16.mxu0 %v4677
      %5428 = vmatmul.mubr.bf16.gmra.mxu0 %v4676
      %v5429 = vpop.f32.mrf.mxu0
      %v5430 = vadd.f32 %v4217, %v5429
      %v5431 = vpop.f32.mrf.mxu0
      %v5432 = vpop.f32.mrf.mxu0
      %v5433 = vadd.f32 %v4217, %v5432
      %v5434 = vpop.f32.mrf.mxu0
      %5435 = vmatprep.mubr.bf16.mxu0 %v4686
      %5436 = vmatmul.mubr.bf16.gmra.mxu0 %v4685
      %v5437 = vpop.f32.mrf.mxu0
      %v5438 = vadd.f32 %v4217, %v5437
      %v5439 = vpop.f32.mrf.mxu0
      %v5440 = vpop.f32.mrf.mxu0
      %v5441 = vadd.f32 %v4217, %v5440
      %v5442 = vpop.f32.mrf.mxu0
      %5443 = vmatprep.mubr.bf16.mxu0 %v4695
      %5444 = vmatmul.mubr.bf16.gmra.mxu0 %v4694
      %v5445 = vpop.f32.mrf.mxu0
      %v5446 = vadd.f32 %v4217, %v5445
      %v5447 = vpop.f32.mrf.mxu0
      %v5448 = vpop.f32.mrf.mxu0
      %v5449 = vadd.f32 %v4217, %v5448
      %v5450 = vpop.f32.mrf.mxu0
      %5451 = vmatprep.mubr.bf16.mxu0 %v4704
      %5452 = vmatmul.mubr.bf16.gmra.mxu0 %v4703
      %v5453 = vpop.f32.mrf.mxu0
      %v5454 = vadd.f32 %v4217, %v5453
      %v5455 = vpop.f32.mrf.mxu0
      %v5456 = vpop.f32.mrf.mxu0
      %v5457 = vadd.f32 %v4217, %v5456
      %v5458 = vpop.f32.mrf.mxu0
      %5459 = vmatprep.mubr.bf16.mxu0 %v4713
      %5460 = vmatmul.mubr.bf16.gmra.mxu0 %v4712
      %v5461 = vpop.f32.mrf.mxu0
      %v5462 = vadd.f32 %v4217, %v5461
      %v5463 = vpop.f32.mrf.mxu0
      %v5464 = vpop.f32.mrf.mxu0
      %v5465 = vadd.f32 %v4217, %v5464
      %v5466 = vpop.f32.mrf.mxu0
      %5467 = vmatprep.mubr.bf16.mxu0 %v4722
      %5468 = vmatmul.mubr.bf16.gmra.mxu0 %v4721
      %v5469 = vpop.f32.mrf.mxu0
      %v5470 = vadd.f32 %v4217, %v5469
      %v5471 = vpop.f32.mrf.mxu0
      %v5472 = vpop.f32.mrf.mxu0
      %v5473 = vadd.f32 %v4217, %v5472
      %v5474 = vpop.f32.mrf.mxu0
      %5475 = vmatprep.mubr.bf16.mxu0 %v4731
      %5476 = vmatmul.mubr.bf16.gmra.mxu0 %v4730
      %v5477 = vpop.f32.mrf.mxu0
      %v5478 = vadd.f32 %v4217, %v5477
      %v5479 = vpop.f32.mrf.mxu0
      %v5480 = vpop.f32.mrf.mxu0
      %v5481 = vadd.f32 %v4217, %v5480
      %v5482 = vpop.f32.mrf.mxu0
      %5483 = vmatprep.mubr.bf16.mxu0 %v4740
      %5484 = vmatmul.mubr.bf16.gmra.mxu0 %v4739
      %v5485 = vpop.f32.mrf.mxu0
      %v5486 = vadd.f32 %v4217, %v5485
      %v5487 = vpop.f32.mrf.mxu0
      %v5488 = vpop.f32.mrf.mxu0
      %v5489 = vadd.f32 %v4217, %v5488
      %v5490 = vpop.f32.mrf.mxu0
      %5491 = vmatprep.mubr.bf16.mxu0 %v4749
      %5492 = vmatmul.mubr.bf16.gmra.mxu0 %v4748
      %v5493 = vpop.f32.mrf.mxu0
      %v5494 = vadd.f32 %v4217, %v5493
      %v5495 = vpop.f32.mrf.mxu0
      %v5496 = vpop.f32.mrf.mxu0
      %v5497 = vadd.f32 %v4217, %v5496
      %v5498 = vpop.f32.mrf.mxu0
      %5499 = vmatprep.mubr.bf16.mxu0 %v4758
      %5500 = vmatmul.mubr.bf16.gmra.mxu0 %v4757
      %v5501 = vpop.f32.mrf.mxu0
      %v5502 = vadd.f32 %v4217, %v5501
      %v5503 = vpop.f32.mrf.mxu0
      %v5504 = vpop.f32.mrf.mxu0
      %v5505 = vadd.f32 %v4217, %v5504
      %v5506 = vpop.f32.mrf.mxu0
      %5507 = vmatprep.mubr.bf16.mxu0 %v4767
      %5508 = vmatmul.mubr.bf16.gmra.mxu0 %v4766
      %v5509 = vpop.f32.mrf.mxu0
      %v5510 = vadd.f32 %v4217, %v5509
      %v5511 = vpop.f32.mrf.mxu0
      %v5512 = vpop.f32.mrf.mxu0
      %v5513 = vadd.f32 %v4217, %v5512
      %v5514 = vpop.f32.mrf.mxu0
      %5515 = vmatprep.mubr.bf16.mxu0 %v4776
      %5516 = vmatmul.mubr.bf16.gmra.mxu0 %v4775
      %v5517 = vpop.f32.mrf.mxu0
      %v5518 = vadd.f32 %v4217, %v5517
      %v5519 = vpop.f32.mrf.mxu0
      %v5520 = vpop.f32.mrf.mxu0
      %v5521 = vadd.f32 %v4217, %v5520
      %v5522 = vpop.f32.mrf.mxu0
      %5523 = vmatprep.mubr.bf16.mxu0 %v4785
      %5524 = vmatmul.mubr.bf16.gmra.mxu0 %v4784
      %v5525 = vpop.f32.mrf.mxu0
      %v5526 = vadd.f32 %v4217, %v5525
      %v5527 = vpop.f32.mrf.mxu0
      %v5528 = vpop.f32.mrf.mxu0
      %v5529 = vadd.f32 %v4217, %v5528
      %v5530 = vpop.f32.mrf.mxu0
      %5531 = vmatprep.mubr.bf16.mxu0 %v4794
      %5532 = vmatmul.mubr.bf16.gmra.mxu0 %v4793
      %v5533 = vpop.f32.mrf.mxu0
      %v5534 = vadd.f32 %v4217, %v5533
      %v5535 = vpop.f32.mrf.mxu0
      %v5536 = vpop.f32.mrf.mxu0
      %v5537 = vadd.f32 %v4217, %v5536
      %v5538 = vpop.f32.mrf.mxu0
      %5539 = vmatprep.mubr.bf16.mxu0 %v4803
      %5540 = vmatmul.mubr.bf16.gmra.mxu0 %v4802
      %v5541 = vpop.f32.mrf.mxu0
      %v5542 = vadd.f32 %v4217, %v5541
      %v5543 = vpop.f32.mrf.mxu0
      %v5544 = vpop.f32.mrf.mxu0
      %v5545 = vadd.f32 %v4217, %v5544
      %v5546 = vpop.f32.mrf.mxu0
      %5547 = vdwg.mxu0
      %5548 = vmatprep.subr.bf16.mxu0 0
      %5549 = vmatpush1.bf16.msra.mxu0 %v5266
      %5550 = vmatprep.subr.bf16.mxu0 0
      %5551 = vmatpush1.bf16.msra.mxu0 %v5265
      %5552 = vmatprep.subr.bf16.mxu0 0
      %5553 = vmatpush1.bf16.msra.mxu0 %v5264
      %5554 = vmatprep.subr.bf16.mxu0 0
      %5555 = vmatpush1.bf16.msra.mxu0 %v5263
      %5556 = vmatprep.subr.bf16.mxu0 0
      %5557 = vmatpush1.bf16.msra.mxu0 %v5262
      %5558 = vmatprep.subr.bf16.mxu0 0
      %5559 = vmatpush1.bf16.msra.mxu0 %v5261
      %5560 = vmatprep.subr.bf16.mxu0 0
      %5561 = vmatpush1.bf16.msra.mxu0 %v5260
      %5562 = vmatprep.subr.bf16.mxu0 0
      %5563 = vmatpush1.bf16.msra.mxu0 %v5259
      %5564 = vmatprep.subr.bf16.mxu0 0
      %5565 = vmatpush2.bf16.msra.mxu0 %v5274
      %5566 = vmatprep.subr.bf16.mxu0 0
      %5567 = vmatpush2.bf16.msra.mxu0 %v5273
      %5568 = vmatprep.subr.bf16.mxu0 0
      %5569 = vmatpush2.bf16.msra.mxu0 %v5272
      %5570 = vmatprep.subr.bf16.mxu0 0
      %5571 = vmatpush2.bf16.msra.mxu0 %v5271
      %5572 = vmatprep.subr.bf16.mxu0 0
      %5573 = vmatpush2.bf16.msra.mxu0 %v5270
      %5574 = vmatprep.subr.bf16.mxu0 0
      %5575 = vmatpush2.bf16.msra.mxu0 %v5269
      %5576 = vmatprep.subr.bf16.mxu0 0
      %5577 = vmatpush2.bf16.msra.mxu0 %v5268
      %5578 = vmatprep.subr.bf16.mxu0 0
      %5579 = vmatpush2.bf16.msra.mxu0 %v5267
      %5580 = vmatprep.mubr.bf16.mxu0 %v4670
      %5581 = vmatmul.mubr.bf16.gmra.mxu0 %v4669
      %v5582 = vpop.f32.mrf.mxu0
      %v5583 = vadd.f32 %v5422, %v5582
      %v5584 = vpop.f32.mrf.mxu0
      %v5585 = vpop.f32.mrf.mxu0
      %v5586 = vadd.f32 %v5425, %v5585
      %v5587 = vpop.f32.mrf.mxu0
      %5588 = vmatprep.mubr.bf16.mxu0 %v4679
      %5589 = vmatmul.mubr.bf16.gmra.mxu0 %v4678
      %v5590 = vpop.f32.mrf.mxu0
      %v5591 = vadd.f32 %v5430, %v5590
      %v5592 = vpop.f32.mrf.mxu0
      %v5593 = vpop.f32.mrf.mxu0
      %v5594 = vadd.f32 %v5433, %v5593
      %v5595 = vpop.f32.mrf.mxu0
      %5596 = vmatprep.mubr.bf16.mxu0 %v4688
      %5597 = vmatmul.mubr.bf16.gmra.mxu0 %v4687
      %v5598 = vpop.f32.mrf.mxu0
      %v5599 = vadd.f32 %v5438, %v5598
      %v5600 = vpop.f32.mrf.mxu0
      %v5601 = vpop.f32.mrf.mxu0
      %v5602 = vadd.f32 %v5441, %v5601
      %v5603 = vpop.f32.mrf.mxu0
      %5604 = vmatprep.mubr.bf16.mxu0 %v4697
      %5605 = vmatmul.mubr.bf16.gmra.mxu0 %v4696
      %v5606 = vpop.f32.mrf.mxu0
      %v5607 = vadd.f32 %v5446, %v5606
      %v5608 = vpop.f32.mrf.mxu0
      %v5609 = vpop.f32.mrf.mxu0
      %v5610 = vadd.f32 %v5449, %v5609
      %v5611 = vpop.f32.mrf.mxu0
      %5612 = vmatprep.mubr.bf16.mxu0 %v4706
      %5613 = vmatmul.mubr.bf16.gmra.mxu0 %v4705
      %v5614 = vpop.f32.mrf.mxu0
      %v5615 = vadd.f32 %v5454, %v5614
      %v5616 = vpop.f32.mrf.mxu0
      %v5617 = vpop.f32.mrf.mxu0
      %v5618 = vadd.f32 %v5457, %v5617
      %v5619 = vpop.f32.mrf.mxu0
      %5620 = vmatprep.mubr.bf16.mxu0 %v4715
      %5621 = vmatmul.mubr.bf16.gmra.mxu0 %v4714
      %v5622 = vpop.f32.mrf.mxu0
      %v5623 = vadd.f32 %v5462, %v5622
      %v5624 = vpop.f32.mrf.mxu0
      %v5625 = vpop.f32.mrf.mxu0
      %v5626 = vadd.f32 %v5465, %v5625
      %v5627 = vpop.f32.mrf.mxu0
      %5628 = vmatprep.mubr.bf16.mxu0 %v4724
      %5629 = vmatmul.mubr.bf16.gmra.mxu0 %v4723
      %v5630 = vpop.f32.mrf.mxu0
      %v5631 = vadd.f32 %v5470, %v5630
      %v5632 = vpop.f32.mrf.mxu0
      %v5633 = vpop.f32.mrf.mxu0
      %v5634 = vadd.f32 %v5473, %v5633
      %v5635 = vpop.f32.mrf.mxu0
      %5636 = vmatprep.mubr.bf16.mxu0 %v4733
      %5637 = vmatmul.mubr.bf16.gmra.mxu0 %v4732
      %v5638 = vpop.f32.mrf.mxu0
      %v5639 = vadd.f32 %v5478, %v5638
      %v5640 = vpop.f32.mrf.mxu0
      %v5641 = vpop.f32.mrf.mxu0
      %v5642 = vadd.f32 %v5481, %v5641
      %v5643 = vpop.f32.mrf.mxu0
      %5644 = vmatprep.mubr.bf16.mxu0 %v4742
      %5645 = vmatmul.mubr.bf16.gmra.mxu0 %v4741
      %v5646 = vpop.f32.mrf.mxu0
      %v5647 = vadd.f32 %v5486, %v5646
      %v5648 = vpop.f32.mrf.mxu0
      %v5649 = vpop.f32.mrf.mxu0
      %v5650 = vadd.f32 %v5489, %v5649
      %v5651 = vpop.f32.mrf.mxu0
      %5652 = vmatprep.mubr.bf16.mxu0 %v4751
      %5653 = vmatmul.mubr.bf16.gmra.mxu0 %v4750
      %v5654 = vpop.f32.mrf.mxu0
      %v5655 = vadd.f32 %v5494, %v5654
      %v5656 = vpop.f32.mrf.mxu0
      %v5657 = vpop.f32.mrf.mxu0
      %v5658 = vadd.f32 %v5497, %v5657
      %v5659 = vpop.f32.mrf.mxu0
      %5660 = vmatprep.mubr.bf16.mxu0 %v4760
      %5661 = vmatmul.mubr.bf16.gmra.mxu0 %v4759
      %v5662 = vpop.f32.mrf.mxu0
      %v5663 = vadd.f32 %v5502, %v5662
      %v5664 = vpop.f32.mrf.mxu0
      %v5665 = vpop.f32.mrf.mxu0
      %v5666 = vadd.f32 %v5505, %v5665
      %v5667 = vpop.f32.mrf.mxu0
      %5668 = vmatprep.mubr.bf16.mxu0 %v4769
      %5669 = vmatmul.mubr.bf16.gmra.mxu0 %v4768
      %v5670 = vpop.f32.mrf.mxu0
      %v5671 = vadd.f32 %v5510, %v5670
      %v5672 = vpop.f32.mrf.mxu0
      %v5673 = vpop.f32.mrf.mxu0
      %v5674 = vadd.f32 %v5513, %v5673
      %v5675 = vpop.f32.mrf.mxu0
      %5676 = vmatprep.mubr.bf16.mxu0 %v4778
      %5677 = vmatmul.mubr.bf16.gmra.mxu0 %v4777
      %v5678 = vpop.f32.mrf.mxu0
      %v5679 = vadd.f32 %v5518, %v5678
      %v5680 = vpop.f32.mrf.mxu0
      %v5681 = vpop.f32.mrf.mxu0
      %v5682 = vadd.f32 %v5521, %v5681
      %v5683 = vpop.f32.mrf.mxu0
      %5684 = vmatprep.mubr.bf16.mxu0 %v4787
      %5685 = vmatmul.mubr.bf16.gmra.mxu0 %v4786
      %v5686 = vpop.f32.mrf.mxu0
      %v5687 = vadd.f32 %v5526, %v5686
      %v5688 = vpop.f32.mrf.mxu0
      %v5689 = vpop.f32.mrf.mxu0
      %v5690 = vadd.f32 %v5529, %v5689
      %v5691 = vpop.f32.mrf.mxu0
      %5692 = vmatprep.mubr.bf16.mxu0 %v4796
      %5693 = vmatmul.mubr.bf16.gmra.mxu0 %v4795
      %v5694 = vpop.f32.mrf.mxu0
      %v5695 = vadd.f32 %v5534, %v5694
      %v5696 = vpop.f32.mrf.mxu0
      %v5697 = vpop.f32.mrf.mxu0
      %v5698 = vadd.f32 %v5537, %v5697
      %v5699 = vpop.f32.mrf.mxu0
      %5700 = vmatprep.mubr.bf16.mxu0 %v4805
      %5701 = vmatmul.mubr.bf16.gmra.mxu0 %v4804
      %v5702 = vpop.f32.mrf.mxu0
      %v5703 = vadd.f32 %v5542, %v5702
      %v5704 = vpop.f32.mrf.mxu0
      %v5705 = vpop.f32.mrf.mxu0
      %v5706 = vadd.f32 %v5545, %v5705
      %v5707 = vpop.f32.mrf.mxu0
      %5708 = vdwg.mxu0
      %5709 = vmatprep.subr.bf16.mxu0 0
      %5710 = vmatpush1.bf16.msra.mxu0 %v5282
      %5711 = vmatprep.subr.bf16.mxu0 0
      %5712 = vmatpush1.bf16.msra.mxu0 %v5281
      %5713 = vmatprep.subr.bf16.mxu0 0
      %5714 = vmatpush1.bf16.msra.mxu0 %v5280
      %5715 = vmatprep.subr.bf16.mxu0 0
      %5716 = vmatpush1.bf16.msra.mxu0 %v5279
      %5717 = vmatprep.subr.bf16.mxu0 0
      %5718 = vmatpush1.bf16.msra.mxu0 %v5278
      %5719 = vmatprep.subr.bf16.mxu0 0
      %5720 = vmatpush1.bf16.msra.mxu0 %v5277
      %5721 = vmatprep.subr.bf16.mxu0 0
      %5722 = vmatpush1.bf16.msra.mxu0 %v5276
      %5723 = vmatprep.subr.bf16.mxu0 0
      %5724 = vmatpush1.bf16.msra.mxu0 %v5275
      %5725 = vmatprep.subr.bf16.mxu0 0
      %5726 = vmatpush2.bf16.msra.mxu0 %v5290
      %5727 = vmatprep.subr.bf16.mxu0 0
      %5728 = vmatpush2.bf16.msra.mxu0 %v5289
      %5729 = vmatprep.subr.bf16.mxu0 0
      %5730 = vmatpush2.bf16.msra.mxu0 %v5288
      %5731 = vmatprep.subr.bf16.mxu0 0
      %5732 = vmatpush2.bf16.msra.mxu0 %v5287
      %5733 = vmatprep.subr.bf16.mxu0 0
      %5734 = vmatpush2.bf16.msra.mxu0 %v5286
      %5735 = vmatprep.subr.bf16.mxu0 0
      %5736 = vmatpush2.bf16.msra.mxu0 %v5285
      %5737 = vmatprep.subr.bf16.mxu0 0
      %5738 = vmatpush2.bf16.msra.mxu0 %v5284
      %5739 = vmatprep.subr.bf16.mxu0 0
      %5740 = vmatpush2.bf16.msra.mxu0 %v5283
      %5741 = vmatprep.mubr.bf16.mxu0 %v4672
      %5742 = vmatmul.mubr.bf16.gmra.mxu0 %v4671
      %v5743 = vpop.f32.mrf.mxu0
      %v5744 = vadd.f32 %v5583, %v5743
      %v5745 = vpop.f32.mrf.mxu0
      %v5746 = vpop.f32.mrf.mxu0
      %v5747 = vadd.f32 %v5586, %v5746
      %v5748 = vpop.f32.mrf.mxu0
      %5749 = vmatprep.mubr.bf16.mxu0 %v4681
      %5750 = vmatmul.mubr.bf16.gmra.mxu0 %v4680
      %v5751 = vpop.f32.mrf.mxu0
      %v5752 = vadd.f32 %v5591, %v5751
      %v5753 = vpop.f32.mrf.mxu0
      %v5754 = vpop.f32.mrf.mxu0
      %v5755 = vadd.f32 %v5594, %v5754
      %v5756 = vpop.f32.mrf.mxu0
      %5757 = vmatprep.mubr.bf16.mxu0 %v4690
      %5758 = vmatmul.mubr.bf16.gmra.mxu0 %v4689
      %v5759 = vpop.f32.mrf.mxu0
      %v5760 = vadd.f32 %v5599, %v5759
      %v5761 = vpop.f32.mrf.mxu0
      %v5762 = vpop.f32.mrf.mxu0
      %v5763 = vadd.f32 %v5602, %v5762
      %v5764 = vpop.f32.mrf.mxu0
      %5765 = vmatprep.mubr.bf16.mxu0 %v4699
      %5766 = vmatmul.mubr.bf16.gmra.mxu0 %v4698
      %v5767 = vpop.f32.mrf.mxu0
      %v5768 = vadd.f32 %v5607, %v5767
      %v5769 = vpop.f32.mrf.mxu0
      %v5770 = vpop.f32.mrf.mxu0
      %v5771 = vadd.f32 %v5610, %v5770
      %v5772 = vpop.f32.mrf.mxu0
      %5773 = vmatprep.mubr.bf16.mxu0 %v4708
      %5774 = vmatmul.mubr.bf16.gmra.mxu0 %v4707
      %v5775 = vpop.f32.mrf.mxu0
      %v5776 = vadd.f32 %v5615, %v5775
      %v5777 = vpop.f32.mrf.mxu0
      %v5778 = vpop.f32.mrf.mxu0
      %v5779 = vadd.f32 %v5618, %v5778
      %v5780 = vpop.f32.mrf.mxu0
      %5781 = vmatprep.mubr.bf16.mxu0 %v4717
      %5782 = vmatmul.mubr.bf16.gmra.mxu0 %v4716
      %v5783 = vpop.f32.mrf.mxu0
      %v5784 = vadd.f32 %v5623, %v5783
      %v5785 = vpop.f32.mrf.mxu0
      %v5786 = vpop.f32.mrf.mxu0
      %v5787 = vadd.f32 %v5626, %v5786
      %v5788 = vpop.f32.mrf.mxu0
      %5789 = vmatprep.mubr.bf16.mxu0 %v4726
      %5790 = vmatmul.mubr.bf16.gmra.mxu0 %v4725
      %v5791 = vpop.f32.mrf.mxu0
      %v5792 = vadd.f32 %v5631, %v5791
      %v5793 = vpop.f32.mrf.mxu0
      %v5794 = vpop.f32.mrf.mxu0
      %v5795 = vadd.f32 %v5634, %v5794
      %v5796 = vpop.f32.mrf.mxu0
      %5797 = vmatprep.mubr.bf16.mxu0 %v4735
      %5798 = vmatmul.mubr.bf16.gmra.mxu0 %v4734
      %v5799 = vpop.f32.mrf.mxu0
      %v5800 = vadd.f32 %v5639, %v5799
      %v5801 = vpop.f32.mrf.mxu0
      %v5802 = vpop.f32.mrf.mxu0
      %v5803 = vadd.f32 %v5642, %v5802
      %v5804 = vpop.f32.mrf.mxu0
      %5805 = vmatprep.mubr.bf16.mxu0 %v4744
      %5806 = vmatmul.mubr.bf16.gmra.mxu0 %v4743
      %v5807 = vpop.f32.mrf.mxu0
      %v5808 = vadd.f32 %v5647, %v5807
      %v5809 = vpop.f32.mrf.mxu0
      %v5810 = vpop.f32.mrf.mxu0
      %v5811 = vadd.f32 %v5650, %v5810
      %v5812 = vpop.f32.mrf.mxu0
      %5813 = vmatprep.mubr.bf16.mxu0 %v4753
      %5814 = vmatmul.mubr.bf16.gmra.mxu0 %v4752
      %v5815 = vpop.f32.mrf.mxu0
      %v5816 = vadd.f32 %v5655, %v5815
      %v5817 = vpop.f32.mrf.mxu0
      %v5818 = vpop.f32.mrf.mxu0
      %v5819 = vadd.f32 %v5658, %v5818
      %v5820 = vpop.f32.mrf.mxu0
      %5821 = vmatprep.mubr.bf16.mxu0 %v4762
      %5822 = vmatmul.mubr.bf16.gmra.mxu0 %v4761
      %v5823 = vpop.f32.mrf.mxu0
      %v5824 = vadd.f32 %v5663, %v5823
      %v5825 = vpop.f32.mrf.mxu0
      %v5826 = vpop.f32.mrf.mxu0
      %v5827 = vadd.f32 %v5666, %v5826
      %v5828 = vpop.f32.mrf.mxu0
      %5829 = vmatprep.mubr.bf16.mxu0 %v4771
      %5830 = vmatmul.mubr.bf16.gmra.mxu0 %v4770
      %v5831 = vpop.f32.mrf.mxu0
      %v5832 = vadd.f32 %v5671, %v5831
      %v5833 = vpop.f32.mrf.mxu0
      %v5834 = vpop.f32.mrf.mxu0
      %v5835 = vadd.f32 %v5674, %v5834
      %v5836 = vpop.f32.mrf.mxu0
      %5837 = vmatprep.mubr.bf16.mxu0 %v4780
      %5838 = vmatmul.mubr.bf16.gmra.mxu0 %v4779
      %v5839 = vpop.f32.mrf.mxu0
      %v5840 = vadd.f32 %v5679, %v5839
      %v5841 = vpop.f32.mrf.mxu0
      %v5842 = vpop.f32.mrf.mxu0
      %v5843 = vadd.f32 %v5682, %v5842
      %v5844 = vpop.f32.mrf.mxu0
      %5845 = vmatprep.mubr.bf16.mxu0 %v4789
      %5846 = vmatmul.mubr.bf16.gmra.mxu0 %v4788
      %v5847 = vpop.f32.mrf.mxu0
      %v5848 = vadd.f32 %v5687, %v5847
      %v5849 = vpop.f32.mrf.mxu0
      %v5850 = vpop.f32.mrf.mxu0
      %v5851 = vadd.f32 %v5690, %v5850
      %v5852 = vpop.f32.mrf.mxu0
      %5853 = vmatprep.mubr.bf16.mxu0 %v4798
      %5854 = vmatmul.mubr.bf16.gmra.mxu0 %v4797
      %v5855 = vpop.f32.mrf.mxu0
      %v5856 = vadd.f32 %v5695, %v5855
      %v5857 = vpop.f32.mrf.mxu0
      %v5858 = vpop.f32.mrf.mxu0
      %v5859 = vadd.f32 %v5698, %v5858
      %v5860 = vpop.f32.mrf.mxu0
      %5861 = vmatprep.mubr.bf16.mxu0 %v4807
      %5862 = vmatmul.mubr.bf16.gmra.mxu0 %v4806
      %v5863 = vpop.f32.mrf.mxu0
      %v5864 = vadd.f32 %v5703, %v5863
      %v5865 = vpop.f32.mrf.mxu0
      %v5866 = vpop.f32.mrf.mxu0
      %v5867 = vadd.f32 %v5706, %v5866
      %v5868 = vpop.f32.mrf.mxu0
      %5869 = vdwg.mxu0
      %5870 = vmatprep.subr.bf16.mxu0 0
      %5871 = vmatpush1.bf16.msra.mxu0 %v5298
      %5872 = vmatprep.subr.bf16.mxu0 0
      %5873 = vmatpush1.bf16.msra.mxu0 %v5297
      %5874 = vmatprep.subr.bf16.mxu0 0
      %5875 = vmatpush1.bf16.msra.mxu0 %v5296
      %5876 = vmatprep.subr.bf16.mxu0 0
      %5877 = vmatpush1.bf16.msra.mxu0 %v5295
      %5878 = vmatprep.subr.bf16.mxu0 0
      %5879 = vmatpush1.bf16.msra.mxu0 %v5294
      %5880 = vmatprep.subr.bf16.mxu0 0
      %5881 = vmatpush1.bf16.msra.mxu0 %v5293
      %5882 = vmatprep.subr.bf16.mxu0 0
      %5883 = vmatpush1.bf16.msra.mxu0 %v5292
      %5884 = vmatprep.subr.bf16.mxu0 0
      %5885 = vmatpush1.bf16.msra.mxu0 %v5291
      %5886 = vmatprep.subr.bf16.mxu0 0
      %5887 = vmatpush2.bf16.msra.mxu0 %v5306
      %5888 = vmatprep.subr.bf16.mxu0 0
      %5889 = vmatpush2.bf16.msra.mxu0 %v5305
      %5890 = vmatprep.subr.bf16.mxu0 0
      %5891 = vmatpush2.bf16.msra.mxu0 %v5304
      %5892 = vmatprep.subr.bf16.mxu0 0
      %5893 = vmatpush2.bf16.msra.mxu0 %v5303
      %5894 = vmatprep.subr.bf16.mxu0 0
      %5895 = vmatpush2.bf16.msra.mxu0 %v5302
      %5896 = vmatprep.subr.bf16.mxu0 0
      %5897 = vmatpush2.bf16.msra.mxu0 %v5301
      %5898 = vmatprep.subr.bf16.mxu0 0
      %5899 = vmatpush2.bf16.msra.mxu0 %v5300
      %5900 = vmatprep.subr.bf16.mxu0 0
      %5901 = vmatpush2.bf16.msra.mxu0 %v5299
      %5902 = vmatprep.mubr.bf16.mxu0 %v4674
      %5903 = vmatmul.mubr.bf16.gmra.mxu0 %v4673
      %v5904 = vpop.f32.mrf.mxu0
      %v5905 = vadd.f32 %v5744, %v5904
      %v5906 = vpop.f32.mrf.mxu0
      %v5907 = vpop.f32.mrf.mxu0
      %v5908 = vadd.f32 %v5747, %v5907
      %v5909 = vpop.f32.mrf.mxu0
      %5910 = vmatprep.mubr.bf16.mxu0 %v4683
      %5911 = vmatmul.mubr.bf16.gmra.mxu0 %v4682
      %v5912 = vpop.f32.mrf.mxu0
      %v5913 = vadd.f32 %v5752, %v5912
      %v5914 = vpop.f32.mrf.mxu0
      %v5915 = vpop.f32.mrf.mxu0
      %v5916 = vadd.f32 %v5755, %v5915
      %v5917 = vpop.f32.mrf.mxu0
      %5918 = vmatprep.mubr.bf16.mxu0 %v4692
      %5919 = vmatmul.mubr.bf16.gmra.mxu0 %v4691
      %v5920 = vpop.f32.mrf.mxu0
      %v5921 = vadd.f32 %v5760, %v5920
      %v5922 = vpop.f32.mrf.mxu0
      %v5923 = vpop.f32.mrf.mxu0
      %v5924 = vadd.f32 %v5763, %v5923
      %v5925 = vpop.f32.mrf.mxu0
      %5926 = vmatprep.mubr.bf16.mxu0 %v4701
      %5927 = vmatmul.mubr.bf16.gmra.mxu0 %v4700
      %v5928 = vpop.f32.mrf.mxu0
      %v5929 = vadd.f32 %v5768, %v5928
      %v5930 = vpop.f32.mrf.mxu0
      %v5931 = vpop.f32.mrf.mxu0
      %v5932 = vadd.f32 %v5771, %v5931
      %v5933 = vpop.f32.mrf.mxu0
      %5934 = vmatprep.mubr.bf16.mxu0 %v4710
      %5935 = vmatmul.mubr.bf16.gmra.mxu0 %v4709
      %v5936 = vpop.f32.mrf.mxu0
      %v5937 = vadd.f32 %v5776, %v5936
      %v5938 = vpop.f32.mrf.mxu0
      %v5939 = vpop.f32.mrf.mxu0
      %v5940 = vadd.f32 %v5779, %v5939
      %v5941 = vpop.f32.mrf.mxu0
      %5942 = vmatprep.mubr.bf16.mxu0 %v4719
      %5943 = vmatmul.mubr.bf16.gmra.mxu0 %v4718
      %v5944 = vpop.f32.mrf.mxu0
      %v5945 = vadd.f32 %v5784, %v5944
      %v5946 = vpop.f32.mrf.mxu0
      %v5947 = vpop.f32.mrf.mxu0
      %v5948 = vadd.f32 %v5787, %v5947
      %v5949 = vpop.f32.mrf.mxu0
      %5950 = vmatprep.mubr.bf16.mxu0 %v4728
      %5951 = vmatmul.mubr.bf16.gmra.mxu0 %v4727
      %v5952 = vpop.f32.mrf.mxu0
      %v5953 = vadd.f32 %v5792, %v5952
      %v5954 = vpop.f32.mrf.mxu0
      %v5955 = vpop.f32.mrf.mxu0
      %v5956 = vadd.f32 %v5795, %v5955
      %v5957 = vpop.f32.mrf.mxu0
      %5958 = vmatprep.mubr.bf16.mxu0 %v4737
      %5959 = vmatmul.mubr.bf16.gmra.mxu0 %v4736
      %v5960 = vpop.f32.mrf.mxu0
      %v5961 = vadd.f32 %v5800, %v5960
      %v5962 = vpop.f32.mrf.mxu0
      %v5963 = vpop.f32.mrf.mxu0
      %v5964 = vadd.f32 %v5803, %v5963
      %v5965 = vpop.f32.mrf.mxu0
      %5966 = vmatprep.mubr.bf16.mxu0 %v4746
      %5967 = vmatmul.mubr.bf16.gmra.mxu0 %v4745
      %v5968 = vpop.f32.mrf.mxu0
      %v5969 = vadd.f32 %v5808, %v5968
      %v5970 = vpop.f32.mrf.mxu0
      %v5971 = vpop.f32.mrf.mxu0
      %v5972 = vadd.f32 %v5811, %v5971
      %v5973 = vpop.f32.mrf.mxu0
      %5974 = vmatprep.mubr.bf16.mxu0 %v4755
      %5975 = vmatmul.mubr.bf16.gmra.mxu0 %v4754
      %v5976 = vpop.f32.mrf.mxu0
      %v5977 = vadd.f32 %v5816, %v5976
      %v5978 = vpop.f32.mrf.mxu0
      %v5979 = vpop.f32.mrf.mxu0
      %v5980 = vadd.f32 %v5819, %v5979
      %v5981 = vpop.f32.mrf.mxu0
      %5982 = vmatprep.mubr.bf16.mxu0 %v4764
      %5983 = vmatmul.mubr.bf16.gmra.mxu0 %v4763
      %v5984 = vpop.f32.mrf.mxu0
      %v5985 = vadd.f32 %v5824, %v5984
      %v5986 = vpop.f32.mrf.mxu0
      %v5987 = vpop.f32.mrf.mxu0
      %v5988 = vadd.f32 %v5827, %v5987
      %v5989 = vpop.f32.mrf.mxu0
      %5990 = vmatprep.mubr.bf16.mxu0 %v4773
      %5991 = vmatmul.mubr.bf16.gmra.mxu0 %v4772
      %v5992 = vpop.f32.mrf.mxu0
      %v5993 = vadd.f32 %v5832, %v5992
      %v5994 = vpop.f32.mrf.mxu0
      %v5995 = vpop.f32.mrf.mxu0
      %v5996 = vadd.f32 %v5835, %v5995
      %v5997 = vpop.f32.mrf.mxu0
      %5998 = vmatprep.mubr.bf16.mxu0 %v4782
      %5999 = vmatmul.mubr.bf16.gmra.mxu0 %v4781
      %v6000 = vpop.f32.mrf.mxu0
      %v6001 = vadd.f32 %v5840, %v6000
      %v6002 = vpop.f32.mrf.mxu0
      %v6003 = vpop.f32.mrf.mxu0
      %v6004 = vadd.f32 %v5843, %v6003
      %v6005 = vpop.f32.mrf.mxu0
      %6006 = vmatprep.mubr.bf16.mxu0 %v4791
      %6007 = vmatmul.mubr.bf16.gmra.mxu0 %v4790
      %v6008 = vpop.f32.mrf.mxu0
      %v6009 = vadd.f32 %v5848, %v6008
      %v6010 = vpop.f32.mrf.mxu0
      %v6011 = vpop.f32.mrf.mxu0
      %v6012 = vadd.f32 %v5851, %v6011
      %v6013 = vpop.f32.mrf.mxu0
      %6014 = vmatprep.mubr.bf16.mxu0 %v4800
      %6015 = vmatmul.mubr.bf16.gmra.mxu0 %v4799
      %v6016 = vpop.f32.mrf.mxu0
      %v6017 = vadd.f32 %v5856, %v6016
      %v6018 = vpop.f32.mrf.mxu0
      %v6019 = vpop.f32.mrf.mxu0
      %v6020 = vadd.f32 %v5859, %v6019
      %v6021 = vpop.f32.mrf.mxu0
      %6022 = vmatprep.mubr.bf16.mxu0 %v4809
      %6023 = vmatmul.mubr.bf16.gmra.mxu0 %v4808
      %v6024 = vpop.f32.mrf.mxu0
      %v6025 = vadd.f32 %v5864, %v6024
      %v6026 = vpop.f32.mrf.mxu0
      %v6027 = vpop.f32.mrf.mxu0
      %v6028 = vadd.f32 %v5867, %v6027
      %v6029 = vpop.f32.mrf.mxu0
      %6030 = vdwg.mxu0
      %6031 = vmatprep.subr.bf16.mxu0 0
      %6032 = vmatpush1.bf16.msra.mxu0 %v5314
      %6033 = vmatprep.subr.bf16.mxu0 0
      %6034 = vmatpush1.bf16.msra.mxu0 %v5313
      %6035 = vmatprep.subr.bf16.mxu0 0
      %6036 = vmatpush1.bf16.msra.mxu0 %v5312
      %6037 = vmatprep.subr.bf16.mxu0 0
      %6038 = vmatpush1.bf16.msra.mxu0 %v5311
      %6039 = vmatprep.subr.bf16.mxu0 0
      %6040 = vmatpush1.bf16.msra.mxu0 %v5310
      %6041 = vmatprep.subr.bf16.mxu0 0
      %6042 = vmatpush1.bf16.msra.mxu0 %v5309
      %6043 = vmatprep.subr.bf16.mxu0 0
      %6044 = vmatpush1.bf16.msra.mxu0 %v5308
      %6045 = vmatprep.subr.bf16.mxu0 0
      %6046 = vmatpush1.bf16.msra.mxu0 %v5307
      %6047 = vmatprep.subr.bf16.mxu0 0
      %6048 = vmatpush2.bf16.msra.mxu0 0
      %6049 = vmatprep.subr.bf16.mxu0 0
      %6050 = vmatpush2.bf16.msra.mxu0 0
      %6051 = vmatprep.subr.bf16.mxu0 0
      %6052 = vmatpush2.bf16.msra.mxu0 0
      %6053 = vmatprep.subr.bf16.mxu0 0
      %6054 = vmatpush2.bf16.msra.mxu0 0
      %6055 = vmatprep.subr.bf16.mxu0 0
      %6056 = vmatpush2.bf16.msra.mxu0 0
      %6057 = vmatprep.subr.bf16.mxu0 0
      %6058 = vmatpush2.bf16.msra.mxu0 0
      %6059 = vmatprep.subr.bf16.mxu0 0
      %6060 = vmatpush2.bf16.msra.mxu0 0
      %6061 = vmatprep.subr.bf16.mxu0 0
      %6062 = vmatpush2.bf16.msra.mxu0 0
      %6063 = vmatprep.mubr.bf16.mxu0 0
      %6064 = vmatmul.mubr.bf16.gmra.mxu0 %v4675
      %v6065 = vpop.f32.mrf.mxu0
      %v6066 = vadd.f32 %v5905, %v6065
      %v6067 = vpop.f32.mrf.mxu0
      %v6068 = vpop.f32.mrf.mxu0
      %v6069 = vadd.f32 %v5908, %v6068
      %v6070 = vpop.f32.mrf.mxu0
      %6071 = vmatprep.mubr.bf16.mxu0 0
      %6072 = vmatmul.mubr.bf16.gmra.mxu0 %v4684
      %v6073 = vpop.f32.mrf.mxu0
      %v6074 = vadd.f32 %v5913, %v6073
      %v6075 = vpop.f32.mrf.mxu0
      %v6076 = vpop.f32.mrf.mxu0
      %v6077 = vadd.f32 %v5916, %v6076
      %v6078 = vpop.f32.mrf.mxu0
      %6079 = vmatprep.mubr.bf16.mxu0 0
      %6080 = vmatmul.mubr.bf16.gmra.mxu0 %v4693
      %v6081 = vpop.f32.mrf.mxu0
      %v6082 = vadd.f32 %v5921, %v6081
      %v6083 = vpop.f32.mrf.mxu0
      %v6084 = vpop.f32.mrf.mxu0
      %v6085 = vadd.f32 %v5924, %v6084
      %v6086 = vpop.f32.mrf.mxu0
      %6087 = vmatprep.mubr.bf16.mxu0 0
      %6088 = vmatmul.mubr.bf16.gmra.mxu0 %v4702
      %v6089 = vpop.f32.mrf.mxu0
      %v6090 = vadd.f32 %v5929, %v6089
      %v6091 = vpop.f32.mrf.mxu0
      %v6092 = vpop.f32.mrf.mxu0
      %v6093 = vadd.f32 %v5932, %v6092
      %v6094 = vpop.f32.mrf.mxu0
      %6095 = vmatprep.mubr.bf16.mxu0 0
      %6096 = vmatmul.mubr.bf16.gmra.mxu0 %v4711
      %v6097 = vpop.f32.mrf.mxu0
      %v6098 = vadd.f32 %v5937, %v6097
      %v6099 = vpop.f32.mrf.mxu0
      %v6100 = vpop.f32.mrf.mxu0
      %v6101 = vadd.f32 %v5940, %v6100
      %v6102 = vpop.f32.mrf.mxu0
      %6103 = vmatprep.mubr.bf16.mxu0 0
      %6104 = vmatmul.mubr.bf16.gmra.mxu0 %v4720
      %v6105 = vpop.f32.mrf.mxu0
      %v6106 = vadd.f32 %v5945, %v6105
      %v6107 = vpop.f32.mrf.mxu0
      %v6108 = vpop.f32.mrf.mxu0
      %v6109 = vadd.f32 %v5948, %v6108
      %v6110 = vpop.f32.mrf.mxu0
      %6111 = vmatprep.mubr.bf16.mxu0 0
      %6112 = vmatmul.mubr.bf16.gmra.mxu0 %v4729
      %v6113 = vpop.f32.mrf.mxu0
      %v6114 = vadd.f32 %v5953, %v6113
      %v6115 = vpop.f32.mrf.mxu0
      %v6116 = vpop.f32.mrf.mxu0
      %v6117 = vadd.f32 %v5956, %v6116
      %v6118 = vpop.f32.mrf.mxu0
      %6119 = vmatprep.mubr.bf16.mxu0 0
      %6120 = vmatmul.mubr.bf16.gmra.mxu0 %v4738
      %v6121 = vpop.f32.mrf.mxu0
      %v6122 = vadd.f32 %v5961, %v6121
      %v6123 = vpop.f32.mrf.mxu0
      %v6124 = vpop.f32.mrf.mxu0
      %v6125 = vadd.f32 %v5964, %v6124
      %v6126 = vpop.f32.mrf.mxu0
      %6127 = vmatprep.mubr.bf16.mxu0 0
      %6128 = vmatmul.mubr.bf16.gmra.mxu0 %v4747
      %v6129 = vpop.f32.mrf.mxu0
      %v6130 = vadd.f32 %v5969, %v6129
      %v6131 = vpop.f32.mrf.mxu0
      %v6132 = vpop.f32.mrf.mxu0
      %v6133 = vadd.f32 %v5972, %v6132
      %v6134 = vpop.f32.mrf.mxu0
      %6135 = vmatprep.mubr.bf16.mxu0 0
      %6136 = vmatmul.mubr.bf16.gmra.mxu0 %v4756
      %v6137 = vpop.f32.mrf.mxu0
      %v6138 = vadd.f32 %v5977, %v6137
      %v6139 = vpop.f32.mrf.mxu0
      %v6140 = vpop.f32.mrf.mxu0
      %v6141 = vadd.f32 %v5980, %v6140
      %v6142 = vpop.f32.mrf.mxu0
      %6143 = vmatprep.mubr.bf16.mxu0 0
      %6144 = vmatmul.mubr.bf16.gmra.mxu0 %v4765
      %v6145 = vpop.f32.mrf.mxu0
      %v6146 = vadd.f32 %v5985, %v6145
      %v6147 = vpop.f32.mrf.mxu0
      %v6148 = vpop.f32.mrf.mxu0
      %v6149 = vadd.f32 %v5988, %v6148
      %v6150 = vpop.f32.mrf.mxu0
      %6151 = vmatprep.mubr.bf16.mxu0 0
      %6152 = vmatmul.mubr.bf16.gmra.mxu0 %v4774
      %v6153 = vpop.f32.mrf.mxu0
      %v6154 = vadd.f32 %v5993, %v6153
      %v6155 = vpop.f32.mrf.mxu0
      %v6156 = vpop.f32.mrf.mxu0
      %v6157 = vadd.f32 %v5996, %v6156
      %v6158 = vpop.f32.mrf.mxu0
      %6159 = vmatprep.mubr.bf16.mxu0 0
      %6160 = vmatmul.mubr.bf16.gmra.mxu0 %v4783
      %v6161 = vpop.f32.mrf.mxu0
      %v6162 = vadd.f32 %v6001, %v6161
      %v6163 = vpop.f32.mrf.mxu0
      %v6164 = vpop.f32.mrf.mxu0
      %v6165 = vadd.f32 %v6004, %v6164
      %v6166 = vpop.f32.mrf.mxu0
      %6167 = vmatprep.mubr.bf16.mxu0 0
      %6168 = vmatmul.mubr.bf16.gmra.mxu0 %v4792
      %v6169 = vpop.f32.mrf.mxu0
      %v6170 = vadd.f32 %v6009, %v6169
      %v6171 = vpop.f32.mrf.mxu0
      %v6172 = vpop.f32.mrf.mxu0
      %v6173 = vadd.f32 %v6012, %v6172
      %v6174 = vpop.f32.mrf.mxu0
      %6175 = vmatprep.mubr.bf16.mxu0 0
      %6176 = vmatmul.mubr.bf16.gmra.mxu0 %v4801
      %v6177 = vpop.f32.mrf.mxu0
      %v6178 = vadd.f32 %v6017, %v6177
      %v6179 = vpop.f32.mrf.mxu0
      %v6180 = vpop.f32.mrf.mxu0
      %v6181 = vadd.f32 %v6020, %v6180
      %v6182 = vpop.f32.mrf.mxu0
      %6183 = vmatprep.mubr.bf16.mxu0 0
      %6184 = vmatmul.mubr.bf16.gmra.mxu0 %v4810
      %v6185 = vpop.f32.mrf.mxu0
      %v6186 = vadd.f32 %v6025, %v6185
      %v6187 = vpop.f32.mrf.mxu0
      %v6188 = vpop.f32.mrf.mxu0
      %v6189 = vadd.f32 %v6028, %v6188
      %v6190 = vpop.f32.mrf.mxu0
      %6191 = vdwg.mxu0
      %v6192 = vxor.u32 %v6066, 2147483648
      %v6193 = vxor.u32 %v6069, 2147483648
      %v6194 = vxor.u32 %v6074, 2147483648
      %v6195 = vxor.u32 %v6077, 2147483648
      %v6196 = vxor.u32 %v6082, 2147483648
      %v6197 = vxor.u32 %v6085, 2147483648
      %v6198 = vxor.u32 %v6090, 2147483648
      %v6199 = vxor.u32 %v6093, 2147483648
      %v6200 = vxor.u32 %v6098, 2147483648
      %v6201 = vxor.u32 %v6101, 2147483648
      %v6202 = vxor.u32 %v6106, 2147483648
      %v6203 = vxor.u32 %v6109, 2147483648
      %v6204 = vxor.u32 %v6114, 2147483648
      %v6205 = vxor.u32 %v6117, 2147483648
      %v6206 = vxor.u32 %v6122, 2147483648
      %v6207 = vxor.u32 %v6125, 2147483648
      %v6208 = vxor.u32 %v6130, 2147483648
      %v6209 = vxor.u32 %v6133, 2147483648
      %v6210 = vxor.u32 %v6138, 2147483648
      %v6211 = vxor.u32 %v6141, 2147483648
      %v6212 = vxor.u32 %v6146, 2147483648
      %v6213 = vxor.u32 %v6149, 2147483648
      %v6214 = vxor.u32 %v6154, 2147483648
      %v6215 = vxor.u32 %v6157, 2147483648
      %v6216 = vxor.u32 %v6162, 2147483648
      %v6217 = vxor.u32 %v6165, 2147483648
      %v6218 = vxor.u32 %v6170, 2147483648
      %v6219 = vxor.u32 %v6173, 2147483648
      %v6220 = vxor.u32 %v6178, 2147483648
      %v6221 = vxor.u32 %v6181, 2147483648
      %v6222 = vxor.u32 %v6186, 2147483648
      %v6223 = vxor.u32 %v6189, 2147483648
      %v6224 = vmul.f32 %v6192, 1.442695
      %v6225 = vpow.pop %v6224
      %v6226 = vmul.f32 %v6193, 1.442695
      %v6227 = vpow.pop %v6226
      %v6228 = vmul.f32 %v6194, 1.442695
      %v6229 = vpow.pop %v6228
      %v6230 = vmul.f32 %v6195, 1.442695
      %v6231 = vpow.pop %v6230
      %v6232 = vmul.f32 %v6196, 1.442695
      %v6233 = vpow.pop %v6232
      %v6234 = vmul.f32 %v6197, 1.442695
      %v6235 = vpow.pop %v6234
      %v6236 = vmul.f32 %v6198, 1.442695
      %v6237 = vpow.pop %v6236
      %v6238 = vmul.f32 %v6199, 1.442695
      %v6239 = vpow.pop %v6238
      %v6240 = vmul.f32 %v6200, 1.442695
      %v6241 = vpow.pop %v6240
      %v6242 = vmul.f32 %v6201, 1.442695
      %v6243 = vpow.pop %v6242
      %v6244 = vmul.f32 %v6202, 1.442695
      %v6245 = vpow.pop %v6244
      %v6246 = vmul.f32 %v6203, 1.442695
      %v6247 = vpow.pop %v6246
      %v6248 = vmul.f32 %v6204, 1.442695
      %v6249 = vpow.pop %v6248
      %v6250 = vmul.f32 %v6205, 1.442695
      %v6251 = vpow.pop %v6250
      %v6252 = vmul.f32 %v6206, 1.442695
      %v6253 = vpow.pop %v6252
      %v6254 = vmul.f32 %v6207, 1.442695
      %v6255 = vpow.pop %v6254
      %v6256 = vmul.f32 %v6208, 1.442695
      %v6257 = vpow.pop %v6256
      %v6258 = vmul.f32 %v6209, 1.442695
      %v6259 = vpow.pop %v6258
      %v6260 = vmul.f32 %v6210, 1.442695
      %v6261 = vpow.pop %v6260
      %v6262 = vmul.f32 %v6211, 1.442695
      %v6263 = vpow.pop %v6262
      %v6264 = vmul.f32 %v6212, 1.442695
      %v6265 = vpow.pop %v6264
      %v6266 = vmul.f32 %v6213, 1.442695
      %v6267 = vpow.pop %v6266
      %v6268 = vmul.f32 %v6214, 1.442695
      %v6269 = vpow.pop %v6268
      %v6270 = vmul.f32 %v6215, 1.442695
      %v6271 = vpow.pop %v6270
      %v6272 = vmul.f32 %v6216, 1.442695
      %v6273 = vpow.pop %v6272
      %v6274 = vmul.f32 %v6217, 1.442695
      %v6275 = vpow.pop %v6274
      %v6276 = vmul.f32 %v6218, 1.442695
      %v6277 = vpow.pop %v6276
      %v6278 = vmul.f32 %v6219, 1.442695
      %v6279 = vpow.pop %v6278
      %v6280 = vmul.f32 %v6220, 1.442695
      %v6281 = vpow.pop %v6280
      %v6282 = vmul.f32 %v6221, 1.442695
      %v6283 = vpow.pop %v6282
      %v6284 = vmul.f32 %v6222, 1.442695
      %v6285 = vpow.pop %v6284
      %v6286 = vmul.f32 %v6223, 1.442695
      %v6287 = vpow.pop %v6286
      %v6288 = vadd.f32 %v6225, 1.0
      %v6289 = vadd.f32 %v6227, 1.0
      %v6290 = vadd.f32 %v6229, 1.0
      %v6291 = vadd.f32 %v6231, 1.0
      %v6292 = vadd.f32 %v6233, 1.0
      %v6293 = vadd.f32 %v6235, 1.0
      %v6294 = vadd.f32 %v6237, 1.0
      %v6295 = vadd.f32 %v6239, 1.0
      %v6296 = vadd.f32 %v6241, 1.0
      %v6297 = vadd.f32 %v6243, 1.0
      %v6298 = vadd.f32 %v6245, 1.0
      %v6299 = vadd.f32 %v6247, 1.0
      %v6300 = vadd.f32 %v6249, 1.0
      %v6301 = vadd.f32 %v6251, 1.0
      %v6302 = vadd.f32 %v6253, 1.0
      %v6303 = vadd.f32 %v6255, 1.0
      %v6304 = vadd.f32 %v6257, 1.0
      %v6305 = vadd.f32 %v6259, 1.0
      %v6306 = vadd.f32 %v6261, 1.0
      %v6307 = vadd.f32 %v6263, 1.0
      %v6308 = vadd.f32 %v6265, 1.0
      %v6309 = vadd.f32 %v6267, 1.0
      %v6310 = vadd.f32 %v6269, 1.0
      %v6311 = vadd.f32 %v6271, 1.0
      %v6312 = vadd.f32 %v6273, 1.0
      %v6313 = vadd.f32 %v6275, 1.0
      %v6314 = vadd.f32 %v6277, 1.0
      %v6315 = vadd.f32 %v6279, 1.0
      %v6316 = vadd.f32 %v6281, 1.0
      %v6317 = vadd.f32 %v6283, 1.0
      %v6318 = vadd.f32 %v6285, 1.0
      %v6319 = vadd.f32 %v6287, 1.0
      %v6320 = vrcp.pop %v6288
      %v6321 = vmul.f32 1.0, %v6320
      %v6322 = vrcp.pop %v6289
      %v6323 = vmul.f32 1.0, %v6322
      %v6324 = vrcp.pop %v6290
      %v6325 = vmul.f32 1.0, %v6324
      %v6326 = vrcp.pop %v6291
      %v6327 = vmul.f32 1.0, %v6326
      %v6328 = vrcp.pop %v6292
      %v6329 = vmul.f32 1.0, %v6328
      %v6330 = vrcp.pop %v6293
      %v6331 = vmul.f32 1.0, %v6330
      %v6332 = vrcp.pop %v6294
      %v6333 = vmul.f32 1.0, %v6332
      %v6334 = vrcp.pop %v6295
      %v6335 = vmul.f32 1.0, %v6334
      %v6336 = vrcp.pop %v6296
      %v6337 = vmul.f32 1.0, %v6336
      %v6338 = vrcp.pop %v6297
      %v6339 = vmul.f32 1.0, %v6338
      %v6340 = vrcp.pop %v6298
      %v6341 = vmul.f32 1.0, %v6340
      %v6342 = vrcp.pop %v6299
      %v6343 = vmul.f32 1.0, %v6342
      %v6344 = vrcp.pop %v6300
      %v6345 = vmul.f32 1.0, %v6344
      %v6346 = vrcp.pop %v6301
      %v6347 = vmul.f32 1.0, %v6346
      %v6348 = vrcp.pop %v6302
      %v6349 = vmul.f32 1.0, %v6348
      %v6350 = vrcp.pop %v6303
      %v6351 = vmul.f32 1.0, %v6350
      %v6352 = vrcp.pop %v6304
      %v6353 = vmul.f32 1.0, %v6352
      %v6354 = vrcp.pop %v6305
      %v6355 = vmul.f32 1.0, %v6354
      %v6356 = vrcp.pop %v6306
      %v6357 = vmul.f32 1.0, %v6356
      %v6358 = vrcp.pop %v6307
      %v6359 = vmul.f32 1.0, %v6358
      %v6360 = vrcp.pop %v6308
      %v6361 = vmul.f32 1.0, %v6360
      %v6362 = vrcp.pop %v6309
      %v6363 = vmul.f32 1.0, %v6362
      %v6364 = vrcp.pop %v6310
      %v6365 = vmul.f32 1.0, %v6364
      %v6366 = vrcp.pop %v6311
      %v6367 = vmul.f32 1.0, %v6366
      %v6368 = vrcp.pop %v6312
      %v6369 = vmul.f32 1.0, %v6368
      %v6370 = vrcp.pop %v6313
      %v6371 = vmul.f32 1.0, %v6370
      %v6372 = vrcp.pop %v6314
      %v6373 = vmul.f32 1.0, %v6372
      %v6374 = vrcp.pop %v6315
      %v6375 = vmul.f32 1.0, %v6374
      %v6376 = vrcp.pop %v6316
      %v6377 = vmul.f32 1.0, %v6376
      %v6378 = vrcp.pop %v6317
      %v6379 = vmul.f32 1.0, %v6378
      %v6380 = vrcp.pop %v6318
      %v6381 = vmul.f32 1.0, %v6380
      %v6382 = vrcp.pop %v6319
      %v6383 = vmul.f32 1.0, %v6382
      %v6384 = vmul.f32 %v6066, %v6321
      %v6385 = vmul.f32 %v6069, %v6323
      %v6386 = vmul.f32 %v6074, %v6325
      %v6387 = vmul.f32 %v6077, %v6327
      %v6388 = vmul.f32 %v6082, %v6329
      %v6389 = vmul.f32 %v6085, %v6331
      %v6390 = vmul.f32 %v6090, %v6333
      %v6391 = vmul.f32 %v6093, %v6335
      %v6392 = vmul.f32 %v6098, %v6337
      %v6393 = vmul.f32 %v6101, %v6339
      %v6394 = vmul.f32 %v6106, %v6341
      %v6395 = vmul.f32 %v6109, %v6343
      %v6396 = vmul.f32 %v6114, %v6345
      %v6397 = vmul.f32 %v6117, %v6347
      %v6398 = vmul.f32 %v6122, %v6349
      %v6399 = vmul.f32 %v6125, %v6351
      %v6400 = vmul.f32 %v6130, %v6353
      %v6401 = vmul.f32 %v6133, %v6355
      %v6402 = vmul.f32 %v6138, %v6357
      %v6403 = vmul.f32 %v6141, %v6359
      %v6404 = vmul.f32 %v6146, %v6361
      %v6405 = vmul.f32 %v6149, %v6363
      %v6406 = vmul.f32 %v6154, %v6365
      %v6407 = vmul.f32 %v6157, %v6367
      %v6408 = vmul.f32 %v6162, %v6369
      %v6409 = vmul.f32 %v6165, %v6371
      %v6410 = vmul.f32 %v6170, %v6373
      %v6411 = vmul.f32 %v6173, %v6375
      %v6412 = vmul.f32 %v6178, %v6377
      %v6413 = vmul.f32 %v6181, %v6379
      %v6414 = vmul.f32 %v6186, %v6381
      %v6415 = vmul.f32 %v6189, %v6383
      %v6416 = vunpack.c.l.bf16 %v284
      %v6417 = vunpack.c.l.bf16 %v285
      %v6418 = vunpack.c.l.bf16 %v286
      %v6419 = vunpack.c.l.bf16 %v287
      %v6420 = vunpack.c.l.bf16 %v288
      %v6421 = vunpack.c.l.bf16 %v289
      %v6422 = vunpack.c.l.bf16 %v290
      %v6423 = vunpack.c.l.bf16 %v291
      %v6424 = vunpack.c.l.bf16 %v292
      %v6425 = vunpack.c.l.bf16 %v293
      %v6426 = vunpack.c.l.bf16 %v294
      %v6427 = vunpack.c.l.bf16 %v295
      %v6428 = vunpack.c.l.bf16 %v296
      %v6429 = vunpack.c.l.bf16 %v297
      %v6430 = vunpack.c.l.bf16 %v298
      %v6431 = vunpack.c.l.bf16 %v299
      %v6432 = vunpack.c.l.bf16 %v300
      %v6433 = vunpack.c.l.bf16 %v301
      %v6434 = vunpack.c.l.bf16 %v302
      %v6435 = vunpack.c.l.bf16 %v303
      %v6436 = vunpack.c.l.bf16 %v304
      %v6437 = vunpack.c.l.bf16 %v305
      %v6438 = vunpack.c.l.bf16 %v306
      %v6439 = vunpack.c.l.bf16 %v307
      %v6440 = vunpack.c.l.bf16 %v308
      %v6441 = vunpack.c.l.bf16 %v309
      %v6442 = vunpack.c.l.bf16 %v310
      %v6443 = vunpack.c.l.bf16 %v311
      %v6444 = vunpack.c.l.bf16 %v312
      %v6445 = vunpack.c.l.bf16 %v313
      %v6446 = vunpack.c.l.bf16 %v314
      %v6447 = vunpack.c.l.bf16 %v315
      %v6448 = vadd.f32 %v6384, %v6416
      %v6449 = vadd.f32 %v6385, %v6417
      %v6450 = vadd.f32 %v6386, %v6418
      %v6451 = vadd.f32 %v6387, %v6419
      %v6452 = vadd.f32 %v6388, %v6420
      %v6453 = vadd.f32 %v6389, %v6421
      %v6454 = vadd.f32 %v6390, %v6422
      %v6455 = vadd.f32 %v6391, %v6423
      %v6456 = vadd.f32 %v6392, %v6424
      %v6457 = vadd.f32 %v6393, %v6425
      %v6458 = vadd.f32 %v6394, %v6426
      %v6459 = vadd.f32 %v6395, %v6427
      %v6460 = vadd.f32 %v6396, %v6428
      %v6461 = vadd.f32 %v6397, %v6429
      %v6462 = vadd.f32 %v6398, %v6430
      %v6463 = vadd.f32 %v6399, %v6431
      %v6464 = vadd.f32 %v6400, %v6432
      %v6465 = vadd.f32 %v6401, %v6433
      %v6466 = vadd.f32 %v6402, %v6434
      %v6467 = vadd.f32 %v6403, %v6435
      %v6468 = vadd.f32 %v6404, %v6436
      %v6469 = vadd.f32 %v6405, %v6437
      %v6470 = vadd.f32 %v6406, %v6438
      %v6471 = vadd.f32 %v6407, %v6439
      %v6472 = vadd.f32 %v6408, %v6440
      %v6473 = vadd.f32 %v6409, %v6441
      %v6474 = vadd.f32 %v6410, %v6442
      %v6475 = vadd.f32 %v6411, %v6443
      %v6476 = vadd.f32 %v6412, %v6444
      %v6477 = vadd.f32 %v6413, %v6445
      %v6478 = vadd.f32 %v6414, %v6446
      %v6479 = vadd.f32 %v6415, %v6447
      %v6480 = vpack.c.bf16 %v6449, %v6448
      %v6481 = vpack.c.bf16 %v6451, %v6450
      %v6482 = vpack.c.bf16 %v6453, %v6452
      %v6483 = vpack.c.bf16 %v6455, %v6454
      %v6484 = vpack.c.bf16 %v6457, %v6456
      %v6485 = vpack.c.bf16 %v6459, %v6458
      %v6486 = vpack.c.bf16 %v6461, %v6460
      %v6487 = vpack.c.bf16 %v6463, %v6462
      %v6488 = vpack.c.bf16 %v6465, %v6464
      %v6489 = vpack.c.bf16 %v6467, %v6466
      %v6490 = vpack.c.bf16 %v6469, %v6468
      %v6491 = vpack.c.bf16 %v6471, %v6470
      %v6492 = vpack.c.bf16 %v6473, %v6472
      %v6493 = vpack.c.bf16 %v6475, %v6474
      %v6494 = vpack.c.bf16 %v6477, %v6476
      %v6495 = vpack.c.bf16 %v6479, %v6478
      %v6512 = vunpack.c.l.b16 %v6480
      %v6513 = vunpack.c.h.b16 %v6480
      %v6514 = vunpack.c.l.b16 %v6481
      %v6515 = vunpack.c.h.b16 %v6481
      %v6516 = vunpack.c.l.b16 %v6482
      %v6517 = vunpack.c.h.b16 %v6482
      %v6518 = vunpack.c.l.b16 %v6483
      %v6519 = vunpack.c.h.b16 %v6483
      %v6520 = vunpack.c.l.b16 %v6484
      %v6521 = vunpack.c.h.b16 %v6484
      %v6522 = vunpack.c.l.b16 %v6485
      %v6523 = vunpack.c.h.b16 %v6485
      %v6524 = vunpack.c.l.b16 %v6486
      %v6525 = vunpack.c.h.b16 %v6486
      %v6526 = vunpack.c.l.b16 %v6487
      %v6527 = vunpack.c.h.b16 %v6487
      %v6528 = vunpack.c.l.b16 %v6488
      %v6529 = vunpack.c.h.b16 %v6488
      %v6530 = vunpack.c.l.b16 %v6489
      %v6531 = vunpack.c.h.b16 %v6489
      %v6532 = vunpack.c.l.b16 %v6490
      %v6533 = vunpack.c.h.b16 %v6490
      %v6534 = vunpack.c.l.b16 %v6491
      %v6535 = vunpack.c.h.b16 %v6491
      %v6536 = vunpack.c.l.b16 %v6492
      %v6537 = vunpack.c.h.b16 %v6492
      %v6538 = vunpack.c.l.b16 %v6493
      %v6539 = vunpack.c.h.b16 %v6493
      %v6540 = vunpack.c.l.b16 %v6494
      %v6541 = vunpack.c.h.b16 %v6494
      %v6542 = vunpack.c.l.b16 %v6495
      %v6543 = vunpack.c.h.b16 %v6495
      %v6544 = vpack.c.b16 %v6512, %v6512
      %v6545 = vpack.c.b16 %v6513, %v6513
      %v6546 = vpack.c.b16 %v6514, %v6514
      %v6547 = vpack.c.b16 %v6515, %v6515
      %v6548 = vpack.c.b16 %v6516, %v6516
      %v6549 = vpack.c.b16 %v6517, %v6517
      %v6550 = vpack.c.b16 %v6518, %v6518
      %v6551 = vpack.c.b16 %v6519, %v6519
      %v6552 = vpack.c.b16 %v6520, %v6520
      %v6553 = vpack.c.b16 %v6521, %v6521
      %v6554 = vpack.c.b16 %v6522, %v6522
      %v6555 = vpack.c.b16 %v6523, %v6523
      %v6556 = vpack.c.b16 %v6524, %v6524
      %v6557 = vpack.c.b16 %v6525, %v6525
      %v6558 = vpack.c.b16 %v6526, %v6526
      %v6559 = vpack.c.b16 %v6527, %v6527
      %v6560 = vpack.c.b16 %v6528, %v6528
      %v6561 = vpack.c.b16 %v6529, %v6529
      %v6562 = vpack.c.b16 %v6530, %v6530
      %v6563 = vpack.c.b16 %v6531, %v6531
      %v6564 = vpack.c.b16 %v6532, %v6532
      %v6565 = vpack.c.b16 %v6533, %v6533
      %v6566 = vpack.c.b16 %v6534, %v6534
      %v6567 = vpack.c.b16 %v6535, %v6535
      %v6568 = vpack.c.b16 %v6536, %v6536
      %v6569 = vpack.c.b16 %v6537, %v6537
      %v6570 = vpack.c.b16 %v6538, %v6538
      %v6571 = vpack.c.b16 %v6539, %v6539
      %v6572 = vpack.c.b16 %v6540, %v6540
      %v6573 = vpack.c.b16 %v6541, %v6541
      %v6574 = vpack.c.b16 %v6542, %v6542
      %v6575 = vpack.c.b16 %v6543, %v6543
      %6608 = vst [vmem:[%s224] sm:$0xf] %v6544
      %6609 = vst [vmem:[%s224 + $0x4] sm:$0xf] %v6545
      %6610 = vst [vmem:[%s224 + $0x8] sm:$0xf] %v6546
      %6611 = vst [vmem:[%s224 + $0xc] sm:$0xf] %v6547
      %6612 = vst [vmem:[%s224 + $0x10] sm:$0xf] %v6548
      %6613 = vst [vmem:[%s224 + $0x14] sm:$0xf] %v6549
      %6614 = vst [vmem:[%s224 + $0x18] sm:$0xf] %v6550
      %6615 = vst [vmem:[%s224 + $0x1c] sm:$0xf] %v6551
      %6616 = vst [vmem:[%s224 + $0x20] sm:$0xf] %v6552
      %6617 = vst [vmem:[%s224 + $0x24] sm:$0xf] %v6553
      %6618 = vst [vmem:[%s224 + $0x28] sm:$0xf] %v6554
      %6619 = vst [vmem:[%s224 + $0x2c] sm:$0xf] %v6555
      %6620 = vst [vmem:[%s224 + $0x30] sm:$0xf] %v6556
      %6621 = vst [vmem:[%s224 + $0x34] sm:$0xf] %v6557
      %6622 = vst [vmem:[%s224 + $0x38] sm:$0xf] %v6558
      %6623 = vst [vmem:[%s224 + $0x3c] sm:$0xf] %v6559
      %6624 = vst [vmem:[%s224 + $0x40] sm:$0xf] %v6560
      %6625 = vst [vmem:[%s224 + $0x44] sm:$0xf] %v6561
      %6626 = vst [vmem:[%s224 + $0x48] sm:$0xf] %v6562
      %6627 = vst [vmem:[%s224 + $0x4c] sm:$0xf] %v6563
      %6628 = vst [vmem:[%s224 + $0x50] sm:$0xf] %v6564
      %6629 = vst [vmem:[%s224 + $0x54] sm:$0xf] %v6565
      %6630 = vst [vmem:[%s224 + $0x58] sm:$0xf] %v6566
      %6631 = vst [vmem:[%s224 + $0x5c] sm:$0xf] %v6567
      %6632 = vst [vmem:[%s224 + $0x60] sm:$0xf] %v6568
      %6633 = vst [vmem:[%s224 + $0x64] sm:$0xf] %v6569
      %6634 = vst [vmem:[%s224 + $0x68] sm:$0xf] %v6570
      %6635 = vst [vmem:[%s224 + $0x6c] sm:$0xf] %v6571
      %6636 = vst [vmem:[%s224 + $0x70] sm:$0xf] %v6572
      %6637 = vst [vmem:[%s224 + $0x74] sm:$0xf] %v6573
      %6638 = vst [vmem:[%s224 + $0x78] sm:$0xf] %v6574
      %6639 = vst [vmem:[%s224 + $0x7c] sm:$0xf] %v6575
      %p6640 = scmp.lt.s32.totalorder %s16, 1
      %s6641 = scalar_select %p6640, %s16, 1
      %s6642 = smul.addr %s6641, 32
      %s6643 = smul.addr %s6642, 4
      %s6644 = scalar_lea.vmem %s5, %s6643
      // Predicated region
      $region45: #{_lambda_.4} parent=39 // pred_check
        %p6645 = pneg %p144
      $region46: #{_lambda_.4} parent=39 // pred_check_branch
        %6647 = sbr.rel (%p6645) target = $region48
      $region47: #{_lambda_.4} parent=39 // pred_region
        _
      $region48: #{_lambda_.4} parent=39 // pred_fallthru
        _
    $region40: #{_lambda_.4} parent=5 // pred_fallthru
      _
    %p6648 = scmp.le.s32.totalorder 2, %s11
    // Predicated region
    $region49: #{_lambda_.4} parent=5 // pred_check
      %p6649 = pneg %p6648
    $region50: #{_lambda_.4} parent=5 // pred_check_branch
      %6651 = sbr.rel (%p6649) target = $region52
    $region51: #{_lambda_.4} parent=5 // pred_region
      %s6652 = ssub.s32 %s11, 2
      // Predicated region
      $region53: #{_lambda_.4} parent=51 // pred_check
        %p6653 = pneg %p150
      $region54: #{_lambda_.4} parent=51 // pred_check_branch
        %6655 = sbr.rel (%p6653) target = $region56
      $region55: #{_lambda_.4} parent=51 // pred_region
        %p6656 = scmp.lt.s32.totalorder %s17, 1
        %s6657 = scalar_select %p6656, %s17, 1
        %s6658 = smul.addr %s6657, 32
        %s6659 = smul.addr %s6658, 4
        %s6660 = scalar_lea.vmem %s5, %s6659
      $region56: #{_lambda_.4} parent=51 // pred_fallthru
        _
    $region52: #{_lambda_.4} parent=5 // pred_fallthru
      _
  $region6: #{_lambda_.4} parent=0 // loop_footer
    %s15 = sadd.s32 1, %s11
  $region7: #{_lambda_.4} parent=0 // loop_footer_branch
    %10 = sbr.rel target = $region3
  $region8: #{_lambda_.4} parent=0 // loop_exit
    _

</llo_original>
